<compile_context>
chip_gen: v6e
topology: v6e:2x2x1
jax: 0.10.0
libtpu: 0.0.40
codegen_flags: <defaults>
</compile_context>

<pallas_src>
import functools

import jax
import jax.numpy as jnp
from jax.experimental import pallas as pl
from jax.experimental.pallas import tpu as pltpu

NEG_SLOPE = 0.01     # nn.LeakyReLU default negative_slope
BN_EPS = 1e-5        # nn.BatchNorm2d default eps

_VMEM = pl.BlockSpec(memory_space=pltpu.MemorySpace.VMEM)


# ---------------------------------------------------------------------------
# Fused Pallas kernel: the entire Discriminator forward
# ---------------------------------------------------------------------------
def _disc_kernel(*refs, bn_plan, tail_hf):
    """refs = (x0, [per-conv-layer params ...], tail params ..., out).

    Per conv layer (in order):
        S    (3, N*Ho, N*Hin)      bf16   row-selection per tap (stride+H-pad)
        W    (3, Win*Cin, Wo*Cout) bf16   banded weights per tap (dw+W-pad+chan)
        bias (1, Wo*Cout)          f32
      and, for BN layers:
        gamma, beta (1, Wo*Cout)   f32
        P    (Wo*Cout, Wo*Cout)    f32    group-average projector for BN stats
    Tail: [sel (Hf,N,N*Hf) bf16 if Hf>1], w1 (Hf, Wf*Cf, 1024) bf16,
          b1 (1,1024) f32, w2 (1024,1) bf16, b2 (1,1) f32.
    """
    it = iter(refs[:-1])
    o_ref = refs[-1]

    xb = next(it)[...].astype(jnp.bfloat16)          # (N*H, W*Cin), lanes = (w, c)

    for use_bn in bn_plan:
        s_ref = next(it)
        w_ref = next(it)
        b_ref = next(it)
        if use_bn:
            g_ref = next(it)
            bt_ref = next(it)
            p_ref = next(it)

        # 3x3 conv (pad=1, stride folded into S/W) as 3 tap matmuls, f32 accum.
        y = None
        for dh in range(3):
            rows = jnp.dot(s_ref[dh], xb,
                           preferred_element_type=jnp.float32).astype(jnp.bfloat16)
            part = jnp.dot(rows, w_ref[dh], preferred_element_type=jnp.float32)
            y = part if y is None else y + part
        y = y + b_ref[...]

        if use_bn:
            # training-mode BatchNorm: per-channel stats over (n, ho, wo), f32.
            inv_rows = 1.0 / y.shape[0]
            row_mean = jnp.sum(y, axis=0, keepdims=True) * inv_rows       # (1, Wo*C)
            mean = jnp.dot(row_mean, p_ref[...],
                           preferred_element_type=jnp.float32)            # per-channel
            d = y - mean
            var_row = jnp.sum(d * d, axis=0, keepdims=True) * inv_rows
            var = jnp.dot(var_row, p_ref[...],
                          preferred_element_type=jnp.float32)             # biased var
            y = g_ref[...] * d * jax.lax.rsqrt(var + BN_EPS) + bt_ref[...]

        y = jnp.where(y > 0, y, NEG_SLOPE * y)        # LeakyReLU(0.01), f32
        xb = y.astype(jnp.bfloat16)                   # next layer input (stays in VMEM)

    # Tail: flatten (NCHW order pre-folded into w1 blocks) -> Linear -> LReLU
    #       -> Linear -> Sigmoid (EUP exp + approx reciprocal).
    if tail_hf > 1:
        selt_ref = next(it)
    w1_ref = next(it)
    b1_ref = next(it)
    w2_ref = next(it)
    b2_ref = next(it)

    hidden = None
    for hf_i in range(tail_hf):
        if tail_hf == 1:
            rows = xb                                                     # (N, Wf*Cf)
        else:
            rows = jnp.dot(selt_ref[hf_i], xb,
                           preferred_element_type=jnp.float32).astype(jnp.bfloat16)
        part = jnp.dot(rows, w1_ref[hf_i], preferred_element_type=jnp.float32)
        hidden = part if hidden is None else hidden + part
    hidden = hidden + b1_ref[...]
    hidden = jnp.where(hidden > 0, hidden, NEG_SLOPE * hidden)
    z = jnp.dot(hidden.astype(jnp.bfloat16), w2_ref[...],
                preferred_element_type=jnp.float32) + b2_ref[...]
    o_ref[...] = pl.reciprocal(1.0 + jnp.exp(-z), approx=True)            # sigmoid


# ---------------------------------------------------------------------------
# Host-side constant builders (tiny, run once outside the kernel)
# ---------------------------------------------------------------------------
def _build_w_taps(kernel, w_in, wo, stride):
    """(3, W_in*Cin, Wo*Cout): per-tap banded weight matrix.

    W_dh[w*Cin+ci, wo*Cout+co] = K[co, ci, dh, w - s*wo + 1]  (0 outside the band),
    i.e. the dw shift, the W zero-padding and the channel mixing of the 3x3 conv.
    """
    cout, cin, kh, kw = kernel.shape
    dw = jnp.arange(w_in)[:, None] - stride * jnp.arange(wo)[None, :] + 1   # (Win, Wo)
    valid = (dw >= 0) & (dw < kw)
    dw_c = jnp.clip(dw, 0, kw - 1)
    taps = []
    for dh in range(kh):
        kd = jnp.transpose(kernel[:, :, dh, :], (2, 1, 0))    # (kw, Cin, Cout)
        t = kd[dw_c]                                          # (Win, Wo, Cin, Cout)
        t = jnp.where(valid[:, :, None, None], t, 0.0)
        t = jnp.transpose(t, (0, 2, 1, 3)).reshape(w_in * cin, wo * cout)
        taps.append(t)
    return jnp.stack(taps, axis=0).astype(jnp.bfloat16)


def _build_row_select(n, h_in, ho, stride):
    """(3, N*Ho, N*Hin) 0/1 matrices: tap dh selects input row s*ho + dh - 1
    (block-diagonal over the batch; out-of-range rows give zero padding)."""
    h_idx = jnp.arange(h_in)[None, :]
    eye_n = jnp.eye(n, dtype=jnp.float32)
    taps = []
    for dh in range(3):
        src = stride * jnp.arange(ho)[:, None] + dh - 1       # (Ho, 1)
        onehot = ((src == h_idx) & (src >= 0)).astype(jnp.float32)
        taps.append(jnp.kron(eye_n, onehot))
    return jnp.stack(taps, axis=0).astype(jnp.bfloat16)


def _build_tail_select(n, hf):
    """(Hf, N, N*Hf): selector that pulls row (n, hf) of the final slab."""
    eye_n = jnp.eye(n, dtype=jnp.float32)
    rows = [jnp.kron(eye_n, (jnp.arange(hf) == h).astype(jnp.float32)[None, :])
            for h in range(hf)]
    return jnp.stack(rows, axis=0).astype(jnp.bfloat16)


# ---------------------------------------------------------------------------
# Discriminator forward (single fused pallas_call)
# ---------------------------------------------------------------------------
def discriminator_forward(x_nchw, params, *, num_of_block):
    n, c, h, w = x_nchw.shape
    # layout: public input is NCHW; in-kernel slab is (N*H, W*C), channels minor.
    x2d = jnp.transpose(x_nchw, (0, 2, 3, 1)).astype(jnp.float32).reshape(n * h, w * c)

    layer_defs = [("conv01", 1, False), ("conv02", 2, False)]
    for i in range(num_of_block):
        layer_defs += [(f"block{i}a", 1, True), (f"block{i}b", 2, True)]

    inputs = [x2d]
    bn_plan = []
    h_in, w_in, c_cur = h, w, c
    for name, stride, use_bn in layer_defs:
        p = params[name]
        cout = p["w"].shape[0]
        ho = (h_in - 1) // stride + 1
        wo = (w_in - 1) // stride + 1
        inputs.append(_build_row_select(n, h_in, ho, stride))
        inputs.append(_build_w_taps(p["w"], w_in, wo, stride))
        inputs.append(jnp.tile(p["b"].astype(jnp.float32), (wo,)).reshape(1, wo * cout))
        if use_bn:
            inputs.append(jnp.tile(p["gamma"].astype(jnp.float32), (wo,)).reshape(1, wo * cout))
            inputs.append(jnp.tile(p["beta"].astype(jnp.float32), (wo,)).reshape(1, wo * cout))
            inputs.append(jnp.kron(jnp.full((wo, wo), 1.0 / wo, jnp.float32),
                                   jnp.eye(cout, dtype=jnp.float32)))
        bn_plan.append(use_bn)
        h_in, w_in, c_cur = ho, wo, cout

    # Tail parameters, regrouped so the kernel consumes the (h, (w,c)) slab
    # while matching torch's x.view(-1, linear_size) (c,h,w) flatten order.
    t = params["tail"]
    hf, wf, cf = h_in, w_in, c_cur
    n_hidden = t["w1"].shape[1]
    w1_blocks = jnp.transpose(t["w1"].reshape(cf, hf, wf, n_hidden),
                              (1, 2, 0, 3)).reshape(hf, wf * cf, n_hidden)
    if hf > 1:
        inputs.append(_build_tail_select(n, hf))
    inputs.append(w1_blocks.astype(jnp.bfloat16))
    inputs.append(t["b1"].astype(jnp.float32).reshape(1, -1))
    inputs.append(t["w2"].astype(jnp.bfloat16))
    inputs.append(t["b2"].astype(jnp.float32).reshape(1, -1))

    kernel = functools.partial(_disc_kernel, bn_plan=tuple(bn_plan), tail_hf=hf)
    return pl.pallas_call(
        kernel,
        out_shape=jax.ShapeDtypeStruct((n, 1), jnp.float32),
        in_specs=[_VMEM] * len(inputs),
        out_specs=_VMEM,
    )(*inputs)


# ---------------------------------------------------------------------------
# Pure-JAX (XLA) reference of the same module, for a loose sanity check
# ---------------------------------------------------------------------------
def _reference_forward(x_nchw, params, *, num_of_block):
    def lrelu(v):
        return jnp.where(v > 0, v, NEG_SLOPE * v)

    def conv2d(v, kernel, bias, stride):
        y = jax.lax.conv_general_dilated(
            v, kernel, window_strides=(stride, stride), padding=((1, 1), (1, 1)),
            dimension_numbers=("NCHW", "OIHW", "NCHW"))
        return y + bias.reshape(1, -1, 1, 1)

    def bn(v, gamma, beta):
        mean = jnp.mean(v, axis=(0, 2, 3), keepdims=True)
        var = jnp.mean((v - mean) ** 2, axis=(0, 2, 3), keepdims=True)
        return (gamma.reshape(1, -1, 1, 1) * (v - mean) * jax.lax.rsqrt(var + BN_EPS)
                + beta.reshape(1, -1, 1, 1))

    v = x_nchw.astype(jnp.float32)
    p = params["conv01"]; v = lrelu(conv2d(v, p["w"], p["b"], 1))
    p = params["conv02"]; v = lrelu(conv2d(v, p["w"], p["b"], 2))
    for i in range(num_of_block):
        p = params[f"block{i}a"]
        v = lrelu(bn(conv2d(v, p["w"], p["b"], 1), p["gamma"], p["beta"]))
        p = params[f"block{i}b"]
        v = lrelu(bn(conv2d(v, p["w"], p["b"], 2), p["gamma"], p["beta"]))
    flat = v.reshape(v.shape[0], -1)          # NCHW flatten, same as torch .view
    t = params["tail"]
    hidden = lrelu(flat @ t["w1"] + t["b1"])
    return jax.nn.sigmoid(hidden @ t["w2"] + t["b2"])


# ---------------------------------------------------------------------------
# Deterministic synthetic parameter init
# ---------------------------------------------------------------------------
def init_params(key, *, img_feat, n_feats, num_of_block, patch_size):
    params = {}
    scale = 0.05

    def conv_p(k, cin, cout, bn):
        kw, kb, kg = jax.random.split(k, 3)
        p = {
            "w": scale * jax.random.normal(kw, (cout, cin, 3, 3), jnp.float32),
            "b": scale * jax.random.normal(kb, (cout,), jnp.float32),
        }
        if bn:
            p["gamma"] = 1.0 + scale * jax.random.normal(kg, (cout,), jnp.float32)
            p["beta"] = jnp.zeros((cout,), jnp.float32)
        return p

    keys = jax.random.split(key, 2 + 2 * num_of_block + 2)
    ki = iter(keys)
    params["conv01"] = conv_p(next(ki), img_feat, n_feats, bn=False)
    params["conv02"] = conv_p(next(ki), n_feats, n_feats, bn=False)
    for i in range(num_of_block):
        cin = n_feats * 2 ** i
        cout = n_feats * 2 ** (i + 1)
        params[f"block{i}a"] = conv_p(next(ki), cin, cout, bn=True)
        params[f"block{i}b"] = conv_p(next(ki), cout, cout, bn=True)

    linear_size = (patch_size // 2 ** (num_of_block + 1)) ** 2 * (n_feats * 2 ** num_of_block)
    k1, k2 = next(ki), next(ki)
    params["tail"] = {
        "w1": scale * jax.random.normal(k1, (linear_size, 1024), jnp.float32),
        "b1": jnp.zeros((1024,), jnp.float32),
        "w2": scale * jax.random.normal(k2, (1024, 1), jnp.float32),
        "b2": jnp.zeros((1,), jnp.float32),
    }
    return params, linear_size


# ---------------------------------------------------------------------------
if __name__ == "__main__":
    # small config consistent with the module: img_feat=3, n_feats=8,
    # num_of_block=3, patch_size=16  ->  linear_size = 1*1*64 = 64
    IMG_FEAT, N_FEATS, NUM_BLOCKS, PATCH = 3, 8, 3, 16
    BATCH = 2

    root = jax.random.PRNGKey(0)
    kx, kp = jax.random.split(root)
    x = jax.random.normal(kx, (BATCH, IMG_FEAT, PATCH, PATCH), jnp.float32)  # NCHW
    params, linear_size = init_params(
        kp, img_feat=IMG_FEAT, n_feats=N_FEATS, num_of_block=NUM_BLOCKS, patch_size=PATCH
    )

    out = discriminator_forward(x, params, num_of_block=NUM_BLOCKS)
    out = jax.block_until_ready(out)
    assert out.shape == (BATCH, 1), out.shape
    assert bool(jnp.all(jnp.isfinite(out)))
    assert bool(jnp.all((out > -1e-3) & (out < 1.0 + 1e-3)))

    # Loose sanity check vs the pure-JAX reference (kernel uses bf16 MXU
    # operands + approx reciprocal, so compare with a generous tolerance).
    ref = _reference_forward(x, params, num_of_block=NUM_BLOCKS)
    assert bool(jnp.max(jnp.abs(out - ref)) < 0.2)

    print("KERNEL_OK")
</pallas_src>

<mosaic_0001>
module attributes {stable_mosaic.version = 11 : i64} {
  func.func @_disc_kernel(%arg0: memref<32x48xf32, #tpu.memory_space<vmem>>, %arg1: memref<3x32x32xbf16, #tpu.memory_space<vmem>>, %arg2: memref<3x48x128xbf16, #tpu.memory_space<vmem>>, %arg3: memref<1x128xf32, #tpu.memory_space<vmem>>, %arg4: memref<3x16x32xbf16, #tpu.memory_space<vmem>>, %arg5: memref<3x128x64xbf16, #tpu.memory_space<vmem>>, %arg6: memref<1x64xf32, #tpu.memory_space<vmem>>, %arg7: memref<3x16x16xbf16, #tpu.memory_space<vmem>>, %arg8: memref<3x64x128xbf16, #tpu.memory_space<vmem>>, %arg9: memref<1x128xf32, #tpu.memory_space<vmem>>, %arg10: memref<1x128xf32, #tpu.memory_space<vmem>>, %arg11: memref<1x128xf32, #tpu.memory_space<vmem>>, %arg12: memref<128x128xf32, #tpu.memory_space<vmem>>, %arg13: memref<3x8x16xbf16, #tpu.memory_space<vmem>>, %arg14: memref<3x128x64xbf16, #tpu.memory_space<vmem>>, %arg15: memref<1x64xf32, #tpu.memory_space<vmem>>, %arg16: memref<1x64xf32, #tpu.memory_space<vmem>>, %arg17: memref<1x64xf32, #tpu.memory_space<vmem>>, %arg18: memref<64x64xf32, #tpu.memory_space<vmem>>, %arg19: memref<3x8x8xbf16, #tpu.memory_space<vmem>>, %arg20: memref<3x64x128xbf16, #tpu.memory_space<vmem>>, %arg21: memref<1x128xf32, #tpu.memory_space<vmem>>, %arg22: memref<1x128xf32, #tpu.memory_space<vmem>>, %arg23: memref<1x128xf32, #tpu.memory_space<vmem>>, %arg24: memref<128x128xf32, #tpu.memory_space<vmem>>, %arg25: memref<3x4x8xbf16, #tpu.memory_space<vmem>>, %arg26: memref<3x128x64xbf16, #tpu.memory_space<vmem>>, %arg27: memref<1x64xf32, #tpu.memory_space<vmem>>, %arg28: memref<1x64xf32, #tpu.memory_space<vmem>>, %arg29: memref<1x64xf32, #tpu.memory_space<vmem>>, %arg30: memref<64x64xf32, #tpu.memory_space<vmem>>, %arg31: memref<3x4x4xbf16, #tpu.memory_space<vmem>>, %arg32: memref<3x64x128xbf16, #tpu.memory_space<vmem>>, %arg33: memref<1x128xf32, #tpu.memory_space<vmem>>, %arg34: memref<1x128xf32, #tpu.memory_space<vmem>>, %arg35: memref<1x128xf32, #tpu.memory_space<vmem>>, %arg36: memref<128x128xf32, #tpu.memory_space<vmem>>, %arg37: memref<3x2x4xbf16, #tpu.memory_space<vmem>>, %arg38: memref<3x128x64xbf16, #tpu.memory_space<vmem>>, %arg39: memref<1x64xf32, #tpu.memory_space<vmem>>, %arg40: memref<1x64xf32, #tpu.memory_space<vmem>>, %arg41: memref<1x64xf32, #tpu.memory_space<vmem>>, %arg42: memref<64x64xf32, #tpu.memory_space<vmem>>, %arg43: memref<1x64x1024xbf16, #tpu.memory_space<vmem>>, %arg44: memref<1x1024xf32, #tpu.memory_space<vmem>>, %arg45: memref<1024x1xbf16, #tpu.memory_space<vmem>>, %arg46: memref<1x1xf32, #tpu.memory_space<vmem>>, %arg47: memref<2x1xf32, #tpu.memory_space<vmem>>) attributes {dimension_semantics = [], scalar_prefetch = 0 : i64, scratch_operands = 0 : i64, tpu.core_type = #tpu.core_type<tc>} {
    %c0 = arith.constant 0 : index
    %c0_0 = arith.constant 0 : index
    %0 = vector.load %arg0[%c0, %c0_0] : memref<32x48xf32, #tpu.memory_space<vmem>>, vector<32x48xf32>
    %1 = arith.truncf %0 : vector<32x48xf32> to vector<32x48xbf16>
    %c0_1 = arith.constant 0 : index
    %c0_2 = arith.constant 0 : index
    %c0_3 = arith.constant 0 : index
    %2 = vector.load %arg1[%c0_1, %c0_2, %c0_3] : memref<3x32x32xbf16, #tpu.memory_space<vmem>>, vector<1x32x32xbf16>
    %3 = vector.shape_cast %2 : vector<1x32x32xbf16> to vector<32x32xbf16>
    %cst = arith.constant dense<0.000000e+00> : vector<32x48xf32>
    %4 = tpu.matmul %3, %1, %cst {dimension_numbers = #tpu.dot_dimension_numbers<[1], [0], [0], [1], [0, 0, 1, 1], [], []>} : vector<32x32xbf16>, vector<32x48xbf16>, vector<32x48xf32> -> vector<32x48xf32>
    %5 = arith.truncf %4 : vector<32x48xf32> to vector<32x48xbf16>
    %c0_4 = arith.constant 0 : index
    %c0_5 = arith.constant 0 : index
    %c0_6 = arith.constant 0 : index
    %6 = vector.load %arg2[%c0_4, %c0_5, %c0_6] : memref<3x48x128xbf16, #tpu.memory_space<vmem>>, vector<1x48x128xbf16>
    %7 = vector.shape_cast %6 : vector<1x48x128xbf16> to vector<48x128xbf16>
    %cst_7 = arith.constant dense<0.000000e+00> : vector<32x128xf32>
    %8 = tpu.matmul %5, %7, %cst_7 {dimension_numbers = #tpu.dot_dimension_numbers<[1], [0], [0], [1], [0, 0, 1, 1], [], []>} : vector<32x48xbf16>, vector<48x128xbf16>, vector<32x128xf32> -> vector<32x128xf32>
    %c1 = arith.constant 1 : index
    %c0_8 = arith.constant 0 : index
    %c0_9 = arith.constant 0 : index
    %9 = vector.load %arg1[%c1, %c0_8, %c0_9] : memref<3x32x32xbf16, #tpu.memory_space<vmem>>, vector<1x32x32xbf16>
    %10 = vector.shape_cast %9 : vector<1x32x32xbf16> to vector<32x32xbf16>
    %cst_10 = arith.constant dense<0.000000e+00> : vector<32x48xf32>
    %11 = tpu.matmul %10, %1, %cst_10 {dimension_numbers = #tpu.dot_dimension_numbers<[1], [0], [0], [1], [0, 0, 1, 1], [], []>} : vector<32x32xbf16>, vector<32x48xbf16>, vector<32x48xf32> -> vector<32x48xf32>
    %12 = arith.truncf %11 : vector<32x48xf32> to vector<32x48xbf16>
    %c1_11 = arith.constant 1 : index
    %c0_12 = arith.constant 0 : index
    %c0_13 = arith.constant 0 : index
    %13 = vector.load %arg2[%c1_11, %c0_12, %c0_13] : memref<3x48x128xbf16, #tpu.memory_space<vmem>>, vector<1x48x128xbf16>
    %14 = vector.shape_cast %13 : vector<1x48x128xbf16> to vector<48x128xbf16>
    %cst_14 = arith.constant dense<0.000000e+00> : vector<32x128xf32>
    %15 = tpu.matmul %12, %14, %cst_14 {dimension_numbers = #tpu.dot_dimension_numbers<[1], [0], [0], [1], [0, 0, 1, 1], [], []>} : vector<32x48xbf16>, vector<48x128xbf16>, vector<32x128xf32> -> vector<32x128xf32>
    %16 = arith.addf %8, %15 : vector<32x128xf32>
    %c2 = arith.constant 2 : index
    %c0_15 = arith.constant 0 : index
    %c0_16 = arith.constant 0 : index
    %17 = vector.load %arg1[%c2, %c0_15, %c0_16] : memref<3x32x32xbf16, #tpu.memory_space<vmem>>, vector<1x32x32xbf16>
    %18 = vector.shape_cast %17 : vector<1x32x32xbf16> to vector<32x32xbf16>
    %cst_17 = arith.constant dense<0.000000e+00> : vector<32x48xf32>
    %19 = tpu.matmul %18, %1, %cst_17 {dimension_numbers = #tpu.dot_dimension_numbers<[1], [0], [0], [1], [0, 0, 1, 1], [], []>} : vector<32x32xbf16>, vector<32x48xbf16>, vector<32x48xf32> -> vector<32x48xf32>
    %20 = arith.truncf %19 : vector<32x48xf32> to vector<32x48xbf16>
    %c2_18 = arith.constant 2 : index
    %c0_19 = arith.constant 0 : index
    %c0_20 = arith.constant 0 : index
    %21 = vector.load %arg2[%c2_18, %c0_19, %c0_20] : memref<3x48x128xbf16, #tpu.memory_space<vmem>>, vector<1x48x128xbf16>
    %22 = vector.shape_cast %21 : vector<1x48x128xbf16> to vector<48x128xbf16>
    %cst_21 = arith.constant dense<0.000000e+00> : vector<32x128xf32>
    %23 = tpu.matmul %20, %22, %cst_21 {dimension_numbers = #tpu.dot_dimension_numbers<[1], [0], [0], [1], [0, 0, 1, 1], [], []>} : vector<32x48xbf16>, vector<48x128xbf16>, vector<32x128xf32> -> vector<32x128xf32>
    %24 = arith.addf %16, %23 : vector<32x128xf32>
    %c0_22 = arith.constant 0 : index
    %c0_23 = arith.constant 0 : index
    %25 = vector.load %arg3[%c0_22, %c0_23] : memref<1x128xf32, #tpu.memory_space<vmem>>, vector<1x128xf32>
    %26 = vector.broadcast %25 : vector<1x128xf32> to vector<32x128xf32>
    %27 = arith.addf %24, %26 : vector<32x128xf32>
    %cst_24 = arith.constant 0.000000e+00 : f32
    %28 = vector.broadcast %cst_24 : f32 to vector<32x128xf32>
    %29 = arith.cmpf ogt, %27, %28 : vector<32x128xf32>
    %cst_25 = arith.constant 0.00999999977 : f32
    %30 = vector.broadcast %cst_25 : f32 to vector<32x128xf32>
    %31 = arith.mulf %30, %27 : vector<32x128xf32>
    %32 = arith.select %29, %27, %31 : vector<32x128xi1>, vector<32x128xf32>
    %33 = arith.truncf %32 : vector<32x128xf32> to vector<32x128xbf16>
    %c0_26 = arith.constant 0 : index
    %c0_27 = arith.constant 0 : index
    %c0_28 = arith.constant 0 : index
    %34 = vector.load %arg4[%c0_26, %c0_27, %c0_28] : memref<3x16x32xbf16, #tpu.memory_space<vmem>>, vector<1x16x32xbf16>
    %35 = vector.shape_cast %34 : vector<1x16x32xbf16> to vector<16x32xbf16>
    %cst_29 = arith.constant dense<0.000000e+00> : vector<16x128xf32>
    %36 = tpu.matmul %35, %33, %cst_29 {dimension_numbers = #tpu.dot_dimension_numbers<[1], [0], [0], [1], [0, 0, 1, 1], [], []>} : vector<16x32xbf16>, vector<32x128xbf16>, vector<16x128xf32> -> vector<16x128xf32>
    %37 = arith.truncf %36 : vector<16x128xf32> to vector<16x128xbf16>
    %c0_30 = arith.constant 0 : index
    %c0_31 = arith.constant 0 : index
    %c0_32 = arith.constant 0 : index
    %38 = vector.load %arg5[%c0_30, %c0_31, %c0_32] : memref<3x128x64xbf16, #tpu.memory_space<vmem>>, vector<1x128x64xbf16>
    %39 = vector.shape_cast %38 : vector<1x128x64xbf16> to vector<128x64xbf16>
    %cst_33 = arith.constant dense<0.000000e+00> : vector<16x64xf32>
    %40 = tpu.matmul %37, %39, %cst_33 {dimension_numbers = #tpu.dot_dimension_numbers<[1], [0], [0], [1], [0, 0, 1, 1], [], []>} : vector<16x128xbf16>, vector<128x64xbf16>, vector<16x64xf32> -> vector<16x64xf32>
    %c1_34 = arith.constant 1 : index
    %c0_35 = arith.constant 0 : index
    %c0_36 = arith.constant 0 : index
    %41 = vector.load %arg4[%c1_34, %c0_35, %c0_36] : memref<3x16x32xbf16, #tpu.memory_space<vmem>>, vector<1x16x32xbf16>
    %42 = vector.shape_cast %41 : vector<1x16x32xbf16> to vector<16x32xbf16>
    %cst_37 = arith.constant dense<0.000000e+00> : vector<16x128xf32>
    %43 = tpu.matmul %42, %33, %cst_37 {dimension_numbers = #tpu.dot_dimension_numbers<[1], [0], [0], [1], [0, 0, 1, 1], [], []>} : vector<16x32xbf16>, vector<32x128xbf16>, vector<16x128xf32> -> vector<16x128xf32>
    %44 = arith.truncf %43 : vector<16x128xf32> to vector<16x128xbf16>
    %c1_38 = arith.constant 1 : index
    %c0_39 = arith.constant 0 : index
    %c0_40 = arith.constant 0 : index
    %45 = vector.load %arg5[%c1_38, %c0_39, %c0_40] : memref<3x128x64xbf16, #tpu.memory_space<vmem>>, vector<1x128x64xbf16>
    %46 = vector.shape_cast %45 : vector<1x128x64xbf16> to vector<128x64xbf16>
    %cst_41 = arith.constant dense<0.000000e+00> : vector<16x64xf32>
    %47 = tpu.matmul %44, %46, %cst_41 {dimension_numbers = #tpu.dot_dimension_numbers<[1], [0], [0], [1], [0, 0, 1, 1], [], []>} : vector<16x128xbf16>, vector<128x64xbf16>, vector<16x64xf32> -> vector<16x64xf32>
    %48 = arith.addf %40, %47 : vector<16x64xf32>
    %c2_42 = arith.constant 2 : index
    %c0_43 = arith.constant 0 : index
    %c0_44 = arith.constant 0 : index
    %49 = vector.load %arg4[%c2_42, %c0_43, %c0_44] : memref<3x16x32xbf16, #tpu.memory_space<vmem>>, vector<1x16x32xbf16>
    %50 = vector.shape_cast %49 : vector<1x16x32xbf16> to vector<16x32xbf16>
    %cst_45 = arith.constant dense<0.000000e+00> : vector<16x128xf32>
    %51 = tpu.matmul %50, %33, %cst_45 {dimension_numbers = #tpu.dot_dimension_numbers<[1], [0], [0], [1], [0, 0, 1, 1], [], []>} : vector<16x32xbf16>, vector<32x128xbf16>, vector<16x128xf32> -> vector<16x128xf32>
    %52 = arith.truncf %51 : vector<16x128xf32> to vector<16x128xbf16>
    %c2_46 = arith.constant 2 : index
    %c0_47 = arith.constant 0 : index
    %c0_48 = arith.constant 0 : index
    %53 = vector.load %arg5[%c2_46, %c0_47, %c0_48] : memref<3x128x64xbf16, #tpu.memory_space<vmem>>, vector<1x128x64xbf16>
    %54 = vector.shape_cast %53 : vector<1x128x64xbf16> to vector<128x64xbf16>
    %cst_49 = arith.constant dense<0.000000e+00> : vector<16x64xf32>
    %55 = tpu.matmul %52, %54, %cst_49 {dimension_numbers = #tpu.dot_dimension_numbers<[1], [0], [0], [1], [0, 0, 1, 1], [], []>} : vector<16x128xbf16>, vector<128x64xbf16>, vector<16x64xf32> -> vector<16x64xf32>
    %56 = arith.addf %48, %55 : vector<16x64xf32>
    %c0_50 = arith.constant 0 : index
    %c0_51 = arith.constant 0 : index
    %57 = vector.load %arg6[%c0_50, %c0_51] : memref<1x64xf32, #tpu.memory_space<vmem>>, vector<1x64xf32>
    %58 = vector.broadcast %57 : vector<1x64xf32> to vector<16x64xf32>
    %59 = arith.addf %56, %58 : vector<16x64xf32>
    %cst_52 = arith.constant 0.000000e+00 : f32
    %60 = vector.broadcast %cst_52 : f32 to vector<16x64xf32>
    %61 = arith.cmpf ogt, %59, %60 : vector<16x64xf32>
    %cst_53 = arith.constant 0.00999999977 : f32
    %62 = vector.broadcast %cst_53 : f32 to vector<16x64xf32>
    %63 = arith.mulf %62, %59 : vector<16x64xf32>
    %64 = arith.select %61, %59, %63 : vector<16x64xi1>, vector<16x64xf32>
    %65 = arith.truncf %64 : vector<16x64xf32> to vector<16x64xbf16>
    %c0_54 = arith.constant 0 : index
    %c0_55 = arith.constant 0 : index
    %c0_56 = arith.constant 0 : index
    %66 = vector.load %arg7[%c0_54, %c0_55, %c0_56] : memref<3x16x16xbf16, #tpu.memory_space<vmem>>, vector<1x16x16xbf16>
    %67 = vector.shape_cast %66 : vector<1x16x16xbf16> to vector<16x16xbf16>
    %cst_57 = arith.constant dense<0.000000e+00> : vector<16x64xf32>
    %68 = tpu.matmul %67, %65, %cst_57 {dimension_numbers = #tpu.dot_dimension_numbers<[1], [0], [0], [1], [0, 0, 1, 1], [], []>} : vector<16x16xbf16>, vector<16x64xbf16>, vector<16x64xf32> -> vector<16x64xf32>
    %69 = arith.truncf %68 : vector<16x64xf32> to vector<16x64xbf16>
    %c0_58 = arith.constant 0 : index
    %c0_59 = arith.constant 0 : index
    %c0_60 = arith.constant 0 : index
    %70 = vector.load %arg8[%c0_58, %c0_59, %c0_60] : memref<3x64x128xbf16, #tpu.memory_space<vmem>>, vector<1x64x128xbf16>
    %71 = vector.shape_cast %70 : vector<1x64x128xbf16> to vector<64x128xbf16>
    %cst_61 = arith.constant dense<0.000000e+00> : vector<16x128xf32>
    %72 = tpu.matmul %69, %71, %cst_61 {dimension_numbers = #tpu.dot_dimension_numbers<[1], [0], [0], [1], [0, 0, 1, 1], [], []>} : vector<16x64xbf16>, vector<64x128xbf16>, vector<16x128xf32> -> vector<16x128xf32>
    %c1_62 = arith.constant 1 : index
    %c0_63 = arith.constant 0 : index
    %c0_64 = arith.constant 0 : index
    %73 = vector.load %arg7[%c1_62, %c0_63, %c0_64] : memref<3x16x16xbf16, #tpu.memory_space<vmem>>, vector<1x16x16xbf16>
    %74 = vector.shape_cast %73 : vector<1x16x16xbf16> to vector<16x16xbf16>
    %cst_65 = arith.constant dense<0.000000e+00> : vector<16x64xf32>
    %75 = tpu.matmul %74, %65, %cst_65 {dimension_numbers = #tpu.dot_dimension_numbers<[1], [0], [0], [1], [0, 0, 1, 1], [], []>} : vector<16x16xbf16>, vector<16x64xbf16>, vector<16x64xf32> -> vector<16x64xf32>
    %76 = arith.truncf %75 : vector<16x64xf32> to vector<16x64xbf16>
    %c1_66 = arith.constant 1 : index
    %c0_67 = arith.constant 0 : index
    %c0_68 = arith.constant 0 : index
    %77 = vector.load %arg8[%c1_66, %c0_67, %c0_68] : memref<3x64x128xbf16, #tpu.memory_space<vmem>>, vector<1x64x128xbf16>
    %78 = vector.shape_cast %77 : vector<1x64x128xbf16> to vector<64x128xbf16>
    %cst_69 = arith.constant dense<0.000000e+00> : vector<16x128xf32>
    %79 = tpu.matmul %76, %78, %cst_69 {dimension_numbers = #tpu.dot_dimension_numbers<[1], [0], [0], [1], [0, 0, 1, 1], [], []>} : vector<16x64xbf16>, vector<64x128xbf16>, vector<16x128xf32> -> vector<16x128xf32>
    %80 = arith.addf %72, %79 : vector<16x128xf32>
    %c2_70 = arith.constant 2 : index
    %c0_71 = arith.constant 0 : index
    %c0_72 = arith.constant 0 : index
    %81 = vector.load %arg7[%c2_70, %c0_71, %c0_72] : memref<3x16x16xbf16, #tpu.memory_space<vmem>>, vector<1x16x16xbf16>
    %82 = vector.shape_cast %81 : vector<1x16x16xbf16> to vector<16x16xbf16>
    %cst_73 = arith.constant dense<0.000000e+00> : vector<16x64xf32>
    %83 = tpu.matmul %82, %65, %cst_73 {dimension_numbers = #tpu.dot_dimension_numbers<[1], [0], [0], [1], [0, 0, 1, 1], [], []>} : vector<16x16xbf16>, vector<16x64xbf16>, vector<16x64xf32> -> vector<16x64xf32>
    %84 = arith.truncf %83 : vector<16x64xf32> to vector<16x64xbf16>
    %c2_74 = arith.constant 2 : index
    %c0_75 = arith.constant 0 : index
    %c0_76 = arith.constant 0 : index
    %85 = vector.load %arg8[%c2_74, %c0_75, %c0_76] : memref<3x64x128xbf16, #tpu.memory_space<vmem>>, vector<1x64x128xbf16>
    %86 = vector.shape_cast %85 : vector<1x64x128xbf16> to vector<64x128xbf16>
    %cst_77 = arith.constant dense<0.000000e+00> : vector<16x128xf32>
    %87 = tpu.matmul %84, %86, %cst_77 {dimension_numbers = #tpu.dot_dimension_numbers<[1], [0], [0], [1], [0, 0, 1, 1], [], []>} : vector<16x64xbf16>, vector<64x128xbf16>, vector<16x128xf32> -> vector<16x128xf32>
    %88 = arith.addf %80, %87 : vector<16x128xf32>
    %c0_78 = arith.constant 0 : index
    %c0_79 = arith.constant 0 : index
    %89 = vector.load %arg9[%c0_78, %c0_79] : memref<1x128xf32, #tpu.memory_space<vmem>>, vector<1x128xf32>
    %90 = vector.broadcast %89 : vector<1x128xf32> to vector<16x128xf32>
    %91 = arith.addf %88, %90 : vector<16x128xf32>
    %cst_80 = arith.constant dense<0.000000e+00> : vector<128xf32>
    %92 = vector.multi_reduction <add>, %91, %cst_80 [0] : vector<16x128xf32> to vector<128xf32>
    %93 = vector.shape_cast %92 : vector<128xf32> to vector<1x128xf32>
    %cst_81 = arith.constant 6.250000e-02 : f32
    %94 = vector.broadcast %cst_81 : f32 to vector<1x128xf32>
    %95 = arith.mulf %93, %94 : vector<1x128xf32>
    %c0_82 = arith.constant 0 : index
    %c0_83 = arith.constant 0 : index
    %96 = vector.load %arg12[%c0_82, %c0_83] : memref<128x128xf32, #tpu.memory_space<vmem>>, vector<128x128xf32>
    %cst_84 = arith.constant dense<0.000000e+00> : vector<1x128xf32>
    %97 = tpu.matmul %95, %96, %cst_84 {dimension_numbers = #tpu.dot_dimension_numbers<[1], [0], [0], [1], [0, 0, 1, 1], [], []>} : vector<1x128xf32>, vector<128x128xf32>, vector<1x128xf32> -> vector<1x128xf32>
    %98 = vector.broadcast %97 : vector<1x128xf32> to vector<16x128xf32>
    %99 = arith.subf %91, %98 : vector<16x128xf32>
    %100 = arith.mulf %99, %99 : vector<16x128xf32>
    %cst_85 = arith.constant dense<0.000000e+00> : vector<128xf32>
    %101 = vector.multi_reduction <add>, %100, %cst_85 [0] : vector<16x128xf32> to vector<128xf32>
    %102 = vector.shape_cast %101 : vector<128xf32> to vector<1x128xf32>
    %cst_86 = arith.constant 6.250000e-02 : f32
    %103 = vector.broadcast %cst_86 : f32 to vector<1x128xf32>
    %104 = arith.mulf %102, %103 : vector<1x128xf32>
    %c0_87 = arith.constant 0 : index
    %c0_88 = arith.constant 0 : index
    %105 = vector.load %arg12[%c0_87, %c0_88] : memref<128x128xf32, #tpu.memory_space<vmem>>, vector<128x128xf32>
    %cst_89 = arith.constant dense<0.000000e+00> : vector<1x128xf32>
    %106 = tpu.matmul %104, %105, %cst_89 {dimension_numbers = #tpu.dot_dimension_numbers<[1], [0], [0], [1], [0, 0, 1, 1], [], []>} : vector<1x128xf32>, vector<128x128xf32>, vector<1x128xf32> -> vector<1x128xf32>
    %c0_90 = arith.constant 0 : index
    %c0_91 = arith.constant 0 : index
    %107 = vector.load %arg10[%c0_90, %c0_91] : memref<1x128xf32, #tpu.memory_space<vmem>>, vector<1x128xf32>
    %108 = vector.broadcast %107 : vector<1x128xf32> to vector<16x128xf32>
    %109 = arith.mulf %108, %99 : vector<16x128xf32>
    %cst_92 = arith.constant 9.99999974E-6 : f32
    %110 = vector.broadcast %cst_92 : f32 to vector<1x128xf32>
    %111 = arith.addf %106, %110 : vector<1x128xf32>
    %112 = math.rsqrt %111 : vector<1x128xf32>
    %113 = vector.broadcast %112 : vector<1x128xf32> to vector<16x128xf32>
    %114 = arith.mulf %109, %113 : vector<16x128xf32>
    %c0_93 = arith.constant 0 : index
    %c0_94 = arith.constant 0 : index
    %115 = vector.load %arg11[%c0_93, %c0_94] : memref<1x128xf32, #tpu.memory_space<vmem>>, vector<1x128xf32>
    %116 = vector.broadcast %115 : vector<1x128xf32> to vector<16x128xf32>
    %117 = arith.addf %114, %116 : vector<16x128xf32>
    %cst_95 = arith.constant 0.000000e+00 : f32
    %118 = vector.broadcast %cst_95 : f32 to vector<16x128xf32>
    %119 = arith.cmpf ogt, %117, %118 : vector<16x128xf32>
    %cst_96 = arith.constant 0.00999999977 : f32
    %120 = vector.broadcast %cst_96 : f32 to vector<16x128xf32>
    %121 = arith.mulf %120, %117 : vector<16x128xf32>
    %122 = arith.select %119, %117, %121 : vector<16x128xi1>, vector<16x128xf32>
    %123 = arith.truncf %122 : vector<16x128xf32> to vector<16x128xbf16>
    %c0_97 = arith.constant 0 : index
    %c0_98 = arith.constant 0 : index
    %c0_99 = arith.constant 0 : index
    %124 = vector.load %arg13[%c0_97, %c0_98, %c0_99] : memref<3x8x16xbf16, #tpu.memory_space<vmem>>, vector<1x8x16xbf16>
    %125 = vector.shape_cast %124 : vector<1x8x16xbf16> to vector<8x16xbf16>
    %cst_100 = arith.constant dense<0.000000e+00> : vector<8x128xf32>
    %126 = tpu.matmul %125, %123, %cst_100 {dimension_numbers = #tpu.dot_dimension_numbers<[1], [0], [0], [1], [0, 0, 1, 1], [], []>} : vector<8x16xbf16>, vector<16x128xbf16>, vector<8x128xf32> -> vector<8x128xf32>
    %127 = arith.truncf %126 : vector<8x128xf32> to vector<8x128xbf16>
    %c0_101 = arith.constant 0 : index
    %c0_102 = arith.constant 0 : index
    %c0_103 = arith.constant 0 : index
    %128 = vector.load %arg14[%c0_101, %c0_102, %c0_103] : memref<3x128x64xbf16, #tpu.memory_space<vmem>>, vector<1x128x64xbf16>
    %129 = vector.shape_cast %128 : vector<1x128x64xbf16> to vector<128x64xbf16>
    %cst_104 = arith.constant dense<0.000000e+00> : vector<8x64xf32>
    %130 = tpu.matmul %127, %129, %cst_104 {dimension_numbers = #tpu.dot_dimension_numbers<[1], [0], [0], [1], [0, 0, 1, 1], [], []>} : vector<8x128xbf16>, vector<128x64xbf16>, vector<8x64xf32> -> vector<8x64xf32>
    %c1_105 = arith.constant 1 : index
    %c0_106 = arith.constant 0 : index
    %c0_107 = arith.constant 0 : index
    %131 = vector.load %arg13[%c1_105, %c0_106, %c0_107] : memref<3x8x16xbf16, #tpu.memory_space<vmem>>, vector<1x8x16xbf16>
    %132 = vector.shape_cast %131 : vector<1x8x16xbf16> to vector<8x16xbf16>
    %cst_108 = arith.constant dense<0.000000e+00> : vector<8x128xf32>
    %133 = tpu.matmul %132, %123, %cst_108 {dimension_numbers = #tpu.dot_dimension_numbers<[1], [0], [0], [1], [0, 0, 1, 1], [], []>} : vector<8x16xbf16>, vector<16x128xbf16>, vector<8x128xf32> -> vector<8x128xf32>
    %134 = arith.truncf %133 : vector<8x128xf32> to vector<8x128xbf16>
    %c1_109 = arith.constant 1 : index
    %c0_110 = arith.constant 0 : index
    %c0_111 = arith.constant 0 : index
    %135 = vector.load %arg14[%c1_109, %c0_110, %c0_111] : memref<3x128x64xbf16, #tpu.memory_space<vmem>>, vector<1x128x64xbf16>
    %136 = vector.shape_cast %135 : vector<1x128x64xbf16> to vector<128x64xbf16>
    %cst_112 = arith.constant dense<0.000000e+00> : vector<8x64xf32>
    %137 = tpu.matmul %134, %136, %cst_112 {dimension_numbers = #tpu.dot_dimension_numbers<[1], [0], [0], [1], [0, 0, 1, 1], [], []>} : vector<8x128xbf16>, vector<128x64xbf16>, vector<8x64xf32> -> vector<8x64xf32>
    %138 = arith.addf %130, %137 : vector<8x64xf32>
    %c2_113 = arith.constant 2 : index
    %c0_114 = arith.constant 0 : index
    %c0_115 = arith.constant 0 : index
    %139 = vector.load %arg13[%c2_113, %c0_114, %c0_115] : memref<3x8x16xbf16, #tpu.memory_space<vmem>>, vector<1x8x16xbf16>
    %140 = vector.shape_cast %139 : vector<1x8x16xbf16> to vector<8x16xbf16>
    %cst_116 = arith.constant dense<0.000000e+00> : vector<8x128xf32>
    %141 = tpu.matmul %140, %123, %cst_116 {dimension_numbers = #tpu.dot_dimension_numbers<[1], [0], [0], [1], [0, 0, 1, 1], [], []>} : vector<8x16xbf16>, vector<16x128xbf16>, vector<8x128xf32> -> vector<8x128xf32>
    %142 = arith.truncf %141 : vector<8x128xf32> to vector<8x128xbf16>
    %c2_117 = arith.constant 2 : index
    %c0_118 = arith.constant 0 : index
    %c0_119 = arith.constant 0 : index
    %143 = vector.load %arg14[%c2_117, %c0_118, %c0_119] : memref<3x128x64xbf16, #tpu.memory_space<vmem>>, vector<1x128x64xbf16>
    %144 = vector.shape_cast %143 : vector<1x128x64xbf16> to vector<128x64xbf16>
    %cst_120 = arith.constant dense<0.000000e+00> : vector<8x64xf32>
    %145 = tpu.matmul %142, %144, %cst_120 {dimension_numbers = #tpu.dot_dimension_numbers<[1], [0], [0], [1], [0, 0, 1, 1], [], []>} : vector<8x128xbf16>, vector<128x64xbf16>, vector<8x64xf32> -> vector<8x64xf32>
    %146 = arith.addf %138, %145 : vector<8x64xf32>
    %c0_121 = arith.constant 0 : index
    %c0_122 = arith.constant 0 : index
    %147 = vector.load %arg15[%c0_121, %c0_122] : memref<1x64xf32, #tpu.memory_space<vmem>>, vector<1x64xf32>
    %148 = vector.broadcast %147 : vector<1x64xf32> to vector<8x64xf32>
    %149 = arith.addf %146, %148 : vector<8x64xf32>
    %cst_123 = arith.constant dense<0.000000e+00> : vector<64xf32>
    %150 = vector.multi_reduction <add>, %149, %cst_123 [0] : vector<8x64xf32> to vector<64xf32>
    %151 = vector.shape_cast %150 : vector<64xf32> to vector<1x64xf32>
    %cst_124 = arith.constant 1.250000e-01 : f32
    %152 = vector.broadcast %cst_124 : f32 to vector<1x64xf32>
    %153 = arith.mulf %151, %152 : vector<1x64xf32>
    %c0_125 = arith.constant 0 : index
    %c0_126 = arith.constant 0 : index
    %154 = vector.load %arg18[%c0_125, %c0_126] : memref<64x64xf32, #tpu.memory_space<vmem>>, vector<64x64xf32>
    %cst_127 = arith.constant dense<0.000000e+00> : vector<1x64xf32>
    %155 = tpu.matmul %153, %154, %cst_127 {dimension_numbers = #tpu.dot_dimension_numbers<[1], [0], [0], [1], [0, 0, 1, 1], [], []>} : vector<1x64xf32>, vector<64x64xf32>, vector<1x64xf32> -> vector<1x64xf32>
    %156 = vector.broadcast %155 : vector<1x64xf32> to vector<8x64xf32>
    %157 = arith.subf %149, %156 : vector<8x64xf32>
    %158 = arith.mulf %157, %157 : vector<8x64xf32>
    %cst_128 = arith.constant dense<0.000000e+00> : vector<64xf32>
    %159 = vector.multi_reduction <add>, %158, %cst_128 [0] : vector<8x64xf32> to vector<64xf32>
    %160 = vector.shape_cast %159 : vector<64xf32> to vector<1x64xf32>
    %cst_129 = arith.constant 1.250000e-01 : f32
    %161 = vector.broadcast %cst_129 : f32 to vector<1x64xf32>
    %162 = arith.mulf %160, %161 : vector<1x64xf32>
    %c0_130 = arith.constant 0 : index
    %c0_131 = arith.constant 0 : index
    %163 = vector.load %arg18[%c0_130, %c0_131] : memref<64x64xf32, #tpu.memory_space<vmem>>, vector<64x64xf32>
    %cst_132 = arith.constant dense<0.000000e+00> : vector<1x64xf32>
    %164 = tpu.matmul %162, %163, %cst_132 {dimension_numbers = #tpu.dot_dimension_numbers<[1], [0], [0], [1], [0, 0, 1, 1], [], []>} : vector<1x64xf32>, vector<64x64xf32>, vector<1x64xf32> -> vector<1x64xf32>
    %c0_133 = arith.constant 0 : index
    %c0_134 = arith.constant 0 : index
    %165 = vector.load %arg16[%c0_133, %c0_134] : memref<1x64xf32, #tpu.memory_space<vmem>>, vector<1x64xf32>
    %166 = vector.broadcast %165 : vector<1x64xf32> to vector<8x64xf32>
    %167 = arith.mulf %166, %157 : vector<8x64xf32>
    %cst_135 = arith.constant 9.99999974E-6 : f32
    %168 = vector.broadcast %cst_135 : f32 to vector<1x64xf32>
    %169 = arith.addf %164, %168 : vector<1x64xf32>
    %170 = math.rsqrt %169 : vector<1x64xf32>
    %171 = vector.broadcast %170 : vector<1x64xf32> to vector<8x64xf32>
    %172 = arith.mulf %167, %171 : vector<8x64xf32>
    %c0_136 = arith.constant 0 : index
    %c0_137 = arith.constant 0 : index
    %173 = vector.load %arg17[%c0_136, %c0_137] : memref<1x64xf32, #tpu.memory_space<vmem>>, vector<1x64xf32>
    %174 = vector.broadcast %173 : vector<1x64xf32> to vector<8x64xf32>
    %175 = arith.addf %172, %174 : vector<8x64xf32>
    %cst_138 = arith.constant 0.000000e+00 : f32
    %176 = vector.broadcast %cst_138 : f32 to vector<8x64xf32>
    %177 = arith.cmpf ogt, %175, %176 : vector<8x64xf32>
    %cst_139 = arith.constant 0.00999999977 : f32
    %178 = vector.broadcast %cst_139 : f32 to vector<8x64xf32>
    %179 = arith.mulf %178, %175 : vector<8x64xf32>
    %180 = arith.select %177, %175, %179 : vector<8x64xi1>, vector<8x64xf32>
    %181 = arith.truncf %180 : vector<8x64xf32> to vector<8x64xbf16>
    %c0_140 = arith.constant 0 : index
    %c0_141 = arith.constant 0 : index
    %c0_142 = arith.constant 0 : index
    %182 = vector.load %arg19[%c0_140, %c0_141, %c0_142] : memref<3x8x8xbf16, #tpu.memory_space<vmem>>, vector<1x8x8xbf16>
    %183 = vector.shape_cast %182 : vector<1x8x8xbf16> to vector<8x8xbf16>
    %cst_143 = arith.constant dense<0.000000e+00> : vector<8x64xf32>
    %184 = tpu.matmul %183, %181, %cst_143 {dimension_numbers = #tpu.dot_dimension_numbers<[1], [0], [0], [1], [0, 0, 1, 1], [], []>} : vector<8x8xbf16>, vector<8x64xbf16>, vector<8x64xf32> -> vector<8x64xf32>
    %185 = arith.truncf %184 : vector<8x64xf32> to vector<8x64xbf16>
    %c0_144 = arith.constant 0 : index
    %c0_145 = arith.constant 0 : index
    %c0_146 = arith.constant 0 : index
    %186 = vector.load %arg20[%c0_144, %c0_145, %c0_146] : memref<3x64x128xbf16, #tpu.memory_space<vmem>>, vector<1x64x128xbf16>
    %187 = vector.shape_cast %186 : vector<1x64x128xbf16> to vector<64x128xbf16>
    %cst_147 = arith.constant dense<0.000000e+00> : vector<8x128xf32>
    %188 = tpu.matmul %185, %187, %cst_147 {dimension_numbers = #tpu.dot_dimension_numbers<[1], [0], [0], [1], [0, 0, 1, 1], [], []>} : vector<8x64xbf16>, vector<64x128xbf16>, vector<8x128xf32> -> vector<8x128xf32>
    %c1_148 = arith.constant 1 : index
    %c0_149 = arith.constant 0 : index
    %c0_150 = arith.constant 0 : index
    %189 = vector.load %arg19[%c1_148, %c0_149, %c0_150] : memref<3x8x8xbf16, #tpu.memory_space<vmem>>, vector<1x8x8xbf16>
    %190 = vector.shape_cast %189 : vector<1x8x8xbf16> to vector<8x8xbf16>
    %cst_151 = arith.constant dense<0.000000e+00> : vector<8x64xf32>
    %191 = tpu.matmul %190, %181, %cst_151 {dimension_numbers = #tpu.dot_dimension_numbers<[1], [0], [0], [1], [0, 0, 1, 1], [], []>} : vector<8x8xbf16>, vector<8x64xbf16>, vector<8x64xf32> -> vector<8x64xf32>
    %192 = arith.truncf %191 : vector<8x64xf32> to vector<8x64xbf16>
    %c1_152 = arith.constant 1 : index
    %c0_153 = arith.constant 0 : index
    %c0_154 = arith.constant 0 : index
    %193 = vector.load %arg20[%c1_152, %c0_153, %c0_154] : memref<3x64x128xbf16, #tpu.memory_space<vmem>>, vector<1x64x128xbf16>
    %194 = vector.shape_cast %193 : vector<1x64x128xbf16> to vector<64x128xbf16>
    %cst_155 = arith.constant dense<0.000000e+00> : vector<8x128xf32>
    %195 = tpu.matmul %192, %194, %cst_155 {dimension_numbers = #tpu.dot_dimension_numbers<[1], [0], [0], [1], [0, 0, 1, 1], [], []>} : vector<8x64xbf16>, vector<64x128xbf16>, vector<8x128xf32> -> vector<8x128xf32>
    %196 = arith.addf %188, %195 : vector<8x128xf32>
    %c2_156 = arith.constant 2 : index
    %c0_157 = arith.constant 0 : index
    %c0_158 = arith.constant 0 : index
    %197 = vector.load %arg19[%c2_156, %c0_157, %c0_158] : memref<3x8x8xbf16, #tpu.memory_space<vmem>>, vector<1x8x8xbf16>
    %198 = vector.shape_cast %197 : vector<1x8x8xbf16> to vector<8x8xbf16>
    %cst_159 = arith.constant dense<0.000000e+00> : vector<8x64xf32>
    %199 = tpu.matmul %198, %181, %cst_159 {dimension_numbers = #tpu.dot_dimension_numbers<[1], [0], [0], [1], [0, 0, 1, 1], [], []>} : vector<8x8xbf16>, vector<8x64xbf16>, vector<8x64xf32> -> vector<8x64xf32>
    %200 = arith.truncf %199 : vector<8x64xf32> to vector<8x64xbf16>
    %c2_160 = arith.constant 2 : index
    %c0_161 = arith.constant 0 : index
    %c0_162 = arith.constant 0 : index
    %201 = vector.load %arg20[%c2_160, %c0_161, %c0_162] : memref<3x64x128xbf16, #tpu.memory_space<vmem>>, vector<1x64x128xbf16>
    %202 = vector.shape_cast %201 : vector<1x64x128xbf16> to vector<64x128xbf16>
    %cst_163 = arith.constant dense<0.000000e+00> : vector<8x128xf32>
    %203 = tpu.matmul %200, %202, %cst_163 {dimension_numbers = #tpu.dot_dimension_numbers<[1], [0], [0], [1], [0, 0, 1, 1], [], []>} : vector<8x64xbf16>, vector<64x128xbf16>, vector<8x128xf32> -> vector<8x128xf32>
    %204 = arith.addf %196, %203 : vector<8x128xf32>
    %c0_164 = arith.constant 0 : index
    %c0_165 = arith.constant 0 : index
    %205 = vector.load %arg21[%c0_164, %c0_165] : memref<1x128xf32, #tpu.memory_space<vmem>>, vector<1x128xf32>
    %206 = vector.broadcast %205 : vector<1x128xf32> to vector<8x128xf32>
    %207 = arith.addf %204, %206 : vector<8x128xf32>
    %cst_166 = arith.constant dense<0.000000e+00> : vector<128xf32>
    %208 = vector.multi_reduction <add>, %207, %cst_166 [0] : vector<8x128xf32> to vector<128xf32>
    %209 = vector.shape_cast %208 : vector<128xf32> to vector<1x128xf32>
    %cst_167 = arith.constant 1.250000e-01 : f32
    %210 = vector.broadcast %cst_167 : f32 to vector<1x128xf32>
    %211 = arith.mulf %209, %210 : vector<1x128xf32>
    %c0_168 = arith.constant 0 : index
    %c0_169 = arith.constant 0 : index
    %212 = vector.load %arg24[%c0_168, %c0_169] : memref<128x128xf32, #tpu.memory_space<vmem>>, vector<128x128xf32>
    %cst_170 = arith.constant dense<0.000000e+00> : vector<1x128xf32>
    %213 = tpu.matmul %211, %212, %cst_170 {dimension_numbers = #tpu.dot_dimension_numbers<[1], [0], [0], [1], [0, 0, 1, 1], [], []>} : vector<1x128xf32>, vector<128x128xf32>, vector<1x128xf32> -> vector<1x128xf32>
    %214 = vector.broadcast %213 : vector<1x128xf32> to vector<8x128xf32>
    %215 = arith.subf %207, %214 : vector<8x128xf32>
    %216 = arith.mulf %215, %215 : vector<8x128xf32>
    %cst_171 = arith.constant dense<0.000000e+00> : vector<128xf32>
    %217 = vector.multi_reduction <add>, %216, %cst_171 [0] : vector<8x128xf32> to vector<128xf32>
    %218 = vector.shape_cast %217 : vector<128xf32> to vector<1x128xf32>
    %cst_172 = arith.constant 1.250000e-01 : f32
    %219 = vector.broadcast %cst_172 : f32 to vector<1x128xf32>
    %220 = arith.mulf %218, %219 : vector<1x128xf32>
    %c0_173 = arith.constant 0 : index
    %c0_174 = arith.constant 0 : index
    %221 = vector.load %arg24[%c0_173, %c0_174] : memref<128x128xf32, #tpu.memory_space<vmem>>, vector<128x128xf32>
    %cst_175 = arith.constant dense<0.000000e+00> : vector<1x128xf32>
    %222 = tpu.matmul %220, %221, %cst_175 {dimension_numbers = #tpu.dot_dimension_numbers<[1], [0], [0], [1], [0, 0, 1, 1], [], []>} : vector<1x128xf32>, vector<128x128xf32>, vector<1x128xf32> -> vector<1x128xf32>
    %c0_176 = arith.constant 0 : index
    %c0_177 = arith.constant 0 : index
    %223 = vector.load %arg22[%c0_176, %c0_177] : memref<1x128xf32, #tpu.memory_space<vmem>>, vector<1x128xf32>
    %224 = vector.broadcast %223 : vector<1x128xf32> to vector<8x128xf32>
    %225 = arith.mulf %224, %215 : vector<8x128xf32>
    %cst_178 = arith.constant 9.99999974E-6 : f32
    %226 = vector.broadcast %cst_178 : f32 to vector<1x128xf32>
    %227 = arith.addf %222, %226 : vector<1x128xf32>
    %228 = math.rsqrt %227 : vector<1x128xf32>
    %229 = vector.broadcast %228 : vector<1x128xf32> to vector<8x128xf32>
    %230 = arith.mulf %225, %229 : vector<8x128xf32>
    %c0_179 = arith.constant 0 : index
    %c0_180 = arith.constant 0 : index
    %231 = vector.load %arg23[%c0_179, %c0_180] : memref<1x128xf32, #tpu.memory_space<vmem>>, vector<1x128xf32>
    %232 = vector.broadcast %231 : vector<1x128xf32> to vector<8x128xf32>
    %233 = arith.addf %230, %232 : vector<8x128xf32>
    %cst_181 = arith.constant 0.000000e+00 : f32
    %234 = vector.broadcast %cst_181 : f32 to vector<8x128xf32>
    %235 = arith.cmpf ogt, %233, %234 : vector<8x128xf32>
    %cst_182 = arith.constant 0.00999999977 : f32
    %236 = vector.broadcast %cst_182 : f32 to vector<8x128xf32>
    %237 = arith.mulf %236, %233 : vector<8x128xf32>
    %238 = arith.select %235, %233, %237 : vector<8x128xi1>, vector<8x128xf32>
    %239 = arith.truncf %238 : vector<8x128xf32> to vector<8x128xbf16>
    %c0_183 = arith.constant 0 : index
    %c0_184 = arith.constant 0 : index
    %c0_185 = arith.constant 0 : index
    %240 = vector.load %arg25[%c0_183, %c0_184, %c0_185] : memref<3x4x8xbf16, #tpu.memory_space<vmem>>, vector<1x4x8xbf16>
    %241 = vector.shape_cast %240 : vector<1x4x8xbf16> to vector<4x8xbf16>
    %cst_186 = arith.constant dense<0.000000e+00> : vector<4x128xf32>
    %242 = tpu.matmul %241, %239, %cst_186 {dimension_numbers = #tpu.dot_dimension_numbers<[1], [0], [0], [1], [0, 0, 1, 1], [], []>} : vector<4x8xbf16>, vector<8x128xbf16>, vector<4x128xf32> -> vector<4x128xf32>
    %243 = arith.truncf %242 : vector<4x128xf32> to vector<4x128xbf16>
    %c0_187 = arith.constant 0 : index
    %c0_188 = arith.constant 0 : index
    %c0_189 = arith.constant 0 : index
    %244 = vector.load %arg26[%c0_187, %c0_188, %c0_189] : memref<3x128x64xbf16, #tpu.memory_space<vmem>>, vector<1x128x64xbf16>
    %245 = vector.shape_cast %244 : vector<1x128x64xbf16> to vector<128x64xbf16>
    %cst_190 = arith.constant dense<0.000000e+00> : vector<4x64xf32>
    %246 = tpu.matmul %243, %245, %cst_190 {dimension_numbers = #tpu.dot_dimension_numbers<[1], [0], [0], [1], [0, 0, 1, 1], [], []>} : vector<4x128xbf16>, vector<128x64xbf16>, vector<4x64xf32> -> vector<4x64xf32>
    %c1_191 = arith.constant 1 : index
    %c0_192 = arith.constant 0 : index
    %c0_193 = arith.constant 0 : index
    %247 = vector.load %arg25[%c1_191, %c0_192, %c0_193] : memref<3x4x8xbf16, #tpu.memory_space<vmem>>, vector<1x4x8xbf16>
    %248 = vector.shape_cast %247 : vector<1x4x8xbf16> to vector<4x8xbf16>
    %cst_194 = arith.constant dense<0.000000e+00> : vector<4x128xf32>
    %249 = tpu.matmul %248, %239, %cst_194 {dimension_numbers = #tpu.dot_dimension_numbers<[1], [0], [0], [1], [0, 0, 1, 1], [], []>} : vector<4x8xbf16>, vector<8x128xbf16>, vector<4x128xf32> -> vector<4x128xf32>
    %250 = arith.truncf %249 : vector<4x128xf32> to vector<4x128xbf16>
    %c1_195 = arith.constant 1 : index
    %c0_196 = arith.constant 0 : index
    %c0_197 = arith.constant 0 : index
    %251 = vector.load %arg26[%c1_195, %c0_196, %c0_197] : memref<3x128x64xbf16, #tpu.memory_space<vmem>>, vector<1x128x64xbf16>
    %252 = vector.shape_cast %251 : vector<1x128x64xbf16> to vector<128x64xbf16>
    %cst_198 = arith.constant dense<0.000000e+00> : vector<4x64xf32>
    %253 = tpu.matmul %250, %252, %cst_198 {dimension_numbers = #tpu.dot_dimension_numbers<[1], [0], [0], [1], [0, 0, 1, 1], [], []>} : vector<4x128xbf16>, vector<128x64xbf16>, vector<4x64xf32> -> vector<4x64xf32>
    %254 = arith.addf %246, %253 : vector<4x64xf32>
    %c2_199 = arith.constant 2 : index
    %c0_200 = arith.constant 0 : index
    %c0_201 = arith.constant 0 : index
    %255 = vector.load %arg25[%c2_199, %c0_200, %c0_201] : memref<3x4x8xbf16, #tpu.memory_space<vmem>>, vector<1x4x8xbf16>
    %256 = vector.shape_cast %255 : vector<1x4x8xbf16> to vector<4x8xbf16>
    %cst_202 = arith.constant dense<0.000000e+00> : vector<4x128xf32>
    %257 = tpu.matmul %256, %239, %cst_202 {dimension_numbers = #tpu.dot_dimension_numbers<[1], [0], [0], [1], [0, 0, 1, 1], [], []>} : vector<4x8xbf16>, vector<8x128xbf16>, vector<4x128xf32> -> vector<4x128xf32>
    %258 = arith.truncf %257 : vector<4x128xf32> to vector<4x128xbf16>
    %c2_203 = arith.constant 2 : index
    %c0_204 = arith.constant 0 : index
    %c0_205 = arith.constant 0 : index
    %259 = vector.load %arg26[%c2_203, %c0_204, %c0_205] : memref<3x128x64xbf16, #tpu.memory_space<vmem>>, vector<1x128x64xbf16>
    %260 = vector.shape_cast %259 : vector<1x128x64xbf16> to vector<128x64xbf16>
    %cst_206 = arith.constant dense<0.000000e+00> : vector<4x64xf32>
    %261 = tpu.matmul %258, %260, %cst_206 {dimension_numbers = #tpu.dot_dimension_numbers<[1], [0], [0], [1], [0, 0, 1, 1], [], []>} : vector<4x128xbf16>, vector<128x64xbf16>, vector<4x64xf32> -> vector<4x64xf32>
    %262 = arith.addf %254, %261 : vector<4x64xf32>
    %c0_207 = arith.constant 0 : index
    %c0_208 = arith.constant 0 : index
    %263 = vector.load %arg27[%c0_207, %c0_208] : memref<1x64xf32, #tpu.memory_space<vmem>>, vector<1x64xf32>
    %264 = vector.broadcast %263 : vector<1x64xf32> to vector<4x64xf32>
    %265 = arith.addf %262, %264 : vector<4x64xf32>
    %cst_209 = arith.constant dense<0.000000e+00> : vector<64xf32>
    %266 = vector.multi_reduction <add>, %265, %cst_209 [0] : vector<4x64xf32> to vector<64xf32>
    %267 = vector.shape_cast %266 : vector<64xf32> to vector<1x64xf32>
    %cst_210 = arith.constant 2.500000e-01 : f32
    %268 = vector.broadcast %cst_210 : f32 to vector<1x64xf32>
    %269 = arith.mulf %267, %268 : vector<1x64xf32>
    %c0_211 = arith.constant 0 : index
    %c0_212 = arith.constant 0 : index
    %270 = vector.load %arg30[%c0_211, %c0_212] : memref<64x64xf32, #tpu.memory_space<vmem>>, vector<64x64xf32>
    %cst_213 = arith.constant dense<0.000000e+00> : vector<1x64xf32>
    %271 = tpu.matmul %269, %270, %cst_213 {dimension_numbers = #tpu.dot_dimension_numbers<[1], [0], [0], [1], [0, 0, 1, 1], [], []>} : vector<1x64xf32>, vector<64x64xf32>, vector<1x64xf32> -> vector<1x64xf32>
    %272 = vector.broadcast %271 : vector<1x64xf32> to vector<4x64xf32>
    %273 = arith.subf %265, %272 : vector<4x64xf32>
    %274 = arith.mulf %273, %273 : vector<4x64xf32>
    %cst_214 = arith.constant dense<0.000000e+00> : vector<64xf32>
    %275 = vector.multi_reduction <add>, %274, %cst_214 [0] : vector<4x64xf32> to vector<64xf32>
    %276 = vector.shape_cast %275 : vector<64xf32> to vector<1x64xf32>
    %cst_215 = arith.constant 2.500000e-01 : f32
    %277 = vector.broadcast %cst_215 : f32 to vector<1x64xf32>
    %278 = arith.mulf %276, %277 : vector<1x64xf32>
    %c0_216 = arith.constant 0 : index
    %c0_217 = arith.constant 0 : index
    %279 = vector.load %arg30[%c0_216, %c0_217] : memref<64x64xf32, #tpu.memory_space<vmem>>, vector<64x64xf32>
    %cst_218 = arith.constant dense<0.000000e+00> : vector<1x64xf32>
    %280 = tpu.matmul %278, %279, %cst_218 {dimension_numbers = #tpu.dot_dimension_numbers<[1], [0], [0], [1], [0, 0, 1, 1], [], []>} : vector<1x64xf32>, vector<64x64xf32>, vector<1x64xf32> -> vector<1x64xf32>
    %c0_219 = arith.constant 0 : index
    %c0_220 = arith.constant 0 : index
    %281 = vector.load %arg28[%c0_219, %c0_220] : memref<1x64xf32, #tpu.memory_space<vmem>>, vector<1x64xf32>
    %282 = vector.broadcast %281 : vector<1x64xf32> to vector<4x64xf32>
    %283 = arith.mulf %282, %273 : vector<4x64xf32>
    %cst_221 = arith.constant 9.99999974E-6 : f32
    %284 = vector.broadcast %cst_221 : f32 to vector<1x64xf32>
    %285 = arith.addf %280, %284 : vector<1x64xf32>
    %286 = math.rsqrt %285 : vector<1x64xf32>
    %287 = vector.broadcast %286 : vector<1x64xf32> to vector<4x64xf32>
    %288 = arith.mulf %283, %287 : vector<4x64xf32>
    %c0_222 = arith.constant 0 : index
    %c0_223 = arith.constant 0 : index
    %289 = vector.load %arg29[%c0_222, %c0_223] : memref<1x64xf32, #tpu.memory_space<vmem>>, vector<1x64xf32>
    %290 = vector.broadcast %289 : vector<1x64xf32> to vector<4x64xf32>
    %291 = arith.addf %288, %290 : vector<4x64xf32>
    %cst_224 = arith.constant 0.000000e+00 : f32
    %292 = vector.broadcast %cst_224 : f32 to vector<4x64xf32>
    %293 = arith.cmpf ogt, %291, %292 : vector<4x64xf32>
    %cst_225 = arith.constant 0.00999999977 : f32
    %294 = vector.broadcast %cst_225 : f32 to vector<4x64xf32>
    %295 = arith.mulf %294, %291 : vector<4x64xf32>
    %296 = arith.select %293, %291, %295 : vector<4x64xi1>, vector<4x64xf32>
    %297 = arith.truncf %296 : vector<4x64xf32> to vector<4x64xbf16>
    %c0_226 = arith.constant 0 : index
    %c0_227 = arith.constant 0 : index
    %c0_228 = arith.constant 0 : index
    %298 = vector.load %arg31[%c0_226, %c0_227, %c0_228] : memref<3x4x4xbf16, #tpu.memory_space<vmem>>, vector<1x4x4xbf16>
    %299 = vector.shape_cast %298 : vector<1x4x4xbf16> to vector<4x4xbf16>
    %cst_229 = arith.constant dense<0.000000e+00> : vector<4x64xf32>
    %300 = tpu.matmul %299, %297, %cst_229 {dimension_numbers = #tpu.dot_dimension_numbers<[1], [0], [0], [1], [0, 0, 1, 1], [], []>} : vector<4x4xbf16>, vector<4x64xbf16>, vector<4x64xf32> -> vector<4x64xf32>
    %301 = arith.truncf %300 : vector<4x64xf32> to vector<4x64xbf16>
    %c0_230 = arith.constant 0 : index
    %c0_231 = arith.constant 0 : index
    %c0_232 = arith.constant 0 : index
    %302 = vector.load %arg32[%c0_230, %c0_231, %c0_232] : memref<3x64x128xbf16, #tpu.memory_space<vmem>>, vector<1x64x128xbf16>
    %303 = vector.shape_cast %302 : vector<1x64x128xbf16> to vector<64x128xbf16>
    %cst_233 = arith.constant dense<0.000000e+00> : vector<4x128xf32>
    %304 = tpu.matmul %301, %303, %cst_233 {dimension_numbers = #tpu.dot_dimension_numbers<[1], [0], [0], [1], [0, 0, 1, 1], [], []>} : vector<4x64xbf16>, vector<64x128xbf16>, vector<4x128xf32> -> vector<4x128xf32>
    %c1_234 = arith.constant 1 : index
    %c0_235 = arith.constant 0 : index
    %c0_236 = arith.constant 0 : index
    %305 = vector.load %arg31[%c1_234, %c0_235, %c0_236] : memref<3x4x4xbf16, #tpu.memory_space<vmem>>, vector<1x4x4xbf16>
    %306 = vector.shape_cast %305 : vector<1x4x4xbf16> to vector<4x4xbf16>
    %cst_237 = arith.constant dense<0.000000e+00> : vector<4x64xf32>
    %307 = tpu.matmul %306, %297, %cst_237 {dimension_numbers = #tpu.dot_dimension_numbers<[1], [0], [0], [1], [0, 0, 1, 1], [], []>} : vector<4x4xbf16>, vector<4x64xbf16>, vector<4x64xf32> -> vector<4x64xf32>
    %308 = arith.truncf %307 : vector<4x64xf32> to vector<4x64xbf16>
    %c1_238 = arith.constant 1 : index
    %c0_239 = arith.constant 0 : index
    %c0_240 = arith.constant 0 : index
    %309 = vector.load %arg32[%c1_238, %c0_239, %c0_240] : memref<3x64x128xbf16, #tpu.memory_space<vmem>>, vector<1x64x128xbf16>
    %310 = vector.shape_cast %309 : vector<1x64x128xbf16> to vector<64x128xbf16>
    %cst_241 = arith.constant dense<0.000000e+00> : vector<4x128xf32>
    %311 = tpu.matmul %308, %310, %cst_241 {dimension_numbers = #tpu.dot_dimension_numbers<[1], [0], [0], [1], [0, 0, 1, 1], [], []>} : vector<4x64xbf16>, vector<64x128xbf16>, vector<4x128xf32> -> vector<4x128xf32>
    %312 = arith.addf %304, %311 : vector<4x128xf32>
    %c2_242 = arith.constant 2 : index
    %c0_243 = arith.constant 0 : index
    %c0_244 = arith.constant 0 : index
    %313 = vector.load %arg31[%c2_242, %c0_243, %c0_244] : memref<3x4x4xbf16, #tpu.memory_space<vmem>>, vector<1x4x4xbf16>
    %314 = vector.shape_cast %313 : vector<1x4x4xbf16> to vector<4x4xbf16>
    %cst_245 = arith.constant dense<0.000000e+00> : vector<4x64xf32>
    %315 = tpu.matmul %314, %297, %cst_245 {dimension_numbers = #tpu.dot_dimension_numbers<[1], [0], [0], [1], [0, 0, 1, 1], [], []>} : vector<4x4xbf16>, vector<4x64xbf16>, vector<4x64xf32> -> vector<4x64xf32>
    %316 = arith.truncf %315 : vector<4x64xf32> to vector<4x64xbf16>
    %c2_246 = arith.constant 2 : index
    %c0_247 = arith.constant 0 : index
    %c0_248 = arith.constant 0 : index
    %317 = vector.load %arg32[%c2_246, %c0_247, %c0_248] : memref<3x64x128xbf16, #tpu.memory_space<vmem>>, vector<1x64x128xbf16>
    %318 = vector.shape_cast %317 : vector<1x64x128xbf16> to vector<64x128xbf16>
    %cst_249 = arith.constant dense<0.000000e+00> : vector<4x128xf32>
    %319 = tpu.matmul %316, %318, %cst_249 {dimension_numbers = #tpu.dot_dimension_numbers<[1], [0], [0], [1], [0, 0, 1, 1], [], []>} : vector<4x64xbf16>, vector<64x128xbf16>, vector<4x128xf32> -> vector<4x128xf32>
    %320 = arith.addf %312, %319 : vector<4x128xf32>
    %c0_250 = arith.constant 0 : index
    %c0_251 = arith.constant 0 : index
    %321 = vector.load %arg33[%c0_250, %c0_251] : memref<1x128xf32, #tpu.memory_space<vmem>>, vector<1x128xf32>
    %322 = vector.broadcast %321 : vector<1x128xf32> to vector<4x128xf32>
    %323 = arith.addf %320, %322 : vector<4x128xf32>
    %cst_252 = arith.constant dense<0.000000e+00> : vector<128xf32>
    %324 = vector.multi_reduction <add>, %323, %cst_252 [0] : vector<4x128xf32> to vector<128xf32>
    %325 = vector.shape_cast %324 : vector<128xf32> to vector<1x128xf32>
    %cst_253 = arith.constant 2.500000e-01 : f32
    %326 = vector.broadcast %cst_253 : f32 to vector<1x128xf32>
    %327 = arith.mulf %325, %326 : vector<1x128xf32>
    %c0_254 = arith.constant 0 : index
    %c0_255 = arith.constant 0 : index
    %328 = vector.load %arg36[%c0_254, %c0_255] : memref<128x128xf32, #tpu.memory_space<vmem>>, vector<128x128xf32>
    %cst_256 = arith.constant dense<0.000000e+00> : vector<1x128xf32>
    %329 = tpu.matmul %327, %328, %cst_256 {dimension_numbers = #tpu.dot_dimension_numbers<[1], [0], [0], [1], [0, 0, 1, 1], [], []>} : vector<1x128xf32>, vector<128x128xf32>, vector<1x128xf32> -> vector<1x128xf32>
    %330 = vector.broadcast %329 : vector<1x128xf32> to vector<4x128xf32>
    %331 = arith.subf %323, %330 : vector<4x128xf32>
    %332 = arith.mulf %331, %331 : vector<4x128xf32>
    %cst_257 = arith.constant dense<0.000000e+00> : vector<128xf32>
    %333 = vector.multi_reduction <add>, %332, %cst_257 [0] : vector<4x128xf32> to vector<128xf32>
    %334 = vector.shape_cast %333 : vector<128xf32> to vector<1x128xf32>
    %cst_258 = arith.constant 2.500000e-01 : f32
    %335 = vector.broadcast %cst_258 : f32 to vector<1x128xf32>
    %336 = arith.mulf %334, %335 : vector<1x128xf32>
    %c0_259 = arith.constant 0 : index
    %c0_260 = arith.constant 0 : index
    %337 = vector.load %arg36[%c0_259, %c0_260] : memref<128x128xf32, #tpu.memory_space<vmem>>, vector<128x128xf32>
    %cst_261 = arith.constant dense<0.000000e+00> : vector<1x128xf32>
    %338 = tpu.matmul %336, %337, %cst_261 {dimension_numbers = #tpu.dot_dimension_numbers<[1], [0], [0], [1], [0, 0, 1, 1], [], []>} : vector<1x128xf32>, vector<128x128xf32>, vector<1x128xf32> -> vector<1x128xf32>
    %c0_262 = arith.constant 0 : index
    %c0_263 = arith.constant 0 : index
    %339 = vector.load %arg34[%c0_262, %c0_263] : memref<1x128xf32, #tpu.memory_space<vmem>>, vector<1x128xf32>
    %340 = vector.broadcast %339 : vector<1x128xf32> to vector<4x128xf32>
    %341 = arith.mulf %340, %331 : vector<4x128xf32>
    %cst_264 = arith.constant 9.99999974E-6 : f32
    %342 = vector.broadcast %cst_264 : f32 to vector<1x128xf32>
    %343 = arith.addf %338, %342 : vector<1x128xf32>
    %344 = math.rsqrt %343 : vector<1x128xf32>
    %345 = vector.broadcast %344 : vector<1x128xf32> to vector<4x128xf32>
    %346 = arith.mulf %341, %345 : vector<4x128xf32>
    %c0_265 = arith.constant 0 : index
    %c0_266 = arith.constant 0 : index
    %347 = vector.load %arg35[%c0_265, %c0_266] : memref<1x128xf32, #tpu.memory_space<vmem>>, vector<1x128xf32>
    %348 = vector.broadcast %347 : vector<1x128xf32> to vector<4x128xf32>
    %349 = arith.addf %346, %348 : vector<4x128xf32>
    %cst_267 = arith.constant 0.000000e+00 : f32
    %350 = vector.broadcast %cst_267 : f32 to vector<4x128xf32>
    %351 = arith.cmpf ogt, %349, %350 : vector<4x128xf32>
    %cst_268 = arith.constant 0.00999999977 : f32
    %352 = vector.broadcast %cst_268 : f32 to vector<4x128xf32>
    %353 = arith.mulf %352, %349 : vector<4x128xf32>
    %354 = arith.select %351, %349, %353 : vector<4x128xi1>, vector<4x128xf32>
    %355 = arith.truncf %354 : vector<4x128xf32> to vector<4x128xbf16>
    %c0_269 = arith.constant 0 : index
    %c0_270 = arith.constant 0 : index
    %c0_271 = arith.constant 0 : index
    %356 = vector.load %arg37[%c0_269, %c0_270, %c0_271] : memref<3x2x4xbf16, #tpu.memory_space<vmem>>, vector<1x2x4xbf16>
    %357 = vector.shape_cast %356 : vector<1x2x4xbf16> to vector<2x4xbf16>
    %cst_272 = arith.constant dense<0.000000e+00> : vector<2x128xf32>
    %358 = tpu.matmul %357, %355, %cst_272 {dimension_numbers = #tpu.dot_dimension_numbers<[1], [0], [0], [1], [0, 0, 1, 1], [], []>} : vector<2x4xbf16>, vector<4x128xbf16>, vector<2x128xf32> -> vector<2x128xf32>
    %359 = arith.truncf %358 : vector<2x128xf32> to vector<2x128xbf16>
    %c0_273 = arith.constant 0 : index
    %c0_274 = arith.constant 0 : index
    %c0_275 = arith.constant 0 : index
    %360 = vector.load %arg38[%c0_273, %c0_274, %c0_275] : memref<3x128x64xbf16, #tpu.memory_space<vmem>>, vector<1x128x64xbf16>
    %361 = vector.shape_cast %360 : vector<1x128x64xbf16> to vector<128x64xbf16>
    %cst_276 = arith.constant dense<0.000000e+00> : vector<2x64xf32>
    %362 = tpu.matmul %359, %361, %cst_276 {dimension_numbers = #tpu.dot_dimension_numbers<[1], [0], [0], [1], [0, 0, 1, 1], [], []>} : vector<2x128xbf16>, vector<128x64xbf16>, vector<2x64xf32> -> vector<2x64xf32>
    %c1_277 = arith.constant 1 : index
    %c0_278 = arith.constant 0 : index
    %c0_279 = arith.constant 0 : index
    %363 = vector.load %arg37[%c1_277, %c0_278, %c0_279] : memref<3x2x4xbf16, #tpu.memory_space<vmem>>, vector<1x2x4xbf16>
    %364 = vector.shape_cast %363 : vector<1x2x4xbf16> to vector<2x4xbf16>
    %cst_280 = arith.constant dense<0.000000e+00> : vector<2x128xf32>
    %365 = tpu.matmul %364, %355, %cst_280 {dimension_numbers = #tpu.dot_dimension_numbers<[1], [0], [0], [1], [0, 0, 1, 1], [], []>} : vector<2x4xbf16>, vector<4x128xbf16>, vector<2x128xf32> -> vector<2x128xf32>
    %366 = arith.truncf %365 : vector<2x128xf32> to vector<2x128xbf16>
    %c1_281 = arith.constant 1 : index
    %c0_282 = arith.constant 0 : index
    %c0_283 = arith.constant 0 : index
    %367 = vector.load %arg38[%c1_281, %c0_282, %c0_283] : memref<3x128x64xbf16, #tpu.memory_space<vmem>>, vector<1x128x64xbf16>
    %368 = vector.shape_cast %367 : vector<1x128x64xbf16> to vector<128x64xbf16>
    %cst_284 = arith.constant dense<0.000000e+00> : vector<2x64xf32>
    %369 = tpu.matmul %366, %368, %cst_284 {dimension_numbers = #tpu.dot_dimension_numbers<[1], [0], [0], [1], [0, 0, 1, 1], [], []>} : vector<2x128xbf16>, vector<128x64xbf16>, vector<2x64xf32> -> vector<2x64xf32>
    %370 = arith.addf %362, %369 : vector<2x64xf32>
    %c2_285 = arith.constant 2 : index
    %c0_286 = arith.constant 0 : index
    %c0_287 = arith.constant 0 : index
    %371 = vector.load %arg37[%c2_285, %c0_286, %c0_287] : memref<3x2x4xbf16, #tpu.memory_space<vmem>>, vector<1x2x4xbf16>
    %372 = vector.shape_cast %371 : vector<1x2x4xbf16> to vector<2x4xbf16>
    %cst_288 = arith.constant dense<0.000000e+00> : vector<2x128xf32>
    %373 = tpu.matmul %372, %355, %cst_288 {dimension_numbers = #tpu.dot_dimension_numbers<[1], [0], [0], [1], [0, 0, 1, 1], [], []>} : vector<2x4xbf16>, vector<4x128xbf16>, vector<2x128xf32> -> vector<2x128xf32>
    %374 = arith.truncf %373 : vector<2x128xf32> to vector<2x128xbf16>
    %c2_289 = arith.constant 2 : index
    %c0_290 = arith.constant 0 : index
    %c0_291 = arith.constant 0 : index
    %375 = vector.load %arg38[%c2_289, %c0_290, %c0_291] : memref<3x128x64xbf16, #tpu.memory_space<vmem>>, vector<1x128x64xbf16>
    %376 = vector.shape_cast %375 : vector<1x128x64xbf16> to vector<128x64xbf16>
    %cst_292 = arith.constant dense<0.000000e+00> : vector<2x64xf32>
    %377 = tpu.matmul %374, %376, %cst_292 {dimension_numbers = #tpu.dot_dimension_numbers<[1], [0], [0], [1], [0, 0, 1, 1], [], []>} : vector<2x128xbf16>, vector<128x64xbf16>, vector<2x64xf32> -> vector<2x64xf32>
    %378 = arith.addf %370, %377 : vector<2x64xf32>
    %c0_293 = arith.constant 0 : index
    %c0_294 = arith.constant 0 : index
    %379 = vector.load %arg39[%c0_293, %c0_294] : memref<1x64xf32, #tpu.memory_space<vmem>>, vector<1x64xf32>
    %380 = vector.broadcast %379 : vector<1x64xf32> to vector<2x64xf32>
    %381 = arith.addf %378, %380 : vector<2x64xf32>
    %cst_295 = arith.constant dense<0.000000e+00> : vector<64xf32>
    %382 = vector.multi_reduction <add>, %381, %cst_295 [0] : vector<2x64xf32> to vector<64xf32>
    %383 = vector.shape_cast %382 : vector<64xf32> to vector<1x64xf32>
    %cst_296 = arith.constant 5.000000e-01 : f32
    %384 = vector.broadcast %cst_296 : f32 to vector<1x64xf32>
    %385 = arith.mulf %383, %384 : vector<1x64xf32>
    %c0_297 = arith.constant 0 : index
    %c0_298 = arith.constant 0 : index
    %386 = vector.load %arg42[%c0_297, %c0_298] : memref<64x64xf32, #tpu.memory_space<vmem>>, vector<64x64xf32>
    %cst_299 = arith.constant dense<0.000000e+00> : vector<1x64xf32>
    %387 = tpu.matmul %385, %386, %cst_299 {dimension_numbers = #tpu.dot_dimension_numbers<[1], [0], [0], [1], [0, 0, 1, 1], [], []>} : vector<1x64xf32>, vector<64x64xf32>, vector<1x64xf32> -> vector<1x64xf32>
    %388 = vector.broadcast %387 : vector<1x64xf32> to vector<2x64xf32>
    %389 = arith.subf %381, %388 : vector<2x64xf32>
    %390 = arith.mulf %389, %389 : vector<2x64xf32>
    %cst_300 = arith.constant dense<0.000000e+00> : vector<64xf32>
    %391 = vector.multi_reduction <add>, %390, %cst_300 [0] : vector<2x64xf32> to vector<64xf32>
    %392 = vector.shape_cast %391 : vector<64xf32> to vector<1x64xf32>
    %cst_301 = arith.constant 5.000000e-01 : f32
    %393 = vector.broadcast %cst_301 : f32 to vector<1x64xf32>
    %394 = arith.mulf %392, %393 : vector<1x64xf32>
    %c0_302 = arith.constant 0 : index
    %c0_303 = arith.constant 0 : index
    %395 = vector.load %arg42[%c0_302, %c0_303] : memref<64x64xf32, #tpu.memory_space<vmem>>, vector<64x64xf32>
    %cst_304 = arith.constant dense<0.000000e+00> : vector<1x64xf32>
    %396 = tpu.matmul %394, %395, %cst_304 {dimension_numbers = #tpu.dot_dimension_numbers<[1], [0], [0], [1], [0, 0, 1, 1], [], []>} : vector<1x64xf32>, vector<64x64xf32>, vector<1x64xf32> -> vector<1x64xf32>
    %c0_305 = arith.constant 0 : index
    %c0_306 = arith.constant 0 : index
    %397 = vector.load %arg40[%c0_305, %c0_306] : memref<1x64xf32, #tpu.memory_space<vmem>>, vector<1x64xf32>
    %398 = vector.broadcast %397 : vector<1x64xf32> to vector<2x64xf32>
    %399 = arith.mulf %398, %389 : vector<2x64xf32>
    %cst_307 = arith.constant 9.99999974E-6 : f32
    %400 = vector.broadcast %cst_307 : f32 to vector<1x64xf32>
    %401 = arith.addf %396, %400 : vector<1x64xf32>
    %402 = math.rsqrt %401 : vector<1x64xf32>
    %403 = vector.broadcast %402 : vector<1x64xf32> to vector<2x64xf32>
    %404 = arith.mulf %399, %403 : vector<2x64xf32>
    %c0_308 = arith.constant 0 : index
    %c0_309 = arith.constant 0 : index
    %405 = vector.load %arg41[%c0_308, %c0_309] : memref<1x64xf32, #tpu.memory_space<vmem>>, vector<1x64xf32>
    %406 = vector.broadcast %405 : vector<1x64xf32> to vector<2x64xf32>
    %407 = arith.addf %404, %406 : vector<2x64xf32>
    %cst_310 = arith.constant 0.000000e+00 : f32
    %408 = vector.broadcast %cst_310 : f32 to vector<2x64xf32>
    %409 = arith.cmpf ogt, %407, %408 : vector<2x64xf32>
    %cst_311 = arith.constant 0.00999999977 : f32
    %410 = vector.broadcast %cst_311 : f32 to vector<2x64xf32>
    %411 = arith.mulf %410, %407 : vector<2x64xf32>
    %412 = arith.select %409, %407, %411 : vector<2x64xi1>, vector<2x64xf32>
    %413 = arith.truncf %412 : vector<2x64xf32> to vector<2x64xbf16>
    %c0_312 = arith.constant 0 : index
    %c0_313 = arith.constant 0 : index
    %c0_314 = arith.constant 0 : index
    %414 = vector.load %arg43[%c0_312, %c0_313, %c0_314] : memref<1x64x1024xbf16, #tpu.memory_space<vmem>>, vector<1x64x1024xbf16>
    %415 = vector.shape_cast %414 : vector<1x64x1024xbf16> to vector<64x1024xbf16>
    %cst_315 = arith.constant dense<0.000000e+00> : vector<2x1024xf32>
    %416 = tpu.matmul %413, %415, %cst_315 {dimension_numbers = #tpu.dot_dimension_numbers<[1], [0], [0], [1], [0, 0, 1, 1], [], []>} : vector<2x64xbf16>, vector<64x1024xbf16>, vector<2x1024xf32> -> vector<2x1024xf32>
    %c0_316 = arith.constant 0 : index
    %c0_317 = arith.constant 0 : index
    %417 = vector.load %arg44[%c0_316, %c0_317] : memref<1x1024xf32, #tpu.memory_space<vmem>>, vector<1x1024xf32>
    %418 = vector.broadcast %417 : vector<1x1024xf32> to vector<2x1024xf32>
    %419 = arith.addf %416, %418 : vector<2x1024xf32>
    %cst_318 = arith.constant 0.000000e+00 : f32
    %420 = vector.broadcast %cst_318 : f32 to vector<2x1024xf32>
    %421 = arith.cmpf ogt, %419, %420 : vector<2x1024xf32>
    %cst_319 = arith.constant 0.00999999977 : f32
    %422 = vector.broadcast %cst_319 : f32 to vector<2x1024xf32>
    %423 = arith.mulf %422, %419 : vector<2x1024xf32>
    %424 = arith.select %421, %419, %423 : vector<2x1024xi1>, vector<2x1024xf32>
    %425 = arith.truncf %424 : vector<2x1024xf32> to vector<2x1024xbf16>
    %c0_320 = arith.constant 0 : index
    %c0_321 = arith.constant 0 : index
    %426 = vector.load %arg45[%c0_320, %c0_321] : memref<1024x1xbf16, #tpu.memory_space<vmem>>, vector<1024x1xbf16>
    %cst_322 = arith.constant dense<0.000000e+00> : vector<2x1xf32>
    %427 = tpu.matmul %425, %426, %cst_322 {dimension_numbers = #tpu.dot_dimension_numbers<[1], [0], [0], [1], [0, 0, 1, 1], [], []>} : vector<2x1024xbf16>, vector<1024x1xbf16>, vector<2x1xf32> -> vector<2x1xf32>
    %c0_323 = arith.constant 0 : index
    %c0_324 = arith.constant 0 : index
    %428 = vector.load %arg46[%c0_323, %c0_324] : memref<1x1xf32, #tpu.memory_space<vmem>>, vector<1x1xf32>
    %429 = vector.broadcast %428 : vector<1x1xf32> to vector<2x1xf32>
    %430 = arith.addf %427, %429 : vector<2x1xf32>
    %cst_325 = arith.constant 0.000000e+00 : f32
    %431 = vector.broadcast %cst_325 : f32 to vector<2x1xf32>
    %432 = arith.subf %431, %430 : vector<2x1xf32>
    %433 = math.exp %432 : vector<2x1xf32>
    %cst_326 = arith.constant 1.000000e+00 : f32
    %434 = vector.broadcast %cst_326 : f32 to vector<2x1xf32>
    %435 = arith.addf %434, %433 : vector<2x1xf32>
    %436 = tpu.reciprocal %435 {approx = true} : vector<2x1xf32> -> vector<2x1xf32>
    %c0_327 = arith.constant 0 : index
    %c0_328 = arith.constant 0 : index
    %437 = vector.load %arg47[%c0_327, %c0_328] : memref<2x1xf32, #tpu.memory_space<vmem>>, vector<2x1xf32>
    tpu.vector_store %arg47[%c0_327, %c0_328], %436 {strides = array<i32>} : memref<2x1xf32, #tpu.memory_space<vmem>>, vector<2x1xf32>,
    return
  }
}

</mosaic_0001>

<llo_original>
// kernel: tpu_custom_call.1
$region0: #{tpu_custom_call.1}
  #allocation0 [shape = 'u32[]', space=smem, size = 0x4, offset = 0x4, fixed_abs, tag = 'smem constant byte address 0x4 - core index']
  #allocation1 [shape = 'u32[144,128]{1,0:T(1,128)}', space=vmem, size = 0x12000, scoped, tag = 'internal scratch']
  #allocation2 [shape = 'f32[1,1]{1,0:T(1,128)S(1)}', space=vmem, size = 0x200, scoped, tag = 'scoped memory for tpu_custom_call.1']
  %s0 = inlined_call_operand.smem [shape: u32[48], index: -1, kind: input, shape index: {}]
  %s1 = sld [smem:[%s0]]
  %s2 = scalar_lea.smem %s0, 1
  %s3 = sld [smem:[%s2]]
  %s4 = scalar_lea.smem %s0, 2
  %s5 = sld [smem:[%s4]]
  %s6 = scalar_lea.smem %s0, 3
  %s7 = sld [smem:[%s6]]
  %s8 = scalar_lea.smem %s0, 4
  %s9 = sld [smem:[%s8]]
  %s10 = scalar_lea.smem %s0, 5
  %s11 = sld [smem:[%s10]]
  %s12 = scalar_lea.smem %s0, 6
  %s13 = sld [smem:[%s12]]
  %s14 = scalar_lea.smem %s0, 7
  %s15 = sld [smem:[%s14]]
  %s16 = scalar_lea.smem %s0, 8
  %s17 = sld [smem:[%s16]]
  %s18 = scalar_lea.smem %s0, 9
  %s19 = sld [smem:[%s18]]
  %s20 = scalar_lea.smem %s0, 10
  %s21 = sld [smem:[%s20]]
  %s22 = scalar_lea.smem %s0, 11
  %s23 = sld [smem:[%s22]]
  %s24 = scalar_lea.smem %s0, 12
  %s25 = sld [smem:[%s24]]
  %s26 = scalar_lea.smem %s0, 13
  %s27 = sld [smem:[%s26]]
  %s28 = scalar_lea.smem %s0, 14
  %s29 = sld [smem:[%s28]]
  %s30 = scalar_lea.smem %s0, 15
  %s31 = sld [smem:[%s30]]
  %s32 = scalar_lea.smem %s0, 16
  %s33 = sld [smem:[%s32]]
  %s34 = scalar_lea.smem %s0, 17
  %s35 = sld [smem:[%s34]]
  %s36 = scalar_lea.smem %s0, 18
  %s37 = sld [smem:[%s36]]
  %s38 = scalar_lea.smem %s0, 19
  %s39 = sld [smem:[%s38]]
  %s40 = scalar_lea.smem %s0, 20
  %s41 = sld [smem:[%s40]]
  %s42 = scalar_lea.smem %s0, 21
  %s43 = sld [smem:[%s42]]
  %s44 = scalar_lea.smem %s0, 22
  %s45 = sld [smem:[%s44]]
  %s46 = scalar_lea.smem %s0, 23
  %s47 = sld [smem:[%s46]]
  %s48 = scalar_lea.smem %s0, 24
  %s49 = sld [smem:[%s48]]
  %s50 = scalar_lea.smem %s0, 25
  %s51 = sld [smem:[%s50]]
  %s52 = scalar_lea.smem %s0, 26
  %s53 = sld [smem:[%s52]]
  %s54 = scalar_lea.smem %s0, 27
  %s55 = sld [smem:[%s54]]
  %s56 = scalar_lea.smem %s0, 28
  %s57 = sld [smem:[%s56]]
  %s58 = scalar_lea.smem %s0, 29
  %s59 = sld [smem:[%s58]]
  %s60 = scalar_lea.smem %s0, 30
  %s61 = sld [smem:[%s60]]
  %s62 = scalar_lea.smem %s0, 31
  %s63 = sld [smem:[%s62]]
  %s64 = scalar_lea.smem %s0, 32
  %s65 = sld [smem:[%s64]]
  %s66 = scalar_lea.smem %s0, 33
  %s67 = sld [smem:[%s66]]
  %s68 = scalar_lea.smem %s0, 34
  %s69 = sld [smem:[%s68]]
  %s70 = scalar_lea.smem %s0, 35
  %s71 = sld [smem:[%s70]]
  %s72 = scalar_lea.smem %s0, 36
  %s73 = sld [smem:[%s72]]
  %s74 = scalar_lea.smem %s0, 37
  %s75 = sld [smem:[%s74]]
  %s76 = scalar_lea.smem %s0, 38
  %s77 = sld [smem:[%s76]]
  %s78 = scalar_lea.smem %s0, 39
  %s79 = sld [smem:[%s78]]
  %s80 = scalar_lea.smem %s0, 40
  %s81 = sld [smem:[%s80]]
  %s82 = scalar_lea.smem %s0, 41
  %s83 = sld [smem:[%s82]]
  %s84 = scalar_lea.smem %s0, 42
  %s85 = sld [smem:[%s84]]
  %s86 = scalar_lea.smem %s0, 43
  %s87 = sld [smem:[%s86]]
  %s88 = scalar_lea.smem %s0, 44
  %s89 = sld [smem:[%s88]]
  %s90 = scalar_lea.smem %s0, 45
  %s91 = sld [smem:[%s90]]
  %s92 = scalar_lea.smem %s0, 46
  %s93 = sld [smem:[%s92]]
  %s94 = scalar_lea.smem %s0, 47
  %s95 = sld [smem:[%s94]]
  %s96 = sld [smem:[#allocation0]]
  $region218: #{tpu_custom_call.1} parent=0
    _
  %s98 = ssub.s32 1, %s96
  %s99 = scalar_select 0, %s98, %s96
  %v100 = vstv %s93
  %101 = vst [vmem:[#allocation2] sm:$0x1] %v100
  $region1: #{tpu_custom_call.1} parent=0
    #allocation3 [shape = 'u8[512]{0}', space=vmem, size = 0x400, scoped, tag = 'input window, operand 34, single buffered']
    #allocation4 [shape = 's32[1]{0}', space=sflag, size = 0x4, scoped, tag = 'scoped memory for tpu_custom_call.1']
    #allocation5 [shape = 'u8[512]{0}', space=vmem, size = 0x400, scoped, tag = 'input window, operand 35, single buffered']
    #allocation6 [shape = 's32[1]{0}', space=sflag, size = 0x4, scoped, tag = 'scoped memory for tpu_custom_call.1']
    #allocation7 [shape = 'u8[512]{0}', space=vmem, size = 0x400, scoped, tag = 'input window, operand 39, single buffered']
    #allocation8 [shape = 'u8[512]{0}', space=vmem, size = 0x400, scoped, tag = 'input window, operand 40, single buffered']
    #allocation9 [shape = 's32[1]{0}', space=sflag, size = 0x4, scoped, tag = 'scoped memory for tpu_custom_call.1']
    #allocation10 [shape = 'u8[512]{0}', space=vmem, size = 0x400, scoped, tag = 'input window, operand 41, single buffered']
    %102 = vsyncpa [#allocation4], 0
    %103 = vsyncpa [#allocation6], 0
    %104 = vsyncpa [#allocation9], 0
    // Predicated region
    $region2: #{tpu_custom_call.1} parent=1 // pred_check
      _
    $region3: #{tpu_custom_call.1} parent=1 // pred_check_branch
      %106 = sbr.rel (0) target = $region5
    $region4: #{tpu_custom_call.1} parent=1 // pred_region
      _
    $region5: #{tpu_custom_call.1} parent=1 // pred_fallthru
      _
    // Predicated region
    $region6: #{tpu_custom_call.1} parent=1 // pred_check
      _
    $region7: #{tpu_custom_call.1} parent=1 // pred_check_branch
      %108 = sbr.rel (0) target = $region9
    $region8: #{tpu_custom_call.1} parent=1 // pred_region
      _
    $region9: #{tpu_custom_call.1} parent=1 // pred_fallthru
      _
    // Predicated region
    $region10: #{tpu_custom_call.1} parent=1 // pred_check
      _
    $region11: #{tpu_custom_call.1} parent=1 // pred_check_branch
      %110 = sbr.rel (0) target = $region13
    $region12: #{tpu_custom_call.1} parent=1 // pred_region
      _
    $region13: #{tpu_custom_call.1} parent=1 // pred_fallthru
      _
    // Predicated region
    $region14: #{tpu_custom_call.1} parent=1 // pred_check
      _
    $region15: #{tpu_custom_call.1} parent=1 // pred_check_branch
      %112 = sbr.rel (0) target = $region17
    $region16: #{tpu_custom_call.1} parent=1 // pred_region
      _
    $region17: #{tpu_custom_call.1} parent=1 // pred_fallthru
      _
    // Predicated region
    $region18: #{tpu_custom_call.1} parent=1 // pred_check
      _
    $region19: #{tpu_custom_call.1} parent=1 // pred_check_branch
      %114 = sbr.rel (0) target = $region21
    $region20: #{tpu_custom_call.1} parent=1 // pred_region
      _
    $region21: #{tpu_custom_call.1} parent=1 // pred_fallthru
      _
    // Predicated region
    $region22: #{tpu_custom_call.1} parent=1 // pred_check
      _
    $region23: #{tpu_custom_call.1} parent=1 // pred_check_branch
      %116 = sbr.rel (0) target = $region25
    $region24: #{tpu_custom_call.1} parent=1 // pred_region
      _
    $region25: #{tpu_custom_call.1} parent=1 // pred_fallthru
      _
    // Predicated region
    $region26: #{tpu_custom_call.1} parent=1 // pred_check
      _
    $region27: #{tpu_custom_call.1} parent=1 // pred_check_branch
      %118 = sbr.rel (0) target = $region29
    $region28: #{tpu_custom_call.1} parent=1 // pred_region
      _
    $region29: #{tpu_custom_call.1} parent=1 // pred_fallthru
      _
    // Predicated region
    $region30: #{tpu_custom_call.1} parent=1 // pred_check
      _
    $region31: #{tpu_custom_call.1} parent=1 // pred_check_branch
      %120 = sbr.rel (0) target = $region33
    $region32: #{tpu_custom_call.1} parent=1 // pred_region
      _
    $region33: #{tpu_custom_call.1} parent=1 // pred_fallthru
      _
    // Predicated region
    $region34: #{tpu_custom_call.1} parent=1 // pred_check
      _
    $region35: #{tpu_custom_call.1} parent=1 // pred_check_branch
      %122 = sbr.rel (0) target = $region37
    $region36: #{tpu_custom_call.1} parent=1 // pred_region
      _
    $region37: #{tpu_custom_call.1} parent=1 // pred_fallthru
      _
    // Predicated region
    $region38: #{tpu_custom_call.1} parent=1 // pred_check
      _
    $region39: #{tpu_custom_call.1} parent=1 // pred_check_branch
      %124 = sbr.rel (0) target = $region41
    $region40: #{tpu_custom_call.1} parent=1 // pred_region
      _
    $region41: #{tpu_custom_call.1} parent=1 // pred_fallthru
      _
    // Predicated region
    $region42: #{tpu_custom_call.1} parent=1 // pred_check
      _
    $region43: #{tpu_custom_call.1} parent=1 // pred_check_branch
      %126 = sbr.rel (0) target = $region45
    $region44: #{tpu_custom_call.1} parent=1 // pred_region
      _
    $region45: #{tpu_custom_call.1} parent=1 // pred_fallthru
      _
    // Predicated region
    $region46: #{tpu_custom_call.1} parent=1 // pred_check
      _
    $region47: #{tpu_custom_call.1} parent=1 // pred_check_branch
      %128 = sbr.rel (0) target = $region49
    $region48: #{tpu_custom_call.1} parent=1 // pred_region
      _
    $region49: #{tpu_custom_call.1} parent=1 // pred_fallthru
      _
    // Predicated region
    $region50: #{tpu_custom_call.1} parent=1 // pred_check
      _
    $region51: #{tpu_custom_call.1} parent=1 // pred_check_branch
      %130 = sbr.rel (0) target = $region53
    $region52: #{tpu_custom_call.1} parent=1 // pred_region
      _
    $region53: #{tpu_custom_call.1} parent=1 // pred_fallthru
      _
    // Predicated region
    $region54: #{tpu_custom_call.1} parent=1 // pred_check
      _
    $region55: #{tpu_custom_call.1} parent=1 // pred_check_branch
      %132 = sbr.rel (0) target = $region57
    $region56: #{tpu_custom_call.1} parent=1 // pred_region
      _
    $region57: #{tpu_custom_call.1} parent=1 // pred_fallthru
      _
    // Predicated region
    $region58: #{tpu_custom_call.1} parent=1 // pred_check
      _
    $region59: #{tpu_custom_call.1} parent=1 // pred_check_branch
      %134 = sbr.rel (0) target = $region61
    $region60: #{tpu_custom_call.1} parent=1 // pred_region
      _
    $region61: #{tpu_custom_call.1} parent=1 // pred_fallthru
      _
    // Predicated region
    $region62: #{tpu_custom_call.1} parent=1 // pred_check
      _
    $region63: #{tpu_custom_call.1} parent=1 // pred_check_branch
      %136 = sbr.rel (0) target = $region65
    $region64: #{tpu_custom_call.1} parent=1 // pred_region
      _
    $region65: #{tpu_custom_call.1} parent=1 // pred_fallthru
      _
    // Predicated region
    $region66: #{tpu_custom_call.1} parent=1 // pred_check
      _
    $region67: #{tpu_custom_call.1} parent=1 // pred_check_branch
      %138 = sbr.rel (0) target = $region69
    $region68: #{tpu_custom_call.1} parent=1 // pred_region
      _
    $region69: #{tpu_custom_call.1} parent=1 // pred_fallthru
      _
    // Predicated region
    $region70: #{tpu_custom_call.1} parent=1 // pred_check
      _
    $region71: #{tpu_custom_call.1} parent=1 // pred_check_branch
      %140 = sbr.rel (0) target = $region73
    $region72: #{tpu_custom_call.1} parent=1 // pred_region
      _
    $region73: #{tpu_custom_call.1} parent=1 // pred_fallthru
      _
    // Predicated region
    $region74: #{tpu_custom_call.1} parent=1 // pred_check
      _
    $region75: #{tpu_custom_call.1} parent=1 // pred_check_branch
      %142 = sbr.rel (0) target = $region77
    $region76: #{tpu_custom_call.1} parent=1 // pred_region
      _
    $region77: #{tpu_custom_call.1} parent=1 // pred_fallthru
      _
    // Predicated region
    $region78: #{tpu_custom_call.1} parent=1 // pred_check
      _
    $region79: #{tpu_custom_call.1} parent=1 // pred_check_branch
      %144 = sbr.rel (0) target = $region81
    $region80: #{tpu_custom_call.1} parent=1 // pred_region
      _
    $region81: #{tpu_custom_call.1} parent=1 // pred_fallthru
      _
    // Predicated region
    $region82: #{tpu_custom_call.1} parent=1 // pred_check
      _
    $region83: #{tpu_custom_call.1} parent=1 // pred_check_branch
      %146 = sbr.rel (0) target = $region85
    $region84: #{tpu_custom_call.1} parent=1 // pred_region
      _
    $region85: #{tpu_custom_call.1} parent=1 // pred_fallthru
      _
    // Predicated region
    $region86: #{tpu_custom_call.1} parent=1 // pred_check
      _
    $region87: #{tpu_custom_call.1} parent=1 // pred_check_branch
      %148 = sbr.rel (0) target = $region89
    $region88: #{tpu_custom_call.1} parent=1 // pred_region
      _
    $region89: #{tpu_custom_call.1} parent=1 // pred_fallthru
      _
    // Predicated region
    $region90: #{tpu_custom_call.1} parent=1 // pred_check
      _
    $region91: #{tpu_custom_call.1} parent=1 // pred_check_branch
      %150 = sbr.rel (0) target = $region93
    $region92: #{tpu_custom_call.1} parent=1 // pred_region
      _
    $region93: #{tpu_custom_call.1} parent=1 // pred_fallthru
      _
    // Predicated region
    $region94: #{tpu_custom_call.1} parent=1 // pred_check
      _
    $region95: #{tpu_custom_call.1} parent=1 // pred_check_branch
      %152 = sbr.rel (0) target = $region97
    $region96: #{tpu_custom_call.1} parent=1 // pred_region
      _
    $region97: #{tpu_custom_call.1} parent=1 // pred_fallthru
      _
    // Predicated region
    $region98: #{tpu_custom_call.1} parent=1 // pred_check
      _
    $region99: #{tpu_custom_call.1} parent=1 // pred_check_branch
      %154 = sbr.rel (0) target = $region101
    $region100: #{tpu_custom_call.1} parent=1 // pred_region
      _
    $region101: #{tpu_custom_call.1} parent=1 // pred_fallthru
      _
    // Predicated region
    $region102: #{tpu_custom_call.1} parent=1 // pred_check
      _
    $region103: #{tpu_custom_call.1} parent=1 // pred_check_branch
      %156 = sbr.rel (0) target = $region105
    $region104: #{tpu_custom_call.1} parent=1 // pred_region
      _
    $region105: #{tpu_custom_call.1} parent=1 // pred_fallthru
      _
    // Predicated region
    $region106: #{tpu_custom_call.1} parent=1 // pred_check
      _
    $region107: #{tpu_custom_call.1} parent=1 // pred_check_branch
      %158 = sbr.rel (0) target = $region109
    $region108: #{tpu_custom_call.1} parent=1 // pred_region
      _
    $region109: #{tpu_custom_call.1} parent=1 // pred_fallthru
      _
    // Predicated region
    $region110: #{tpu_custom_call.1} parent=1 // pred_check
      _
    $region111: #{tpu_custom_call.1} parent=1 // pred_check_branch
      %160 = sbr.rel (0) target = $region113
    $region112: #{tpu_custom_call.1} parent=1 // pred_region
      _
    $region113: #{tpu_custom_call.1} parent=1 // pred_fallthru
      _
    // Predicated region
    $region114: #{tpu_custom_call.1} parent=1 // pred_check
      _
    $region115: #{tpu_custom_call.1} parent=1 // pred_check_branch
      %162 = sbr.rel (0) target = $region117
    $region116: #{tpu_custom_call.1} parent=1 // pred_region
      _
    $region117: #{tpu_custom_call.1} parent=1 // pred_fallthru
      _
    // Predicated region
    $region118: #{tpu_custom_call.1} parent=1 // pred_check
      _
    $region119: #{tpu_custom_call.1} parent=1 // pred_check_branch
      %164 = sbr.rel (0) target = $region121
    $region120: #{tpu_custom_call.1} parent=1 // pred_region
      _
    $region121: #{tpu_custom_call.1} parent=1 // pred_fallthru
      _
    // Predicated region
    $region122: #{tpu_custom_call.1} parent=1 // pred_check
      _
    $region123: #{tpu_custom_call.1} parent=1 // pred_check_branch
      %166 = sbr.rel (0) target = $region125
    $region124: #{tpu_custom_call.1} parent=1 // pred_region
      _
    $region125: #{tpu_custom_call.1} parent=1 // pred_fallthru
      _
    // Predicated region
    $region126: #{tpu_custom_call.1} parent=1 // pred_check
      _
    $region127: #{tpu_custom_call.1} parent=1 // pred_check_branch
      %168 = sbr.rel (0) target = $region129
    $region128: #{tpu_custom_call.1} parent=1 // pred_region
      _
    $region129: #{tpu_custom_call.1} parent=1 // pred_fallthru
      _
    // Predicated region
    $region130: #{tpu_custom_call.1} parent=1 // pred_check
      _
    $region131: #{tpu_custom_call.1} parent=1 // pred_check_branch
      %170 = sbr.rel (0) target = $region133
    $region132: #{tpu_custom_call.1} parent=1 // pred_region
      _
    $region133: #{tpu_custom_call.1} parent=1 // pred_fallthru
      _
    // Predicated region
    $region134: #{tpu_custom_call.1} parent=1 // pred_check
      _
    $region135: #{tpu_custom_call.1} parent=1 // pred_check_branch
      %172 = sbr.rel (0) target = $region137
    $region136: #{tpu_custom_call.1} parent=1 // pred_region
      _
    $region137: #{tpu_custom_call.1} parent=1 // pred_fallthru
      _
    // Predicated region
    $region138: #{tpu_custom_call.1} parent=1 // pred_check
      _
    $region139: #{tpu_custom_call.1} parent=1 // pred_check_branch
      %174 = sbr.rel (0) target = $region141
    $region140: #{tpu_custom_call.1} parent=1 // pred_region
      %s176 = ssub.s32 16, 16
      %177 = vsyncadd [#allocation4], %s176
      %s179 = sshll.u32 [#allocation3], 4
      %s180 = int_to_ptr.vmem [resolvable:$true] %s179
      %182 = dma.hbm_to_vmem [thread:$0]  %s69, 16, %s180, [#allocation4]
    $region141: #{tpu_custom_call.1} parent=1 // pred_fallthru
      _
    // Predicated region
    $region142: #{tpu_custom_call.1} parent=1 // pred_check
      _
    $region143: #{tpu_custom_call.1} parent=1 // pred_check_branch
      %184 = sbr.rel (0) target = $region145
    $region144: #{tpu_custom_call.1} parent=1 // pred_region
      %s186 = ssub.s32 16, 16
      %187 = vsyncadd [#allocation6], %s186
      %s189 = sshll.u32 [#allocation5], 4
      %s190 = int_to_ptr.vmem [resolvable:$true] %s189
      %192 = dma.hbm_to_vmem [thread:$0]  %s71, 16, %s190, [#allocation6]
    $region145: #{tpu_custom_call.1} parent=1 // pred_fallthru
      _
    // Predicated region
    $region146: #{tpu_custom_call.1} parent=1 // pred_check
      _
    $region147: #{tpu_custom_call.1} parent=1 // pred_check_branch
      %194 = sbr.rel (0) target = $region149
    $region148: #{tpu_custom_call.1} parent=1 // pred_region
      _
    $region149: #{tpu_custom_call.1} parent=1 // pred_fallthru
      _
    // Predicated region
    $region150: #{tpu_custom_call.1} parent=1 // pred_check
      _
    $region151: #{tpu_custom_call.1} parent=1 // pred_check_branch
      %196 = sbr.rel (0) target = $region153
    $region152: #{tpu_custom_call.1} parent=1 // pred_region
      _
    $region153: #{tpu_custom_call.1} parent=1 // pred_fallthru
      _
    // Predicated region
    $region154: #{tpu_custom_call.1} parent=1 // pred_check
      _
    $region155: #{tpu_custom_call.1} parent=1 // pred_check_branch
      %198 = sbr.rel (0) target = $region157
    $region156: #{tpu_custom_call.1} parent=1 // pred_region
      _
    $region157: #{tpu_custom_call.1} parent=1 // pred_fallthru
      _
    // Predicated region
    $region158: #{tpu_custom_call.1} parent=1 // pred_check
      _
    $region159: #{tpu_custom_call.1} parent=1 // pred_check_branch
      %200 = sbr.rel (0) target = $region161
    $region160: #{tpu_custom_call.1} parent=1 // pred_region
      %s202 = ssub.s32 16, 16
      %203 = vsyncadd [#allocation6], %s202
      %s205 = sshll.u32 [#allocation7], 4
      %s206 = int_to_ptr.vmem [resolvable:$true] %s205
      %208 = dma.hbm_to_vmem [thread:$0]  %s79, 16, %s206, [#allocation6]
    $region161: #{tpu_custom_call.1} parent=1 // pred_fallthru
      _
    // Predicated region
    $region162: #{tpu_custom_call.1} parent=1 // pred_check
      _
    $region163: #{tpu_custom_call.1} parent=1 // pred_check_branch
      %210 = sbr.rel (0) target = $region165
    $region164: #{tpu_custom_call.1} parent=1 // pred_region
      %s212 = ssub.s32 16, 16
      %213 = vsyncadd [#allocation9], %s212
      %s215 = sshll.u32 [#allocation8], 4
      %s216 = int_to_ptr.vmem [resolvable:$true] %s215
      %218 = dma.hbm_to_vmem [thread:$0]  %s81, 16, %s216, [#allocation9]
    $region165: #{tpu_custom_call.1} parent=1 // pred_fallthru
      _
    // Predicated region
    $region166: #{tpu_custom_call.1} parent=1 // pred_check
      _
    $region167: #{tpu_custom_call.1} parent=1 // pred_check_branch
      %220 = sbr.rel (0) target = $region169
    $region168: #{tpu_custom_call.1} parent=1 // pred_region
      %s222 = ssub.s32 16, 16
      %223 = vsyncadd [#allocation9], %s222
      %s225 = sshll.u32 [#allocation10], 4
      %s226 = int_to_ptr.vmem [resolvable:$true] %s225
      %228 = dma.hbm_to_vmem [thread:$0]  %s83, 16, %s226, [#allocation9]
    $region169: #{tpu_custom_call.1} parent=1 // pred_fallthru
      _
    // Predicated region
    $region170: #{tpu_custom_call.1} parent=1 // pred_check
      _
    $region171: #{tpu_custom_call.1} parent=1 // pred_check_branch
      %230 = sbr.rel (0) target = $region173
    $region172: #{tpu_custom_call.1} parent=1 // pred_region
      _
    $region173: #{tpu_custom_call.1} parent=1 // pred_fallthru
      _
    // Predicated region
    $region174: #{tpu_custom_call.1} parent=1 // pred_check
      _
    $region175: #{tpu_custom_call.1} parent=1 // pred_check_branch
      %232 = sbr.rel (0) target = $region177
    $region176: #{tpu_custom_call.1} parent=1 // pred_region
      _
    $region177: #{tpu_custom_call.1} parent=1 // pred_fallthru
      _
    // Predicated region
    $region178: #{tpu_custom_call.1} parent=1 // pred_check
      _
    $region179: #{tpu_custom_call.1} parent=1 // pred_check_branch
      %234 = sbr.rel (0) target = $region181
    $region180: #{tpu_custom_call.1} parent=1 // pred_region
      _
    $region181: #{tpu_custom_call.1} parent=1 // pred_fallthru
      _
    // Predicated region
    $region182: #{tpu_custom_call.1} parent=1 // pred_check
      _
    $region183: #{tpu_custom_call.1} parent=1 // pred_check_branch
      %236 = sbr.rel (0) target = $region185
    $region184: #{tpu_custom_call.1} parent=1 // pred_region
      _
    $region185: #{tpu_custom_call.1} parent=1 // pred_fallthru
      _
    // Predicated region
    $region186: #{tpu_custom_call.1} parent=1 // pred_check
      _
    $region187: #{tpu_custom_call.1} parent=1 // pred_check_branch
      %238 = sbr.rel (0) target = $region189
    $region188: #{tpu_custom_call.1} parent=1 // pred_region
      _
    $region189: #{tpu_custom_call.1} parent=1 // pred_fallthru
      _
    // Predicated region
    $region190: #{tpu_custom_call.1} parent=1 // pred_check
      _
    $region191: #{tpu_custom_call.1} parent=1 // pred_check_branch
      %240 = sbr.rel (0) target = $region193
    $region192: #{tpu_custom_call.1} parent=1 // pred_region
      %241 = dma.done [#allocation4], 16
    $region193: #{tpu_custom_call.1} parent=1 // pred_fallthru
      _
    // Predicated region
    $region194: #{tpu_custom_call.1} parent=1 // pred_check
      _
    $region195: #{tpu_custom_call.1} parent=1 // pred_check_branch
      %243 = sbr.rel (0) target = $region197
    $region196: #{tpu_custom_call.1} parent=1 // pred_region
      %244 = dma.done [#allocation6], 16
    $region197: #{tpu_custom_call.1} parent=1 // pred_fallthru
      _
    // Predicated region
    $region198: #{tpu_custom_call.1} parent=1 // pred_check
      _
    $region199: #{tpu_custom_call.1} parent=1 // pred_check_branch
      %246 = sbr.rel (0) target = $region201
    $region200: #{tpu_custom_call.1} parent=1 // pred_region
      %247 = dma.done [#allocation6], 16
    $region201: #{tpu_custom_call.1} parent=1 // pred_fallthru
      _
    // Predicated region
    $region202: #{tpu_custom_call.1} parent=1 // pred_check
      _
    $region203: #{tpu_custom_call.1} parent=1 // pred_check_branch
      %249 = sbr.rel (0) target = $region205
    $region204: #{tpu_custom_call.1} parent=1 // pred_region
      %250 = dma.done [#allocation9], 16
    $region205: #{tpu_custom_call.1} parent=1 // pred_fallthru
      _
    // Predicated region
    $region206: #{tpu_custom_call.1} parent=1 // pred_check
      _
    $region207: #{tpu_custom_call.1} parent=1 // pred_check_branch
      %252 = sbr.rel (0) target = $region209
    $region208: #{tpu_custom_call.1} parent=1 // pred_region
      %253 = dma.done [#allocation9], 16
    $region209: #{tpu_custom_call.1} parent=1 // pred_fallthru
      _
    %v255 = vld [vmem:[%s1] sm:$0xff]
    %v256 = vld [vmem:[%s1 + $0x8] sm:$0xff]
    %v257 = vld [vmem:[%s1 + $0x10] sm:$0xff]
    %v258 = vld [vmem:[%s1 + $0x18] sm:$0xff]
    %v259 = vpack.c.bf16 %v256, %v255
    %v260 = vpack.c.bf16 %v258, %v257
    %v261 = vld [vmem:[%s3] sm:$0xf]
    %v262 = vld [vmem:[%s3 + $0x4] sm:$0xf]
    %v263 = vld [vmem:[%s3 + $0x8] sm:$0xf]
    %v264 = vld [vmem:[%s3 + $0xc] sm:$0xf]
    %v269 = vunpack.c.l.b16 %v261
    %v270 = vunpack.c.l.b16 %v262
    %v271 = vunpack.c.l.b16 %v263
    %v272 = vunpack.c.l.b16 %v264
    %v273 = vpack.c.b16 %v270, %v269
    %v274 = vpack.c.b16 %v272, %v271
    %vm275 = vcmask 261120
    %v277 = vsel %vm275, %v273, 0
    %v280 = vsel %vm275, %v274, 0
    %282 = vmatprep.subr.bf16.mxu0 0
    %283 = vmatpush1.bf16.msra.mxu0 0
    %284 = vmatprep.subr.bf16.mxu0 0
    %285 = vmatpush1.bf16.msra.mxu0 0
    %286 = vmatprep.subr.bf16.mxu0 0
    %287 = vmatpush1.bf16.msra.mxu0 0
    %288 = vmatprep.subr.bf16.mxu0 0
    %289 = vmatpush1.bf16.msra.mxu0 0
    %290 = vmatprep.subr.bf16.mxu0 0
    %291 = vmatpush1.bf16.msra.mxu0 0
    %292 = vmatprep.subr.bf16.mxu0 0
    %293 = vmatpush1.bf16.msra.mxu0 0
    %294 = vmatprep.subr.bf16.mxu0 0
    %295 = vmatpush1.bf16.msra.mxu0 %v260
    %296 = vmatprep.subr.bf16.mxu0 0
    %297 = vmatpush1.bf16.msra.mxu0 %v259
    %298 = vmatprep.subr.bf16.mxu0 0
    %299 = vmatpush2.bf16.msra.mxu0 0
    %300 = vmatprep.subr.bf16.mxu0 0
    %301 = vmatpush2.bf16.msra.mxu0 0
    %302 = vmatprep.subr.bf16.mxu0 0
    %303 = vmatpush2.bf16.msra.mxu0 0
    %304 = vmatprep.subr.bf16.mxu0 0
    %305 = vmatpush2.bf16.msra.mxu0 0
    %306 = vmatprep.subr.bf16.mxu0 0
    %307 = vmatpush2.bf16.msra.mxu0 0
    %308 = vmatprep.subr.bf16.mxu0 0
    %309 = vmatpush2.bf16.msra.mxu0 0
    %310 = vmatprep.subr.bf16.mxu0 0
    %311 = vmatpush2.bf16.msra.mxu0 0
    %312 = vmatprep.subr.bf16.mxu0 0
    %313 = vmatpush2.bf16.msra.mxu0 0
    %314 = vmatprep.mubr.bf16.mxu0 0
    %315 = vmatmul.mubr.bf16.gmra.mxu0 %v277
    %v316 = vpop.f32.mrf.mxu0
    %v317 = vadd.f32 0.0, %v316
    %v318 = vpop.f32.mrf.mxu0
    %v319 = vpop.f32.mrf.mxu0
    %v320 = vadd.f32 0.0, %v319
    %v321 = vpop.f32.mrf.mxu0
    %322 = vmatprep.mubr.bf16.mxu0 0
    %323 = vmatmul.mubr.bf16.gmra.mxu0 %v280
    %v324 = vpop.f32.mrf.mxu0
    %v325 = vadd.f32 0.0, %v324
    %v326 = vpop.f32.mrf.mxu0
    %v327 = vpop.f32.mrf.mxu0
    %v328 = vadd.f32 0.0, %v327
    %v329 = vpop.f32.mrf.mxu0
    %330 = vdwg.mxu0
    %v331 = vpack.c.bf16 %v320, %v317
    %v332 = vpack.c.bf16 %v328, %v325
    %v333 = vld [vmem:[%s5] sm:$0xf]
    %v334 = vld [vmem:[%s5 + $0x4] sm:$0xf]
    %v335 = vld [vmem:[%s5 + $0x8] sm:$0xf]
    %v336 = vld [vmem:[%s5 + $0xc] sm:$0xf]
    %v337 = vld [vmem:[%s5 + $0x10] sm:$0xf]
    %v338 = vld [vmem:[%s5 + $0x14] sm:$0xf]
    %s339 = scalar_lea.vmem %s3, 16
    %v340 = vld [vmem:[%s339] sm:$0xf]
    %v341 = vld [vmem:[%s339 + $0x4] sm:$0xf]
    %v342 = vld [vmem:[%s339 + $0x8] sm:$0xf]
    %v343 = vld [vmem:[%s339 + $0xc] sm:$0xf]
    %v348 = vunpack.c.l.b16 %v340
    %v349 = vunpack.c.l.b16 %v341
    %v350 = vunpack.c.l.b16 %v342
    %v351 = vunpack.c.l.b16 %v343
    %v352 = vpack.c.b16 %v349, %v348
    %v353 = vpack.c.b16 %v351, %v350
    %v355 = vsel %vm275, %v352, 0
    %v358 = vsel %vm275, %v353, 0
    %360 = vmatprep.subr.bf16.mxu0 0
    %361 = vmatpush1.bf16.msra.mxu0 0
    %362 = vmatprep.subr.bf16.mxu0 0
    %363 = vmatpush1.bf16.msra.mxu0 0
    %364 = vmatprep.subr.bf16.mxu0 0
    %365 = vmatpush1.bf16.msra.mxu0 0
    %366 = vmatprep.subr.bf16.mxu0 0
    %367 = vmatpush1.bf16.msra.mxu0 0
    %368 = vmatprep.subr.bf16.mxu0 0
    %369 = vmatpush1.bf16.msra.mxu0 0
    %370 = vmatprep.subr.bf16.mxu0 0
    %371 = vmatpush1.bf16.msra.mxu0 0
    %372 = vmatprep.subr.bf16.mxu0 0
    %373 = vmatpush1.bf16.msra.mxu0 %v260
    %374 = vmatprep.subr.bf16.mxu0 0
    %375 = vmatpush1.bf16.msra.mxu0 %v259
    %376 = vmatprep.subr.bf16.mxu0 0
    %377 = vmatpush2.bf16.msra.mxu0 0
    %378 = vmatprep.subr.bf16.mxu0 0
    %379 = vmatpush2.bf16.msra.mxu0 0
    %380 = vmatprep.subr.bf16.mxu0 0
    %381 = vmatpush2.bf16.msra.mxu0 0
    %382 = vmatprep.subr.bf16.mxu0 0
    %383 = vmatpush2.bf16.msra.mxu0 0
    %384 = vmatprep.subr.bf16.mxu0 0
    %385 = vmatpush2.bf16.msra.mxu0 0
    %386 = vmatprep.subr.bf16.mxu0 0
    %387 = vmatpush2.bf16.msra.mxu0 0
    %388 = vmatprep.subr.bf16.mxu0 0
    %389 = vmatpush2.bf16.msra.mxu0 0
    %390 = vmatprep.subr.bf16.mxu0 0
    %391 = vmatpush2.bf16.msra.mxu0 0
    %392 = vmatprep.mubr.bf16.mxu0 0
    %393 = vmatmul.mubr.bf16.gmra.mxu0 %v355
    %v394 = vpop.f32.mrf.mxu0
    %v395 = vadd.f32 0.0, %v394
    %v396 = vpop.f32.mrf.mxu0
    %v397 = vpop.f32.mrf.mxu0
    %v398 = vadd.f32 0.0, %v397
    %v399 = vpop.f32.mrf.mxu0
    %400 = vmatprep.mubr.bf16.mxu0 0
    %401 = vmatmul.mubr.bf16.gmra.mxu0 %v358
    %v402 = vpop.f32.mrf.mxu0
    %v403 = vadd.f32 0.0, %v402
    %v404 = vpop.f32.mrf.mxu0
    %v405 = vpop.f32.mrf.mxu0
    %v406 = vadd.f32 0.0, %v405
    %v407 = vpop.f32.mrf.mxu0
    %408 = vdwg.mxu0
    %v409 = vpack.c.bf16 %v398, %v395
    %v410 = vpack.c.bf16 %v406, %v403
    %s411 = scalar_lea.vmem %s5, 24
    %v412 = vld [vmem:[%s411] sm:$0xf]
    %v413 = vld [vmem:[%s411 + $0x4] sm:$0xf]
    %v414 = vld [vmem:[%s411 + $0x8] sm:$0xf]
    %v415 = vld [vmem:[%s411 + $0xc] sm:$0xf]
    %v416 = vld [vmem:[%s411 + $0x10] sm:$0xf]
    %v417 = vld [vmem:[%s411 + $0x14] sm:$0xf]
    %v424 = vunpack.c.l.b16 %v412
    %v425 = vunpack.c.l.b16 %v413
    %v426 = vunpack.c.l.b16 %v414
    %v427 = vunpack.c.l.b16 %v415
    %v428 = vunpack.c.l.b16 %v416
    %v429 = vunpack.c.l.b16 %v417
    %v430 = vpack.c.b16 %v425, %v424
    %v431 = vpack.c.b16 %v427, %v426
    %v432 = vpack.c.b16 %v429, %v428
    %vm436 = vcmask 392192
    %v438 = vsel %vm436, %v409, 0
    %v441 = vsel %vm436, %v410, 0
    %443 = vmatprep.subr.bf16.mxu0 0
    %444 = vmatpush1.bf16.msra.mxu0 0
    %445 = vmatprep.subr.bf16.mxu0 0
    %446 = vmatpush1.bf16.msra.mxu0 0
    %447 = vmatprep.subr.bf16.mxu0 0
    %448 = vmatpush1.bf16.msra.mxu0 0
    %449 = vmatprep.subr.bf16.mxu0 0
    %450 = vmatpush1.bf16.msra.mxu0 0
    %451 = vmatprep.subr.bf16.mxu0 0
    %452 = vmatpush1.bf16.msra.mxu0 0
    %453 = vmatprep.subr.bf16.mxu0 0
    %454 = vmatpush1.bf16.msra.mxu0 %v432
    %455 = vmatprep.subr.bf16.mxu0 0
    %456 = vmatpush1.bf16.msra.mxu0 %v431
    %457 = vmatprep.subr.bf16.mxu0 0
    %458 = vmatpush1.bf16.msra.mxu0 %v430
    %459 = vmatprep.subr.bf16.mxu0 0
    %460 = vmatpush2.bf16.msra.mxu0 0
    %461 = vmatprep.subr.bf16.mxu0 0
    %462 = vmatpush2.bf16.msra.mxu0 0
    %463 = vmatprep.subr.bf16.mxu0 0
    %464 = vmatpush2.bf16.msra.mxu0 0
    %465 = vmatprep.subr.bf16.mxu0 0
    %466 = vmatpush2.bf16.msra.mxu0 0
    %467 = vmatprep.subr.bf16.mxu0 0
    %468 = vmatpush2.bf16.msra.mxu0 0
    %469 = vmatprep.subr.bf16.mxu0 0
    %470 = vmatpush2.bf16.msra.mxu0 0
    %471 = vmatprep.subr.bf16.mxu0 0
    %472 = vmatpush2.bf16.msra.mxu0 0
    %473 = vmatprep.subr.bf16.mxu0 0
    %474 = vmatpush2.bf16.msra.mxu0 0
    %475 = vmatprep.mubr.bf16.mxu0 0
    %476 = vmatmul.mubr.bf16.gmra.mxu0 %v438
    %v477 = vpop.f32.mrf.mxu0
    %v478 = vadd.f32 0.0, %v477
    %v479 = vpop.f32.mrf.mxu0
    %v480 = vpop.f32.mrf.mxu0
    %v481 = vadd.f32 0.0, %v480
    %v482 = vpop.f32.mrf.mxu0
    %483 = vmatprep.mubr.bf16.mxu0 0
    %484 = vmatmul.mubr.bf16.gmra.mxu0 %v441
    %v485 = vpop.f32.mrf.mxu0
    %v486 = vadd.f32 0.0, %v485
    %v487 = vpop.f32.mrf.mxu0
    %v488 = vpop.f32.mrf.mxu0
    %v489 = vadd.f32 0.0, %v488
    %v490 = vpop.f32.mrf.mxu0
    %491 = vdwg.mxu0
    %v498 = vunpack.c.l.b16 %v333
    %v499 = vunpack.c.l.b16 %v334
    %v500 = vunpack.c.l.b16 %v335
    %v501 = vunpack.c.l.b16 %v336
    %v502 = vunpack.c.l.b16 %v337
    %v503 = vunpack.c.l.b16 %v338
    %v504 = vpack.c.b16 %v499, %v498
    %v505 = vpack.c.b16 %v501, %v500
    %v506 = vpack.c.b16 %v503, %v502
    %v511 = vsel %vm436, %v331, 0
    %v514 = vsel %vm436, %v332, 0
    %516 = vmatprep.subr.bf16.mxu0 0
    %517 = vmatpush1.bf16.msra.mxu0 0
    %518 = vmatprep.subr.bf16.mxu0 0
    %519 = vmatpush1.bf16.msra.mxu0 0
    %520 = vmatprep.subr.bf16.mxu0 0
    %521 = vmatpush1.bf16.msra.mxu0 0
    %522 = vmatprep.subr.bf16.mxu0 0
    %523 = vmatpush1.bf16.msra.mxu0 0
    %524 = vmatprep.subr.bf16.mxu0 0
    %525 = vmatpush1.bf16.msra.mxu0 0
    %526 = vmatprep.subr.bf16.mxu0 0
    %527 = vmatpush1.bf16.msra.mxu0 %v506
    %528 = vmatprep.subr.bf16.mxu0 0
    %529 = vmatpush1.bf16.msra.mxu0 %v505
    %530 = vmatprep.subr.bf16.mxu0 0
    %531 = vmatpush1.bf16.msra.mxu0 %v504
    %532 = vmatprep.subr.bf16.mxu0 0
    %533 = vmatpush2.bf16.msra.mxu0 0
    %534 = vmatprep.subr.bf16.mxu0 0
    %535 = vmatpush2.bf16.msra.mxu0 0
    %536 = vmatprep.subr.bf16.mxu0 0
    %537 = vmatpush2.bf16.msra.mxu0 0
    %538 = vmatprep.subr.bf16.mxu0 0
    %539 = vmatpush2.bf16.msra.mxu0 0
    %540 = vmatprep.subr.bf16.mxu0 0
    %541 = vmatpush2.bf16.msra.mxu0 0
    %542 = vmatprep.subr.bf16.mxu0 0
    %543 = vmatpush2.bf16.msra.mxu0 0
    %544 = vmatprep.subr.bf16.mxu0 0
    %545 = vmatpush2.bf16.msra.mxu0 0
    %546 = vmatprep.subr.bf16.mxu0 0
    %547 = vmatpush2.bf16.msra.mxu0 0
    %548 = vmatprep.mubr.bf16.mxu0 0
    %549 = vmatmul.mubr.bf16.gmra.mxu0 %v511
    %v550 = vpop.f32.mrf.mxu0
    %v551 = vadd.f32 %v478, %v550
    %v552 = vpop.f32.mrf.mxu0
    %v553 = vpop.f32.mrf.mxu0
    %v554 = vadd.f32 %v481, %v553
    %v555 = vpop.f32.mrf.mxu0
    %556 = vmatprep.mubr.bf16.mxu0 0
    %557 = vmatmul.mubr.bf16.gmra.mxu0 %v514
    %v558 = vpop.f32.mrf.mxu0
    %v559 = vadd.f32 %v486, %v558
    %v560 = vpop.f32.mrf.mxu0
    %v561 = vpop.f32.mrf.mxu0
    %v562 = vadd.f32 %v489, %v561
    %v563 = vpop.f32.mrf.mxu0
    %564 = vdwg.mxu0
    %s565 = scalar_lea.vmem %s3, 32
    %v566 = vld [vmem:[%s565] sm:$0xf]
    %v567 = vld [vmem:[%s565 + $0x4] sm:$0xf]
    %v568 = vld [vmem:[%s565 + $0x8] sm:$0xf]
    %v569 = vld [vmem:[%s565 + $0xc] sm:$0xf]
    %v574 = vunpack.c.l.b16 %v566
    %v575 = vunpack.c.l.b16 %v567
    %v576 = vunpack.c.l.b16 %v568
    %v577 = vunpack.c.l.b16 %v569
    %v578 = vpack.c.b16 %v575, %v574
    %v579 = vpack.c.b16 %v577, %v576
    %v581 = vsel %vm275, %v578, 0
    %v584 = vsel %vm275, %v579, 0
    %586 = vmatprep.subr.bf16.mxu0 0
    %587 = vmatpush1.bf16.msra.mxu0 0
    %588 = vmatprep.subr.bf16.mxu0 0
    %589 = vmatpush1.bf16.msra.mxu0 0
    %590 = vmatprep.subr.bf16.mxu0 0
    %591 = vmatpush1.bf16.msra.mxu0 0
    %592 = vmatprep.subr.bf16.mxu0 0
    %593 = vmatpush1.bf16.msra.mxu0 0
    %594 = vmatprep.subr.bf16.mxu0 0
    %595 = vmatpush1.bf16.msra.mxu0 0
    %596 = vmatprep.subr.bf16.mxu0 0
    %597 = vmatpush1.bf16.msra.mxu0 0
    %598 = vmatprep.subr.bf16.mxu0 0
    %599 = vmatpush1.bf16.msra.mxu0 %v260
    %600 = vmatprep.subr.bf16.mxu0 0
    %601 = vmatpush1.bf16.msra.mxu0 %v259
    %602 = vmatprep.subr.bf16.mxu0 0
    %603 = vmatpush2.bf16.msra.mxu0 0
    %604 = vmatprep.subr.bf16.mxu0 0
    %605 = vmatpush2.bf16.msra.mxu0 0
    %606 = vmatprep.subr.bf16.mxu0 0
    %607 = vmatpush2.bf16.msra.mxu0 0
    %608 = vmatprep.subr.bf16.mxu0 0
    %609 = vmatpush2.bf16.msra.mxu0 0
    %610 = vmatprep.subr.bf16.mxu0 0
    %611 = vmatpush2.bf16.msra.mxu0 0
    %612 = vmatprep.subr.bf16.mxu0 0
    %613 = vmatpush2.bf16.msra.mxu0 0
    %614 = vmatprep.subr.bf16.mxu0 0
    %615 = vmatpush2.bf16.msra.mxu0 0
    %616 = vmatprep.subr.bf16.mxu0 0
    %617 = vmatpush2.bf16.msra.mxu0 0
    %618 = vmatprep.mubr.bf16.mxu0 0
    %619 = vmatmul.mubr.bf16.gmra.mxu0 %v581
    %v620 = vpop.f32.mrf.mxu0
    %v621 = vadd.f32 0.0, %v620
    %v622 = vpop.f32.mrf.mxu0
    %v623 = vpop.f32.mrf.mxu0
    %v624 = vadd.f32 0.0, %v623
    %v625 = vpop.f32.mrf.mxu0
    %626 = vmatprep.mubr.bf16.mxu0 0
    %627 = vmatmul.mubr.bf16.gmra.mxu0 %v584
    %v628 = vpop.f32.mrf.mxu0
    %v629 = vadd.f32 0.0, %v628
    %v630 = vpop.f32.mrf.mxu0
    %v631 = vpop.f32.mrf.mxu0
    %v632 = vadd.f32 0.0, %v631
    %v633 = vpop.f32.mrf.mxu0
    %634 = vdwg.mxu0
    %v635 = vpack.c.bf16 %v624, %v621
    %v636 = vpack.c.bf16 %v632, %v629
    %s637 = scalar_lea.vmem %s5, 48
    %v638 = vld [vmem:[%s637] sm:$0xf]
    %v639 = vld [vmem:[%s637 + $0x4] sm:$0xf]
    %v640 = vld [vmem:[%s637 + $0x8] sm:$0xf]
    %v641 = vld [vmem:[%s637 + $0xc] sm:$0xf]
    %v642 = vld [vmem:[%s637 + $0x10] sm:$0xf]
    %v643 = vld [vmem:[%s637 + $0x14] sm:$0xf]
    %v650 = vunpack.c.l.b16 %v638
    %v651 = vunpack.c.l.b16 %v639
    %v652 = vunpack.c.l.b16 %v640
    %v653 = vunpack.c.l.b16 %v641
    %v654 = vunpack.c.l.b16 %v642
    %v655 = vunpack.c.l.b16 %v643
    %v656 = vpack.c.b16 %v651, %v650
    %v657 = vpack.c.b16 %v653, %v652
    %v658 = vpack.c.b16 %v655, %v654
    %v663 = vsel %vm436, %v635, 0
    %v666 = vsel %vm436, %v636, 0
    %668 = vmatprep.subr.bf16.mxu0 0
    %669 = vmatpush1.bf16.msra.mxu0 0
    %670 = vmatprep.subr.bf16.mxu0 0
    %671 = vmatpush1.bf16.msra.mxu0 0
    %672 = vmatprep.subr.bf16.mxu0 0
    %673 = vmatpush1.bf16.msra.mxu0 0
    %674 = vmatprep.subr.bf16.mxu0 0
    %675 = vmatpush1.bf16.msra.mxu0 0
    %676 = vmatprep.subr.bf16.mxu0 0
    %677 = vmatpush1.bf16.msra.mxu0 0
    %678 = vmatprep.subr.bf16.mxu0 0
    %679 = vmatpush1.bf16.msra.mxu0 %v658
    %680 = vmatprep.subr.bf16.mxu0 0
    %681 = vmatpush1.bf16.msra.mxu0 %v657
    %682 = vmatprep.subr.bf16.mxu0 0
    %683 = vmatpush1.bf16.msra.mxu0 %v656
    %684 = vmatprep.subr.bf16.mxu0 0
    %685 = vmatpush2.bf16.msra.mxu0 0
    %686 = vmatprep.subr.bf16.mxu0 0
    %687 = vmatpush2.bf16.msra.mxu0 0
    %688 = vmatprep.subr.bf16.mxu0 0
    %689 = vmatpush2.bf16.msra.mxu0 0
    %690 = vmatprep.subr.bf16.mxu0 0
    %691 = vmatpush2.bf16.msra.mxu0 0
    %692 = vmatprep.subr.bf16.mxu0 0
    %693 = vmatpush2.bf16.msra.mxu0 0
    %694 = vmatprep.subr.bf16.mxu0 0
    %695 = vmatpush2.bf16.msra.mxu0 0
    %696 = vmatprep.subr.bf16.mxu0 0
    %697 = vmatpush2.bf16.msra.mxu0 0
    %698 = vmatprep.subr.bf16.mxu0 0
    %699 = vmatpush2.bf16.msra.mxu0 0
    %700 = vmatprep.mubr.bf16.mxu0 0
    %701 = vmatmul.mubr.bf16.gmra.mxu0 %v663
    %v702 = vpop.f32.mrf.mxu0
    %v703 = vadd.f32 0.0, %v702
    %v704 = vpop.f32.mrf.mxu0
    %v705 = vpop.f32.mrf.mxu0
    %v706 = vadd.f32 0.0, %v705
    %v707 = vpop.f32.mrf.mxu0
    %708 = vmatprep.mubr.bf16.mxu0 0
    %709 = vmatmul.mubr.bf16.gmra.mxu0 %v666
    %v710 = vpop.f32.mrf.mxu0
    %v711 = vadd.f32 0.0, %v710
    %v712 = vpop.f32.mrf.mxu0
    %v713 = vpop.f32.mrf.mxu0
    %v714 = vadd.f32 0.0, %v713
    %v715 = vpop.f32.mrf.mxu0
    %716 = vdwg.mxu0
    %v717 = vadd.f32 %v551, %v703
    %v718 = vadd.f32 %v554, %v706
    %v719 = vadd.f32 %v559, %v711
    %v720 = vadd.f32 %v562, %v714
    %v721 = vld [vmem:[%s7] sm:$0x1]
    %v723 = vlaneseq
    %v724 = vshrl.u32 %v723, 7
    %v725 = vsub.s32 0, %v724
    %v726 = vrot.slane %v721, %v725
    %v728 = vadd.f32 %v717, %v726
    %v729 = vadd.f32 %v718, %v726
    %v730 = vadd.f32 %v719, %v726
    %v731 = vadd.f32 %v720, %v726
    %vm732 = vcmp.gt.f32.partialorder %v728, 0.0
    %vm733 = vcmp.gt.f32.partialorder %v729, 0.0
    %vm734 = vcmp.gt.f32.partialorder %v730, 0.0
    %vm735 = vcmp.gt.f32.partialorder %v731, 0.0
    %v736 = vmul.f32 %v728, 0.01
    %v737 = vmul.f32 %v729, 0.01
    %v738 = vmul.f32 %v730, 0.01
    %v739 = vmul.f32 %v731, 0.01
    %v740 = vsel %vm732, %v728, %v736
    %v741 = vsel %vm733, %v729, %v737
    %v742 = vsel %vm734, %v730, %v738
    %v743 = vsel %vm735, %v731, %v739
    %v744 = vpack.c.bf16 %v741, %v740
    %v745 = vpack.c.bf16 %v743, %v742
    %v746 = vld [vmem:[%s9] sm:$0xf]
    %v747 = vld [vmem:[%s9 + $0x4] sm:$0xf]
    %v750 = vunpack.c.l.b16 %v746
    %v751 = vunpack.c.l.b16 %v747
    %v752 = vpack.c.b16 %v751, %v750
    %v754 = vsel %vm275, %v752, 0
    %756 = vmatprep.subr.bf16.mxu0 0
    %757 = vmatpush1.bf16.msra.mxu0 0
    %758 = vmatprep.subr.bf16.mxu0 0
    %759 = vmatpush1.bf16.msra.mxu0 0
    %760 = vmatprep.subr.bf16.mxu0 0
    %761 = vmatpush1.bf16.msra.mxu0 0
    %762 = vmatprep.subr.bf16.mxu0 0
    %763 = vmatpush1.bf16.msra.mxu0 0
    %764 = vmatprep.subr.bf16.mxu0 0
    %765 = vmatpush1.bf16.msra.mxu0 0
    %766 = vmatprep.subr.bf16.mxu0 0
    %767 = vmatpush1.bf16.msra.mxu0 0
    %768 = vmatprep.subr.bf16.mxu0 0
    %769 = vmatpush1.bf16.msra.mxu0 %v745
    %770 = vmatprep.subr.bf16.mxu0 0
    %771 = vmatpush1.bf16.msra.mxu0 %v744
    %772 = vmatprep.subr.bf16.mxu0 0
    %773 = vmatpush2.bf16.msra.mxu0 0
    %774 = vmatprep.subr.bf16.mxu0 0
    %775 = vmatpush2.bf16.msra.mxu0 0
    %776 = vmatprep.subr.bf16.mxu0 0
    %777 = vmatpush2.bf16.msra.mxu0 0
    %778 = vmatprep.subr.bf16.mxu0 0
    %779 = vmatpush2.bf16.msra.mxu0 0
    %780 = vmatprep.subr.bf16.mxu0 0
    %781 = vmatpush2.bf16.msra.mxu0 0
    %782 = vmatprep.subr.bf16.mxu0 0
    %783 = vmatpush2.bf16.msra.mxu0 0
    %784 = vmatprep.subr.bf16.mxu0 0
    %785 = vmatpush2.bf16.msra.mxu0 0
    %786 = vmatprep.subr.bf16.mxu0 0
    %787 = vmatpush2.bf16.msra.mxu0 0
    %788 = vmatprep.mubr.bf16.mxu0 0
    %789 = vmatmul.mubr.bf16.gmra.mxu0 %v754
    %v790 = vpop.f32.mrf.mxu0
    %v791 = vadd.f32 0.0, %v790
    %v792 = vpop.f32.mrf.mxu0
    %v793 = vpop.f32.mrf.mxu0
    %v794 = vadd.f32 0.0, %v793
    %v795 = vpop.f32.mrf.mxu0
    %796 = vdwg.mxu0
    %v797 = vpack.c.bf16 %v794, %v791
    %v798 = vld [vmem:[%s11] sm:$0xf]
    %v799 = vld [vmem:[%s11 + $0x4] sm:$0xf]
    %v800 = vld [vmem:[%s11 + $0x8] sm:$0xf]
    %v801 = vld [vmem:[%s11 + $0xc] sm:$0xf]
    %v802 = vld [vmem:[%s11 + $0x10] sm:$0xf]
    %v803 = vld [vmem:[%s11 + $0x14] sm:$0xf]
    %v804 = vld [vmem:[%s11 + $0x18] sm:$0xf]
    %v805 = vld [vmem:[%s11 + $0x1c] sm:$0xf]
    %v806 = vld [vmem:[%s11 + $0x20] sm:$0xf]
    %v807 = vld [vmem:[%s11 + $0x24] sm:$0xf]
    %v808 = vld [vmem:[%s11 + $0x28] sm:$0xf]
    %v809 = vld [vmem:[%s11 + $0x2c] sm:$0xf]
    %v810 = vld [vmem:[%s11 + $0x30] sm:$0xf]
    %v811 = vld [vmem:[%s11 + $0x34] sm:$0xf]
    %v812 = vld [vmem:[%s11 + $0x38] sm:$0xf]
    %v813 = vld [vmem:[%s11 + $0x3c] sm:$0xf]
    %s814 = scalar_lea.vmem %s9, 8
    %v815 = vld [vmem:[%s814] sm:$0xf]
    %v816 = vld [vmem:[%s814 + $0x4] sm:$0xf]
    %v819 = vunpack.c.l.b16 %v815
    %v820 = vunpack.c.l.b16 %v816
    %v821 = vpack.c.b16 %v820, %v819
    %v823 = vsel %vm275, %v821, 0
    %825 = vmatprep.subr.bf16.mxu0 0
    %826 = vmatpush1.bf16.msra.mxu0 0
    %827 = vmatprep.subr.bf16.mxu0 0
    %828 = vmatpush1.bf16.msra.mxu0 0
    %829 = vmatprep.subr.bf16.mxu0 0
    %830 = vmatpush1.bf16.msra.mxu0 0
    %831 = vmatprep.subr.bf16.mxu0 0
    %832 = vmatpush1.bf16.msra.mxu0 0
    %833 = vmatprep.subr.bf16.mxu0 0
    %834 = vmatpush1.bf16.msra.mxu0 0
    %835 = vmatprep.subr.bf16.mxu0 0
    %836 = vmatpush1.bf16.msra.mxu0 0
    %837 = vmatprep.subr.bf16.mxu0 0
    %838 = vmatpush1.bf16.msra.mxu0 %v745
    %839 = vmatprep.subr.bf16.mxu0 0
    %840 = vmatpush1.bf16.msra.mxu0 %v744
    %841 = vmatprep.subr.bf16.mxu0 0
    %842 = vmatpush2.bf16.msra.mxu0 0
    %843 = vmatprep.subr.bf16.mxu0 0
    %844 = vmatpush2.bf16.msra.mxu0 0
    %845 = vmatprep.subr.bf16.mxu0 0
    %846 = vmatpush2.bf16.msra.mxu0 0
    %847 = vmatprep.subr.bf16.mxu0 0
    %848 = vmatpush2.bf16.msra.mxu0 0
    %849 = vmatprep.subr.bf16.mxu0 0
    %850 = vmatpush2.bf16.msra.mxu0 0
    %851 = vmatprep.subr.bf16.mxu0 0
    %852 = vmatpush2.bf16.msra.mxu0 0
    %853 = vmatprep.subr.bf16.mxu0 0
    %854 = vmatpush2.bf16.msra.mxu0 0
    %855 = vmatprep.subr.bf16.mxu0 0
    %856 = vmatpush2.bf16.msra.mxu0 0
    %857 = vmatprep.mubr.bf16.mxu0 0
    %858 = vmatmul.mubr.bf16.gmra.mxu0 %v823
    %v859 = vpop.f32.mrf.mxu0
    %v860 = vadd.f32 0.0, %v859
    %v861 = vpop.f32.mrf.mxu0
    %v862 = vpop.f32.mrf.mxu0
    %v863 = vadd.f32 0.0, %v862
    %v864 = vpop.f32.mrf.mxu0
    %865 = vdwg.mxu0
    %v866 = vpack.c.bf16 %v863, %v860
    %s867 = scalar_lea.vmem %s11, 64
    %v868 = vld [vmem:[%s867] sm:$0xf]
    %v869 = vld [vmem:[%s867 + $0x4] sm:$0xf]
    %v870 = vld [vmem:[%s867 + $0x8] sm:$0xf]
    %v871 = vld [vmem:[%s867 + $0xc] sm:$0xf]
    %v872 = vld [vmem:[%s867 + $0x10] sm:$0xf]
    %v873 = vld [vmem:[%s867 + $0x14] sm:$0xf]
    %v874 = vld [vmem:[%s867 + $0x18] sm:$0xf]
    %v875 = vld [vmem:[%s867 + $0x1c] sm:$0xf]
    %v876 = vld [vmem:[%s867 + $0x20] sm:$0xf]
    %v877 = vld [vmem:[%s867 + $0x24] sm:$0xf]
    %v878 = vld [vmem:[%s867 + $0x28] sm:$0xf]
    %v879 = vld [vmem:[%s867 + $0x2c] sm:$0xf]
    %v880 = vld [vmem:[%s867 + $0x30] sm:$0xf]
    %v881 = vld [vmem:[%s867 + $0x34] sm:$0xf]
    %v882 = vld [vmem:[%s867 + $0x38] sm:$0xf]
    %v883 = vld [vmem:[%s867 + $0x3c] sm:$0xf]
    %v900 = vunpack.c.l.b16 %v868
    %v901 = vunpack.c.l.b16 %v869
    %v902 = vunpack.c.l.b16 %v870
    %v903 = vunpack.c.l.b16 %v871
    %v904 = vunpack.c.l.b16 %v872
    %v905 = vunpack.c.l.b16 %v873
    %v906 = vunpack.c.l.b16 %v874
    %v907 = vunpack.c.l.b16 %v875
    %v908 = vunpack.c.l.b16 %v876
    %v909 = vunpack.c.l.b16 %v877
    %v910 = vunpack.c.l.b16 %v878
    %v911 = vunpack.c.l.b16 %v879
    %v912 = vunpack.c.l.b16 %v880
    %v913 = vunpack.c.l.b16 %v881
    %v914 = vunpack.c.l.b16 %v882
    %v915 = vunpack.c.l.b16 %v883
    %v916 = vpack.c.b16 %v901, %v900
    %v917 = vpack.c.b16 %v903, %v902
    %v918 = vpack.c.b16 %v905, %v904
    %v919 = vpack.c.b16 %v907, %v906
    %v920 = vpack.c.b16 %v909, %v908
    %v921 = vpack.c.b16 %v911, %v910
    %v922 = vpack.c.b16 %v913, %v912
    %v923 = vpack.c.b16 %v915, %v914
    %932 = vmatprep.subr.bf16.mxu0 0
    %933 = vmatpush1.bf16.msra.mxu0 %v923
    %934 = vmatprep.subr.bf16.mxu0 0
    %935 = vmatpush1.bf16.msra.mxu0 %v922
    %936 = vmatprep.subr.bf16.mxu0 0
    %937 = vmatpush1.bf16.msra.mxu0 %v921
    %938 = vmatprep.subr.bf16.mxu0 0
    %939 = vmatpush1.bf16.msra.mxu0 %v920
    %940 = vmatprep.subr.bf16.mxu0 0
    %941 = vmatpush1.bf16.msra.mxu0 %v919
    %942 = vmatprep.subr.bf16.mxu0 0
    %943 = vmatpush1.bf16.msra.mxu0 %v918
    %944 = vmatprep.subr.bf16.mxu0 0
    %945 = vmatpush1.bf16.msra.mxu0 %v917
    %946 = vmatprep.subr.bf16.mxu0 0
    %947 = vmatpush1.bf16.msra.mxu0 %v916
    %948 = vmatprep.subr.bf16.mxu0 0
    %949 = vmatpush2.bf16.msra.mxu0 0
    %950 = vmatprep.subr.bf16.mxu0 0
    %951 = vmatpush2.bf16.msra.mxu0 0
    %952 = vmatprep.subr.bf16.mxu0 0
    %953 = vmatpush2.bf16.msra.mxu0 0
    %954 = vmatprep.subr.bf16.mxu0 0
    %955 = vmatpush2.bf16.msra.mxu0 0
    %956 = vmatprep.subr.bf16.mxu0 0
    %957 = vmatpush2.bf16.msra.mxu0 0
    %958 = vmatprep.subr.bf16.mxu0 0
    %959 = vmatpush2.bf16.msra.mxu0 0
    %960 = vmatprep.subr.bf16.mxu0 0
    %961 = vmatpush2.bf16.msra.mxu0 0
    %962 = vmatprep.subr.bf16.mxu0 0
    %963 = vmatpush2.bf16.msra.mxu0 0
    %964 = vmatprep.mubr.bf16.mxu0 0
    %965 = vmatmul.mubr.bf16.gmra.mxu0 %v866
    %v966 = vpop.f32.mrf.mxu0
    %v967 = vadd.f32 0.0, %v966
    %v968 = vpop.f32.mrf.mxu0
    %v969 = vpop.f32.mrf.mxu0
    %v970 = vadd.f32 0.0, %v969
    %v971 = vpop.f32.mrf.mxu0
    %972 = vdwg.mxu0
    %v989 = vunpack.c.l.b16 %v798
    %v990 = vunpack.c.l.b16 %v799
    %v991 = vunpack.c.l.b16 %v800
    %v992 = vunpack.c.l.b16 %v801
    %v993 = vunpack.c.l.b16 %v802
    %v994 = vunpack.c.l.b16 %v803
    %v995 = vunpack.c.l.b16 %v804
    %v996 = vunpack.c.l.b16 %v805
    %v997 = vunpack.c.l.b16 %v806
    %v998 = vunpack.c.l.b16 %v807
    %v999 = vunpack.c.l.b16 %v808
    %v1000 = vunpack.c.l.b16 %v809
    %v1001 = vunpack.c.l.b16 %v810
    %v1002 = vunpack.c.l.b16 %v811
    %v1003 = vunpack.c.l.b16 %v812
    %v1004 = vunpack.c.l.b16 %v813
    %v1005 = vpack.c.b16 %v990, %v989
    %v1006 = vpack.c.b16 %v992, %v991
    %v1007 = vpack.c.b16 %v994, %v993
    %v1008 = vpack.c.b16 %v996, %v995
    %v1009 = vpack.c.b16 %v998, %v997
    %v1010 = vpack.c.b16 %v1000, %v999
    %v1011 = vpack.c.b16 %v1002, %v1001
    %v1012 = vpack.c.b16 %v1004, %v1003
    %1021 = vmatprep.subr.bf16.mxu0 0
    %1022 = vmatpush1.bf16.msra.mxu0 %v1012
    %1023 = vmatprep.subr.bf16.mxu0 0
    %1024 = vmatpush1.bf16.msra.mxu0 %v1011
    %1025 = vmatprep.subr.bf16.mxu0 0
    %1026 = vmatpush1.bf16.msra.mxu0 %v1010
    %1027 = vmatprep.subr.bf16.mxu0 0
    %1028 = vmatpush1.bf16.msra.mxu0 %v1009
    %1029 = vmatprep.subr.bf16.mxu0 0
    %1030 = vmatpush1.bf16.msra.mxu0 %v1008
    %1031 = vmatprep.subr.bf16.mxu0 0
    %1032 = vmatpush1.bf16.msra.mxu0 %v1007
    %1033 = vmatprep.subr.bf16.mxu0 0
    %1034 = vmatpush1.bf16.msra.mxu0 %v1006
    %1035 = vmatprep.subr.bf16.mxu0 0
    %1036 = vmatpush1.bf16.msra.mxu0 %v1005
    %1037 = vmatprep.subr.bf16.mxu0 0
    %1038 = vmatpush2.bf16.msra.mxu0 0
    %1039 = vmatprep.subr.bf16.mxu0 0
    %1040 = vmatpush2.bf16.msra.mxu0 0
    %1041 = vmatprep.subr.bf16.mxu0 0
    %1042 = vmatpush2.bf16.msra.mxu0 0
    %1043 = vmatprep.subr.bf16.mxu0 0
    %1044 = vmatpush2.bf16.msra.mxu0 0
    %1045 = vmatprep.subr.bf16.mxu0 0
    %1046 = vmatpush2.bf16.msra.mxu0 0
    %1047 = vmatprep.subr.bf16.mxu0 0
    %1048 = vmatpush2.bf16.msra.mxu0 0
    %1049 = vmatprep.subr.bf16.mxu0 0
    %1050 = vmatpush2.bf16.msra.mxu0 0
    %1051 = vmatprep.subr.bf16.mxu0 0
    %1052 = vmatpush2.bf16.msra.mxu0 0
    %1053 = vmatprep.mubr.bf16.mxu0 0
    %1054 = vmatmul.mubr.bf16.gmra.mxu0 %v797
    %v1055 = vpop.f32.mrf.mxu0
    %v1056 = vadd.f32 %v967, %v1055
    %v1057 = vpop.f32.mrf.mxu0
    %v1058 = vpop.f32.mrf.mxu0
    %v1059 = vadd.f32 %v970, %v1058
    %v1060 = vpop.f32.mrf.mxu0
    %1061 = vdwg.mxu0
    %s1062 = scalar_lea.vmem %s9, 16
    %v1063 = vld [vmem:[%s1062] sm:$0xf]
    %v1064 = vld [vmem:[%s1062 + $0x4] sm:$0xf]
    %v1067 = vunpack.c.l.b16 %v1063
    %v1068 = vunpack.c.l.b16 %v1064
    %v1069 = vpack.c.b16 %v1068, %v1067
    %v1071 = vsel %vm275, %v1069, 0
    %1073 = vmatprep.subr.bf16.mxu0 0
    %1074 = vmatpush1.bf16.msra.mxu0 0
    %1075 = vmatprep.subr.bf16.mxu0 0
    %1076 = vmatpush1.bf16.msra.mxu0 0
    %1077 = vmatprep.subr.bf16.mxu0 0
    %1078 = vmatpush1.bf16.msra.mxu0 0
    %1079 = vmatprep.subr.bf16.mxu0 0
    %1080 = vmatpush1.bf16.msra.mxu0 0
    %1081 = vmatprep.subr.bf16.mxu0 0
    %1082 = vmatpush1.bf16.msra.mxu0 0
    %1083 = vmatprep.subr.bf16.mxu0 0
    %1084 = vmatpush1.bf16.msra.mxu0 0
    %1085 = vmatprep.subr.bf16.mxu0 0
    %1086 = vmatpush1.bf16.msra.mxu0 %v745
    %1087 = vmatprep.subr.bf16.mxu0 0
    %1088 = vmatpush1.bf16.msra.mxu0 %v744
    %1089 = vmatprep.subr.bf16.mxu0 0
    %1090 = vmatpush2.bf16.msra.mxu0 0
    %1091 = vmatprep.subr.bf16.mxu0 0
    %1092 = vmatpush2.bf16.msra.mxu0 0
    %1093 = vmatprep.subr.bf16.mxu0 0
    %1094 = vmatpush2.bf16.msra.mxu0 0
    %1095 = vmatprep.subr.bf16.mxu0 0
    %1096 = vmatpush2.bf16.msra.mxu0 0
    %1097 = vmatprep.subr.bf16.mxu0 0
    %1098 = vmatpush2.bf16.msra.mxu0 0
    %1099 = vmatprep.subr.bf16.mxu0 0
    %1100 = vmatpush2.bf16.msra.mxu0 0
    %1101 = vmatprep.subr.bf16.mxu0 0
    %1102 = vmatpush2.bf16.msra.mxu0 0
    %1103 = vmatprep.subr.bf16.mxu0 0
    %1104 = vmatpush2.bf16.msra.mxu0 0
    %1105 = vmatprep.mubr.bf16.mxu0 0
    %1106 = vmatmul.mubr.bf16.gmra.mxu0 %v1071
    %v1107 = vpop.f32.mrf.mxu0
    %v1108 = vadd.f32 0.0, %v1107
    %v1109 = vpop.f32.mrf.mxu0
    %v1110 = vpop.f32.mrf.mxu0
    %v1111 = vadd.f32 0.0, %v1110
    %v1112 = vpop.f32.mrf.mxu0
    %1113 = vdwg.mxu0
    %v1114 = vpack.c.bf16 %v1111, %v1108
    %s1115 = scalar_lea.vmem %s11, 128
    %v1116 = vld [vmem:[%s1115] sm:$0xf]
    %v1117 = vld [vmem:[%s1115 + $0x4] sm:$0xf]
    %v1118 = vld [vmem:[%s1115 + $0x8] sm:$0xf]
    %v1119 = vld [vmem:[%s1115 + $0xc] sm:$0xf]
    %v1120 = vld [vmem:[%s1115 + $0x10] sm:$0xf]
    %v1121 = vld [vmem:[%s1115 + $0x14] sm:$0xf]
    %v1122 = vld [vmem:[%s1115 + $0x18] sm:$0xf]
    %v1123 = vld [vmem:[%s1115 + $0x1c] sm:$0xf]
    %v1124 = vld [vmem:[%s1115 + $0x20] sm:$0xf]
    %v1125 = vld [vmem:[%s1115 + $0x24] sm:$0xf]
    %v1126 = vld [vmem:[%s1115 + $0x28] sm:$0xf]
    %v1127 = vld [vmem:[%s1115 + $0x2c] sm:$0xf]
    %v1128 = vld [vmem:[%s1115 + $0x30] sm:$0xf]
    %v1129 = vld [vmem:[%s1115 + $0x34] sm:$0xf]
    %v1130 = vld [vmem:[%s1115 + $0x38] sm:$0xf]
    %v1131 = vld [vmem:[%s1115 + $0x3c] sm:$0xf]
    %v1148 = vunpack.c.l.b16 %v1116
    %v1149 = vunpack.c.l.b16 %v1117
    %v1150 = vunpack.c.l.b16 %v1118
    %v1151 = vunpack.c.l.b16 %v1119
    %v1152 = vunpack.c.l.b16 %v1120
    %v1153 = vunpack.c.l.b16 %v1121
    %v1154 = vunpack.c.l.b16 %v1122
    %v1155 = vunpack.c.l.b16 %v1123
    %v1156 = vunpack.c.l.b16 %v1124
    %v1157 = vunpack.c.l.b16 %v1125
    %v1158 = vunpack.c.l.b16 %v1126
    %v1159 = vunpack.c.l.b16 %v1127
    %v1160 = vunpack.c.l.b16 %v1128
    %v1161 = vunpack.c.l.b16 %v1129
    %v1162 = vunpack.c.l.b16 %v1130
    %v1163 = vunpack.c.l.b16 %v1131
    %v1164 = vpack.c.b16 %v1149, %v1148
    %v1165 = vpack.c.b16 %v1151, %v1150
    %v1166 = vpack.c.b16 %v1153, %v1152
    %v1167 = vpack.c.b16 %v1155, %v1154
    %v1168 = vpack.c.b16 %v1157, %v1156
    %v1169 = vpack.c.b16 %v1159, %v1158
    %v1170 = vpack.c.b16 %v1161, %v1160
    %v1171 = vpack.c.b16 %v1163, %v1162
    %1180 = vmatprep.subr.bf16.mxu0 0
    %1181 = vmatpush1.bf16.msra.mxu0 %v1171
    %1182 = vmatprep.subr.bf16.mxu0 0
    %1183 = vmatpush1.bf16.msra.mxu0 %v1170
    %1184 = vmatprep.subr.bf16.mxu0 0
    %1185 = vmatpush1.bf16.msra.mxu0 %v1169
    %1186 = vmatprep.subr.bf16.mxu0 0
    %1187 = vmatpush1.bf16.msra.mxu0 %v1168
    %1188 = vmatprep.subr.bf16.mxu0 0
    %1189 = vmatpush1.bf16.msra.mxu0 %v1167
    %1190 = vmatprep.subr.bf16.mxu0 0
    %1191 = vmatpush1.bf16.msra.mxu0 %v1166
    %1192 = vmatprep.subr.bf16.mxu0 0
    %1193 = vmatpush1.bf16.msra.mxu0 %v1165
    %1194 = vmatprep.subr.bf16.mxu0 0
    %1195 = vmatpush1.bf16.msra.mxu0 %v1164
    %1196 = vmatprep.subr.bf16.mxu0 0
    %1197 = vmatpush2.bf16.msra.mxu0 0
    %1198 = vmatprep.subr.bf16.mxu0 0
    %1199 = vmatpush2.bf16.msra.mxu0 0
    %1200 = vmatprep.subr.bf16.mxu0 0
    %1201 = vmatpush2.bf16.msra.mxu0 0
    %1202 = vmatprep.subr.bf16.mxu0 0
    %1203 = vmatpush2.bf16.msra.mxu0 0
    %1204 = vmatprep.subr.bf16.mxu0 0
    %1205 = vmatpush2.bf16.msra.mxu0 0
    %1206 = vmatprep.subr.bf16.mxu0 0
    %1207 = vmatpush2.bf16.msra.mxu0 0
    %1208 = vmatprep.subr.bf16.mxu0 0
    %1209 = vmatpush2.bf16.msra.mxu0 0
    %1210 = vmatprep.subr.bf16.mxu0 0
    %1211 = vmatpush2.bf16.msra.mxu0 0
    %1212 = vmatprep.mubr.bf16.mxu0 0
    %1213 = vmatmul.mubr.bf16.gmra.mxu0 %v1114
    %v1214 = vpop.f32.mrf.mxu0
    %v1215 = vadd.f32 0.0, %v1214
    %v1216 = vpop.f32.mrf.mxu0
    %v1217 = vpop.f32.mrf.mxu0
    %v1218 = vadd.f32 0.0, %v1217
    %v1219 = vpop.f32.mrf.mxu0
    %1220 = vdwg.mxu0
    %v1221 = vadd.f32 %v1056, %v1215
    %v1222 = vadd.f32 %v1059, %v1218
    %v1223 = vld [vmem:[%s13] sm:$0x1]
    %v1225 = vlaneseq
    %v1226 = vshrl.u32 %v1225, 7
    %v1227 = vsub.s32 0, %v1226
    %v1228 = vrot.slane %v1223, %v1227
    %v1230 = vadd.f32 %v1221, %v1228
    %v1231 = vadd.f32 %v1222, %v1228
    %vm1232 = vcmp.gt.f32.partialorder %v1230, 0.0
    %vm1233 = vcmp.gt.f32.partialorder %v1231, 0.0
    %v1234 = vmul.f32 %v1230, 0.01
    %v1235 = vmul.f32 %v1231, 0.01
    %v1236 = vsel %vm1232, %v1230, %v1234
    %v1237 = vsel %vm1233, %v1231, %v1235
    %v1238 = vpack.c.bf16 %v1237, %v1236
    %v1239 = vld [vmem:[%s15] sm:$0xf]
    %v1240 = vld [vmem:[%s15 + $0x4] sm:$0xf]
    %v1243 = vunpack.c.l.b16 %v1239
    %v1244 = vunpack.c.l.b16 %v1240
    %v1245 = vpack.c.b16 %v1244, %v1243
    %vm1246 = vcmask 130048
    %v1248 = vsel %vm1246, %v1245, 0
    %1250 = vmatprep.subr.bf16.mxu0 0
    %1251 = vmatpush1.bf16.msra.mxu0 0
    %1252 = vmatprep.subr.bf16.mxu0 0
    %1253 = vmatpush1.bf16.msra.mxu0 0
    %1254 = vmatprep.subr.bf16.mxu0 0
    %1255 = vmatpush1.bf16.msra.mxu0 0
    %1256 = vmatprep.subr.bf16.mxu0 0
    %1257 = vmatpush1.bf16.msra.mxu0 0
    %1258 = vmatprep.subr.bf16.mxu0 0
    %1259 = vmatpush1.bf16.msra.mxu0 0
    %1260 = vmatprep.subr.bf16.mxu0 0
    %1261 = vmatpush1.bf16.msra.mxu0 0
    %1262 = vmatprep.subr.bf16.mxu0 0
    %1263 = vmatpush1.bf16.msra.mxu0 0
    %1264 = vmatprep.subr.bf16.mxu0 0
    %1265 = vmatpush1.bf16.msra.mxu0 %v1238
    %1266 = vmatprep.subr.bf16.mxu0 0
    %1267 = vmatpush2.bf16.msra.mxu0 0
    %1268 = vmatprep.subr.bf16.mxu0 0
    %1269 = vmatpush2.bf16.msra.mxu0 0
    %1270 = vmatprep.subr.bf16.mxu0 0
    %1271 = vmatpush2.bf16.msra.mxu0 0
    %1272 = vmatprep.subr.bf16.mxu0 0
    %1273 = vmatpush2.bf16.msra.mxu0 0
    %1274 = vmatprep.subr.bf16.mxu0 0
    %1275 = vmatpush2.bf16.msra.mxu0 0
    %1276 = vmatprep.subr.bf16.mxu0 0
    %1277 = vmatpush2.bf16.msra.mxu0 0
    %1278 = vmatprep.subr.bf16.mxu0 0
    %1279 = vmatpush2.bf16.msra.mxu0 0
    %1280 = vmatprep.subr.bf16.mxu0 0
    %1281 = vmatpush2.bf16.msra.mxu0 0
    %1282 = vmatprep.mubr.bf16.mxu0 0
    %1283 = vmatmul.mubr.bf16.gmra.mxu0 %v1248
    %v1284 = vpop.f32.mrf.mxu0
    %v1285 = vadd.f32 0.0, %v1284
    %v1286 = vpop.f32.mrf.mxu0
    %v1287 = vpop.f32.mrf.mxu0
    %v1288 = vadd.f32 0.0, %v1287
    %v1289 = vpop.f32.mrf.mxu0
    %1290 = vdwg.mxu0
    %v1291 = vpack.c.bf16 %v1288, %v1285
    %v1292 = vld [vmem:[%s17] sm:$0xf]
    %v1293 = vld [vmem:[%s17 + $0x4] sm:$0xf]
    %v1294 = vld [vmem:[%s17 + $0x8] sm:$0xf]
    %v1295 = vld [vmem:[%s17 + $0xc] sm:$0xf]
    %v1296 = vld [vmem:[%s17 + $0x10] sm:$0xf]
    %v1297 = vld [vmem:[%s17 + $0x14] sm:$0xf]
    %v1298 = vld [vmem:[%s17 + $0x18] sm:$0xf]
    %v1299 = vld [vmem:[%s17 + $0x1c] sm:$0xf]
    %s1300 = scalar_lea.vmem %s15, 8
    %v1301 = vld [vmem:[%s1300] sm:$0xf]
    %v1302 = vld [vmem:[%s1300 + $0x4] sm:$0xf]
    %v1305 = vunpack.c.l.b16 %v1301
    %v1306 = vunpack.c.l.b16 %v1302
    %v1307 = vpack.c.b16 %v1306, %v1305
    %v1309 = vsel %vm1246, %v1307, 0
    %1311 = vmatprep.subr.bf16.mxu0 0
    %1312 = vmatpush1.bf16.msra.mxu0 0
    %1313 = vmatprep.subr.bf16.mxu0 0
    %1314 = vmatpush1.bf16.msra.mxu0 0
    %1315 = vmatprep.subr.bf16.mxu0 0
    %1316 = vmatpush1.bf16.msra.mxu0 0
    %1317 = vmatprep.subr.bf16.mxu0 0
    %1318 = vmatpush1.bf16.msra.mxu0 0
    %1319 = vmatprep.subr.bf16.mxu0 0
    %1320 = vmatpush1.bf16.msra.mxu0 0
    %1321 = vmatprep.subr.bf16.mxu0 0
    %1322 = vmatpush1.bf16.msra.mxu0 0
    %1323 = vmatprep.subr.bf16.mxu0 0
    %1324 = vmatpush1.bf16.msra.mxu0 0
    %1325 = vmatprep.subr.bf16.mxu0 0
    %1326 = vmatpush1.bf16.msra.mxu0 %v1238
    %1327 = vmatprep.subr.bf16.mxu0 0
    %1328 = vmatpush2.bf16.msra.mxu0 0
    %1329 = vmatprep.subr.bf16.mxu0 0
    %1330 = vmatpush2.bf16.msra.mxu0 0
    %1331 = vmatprep.subr.bf16.mxu0 0
    %1332 = vmatpush2.bf16.msra.mxu0 0
    %1333 = vmatprep.subr.bf16.mxu0 0
    %1334 = vmatpush2.bf16.msra.mxu0 0
    %1335 = vmatprep.subr.bf16.mxu0 0
    %1336 = vmatpush2.bf16.msra.mxu0 0
    %1337 = vmatprep.subr.bf16.mxu0 0
    %1338 = vmatpush2.bf16.msra.mxu0 0
    %1339 = vmatprep.subr.bf16.mxu0 0
    %1340 = vmatpush2.bf16.msra.mxu0 0
    %1341 = vmatprep.subr.bf16.mxu0 0
    %1342 = vmatpush2.bf16.msra.mxu0 0
    %1343 = vmatprep.mubr.bf16.mxu0 0
    %1344 = vmatmul.mubr.bf16.gmra.mxu0 %v1309
    %v1345 = vpop.f32.mrf.mxu0
    %v1346 = vadd.f32 0.0, %v1345
    %v1347 = vpop.f32.mrf.mxu0
    %v1348 = vpop.f32.mrf.mxu0
    %v1349 = vadd.f32 0.0, %v1348
    %v1350 = vpop.f32.mrf.mxu0
    %1351 = vdwg.mxu0
    %v1352 = vpack.c.bf16 %v1349, %v1346
    %s1353 = scalar_lea.vmem %s17, 32
    %v1354 = vld [vmem:[%s1353] sm:$0xf]
    %v1355 = vld [vmem:[%s1353 + $0x4] sm:$0xf]
    %v1356 = vld [vmem:[%s1353 + $0x8] sm:$0xf]
    %v1357 = vld [vmem:[%s1353 + $0xc] sm:$0xf]
    %v1358 = vld [vmem:[%s1353 + $0x10] sm:$0xf]
    %v1359 = vld [vmem:[%s1353 + $0x14] sm:$0xf]
    %v1360 = vld [vmem:[%s1353 + $0x18] sm:$0xf]
    %v1361 = vld [vmem:[%s1353 + $0x1c] sm:$0xf]
    %v1370 = vunpack.c.l.b16 %v1354
    %v1371 = vunpack.c.l.b16 %v1355
    %v1372 = vunpack.c.l.b16 %v1356
    %v1373 = vunpack.c.l.b16 %v1357
    %v1374 = vunpack.c.l.b16 %v1358
    %v1375 = vunpack.c.l.b16 %v1359
    %v1376 = vunpack.c.l.b16 %v1360
    %v1377 = vunpack.c.l.b16 %v1361
    %v1378 = vpack.c.b16 %v1371, %v1370
    %v1379 = vpack.c.b16 %v1373, %v1372
    %v1380 = vpack.c.b16 %v1375, %v1374
    %v1381 = vpack.c.b16 %v1377, %v1376
    %vm1386 = vcmask 523264
    %v1388 = vsel %vm1386, %v1352, 0
    %1390 = vmatprep.subr.bf16.mxu0 0
    %1391 = vmatpush1.bf16.msra.mxu0 0
    %1392 = vmatprep.subr.bf16.mxu0 0
    %1393 = vmatpush1.bf16.msra.mxu0 0
    %1394 = vmatprep.subr.bf16.mxu0 0
    %1395 = vmatpush1.bf16.msra.mxu0 0
    %1396 = vmatprep.subr.bf16.mxu0 0
    %1397 = vmatpush1.bf16.msra.mxu0 0
    %1398 = vmatprep.subr.bf16.mxu0 0
    %1399 = vmatpush1.bf16.msra.mxu0 %v1381
    %1400 = vmatprep.subr.bf16.mxu0 0
    %1401 = vmatpush1.bf16.msra.mxu0 %v1380
    %1402 = vmatprep.subr.bf16.mxu0 0
    %1403 = vmatpush1.bf16.msra.mxu0 %v1379
    %1404 = vmatprep.subr.bf16.mxu0 0
    %1405 = vmatpush1.bf16.msra.mxu0 %v1378
    %1406 = vmatprep.subr.bf16.mxu0 0
    %1407 = vmatpush2.bf16.msra.mxu0 0
    %1408 = vmatprep.subr.bf16.mxu0 0
    %1409 = vmatpush2.bf16.msra.mxu0 0
    %1410 = vmatprep.subr.bf16.mxu0 0
    %1411 = vmatpush2.bf16.msra.mxu0 0
    %1412 = vmatprep.subr.bf16.mxu0 0
    %1413 = vmatpush2.bf16.msra.mxu0 0
    %1414 = vmatprep.subr.bf16.mxu0 0
    %1415 = vmatpush2.bf16.msra.mxu0 0
    %1416 = vmatprep.subr.bf16.mxu0 0
    %1417 = vmatpush2.bf16.msra.mxu0 0
    %1418 = vmatprep.subr.bf16.mxu0 0
    %1419 = vmatpush2.bf16.msra.mxu0 0
    %1420 = vmatprep.subr.bf16.mxu0 0
    %1421 = vmatpush2.bf16.msra.mxu0 0
    %1422 = vmatprep.mubr.bf16.mxu0 0
    %1423 = vmatmul.mubr.bf16.gmra.mxu0 %v1388
    %v1424 = vpop.f32.mrf.mxu0
    %v1425 = vadd.f32 0.0, %v1424
    %v1426 = vpop.f32.mrf.mxu0
    %v1427 = vpop.f32.mrf.mxu0
    %v1428 = vadd.f32 0.0, %v1427
    %v1429 = vpop.f32.mrf.mxu0
    %1430 = vdwg.mxu0
    %v1439 = vunpack.c.l.b16 %v1292
    %v1440 = vunpack.c.l.b16 %v1293
    %v1441 = vunpack.c.l.b16 %v1294
    %v1442 = vunpack.c.l.b16 %v1295
    %v1443 = vunpack.c.l.b16 %v1296
    %v1444 = vunpack.c.l.b16 %v1297
    %v1445 = vunpack.c.l.b16 %v1298
    %v1446 = vunpack.c.l.b16 %v1299
    %v1447 = vpack.c.b16 %v1440, %v1439
    %v1448 = vpack.c.b16 %v1442, %v1441
    %v1449 = vpack.c.b16 %v1444, %v1443
    %v1450 = vpack.c.b16 %v1446, %v1445
    %v1456 = vsel %vm1386, %v1291, 0
    %1458 = vmatprep.subr.bf16.mxu0 0
    %1459 = vmatpush1.bf16.msra.mxu0 0
    %1460 = vmatprep.subr.bf16.mxu0 0
    %1461 = vmatpush1.bf16.msra.mxu0 0
    %1462 = vmatprep.subr.bf16.mxu0 0
    %1463 = vmatpush1.bf16.msra.mxu0 0
    %1464 = vmatprep.subr.bf16.mxu0 0
    %1465 = vmatpush1.bf16.msra.mxu0 0
    %1466 = vmatprep.subr.bf16.mxu0 0
    %1467 = vmatpush1.bf16.msra.mxu0 %v1450
    %1468 = vmatprep.subr.bf16.mxu0 0
    %1469 = vmatpush1.bf16.msra.mxu0 %v1449
    %1470 = vmatprep.subr.bf16.mxu0 0
    %1471 = vmatpush1.bf16.msra.mxu0 %v1448
    %1472 = vmatprep.subr.bf16.mxu0 0
    %1473 = vmatpush1.bf16.msra.mxu0 %v1447
    %1474 = vmatprep.subr.bf16.mxu0 0
    %1475 = vmatpush2.bf16.msra.mxu0 0
    %1476 = vmatprep.subr.bf16.mxu0 0
    %1477 = vmatpush2.bf16.msra.mxu0 0
    %1478 = vmatprep.subr.bf16.mxu0 0
    %1479 = vmatpush2.bf16.msra.mxu0 0
    %1480 = vmatprep.subr.bf16.mxu0 0
    %1481 = vmatpush2.bf16.msra.mxu0 0
    %1482 = vmatprep.subr.bf16.mxu0 0
    %1483 = vmatpush2.bf16.msra.mxu0 0
    %1484 = vmatprep.subr.bf16.mxu0 0
    %1485 = vmatpush2.bf16.msra.mxu0 0
    %1486 = vmatprep.subr.bf16.mxu0 0
    %1487 = vmatpush2.bf16.msra.mxu0 0
    %1488 = vmatprep.subr.bf16.mxu0 0
    %1489 = vmatpush2.bf16.msra.mxu0 0
    %1490 = vmatprep.mubr.bf16.mxu0 0
    %1491 = vmatmul.mubr.bf16.gmra.mxu0 %v1456
    %v1492 = vpop.f32.mrf.mxu0
    %v1493 = vadd.f32 %v1425, %v1492
    %v1494 = vpop.f32.mrf.mxu0
    %v1495 = vpop.f32.mrf.mxu0
    %v1496 = vadd.f32 %v1428, %v1495
    %v1497 = vpop.f32.mrf.mxu0
    %1498 = vdwg.mxu0
    %s1499 = scalar_lea.vmem %s15, 16
    %v1500 = vld [vmem:[%s1499] sm:$0xf]
    %v1501 = vld [vmem:[%s1499 + $0x4] sm:$0xf]
    %v1504 = vunpack.c.l.b16 %v1500
    %v1505 = vunpack.c.l.b16 %v1501
    %v1506 = vpack.c.b16 %v1505, %v1504
    %v1508 = vsel %vm1246, %v1506, 0
    %1510 = vmatprep.subr.bf16.mxu0 0
    %1511 = vmatpush1.bf16.msra.mxu0 0
    %1512 = vmatprep.subr.bf16.mxu0 0
    %1513 = vmatpush1.bf16.msra.mxu0 0
    %1514 = vmatprep.subr.bf16.mxu0 0
    %1515 = vmatpush1.bf16.msra.mxu0 0
    %1516 = vmatprep.subr.bf16.mxu0 0
    %1517 = vmatpush1.bf16.msra.mxu0 0
    %1518 = vmatprep.subr.bf16.mxu0 0
    %1519 = vmatpush1.bf16.msra.mxu0 0
    %1520 = vmatprep.subr.bf16.mxu0 0
    %1521 = vmatpush1.bf16.msra.mxu0 0
    %1522 = vmatprep.subr.bf16.mxu0 0
    %1523 = vmatpush1.bf16.msra.mxu0 0
    %1524 = vmatprep.subr.bf16.mxu0 0
    %1525 = vmatpush1.bf16.msra.mxu0 %v1238
    %1526 = vmatprep.subr.bf16.mxu0 0
    %1527 = vmatpush2.bf16.msra.mxu0 0
    %1528 = vmatprep.subr.bf16.mxu0 0
    %1529 = vmatpush2.bf16.msra.mxu0 0
    %1530 = vmatprep.subr.bf16.mxu0 0
    %1531 = vmatpush2.bf16.msra.mxu0 0
    %1532 = vmatprep.subr.bf16.mxu0 0
    %1533 = vmatpush2.bf16.msra.mxu0 0
    %1534 = vmatprep.subr.bf16.mxu0 0
    %1535 = vmatpush2.bf16.msra.mxu0 0
    %1536 = vmatprep.subr.bf16.mxu0 0
    %1537 = vmatpush2.bf16.msra.mxu0 0
    %1538 = vmatprep.subr.bf16.mxu0 0
    %1539 = vmatpush2.bf16.msra.mxu0 0
    %1540 = vmatprep.subr.bf16.mxu0 0
    %1541 = vmatpush2.bf16.msra.mxu0 0
    %1542 = vmatprep.mubr.bf16.mxu0 0
    %1543 = vmatmul.mubr.bf16.gmra.mxu0 %v1508
    %v1544 = vpop.f32.mrf.mxu0
    %v1545 = vadd.f32 0.0, %v1544
    %v1546 = vpop.f32.mrf.mxu0
    %v1547 = vpop.f32.mrf.mxu0
    %v1548 = vadd.f32 0.0, %v1547
    %v1549 = vpop.f32.mrf.mxu0
    %1550 = vdwg.mxu0
    %v1551 = vpack.c.bf16 %v1548, %v1545
    %s1552 = scalar_lea.vmem %s17, 64
    %v1553 = vld [vmem:[%s1552] sm:$0xf]
    %v1554 = vld [vmem:[%s1552 + $0x4] sm:$0xf]
    %v1555 = vld [vmem:[%s1552 + $0x8] sm:$0xf]
    %v1556 = vld [vmem:[%s1552 + $0xc] sm:$0xf]
    %v1557 = vld [vmem:[%s1552 + $0x10] sm:$0xf]
    %v1558 = vld [vmem:[%s1552 + $0x14] sm:$0xf]
    %v1559 = vld [vmem:[%s1552 + $0x18] sm:$0xf]
    %v1560 = vld [vmem:[%s1552 + $0x1c] sm:$0xf]
    %v1569 = vunpack.c.l.b16 %v1553
    %v1570 = vunpack.c.l.b16 %v1554
    %v1571 = vunpack.c.l.b16 %v1555
    %v1572 = vunpack.c.l.b16 %v1556
    %v1573 = vunpack.c.l.b16 %v1557
    %v1574 = vunpack.c.l.b16 %v1558
    %v1575 = vunpack.c.l.b16 %v1559
    %v1576 = vunpack.c.l.b16 %v1560
    %v1577 = vpack.c.b16 %v1570, %v1569
    %v1578 = vpack.c.b16 %v1572, %v1571
    %v1579 = vpack.c.b16 %v1574, %v1573
    %v1580 = vpack.c.b16 %v1576, %v1575
    %v1586 = vsel %vm1386, %v1551, 0
    %1588 = vmatprep.subr.bf16.mxu0 0
    %1589 = vmatpush1.bf16.msra.mxu0 0
    %1590 = vmatprep.subr.bf16.mxu0 0
    %1591 = vmatpush1.bf16.msra.mxu0 0
    %1592 = vmatprep.subr.bf16.mxu0 0
    %1593 = vmatpush1.bf16.msra.mxu0 0
    %1594 = vmatprep.subr.bf16.mxu0 0
    %1595 = vmatpush1.bf16.msra.mxu0 0
    %1596 = vmatprep.subr.bf16.mxu0 0
    %1597 = vmatpush1.bf16.msra.mxu0 %v1580
    %1598 = vmatprep.subr.bf16.mxu0 0
    %1599 = vmatpush1.bf16.msra.mxu0 %v1579
    %1600 = vmatprep.subr.bf16.mxu0 0
    %1601 = vmatpush1.bf16.msra.mxu0 %v1578
    %1602 = vmatprep.subr.bf16.mxu0 0
    %1603 = vmatpush1.bf16.msra.mxu0 %v1577
    %1604 = vmatprep.subr.bf16.mxu0 0
    %1605 = vmatpush2.bf16.msra.mxu0 0
    %1606 = vmatprep.subr.bf16.mxu0 0
    %1607 = vmatpush2.bf16.msra.mxu0 0
    %1608 = vmatprep.subr.bf16.mxu0 0
    %1609 = vmatpush2.bf16.msra.mxu0 0
    %1610 = vmatprep.subr.bf16.mxu0 0
    %1611 = vmatpush2.bf16.msra.mxu0 0
    %1612 = vmatprep.subr.bf16.mxu0 0
    %1613 = vmatpush2.bf16.msra.mxu0 0
    %1614 = vmatprep.subr.bf16.mxu0 0
    %1615 = vmatpush2.bf16.msra.mxu0 0
    %1616 = vmatprep.subr.bf16.mxu0 0
    %1617 = vmatpush2.bf16.msra.mxu0 0
    %1618 = vmatprep.subr.bf16.mxu0 0
    %1619 = vmatpush2.bf16.msra.mxu0 0
    %1620 = vmatprep.mubr.bf16.mxu0 0
    %1621 = vmatmul.mubr.bf16.gmra.mxu0 %v1586
    %v1622 = vpop.f32.mrf.mxu0
    %v1623 = vadd.f32 0.0, %v1622
    %v1624 = vpop.f32.mrf.mxu0
    %v1625 = vpop.f32.mrf.mxu0
    %v1626 = vadd.f32 0.0, %v1625
    %v1627 = vpop.f32.mrf.mxu0
    %1628 = vdwg.mxu0
    %v1629 = vadd.f32 %v1493, %v1623
    %v1630 = vadd.f32 %v1496, %v1626
    %v1631 = vld [vmem:[%s19] sm:$0x1]
    %v1633 = vlaneseq
    %v1634 = vshrl.u32 %v1633, 7
    %v1635 = vsub.s32 0, %v1634
    %v1636 = vrot.slane %v1631, %v1635
    %v1638 = vadd.f32 %v1629, %v1636
    %v1639 = vadd.f32 %v1630, %v1636
    %v1640 = vadd.f32 %v1638, %v1639
    %v1641 = vrot.slane %v1640, 4
    %v1642 = vadd.f32 %v1640, %v1641
    %v1643 = vrot.slane %v1642, 2
    %v1644 = vadd.f32 %v1642, %v1643
    %v1645 = vrot.slane %v1644, 1
    %v1646 = vadd.f32 %v1644, %v1645
    %v1647 = vmul.f32 %v1646, 0.0625
    %v1648 = vld [vmem:[%s25] sm:$0xff]
    %v1649 = vld [vmem:[%s25 + $0x8] sm:$0xff]
    %v1650 = vld [vmem:[%s25 + $0x10] sm:$0xff]
    %v1651 = vld [vmem:[%s25 + $0x18] sm:$0xff]
    %v1652 = vld [vmem:[%s25 + $0x20] sm:$0xff]
    %v1653 = vld [vmem:[%s25 + $0x28] sm:$0xff]
    %v1654 = vld [vmem:[%s25 + $0x30] sm:$0xff]
    %v1655 = vld [vmem:[%s25 + $0x38] sm:$0xff]
    %v1656 = vld [vmem:[%s25 + $0x40] sm:$0xff]
    %v1657 = vld [vmem:[%s25 + $0x48] sm:$0xff]
    %v1658 = vld [vmem:[%s25 + $0x50] sm:$0xff]
    %v1659 = vld [vmem:[%s25 + $0x58] sm:$0xff]
    %v1660 = vld [vmem:[%s25 + $0x60] sm:$0xff]
    %v1661 = vld [vmem:[%s25 + $0x68] sm:$0xff]
    %v1662 = vld [vmem:[%s25 + $0x70] sm:$0xff]
    %v1663 = vld [vmem:[%s25 + $0x78] sm:$0xff]
    %1664 = vmatprep.subr.mxu0 0.0
    %1665 = vmatpush1.msra.mxu0 %v1663
    %1666 = vmatprep.subr.mxu0 0.0
    %1667 = vmatpush1.msra.mxu0 %v1662
    %1668 = vmatprep.subr.mxu0 0.0
    %1669 = vmatpush1.msra.mxu0 %v1661
    %1670 = vmatprep.subr.mxu0 0.0
    %1671 = vmatpush1.msra.mxu0 %v1660
    %1672 = vmatprep.subr.mxu0 0.0
    %1673 = vmatpush1.msra.mxu0 %v1659
    %1674 = vmatprep.subr.mxu0 0.0
    %1675 = vmatpush1.msra.mxu0 %v1658
    %1676 = vmatprep.subr.mxu0 0.0
    %1677 = vmatpush1.msra.mxu0 %v1657
    %1678 = vmatprep.subr.mxu0 0.0
    %1679 = vmatpush1.msra.mxu0 %v1656
    %1680 = vmatprep.subr.mxu0 0.0
    %1681 = vmatpush1.msra.mxu0 %v1655
    %1682 = vmatprep.subr.mxu0 0.0
    %1683 = vmatpush1.msra.mxu0 %v1654
    %1684 = vmatprep.subr.mxu0 0.0
    %1685 = vmatpush1.msra.mxu0 %v1653
    %1686 = vmatprep.subr.mxu0 0.0
    %1687 = vmatpush1.msra.mxu0 %v1652
    %1688 = vmatprep.subr.mxu0 0.0
    %1689 = vmatpush1.msra.mxu0 %v1651
    %1690 = vmatprep.subr.mxu0 0.0
    %1691 = vmatpush1.msra.mxu0 %v1650
    %1692 = vmatprep.subr.mxu0 0.0
    %1693 = vmatpush1.msra.mxu0 %v1649
    %1694 = vmatprep.subr.mxu0 0.0
    %1695 = vmatpush1.msra.mxu0 %v1648
    %1696 = vmatprep.subr.mxu0 0.0
    %1697 = vmatpush2.msra.mxu0 0.0
    %1698 = vmatprep.subr.mxu0 0.0
    %1699 = vmatpush2.msra.mxu0 0.0
    %1700 = vmatprep.subr.mxu0 0.0
    %1701 = vmatpush2.msra.mxu0 0.0
    %1702 = vmatprep.subr.mxu0 0.0
    %1703 = vmatpush2.msra.mxu0 0.0
    %1704 = vmatprep.subr.mxu0 0.0
    %1705 = vmatpush2.msra.mxu0 0.0
    %1706 = vmatprep.subr.mxu0 0.0
    %1707 = vmatpush2.msra.mxu0 0.0
    %1708 = vmatprep.subr.mxu0 0.0
    %1709 = vmatpush2.msra.mxu0 0.0
    %1710 = vmatprep.subr.mxu0 0.0
    %1711 = vmatpush2.msra.mxu0 0.0
    %1712 = vmatprep.subr.mxu0 0.0
    %1713 = vmatpush2.msra.mxu0 0.0
    %1714 = vmatprep.subr.mxu0 0.0
    %1715 = vmatpush2.msra.mxu0 0.0
    %1716 = vmatprep.subr.mxu0 0.0
    %1717 = vmatpush2.msra.mxu0 0.0
    %1718 = vmatprep.subr.mxu0 0.0
    %1719 = vmatpush2.msra.mxu0 0.0
    %1720 = vmatprep.subr.mxu0 0.0
    %1721 = vmatpush2.msra.mxu0 0.0
    %1722 = vmatprep.subr.mxu0 0.0
    %1723 = vmatpush2.msra.mxu0 0.0
    %1724 = vmatprep.subr.mxu0 0.0
    %1725 = vmatpush2.msra.mxu0 0.0
    %1726 = vmatprep.subr.mxu0 0.0
    %1727 = vmatpush2.msra.mxu0 0.0
    %1728 = vmatprep.mubr.f32.mxu0 0.0
    %1729 = vmatmul.mubr.f32.gmra.mxu0 %v1647
    %v1730 = vpop.f32.mrf.mxu0
    %v1731 = vadd.f32 0.0, %v1730
    %v1732 = vpop.f32.mrf.mxu0
    %1733 = vdwg.mxu0
    %v1734 = vlaneseq
    %v1735 = vshrl.u32 %v1734, 7
    %v1736 = vsub.s32 0, %v1735
    %v1737 = vrot.slane %v1731, %v1736
    %v1738 = vsub.f32 %v1638, %v1737
    %v1739 = vsub.f32 %v1639, %v1737
    %v1740 = vmul.f32 %v1738, %v1738
    %v1741 = vmul.f32 %v1739, %v1739
    %v1742 = vadd.f32 %v1740, %v1741
    %v1743 = vrot.slane %v1742, 4
    %v1744 = vadd.f32 %v1742, %v1743
    %v1745 = vrot.slane %v1744, 2
    %v1746 = vadd.f32 %v1744, %v1745
    %v1747 = vrot.slane %v1746, 1
    %v1748 = vadd.f32 %v1746, %v1747
    %v1749 = vmul.f32 %v1748, 0.0625
    %v1750 = vld [vmem:[%s21] sm:$0x1]
    %v1752 = vlaneseq
    %v1753 = vshrl.u32 %v1752, 7
    %v1754 = vsub.s32 0, %v1753
    %v1755 = vrot.slane %v1750, %v1754
    %v1757 = vmul.f32 %v1755, %v1738
    %v1758 = vmul.f32 %v1755, %v1739
    %1759 = vmatprep.subr.mxu0 0.0
    %1760 = vmatpush1.msra.mxu0 %v1663
    %1761 = vmatprep.subr.mxu0 0.0
    %1762 = vmatpush1.msra.mxu0 %v1662
    %1763 = vmatprep.subr.mxu0 0.0
    %1764 = vmatpush1.msra.mxu0 %v1661
    %1765 = vmatprep.subr.mxu0 0.0
    %1766 = vmatpush1.msra.mxu0 %v1660
    %1767 = vmatprep.subr.mxu0 0.0
    %1768 = vmatpush1.msra.mxu0 %v1659
    %1769 = vmatprep.subr.mxu0 0.0
    %1770 = vmatpush1.msra.mxu0 %v1658
    %1771 = vmatprep.subr.mxu0 0.0
    %1772 = vmatpush1.msra.mxu0 %v1657
    %1773 = vmatprep.subr.mxu0 0.0
    %1774 = vmatpush1.msra.mxu0 %v1656
    %1775 = vmatprep.subr.mxu0 0.0
    %1776 = vmatpush1.msra.mxu0 %v1655
    %1777 = vmatprep.subr.mxu0 0.0
    %1778 = vmatpush1.msra.mxu0 %v1654
    %1779 = vmatprep.subr.mxu0 0.0
    %1780 = vmatpush1.msra.mxu0 %v1653
    %1781 = vmatprep.subr.mxu0 0.0
    %1782 = vmatpush1.msra.mxu0 %v1652
    %1783 = vmatprep.subr.mxu0 0.0
    %1784 = vmatpush1.msra.mxu0 %v1651
    %1785 = vmatprep.subr.mxu0 0.0
    %1786 = vmatpush1.msra.mxu0 %v1650
    %1787 = vmatprep.subr.mxu0 0.0
    %1788 = vmatpush1.msra.mxu0 %v1649
    %1789 = vmatprep.subr.mxu0 0.0
    %1790 = vmatpush1.msra.mxu0 %v1648
    %1791 = vmatprep.subr.mxu0 0.0
    %1792 = vmatpush2.msra.mxu0 0.0
    %1793 = vmatprep.subr.mxu0 0.0
    %1794 = vmatpush2.msra.mxu0 0.0
    %1795 = vmatprep.subr.mxu0 0.0
    %1796 = vmatpush2.msra.mxu0 0.0
    %1797 = vmatprep.subr.mxu0 0.0
    %1798 = vmatpush2.msra.mxu0 0.0
    %1799 = vmatprep.subr.mxu0 0.0
    %1800 = vmatpush2.msra.mxu0 0.0
    %1801 = vmatprep.subr.mxu0 0.0
    %1802 = vmatpush2.msra.mxu0 0.0
    %1803 = vmatprep.subr.mxu0 0.0
    %1804 = vmatpush2.msra.mxu0 0.0
    %1805 = vmatprep.subr.mxu0 0.0
    %1806 = vmatpush2.msra.mxu0 0.0
    %1807 = vmatprep.subr.mxu0 0.0
    %1808 = vmatpush2.msra.mxu0 0.0
    %1809 = vmatprep.subr.mxu0 0.0
    %1810 = vmatpush2.msra.mxu0 0.0
    %1811 = vmatprep.subr.mxu0 0.0
    %1812 = vmatpush2.msra.mxu0 0.0
    %1813 = vmatprep.subr.mxu0 0.0
    %1814 = vmatpush2.msra.mxu0 0.0
    %1815 = vmatprep.subr.mxu0 0.0
    %1816 = vmatpush2.msra.mxu0 0.0
    %1817 = vmatprep.subr.mxu0 0.0
    %1818 = vmatpush2.msra.mxu0 0.0
    %1819 = vmatprep.subr.mxu0 0.0
    %1820 = vmatpush2.msra.mxu0 0.0
    %1821 = vmatprep.subr.mxu0 0.0
    %1822 = vmatpush2.msra.mxu0 0.0
    %1823 = vmatprep.mubr.f32.mxu0 0.0
    %1824 = vmatmul.mubr.f32.gmra.mxu0 %v1749
    %v1825 = vpop.f32.mrf.mxu0
    %v1826 = vadd.f32 1e-05, %v1825
    %v1827 = vpop.f32.mrf.mxu0
    %1828 = vdwg.mxu0
    %v1829 = vrsqrt.pop %v1826
    %v1830 = vlaneseq
    %v1831 = vshrl.u32 %v1830, 7
    %v1832 = vsub.s32 0, %v1831
    %v1833 = vrot.slane %v1829, %v1832
    %v1834 = vmul.f32 %v1757, %v1833
    %v1835 = vmul.f32 %v1758, %v1833
    %v1836 = vld [vmem:[%s23] sm:$0x1]
    %v1838 = vlaneseq
    %v1839 = vshrl.u32 %v1838, 7
    %v1840 = vsub.s32 0, %v1839
    %v1841 = vrot.slane %v1836, %v1840
    %v1843 = vadd.f32 %v1834, %v1841
    %v1844 = vadd.f32 %v1835, %v1841
    %vm1845 = vcmp.gt.f32.partialorder %v1843, 0.0
    %vm1846 = vcmp.gt.f32.partialorder %v1844, 0.0
    %v1847 = vmul.f32 %v1843, 0.01
    %v1848 = vmul.f32 %v1844, 0.01
    %v1849 = vsel %vm1845, %v1843, %v1847
    %v1850 = vsel %vm1846, %v1844, %v1848
    %v1851 = vpack.c.bf16 %v1850, %v1849
    %v1852 = vld [vmem:[%s27] sm:$0xf]
    %v1854 = vsel %vm1246, %v1852, 0
    %1856 = vmatprep.subr.bf16.mxu0 0
    %1857 = vmatpush1.bf16.msra.mxu0 0
    %1858 = vmatprep.subr.bf16.mxu0 0
    %1859 = vmatpush1.bf16.msra.mxu0 0
    %1860 = vmatprep.subr.bf16.mxu0 0
    %1861 = vmatpush1.bf16.msra.mxu0 0
    %1862 = vmatprep.subr.bf16.mxu0 0
    %1863 = vmatpush1.bf16.msra.mxu0 0
    %1864 = vmatprep.subr.bf16.mxu0 0
    %1865 = vmatpush1.bf16.msra.mxu0 0
    %1866 = vmatprep.subr.bf16.mxu0 0
    %1867 = vmatpush1.bf16.msra.mxu0 0
    %1868 = vmatprep.subr.bf16.mxu0 0
    %1869 = vmatpush1.bf16.msra.mxu0 0
    %1870 = vmatprep.subr.bf16.mxu0 0
    %1871 = vmatpush1.bf16.msra.mxu0 %v1851
    %1872 = vmatprep.subr.bf16.mxu0 0
    %1873 = vmatpush2.bf16.msra.mxu0 0
    %1874 = vmatprep.subr.bf16.mxu0 0
    %1875 = vmatpush2.bf16.msra.mxu0 0
    %1876 = vmatprep.subr.bf16.mxu0 0
    %1877 = vmatpush2.bf16.msra.mxu0 0
    %1878 = vmatprep.subr.bf16.mxu0 0
    %1879 = vmatpush2.bf16.msra.mxu0 0
    %1880 = vmatprep.subr.bf16.mxu0 0
    %1881 = vmatpush2.bf16.msra.mxu0 0
    %1882 = vmatprep.subr.bf16.mxu0 0
    %1883 = vmatpush2.bf16.msra.mxu0 0
    %1884 = vmatprep.subr.bf16.mxu0 0
    %1885 = vmatpush2.bf16.msra.mxu0 0
    %1886 = vmatprep.subr.bf16.mxu0 0
    %1887 = vmatpush2.bf16.msra.mxu0 0
    %1888 = vmatprep.mubr.bf16.mxu0 0
    %1889 = vmatmul.mubr.bf16.gmra.mxu0 %v1854
    %v1890 = vpop.f32.mrf.mxu0
    %v1891 = vadd.f32 0.0, %v1890
    %v1892 = vpop.f32.mrf.mxu0
    %v1893 = vpop.f32.mrf.mxu0
    %v1894 = vpop.f32.mrf.mxu0
    %1895 = vdwg.mxu0
    %v1896 = vpack.c.bf16 %v1891, %v1891
    %v1897 = vld [vmem:[%s29] sm:$0xf]
    %v1898 = vld [vmem:[%s29 + $0x4] sm:$0xf]
    %v1899 = vld [vmem:[%s29 + $0x8] sm:$0xf]
    %v1900 = vld [vmem:[%s29 + $0xc] sm:$0xf]
    %v1901 = vld [vmem:[%s29 + $0x10] sm:$0xf]
    %v1902 = vld [vmem:[%s29 + $0x14] sm:$0xf]
    %v1903 = vld [vmem:[%s29 + $0x18] sm:$0xf]
    %v1904 = vld [vmem:[%s29 + $0x1c] sm:$0xf]
    %v1905 = vld [vmem:[%s29 + $0x20] sm:$0xf]
    %v1906 = vld [vmem:[%s29 + $0x24] sm:$0xf]
    %v1907 = vld [vmem:[%s29 + $0x28] sm:$0xf]
    %v1908 = vld [vmem:[%s29 + $0x2c] sm:$0xf]
    %v1909 = vld [vmem:[%s29 + $0x30] sm:$0xf]
    %v1910 = vld [vmem:[%s29 + $0x34] sm:$0xf]
    %v1911 = vld [vmem:[%s29 + $0x38] sm:$0xf]
    %v1912 = vld [vmem:[%s29 + $0x3c] sm:$0xf]
    %s1913 = scalar_lea.vmem %s27, 4
    %v1914 = vld [vmem:[%s1913] sm:$0xf]
    %v1916 = vsel %vm1246, %v1914, 0
    %1918 = vmatprep.subr.bf16.mxu0 0
    %1919 = vmatpush1.bf16.msra.mxu0 0
    %1920 = vmatprep.subr.bf16.mxu0 0
    %1921 = vmatpush1.bf16.msra.mxu0 0
    %1922 = vmatprep.subr.bf16.mxu0 0
    %1923 = vmatpush1.bf16.msra.mxu0 0
    %1924 = vmatprep.subr.bf16.mxu0 0
    %1925 = vmatpush1.bf16.msra.mxu0 0
    %1926 = vmatprep.subr.bf16.mxu0 0
    %1927 = vmatpush1.bf16.msra.mxu0 0
    %1928 = vmatprep.subr.bf16.mxu0 0
    %1929 = vmatpush1.bf16.msra.mxu0 0
    %1930 = vmatprep.subr.bf16.mxu0 0
    %1931 = vmatpush1.bf16.msra.mxu0 0
    %1932 = vmatprep.subr.bf16.mxu0 0
    %1933 = vmatpush1.bf16.msra.mxu0 %v1851
    %1934 = vmatprep.subr.bf16.mxu0 0
    %1935 = vmatpush2.bf16.msra.mxu0 0
    %1936 = vmatprep.subr.bf16.mxu0 0
    %1937 = vmatpush2.bf16.msra.mxu0 0
    %1938 = vmatprep.subr.bf16.mxu0 0
    %1939 = vmatpush2.bf16.msra.mxu0 0
    %1940 = vmatprep.subr.bf16.mxu0 0
    %1941 = vmatpush2.bf16.msra.mxu0 0
    %1942 = vmatprep.subr.bf16.mxu0 0
    %1943 = vmatpush2.bf16.msra.mxu0 0
    %1944 = vmatprep.subr.bf16.mxu0 0
    %1945 = vmatpush2.bf16.msra.mxu0 0
    %1946 = vmatprep.subr.bf16.mxu0 0
    %1947 = vmatpush2.bf16.msra.mxu0 0
    %1948 = vmatprep.subr.bf16.mxu0 0
    %1949 = vmatpush2.bf16.msra.mxu0 0
    %1950 = vmatprep.mubr.bf16.mxu0 0
    %1951 = vmatmul.mubr.bf16.gmra.mxu0 %v1916
    %v1952 = vpop.f32.mrf.mxu0
    %v1953 = vadd.f32 0.0, %v1952
    %v1954 = vpop.f32.mrf.mxu0
    %v1955 = vpop.f32.mrf.mxu0
    %v1956 = vpop.f32.mrf.mxu0
    %1957 = vdwg.mxu0
    %v1958 = vpack.c.bf16 %v1953, %v1953
    %s1959 = scalar_lea.vmem %s29, 64
    %v1960 = vld [vmem:[%s1959] sm:$0xf]
    %v1961 = vld [vmem:[%s1959 + $0x4] sm:$0xf]
    %v1962 = vld [vmem:[%s1959 + $0x8] sm:$0xf]
    %v1963 = vld [vmem:[%s1959 + $0xc] sm:$0xf]
    %v1964 = vld [vmem:[%s1959 + $0x10] sm:$0xf]
    %v1965 = vld [vmem:[%s1959 + $0x14] sm:$0xf]
    %v1966 = vld [vmem:[%s1959 + $0x18] sm:$0xf]
    %v1967 = vld [vmem:[%s1959 + $0x1c] sm:$0xf]
    %v1968 = vld [vmem:[%s1959 + $0x20] sm:$0xf]
    %v1969 = vld [vmem:[%s1959 + $0x24] sm:$0xf]
    %v1970 = vld [vmem:[%s1959 + $0x28] sm:$0xf]
    %v1971 = vld [vmem:[%s1959 + $0x2c] sm:$0xf]
    %v1972 = vld [vmem:[%s1959 + $0x30] sm:$0xf]
    %v1973 = vld [vmem:[%s1959 + $0x34] sm:$0xf]
    %v1974 = vld [vmem:[%s1959 + $0x38] sm:$0xf]
    %v1975 = vld [vmem:[%s1959 + $0x3c] sm:$0xf]
    %v1992 = vunpack.c.l.b16 %v1960
    %v1993 = vunpack.c.l.b16 %v1961
    %v1994 = vunpack.c.l.b16 %v1962
    %v1995 = vunpack.c.l.b16 %v1963
    %v1996 = vunpack.c.l.b16 %v1964
    %v1997 = vunpack.c.l.b16 %v1965
    %v1998 = vunpack.c.l.b16 %v1966
    %v1999 = vunpack.c.l.b16 %v1967
    %v2000 = vunpack.c.l.b16 %v1968
    %v2001 = vunpack.c.l.b16 %v1969
    %v2002 = vunpack.c.l.b16 %v1970
    %v2003 = vunpack.c.l.b16 %v1971
    %v2004 = vunpack.c.l.b16 %v1972
    %v2005 = vunpack.c.l.b16 %v1973
    %v2006 = vunpack.c.l.b16 %v1974
    %v2007 = vunpack.c.l.b16 %v1975
    %v2008 = vpack.c.b16 %v1993, %v1992
    %v2009 = vpack.c.b16 %v1995, %v1994
    %v2010 = vpack.c.b16 %v1997, %v1996
    %v2011 = vpack.c.b16 %v1999, %v1998
    %v2012 = vpack.c.b16 %v2001, %v2000
    %v2013 = vpack.c.b16 %v2003, %v2002
    %v2014 = vpack.c.b16 %v2005, %v2004
    %v2015 = vpack.c.b16 %v2007, %v2006
    %2024 = vmatprep.subr.bf16.mxu0 0
    %2025 = vmatpush1.bf16.msra.mxu0 %v2015
    %2026 = vmatprep.subr.bf16.mxu0 0
    %2027 = vmatpush1.bf16.msra.mxu0 %v2014
    %2028 = vmatprep.subr.bf16.mxu0 0
    %2029 = vmatpush1.bf16.msra.mxu0 %v2013
    %2030 = vmatprep.subr.bf16.mxu0 0
    %2031 = vmatpush1.bf16.msra.mxu0 %v2012
    %2032 = vmatprep.subr.bf16.mxu0 0
    %2033 = vmatpush1.bf16.msra.mxu0 %v2011
    %2034 = vmatprep.subr.bf16.mxu0 0
    %2035 = vmatpush1.bf16.msra.mxu0 %v2010
    %2036 = vmatprep.subr.bf16.mxu0 0
    %2037 = vmatpush1.bf16.msra.mxu0 %v2009
    %2038 = vmatprep.subr.bf16.mxu0 0
    %2039 = vmatpush1.bf16.msra.mxu0 %v2008
    %2040 = vmatprep.subr.bf16.mxu0 0
    %2041 = vmatpush2.bf16.msra.mxu0 0
    %2042 = vmatprep.subr.bf16.mxu0 0
    %2043 = vmatpush2.bf16.msra.mxu0 0
    %2044 = vmatprep.subr.bf16.mxu0 0
    %2045 = vmatpush2.bf16.msra.mxu0 0
    %2046 = vmatprep.subr.bf16.mxu0 0
    %2047 = vmatpush2.bf16.msra.mxu0 0
    %2048 = vmatprep.subr.bf16.mxu0 0
    %2049 = vmatpush2.bf16.msra.mxu0 0
    %2050 = vmatprep.subr.bf16.mxu0 0
    %2051 = vmatpush2.bf16.msra.mxu0 0
    %2052 = vmatprep.subr.bf16.mxu0 0
    %2053 = vmatpush2.bf16.msra.mxu0 0
    %2054 = vmatprep.subr.bf16.mxu0 0
    %2055 = vmatpush2.bf16.msra.mxu0 0
    %2056 = vmatprep.mubr.bf16.mxu0 0
    %2057 = vmatmul.mubr.bf16.gmra.mxu0 %v1958
    %v2058 = vpop.f32.mrf.mxu0
    %v2059 = vadd.f32 0.0, %v2058
    %v2060 = vpop.f32.mrf.mxu0
    %v2061 = vpop.f32.mrf.mxu0
    %v2062 = vpop.f32.mrf.mxu0
    %2063 = vdwg.mxu0
    %v2080 = vunpack.c.l.b16 %v1897
    %v2081 = vunpack.c.l.b16 %v1898
    %v2082 = vunpack.c.l.b16 %v1899
    %v2083 = vunpack.c.l.b16 %v1900
    %v2084 = vunpack.c.l.b16 %v1901
    %v2085 = vunpack.c.l.b16 %v1902
    %v2086 = vunpack.c.l.b16 %v1903
    %v2087 = vunpack.c.l.b16 %v1904
    %v2088 = vunpack.c.l.b16 %v1905
    %v2089 = vunpack.c.l.b16 %v1906
    %v2090 = vunpack.c.l.b16 %v1907
    %v2091 = vunpack.c.l.b16 %v1908
    %v2092 = vunpack.c.l.b16 %v1909
    %v2093 = vunpack.c.l.b16 %v1910
    %v2094 = vunpack.c.l.b16 %v1911
    %v2095 = vunpack.c.l.b16 %v1912
    %v2096 = vpack.c.b16 %v2081, %v2080
    %v2097 = vpack.c.b16 %v2083, %v2082
    %v2098 = vpack.c.b16 %v2085, %v2084
    %v2099 = vpack.c.b16 %v2087, %v2086
    %v2100 = vpack.c.b16 %v2089, %v2088
    %v2101 = vpack.c.b16 %v2091, %v2090
    %v2102 = vpack.c.b16 %v2093, %v2092
    %v2103 = vpack.c.b16 %v2095, %v2094
    %2112 = vmatprep.subr.bf16.mxu0 0
    %2113 = vmatpush1.bf16.msra.mxu0 %v2103
    %2114 = vmatprep.subr.bf16.mxu0 0
    %2115 = vmatpush1.bf16.msra.mxu0 %v2102
    %2116 = vmatprep.subr.bf16.mxu0 0
    %2117 = vmatpush1.bf16.msra.mxu0 %v2101
    %2118 = vmatprep.subr.bf16.mxu0 0
    %2119 = vmatpush1.bf16.msra.mxu0 %v2100
    %2120 = vmatprep.subr.bf16.mxu0 0
    %2121 = vmatpush1.bf16.msra.mxu0 %v2099
    %2122 = vmatprep.subr.bf16.mxu0 0
    %2123 = vmatpush1.bf16.msra.mxu0 %v2098
    %2124 = vmatprep.subr.bf16.mxu0 0
    %2125 = vmatpush1.bf16.msra.mxu0 %v2097
    %2126 = vmatprep.subr.bf16.mxu0 0
    %2127 = vmatpush1.bf16.msra.mxu0 %v2096
    %2128 = vmatprep.subr.bf16.mxu0 0
    %2129 = vmatpush2.bf16.msra.mxu0 0
    %2130 = vmatprep.subr.bf16.mxu0 0
    %2131 = vmatpush2.bf16.msra.mxu0 0
    %2132 = vmatprep.subr.bf16.mxu0 0
    %2133 = vmatpush2.bf16.msra.mxu0 0
    %2134 = vmatprep.subr.bf16.mxu0 0
    %2135 = vmatpush2.bf16.msra.mxu0 0
    %2136 = vmatprep.subr.bf16.mxu0 0
    %2137 = vmatpush2.bf16.msra.mxu0 0
    %2138 = vmatprep.subr.bf16.mxu0 0
    %2139 = vmatpush2.bf16.msra.mxu0 0
    %2140 = vmatprep.subr.bf16.mxu0 0
    %2141 = vmatpush2.bf16.msra.mxu0 0
    %2142 = vmatprep.subr.bf16.mxu0 0
    %2143 = vmatpush2.bf16.msra.mxu0 0
    %2144 = vmatprep.mubr.bf16.mxu0 0
    %2145 = vmatmul.mubr.bf16.gmra.mxu0 %v1896
    %v2146 = vpop.f32.mrf.mxu0
    %v2147 = vadd.f32 %v2059, %v2146
    %v2148 = vpop.f32.mrf.mxu0
    %v2149 = vpop.f32.mrf.mxu0
    %v2150 = vpop.f32.mrf.mxu0
    %2151 = vdwg.mxu0
    %s2152 = scalar_lea.vmem %s27, 8
    %v2153 = vld [vmem:[%s2152] sm:$0xf]
    %v2155 = vsel %vm1246, %v2153, 0
    %2157 = vmatprep.subr.bf16.mxu0 0
    %2158 = vmatpush1.bf16.msra.mxu0 0
    %2159 = vmatprep.subr.bf16.mxu0 0
    %2160 = vmatpush1.bf16.msra.mxu0 0
    %2161 = vmatprep.subr.bf16.mxu0 0
    %2162 = vmatpush1.bf16.msra.mxu0 0
    %2163 = vmatprep.subr.bf16.mxu0 0
    %2164 = vmatpush1.bf16.msra.mxu0 0
    %2165 = vmatprep.subr.bf16.mxu0 0
    %2166 = vmatpush1.bf16.msra.mxu0 0
    %2167 = vmatprep.subr.bf16.mxu0 0
    %2168 = vmatpush1.bf16.msra.mxu0 0
    %2169 = vmatprep.subr.bf16.mxu0 0
    %2170 = vmatpush1.bf16.msra.mxu0 0
    %2171 = vmatprep.subr.bf16.mxu0 0
    %2172 = vmatpush1.bf16.msra.mxu0 %v1851
    %2173 = vmatprep.subr.bf16.mxu0 0
    %2174 = vmatpush2.bf16.msra.mxu0 0
    %2175 = vmatprep.subr.bf16.mxu0 0
    %2176 = vmatpush2.bf16.msra.mxu0 0
    %2177 = vmatprep.subr.bf16.mxu0 0
    %2178 = vmatpush2.bf16.msra.mxu0 0
    %2179 = vmatprep.subr.bf16.mxu0 0
    %2180 = vmatpush2.bf16.msra.mxu0 0
    %2181 = vmatprep.subr.bf16.mxu0 0
    %2182 = vmatpush2.bf16.msra.mxu0 0
    %2183 = vmatprep.subr.bf16.mxu0 0
    %2184 = vmatpush2.bf16.msra.mxu0 0
    %2185 = vmatprep.subr.bf16.mxu0 0
    %2186 = vmatpush2.bf16.msra.mxu0 0
    %2187 = vmatprep.subr.bf16.mxu0 0
    %2188 = vmatpush2.bf16.msra.mxu0 0
    %2189 = vmatprep.mubr.bf16.mxu0 0
    %2190 = vmatmul.mubr.bf16.gmra.mxu0 %v2155
    %v2191 = vpop.f32.mrf.mxu0
    %v2192 = vadd.f32 0.0, %v2191
    %v2193 = vpop.f32.mrf.mxu0
    %v2194 = vpop.f32.mrf.mxu0
    %v2195 = vpop.f32.mrf.mxu0
    %2196 = vdwg.mxu0
    %v2197 = vpack.c.bf16 %v2192, %v2192
    %s2198 = scalar_lea.vmem %s29, 128
    %v2199 = vld [vmem:[%s2198] sm:$0xf]
    %v2200 = vld [vmem:[%s2198 + $0x4] sm:$0xf]
    %v2201 = vld [vmem:[%s2198 + $0x8] sm:$0xf]
    %v2202 = vld [vmem:[%s2198 + $0xc] sm:$0xf]
    %v2203 = vld [vmem:[%s2198 + $0x10] sm:$0xf]
    %v2204 = vld [vmem:[%s2198 + $0x14] sm:$0xf]
    %v2205 = vld [vmem:[%s2198 + $0x18] sm:$0xf]
    %v2206 = vld [vmem:[%s2198 + $0x1c] sm:$0xf]
    %v2207 = vld [vmem:[%s2198 + $0x20] sm:$0xf]
    %v2208 = vld [vmem:[%s2198 + $0x24] sm:$0xf]
    %v2209 = vld [vmem:[%s2198 + $0x28] sm:$0xf]
    %v2210 = vld [vmem:[%s2198 + $0x2c] sm:$0xf]
    %v2211 = vld [vmem:[%s2198 + $0x30] sm:$0xf]
    %v2212 = vld [vmem:[%s2198 + $0x34] sm:$0xf]
    %v2213 = vld [vmem:[%s2198 + $0x38] sm:$0xf]
    %v2214 = vld [vmem:[%s2198 + $0x3c] sm:$0xf]
    %v2231 = vunpack.c.l.b16 %v2199
    %v2232 = vunpack.c.l.b16 %v2200
    %v2233 = vunpack.c.l.b16 %v2201
    %v2234 = vunpack.c.l.b16 %v2202
    %v2235 = vunpack.c.l.b16 %v2203
    %v2236 = vunpack.c.l.b16 %v2204
    %v2237 = vunpack.c.l.b16 %v2205
    %v2238 = vunpack.c.l.b16 %v2206
    %v2239 = vunpack.c.l.b16 %v2207
    %v2240 = vunpack.c.l.b16 %v2208
    %v2241 = vunpack.c.l.b16 %v2209
    %v2242 = vunpack.c.l.b16 %v2210
    %v2243 = vunpack.c.l.b16 %v2211
    %v2244 = vunpack.c.l.b16 %v2212
    %v2245 = vunpack.c.l.b16 %v2213
    %v2246 = vunpack.c.l.b16 %v2214
    %v2247 = vpack.c.b16 %v2232, %v2231
    %v2248 = vpack.c.b16 %v2234, %v2233
    %v2249 = vpack.c.b16 %v2236, %v2235
    %v2250 = vpack.c.b16 %v2238, %v2237
    %v2251 = vpack.c.b16 %v2240, %v2239
    %v2252 = vpack.c.b16 %v2242, %v2241
    %v2253 = vpack.c.b16 %v2244, %v2243
    %v2254 = vpack.c.b16 %v2246, %v2245
    %2263 = vmatprep.subr.bf16.mxu0 0
    %2264 = vmatpush1.bf16.msra.mxu0 %v2254
    %2265 = vmatprep.subr.bf16.mxu0 0
    %2266 = vmatpush1.bf16.msra.mxu0 %v2253
    %2267 = vmatprep.subr.bf16.mxu0 0
    %2268 = vmatpush1.bf16.msra.mxu0 %v2252
    %2269 = vmatprep.subr.bf16.mxu0 0
    %2270 = vmatpush1.bf16.msra.mxu0 %v2251
    %2271 = vmatprep.subr.bf16.mxu0 0
    %2272 = vmatpush1.bf16.msra.mxu0 %v2250
    %2273 = vmatprep.subr.bf16.mxu0 0
    %2274 = vmatpush1.bf16.msra.mxu0 %v2249
    %2275 = vmatprep.subr.bf16.mxu0 0
    %2276 = vmatpush1.bf16.msra.mxu0 %v2248
    %2277 = vmatprep.subr.bf16.mxu0 0
    %2278 = vmatpush1.bf16.msra.mxu0 %v2247
    %2279 = vmatprep.subr.bf16.mxu0 0
    %2280 = vmatpush2.bf16.msra.mxu0 0
    %2281 = vmatprep.subr.bf16.mxu0 0
    %2282 = vmatpush2.bf16.msra.mxu0 0
    %2283 = vmatprep.subr.bf16.mxu0 0
    %2284 = vmatpush2.bf16.msra.mxu0 0
    %2285 = vmatprep.subr.bf16.mxu0 0
    %2286 = vmatpush2.bf16.msra.mxu0 0
    %2287 = vmatprep.subr.bf16.mxu0 0
    %2288 = vmatpush2.bf16.msra.mxu0 0
    %2289 = vmatprep.subr.bf16.mxu0 0
    %2290 = vmatpush2.bf16.msra.mxu0 0
    %2291 = vmatprep.subr.bf16.mxu0 0
    %2292 = vmatpush2.bf16.msra.mxu0 0
    %2293 = vmatprep.subr.bf16.mxu0 0
    %2294 = vmatpush2.bf16.msra.mxu0 0
    %2295 = vmatprep.mubr.bf16.mxu0 0
    %2296 = vmatmul.mubr.bf16.gmra.mxu0 %v2197
    %v2297 = vpop.f32.mrf.mxu0
    %v2298 = vadd.f32 0.0, %v2297
    %v2299 = vpop.f32.mrf.mxu0
    %v2300 = vpop.f32.mrf.mxu0
    %v2301 = vpop.f32.mrf.mxu0
    %2302 = vdwg.mxu0
    %v2303 = vadd.f32 %v2147, %v2298
    %v2304 = vld [vmem:[%s31] sm:$0x1]
    %v2306 = vlaneseq
    %v2307 = vshrl.u32 %v2306, 7
    %v2308 = vsub.s32 0, %v2307
    %v2309 = vrot.slane %v2304, %v2308
    %v2311 = vadd.f32 %v2303, %v2309
    %v2312 = vsel %vm1386, %v2311, 0.0
    %v2313 = vrot.slane %v2312, 4
    %v2314 = vadd.f32 %v2312, %v2313
    %v2315 = vrot.slane %v2314, 2
    %v2316 = vadd.f32 %v2314, %v2315
    %v2317 = vrot.slane %v2316, 1
    %v2318 = vadd.f32 %v2316, %v2317
    %v2319 = vmul.f32 %v2318, 0.125
    %v2320 = vld [vmem:[%s37] sm:$0xff]
    %v2321 = vld [vmem:[%s37 + $0x8] sm:$0xff]
    %v2322 = vld [vmem:[%s37 + $0x10] sm:$0xff]
    %v2323 = vld [vmem:[%s37 + $0x18] sm:$0xff]
    %v2324 = vld [vmem:[%s37 + $0x20] sm:$0xff]
    %v2325 = vld [vmem:[%s37 + $0x28] sm:$0xff]
    %v2326 = vld [vmem:[%s37 + $0x30] sm:$0xff]
    %v2327 = vld [vmem:[%s37 + $0x38] sm:$0xff]
    %v2329 = vsel %vm1386, %v2319, 0
    %2331 = vmatprep.subr.mxu0 0.0
    %2332 = vmatpush1.msra.mxu0 0.0
    %2333 = vmatprep.subr.mxu0 0.0
    %2334 = vmatpush1.msra.mxu0 0.0
    %2335 = vmatprep.subr.mxu0 0.0
    %2336 = vmatpush1.msra.mxu0 0.0
    %2337 = vmatprep.subr.mxu0 0.0
    %2338 = vmatpush1.msra.mxu0 0.0
    %2339 = vmatprep.subr.mxu0 0.0
    %2340 = vmatpush1.msra.mxu0 0.0
    %2341 = vmatprep.subr.mxu0 0.0
    %2342 = vmatpush1.msra.mxu0 0.0
    %2343 = vmatprep.subr.mxu0 0.0
    %2344 = vmatpush1.msra.mxu0 0.0
    %2345 = vmatprep.subr.mxu0 0.0
    %2346 = vmatpush1.msra.mxu0 0.0
    %2347 = vmatprep.subr.mxu0 0.0
    %2348 = vmatpush1.msra.mxu0 %v2327
    %2349 = vmatprep.subr.mxu0 0.0
    %2350 = vmatpush1.msra.mxu0 %v2326
    %2351 = vmatprep.subr.mxu0 0.0
    %2352 = vmatpush1.msra.mxu0 %v2325
    %2353 = vmatprep.subr.mxu0 0.0
    %2354 = vmatpush1.msra.mxu0 %v2324
    %2355 = vmatprep.subr.mxu0 0.0
    %2356 = vmatpush1.msra.mxu0 %v2323
    %2357 = vmatprep.subr.mxu0 0.0
    %2358 = vmatpush1.msra.mxu0 %v2322
    %2359 = vmatprep.subr.mxu0 0.0
    %2360 = vmatpush1.msra.mxu0 %v2321
    %2361 = vmatprep.subr.mxu0 0.0
    %2362 = vmatpush1.msra.mxu0 %v2320
    %2363 = vmatprep.subr.mxu0 0.0
    %2364 = vmatpush2.msra.mxu0 0.0
    %2365 = vmatprep.subr.mxu0 0.0
    %2366 = vmatpush2.msra.mxu0 0.0
    %2367 = vmatprep.subr.mxu0 0.0
    %2368 = vmatpush2.msra.mxu0 0.0
    %2369 = vmatprep.subr.mxu0 0.0
    %2370 = vmatpush2.msra.mxu0 0.0
    %2371 = vmatprep.subr.mxu0 0.0
    %2372 = vmatpush2.msra.mxu0 0.0
    %2373 = vmatprep.subr.mxu0 0.0
    %2374 = vmatpush2.msra.mxu0 0.0
    %2375 = vmatprep.subr.mxu0 0.0
    %2376 = vmatpush2.msra.mxu0 0.0
    %2377 = vmatprep.subr.mxu0 0.0
    %2378 = vmatpush2.msra.mxu0 0.0
    %2379 = vmatprep.subr.mxu0 0.0
    %2380 = vmatpush2.msra.mxu0 0.0
    %2381 = vmatprep.subr.mxu0 0.0
    %2382 = vmatpush2.msra.mxu0 0.0
    %2383 = vmatprep.subr.mxu0 0.0
    %2384 = vmatpush2.msra.mxu0 0.0
    %2385 = vmatprep.subr.mxu0 0.0
    %2386 = vmatpush2.msra.mxu0 0.0
    %2387 = vmatprep.subr.mxu0 0.0
    %2388 = vmatpush2.msra.mxu0 0.0
    %2389 = vmatprep.subr.mxu0 0.0
    %2390 = vmatpush2.msra.mxu0 0.0
    %2391 = vmatprep.subr.mxu0 0.0
    %2392 = vmatpush2.msra.mxu0 0.0
    %2393 = vmatprep.subr.mxu0 0.0
    %2394 = vmatpush2.msra.mxu0 0.0
    %2395 = vmatprep.mubr.f32.mxu0 0.0
    %2396 = vmatmul.mubr.f32.gmra.mxu0 %v2329
    %v2397 = vpop.f32.mrf.mxu0
    %v2398 = vadd.f32 0.0, %v2397
    %v2399 = vpop.f32.mrf.mxu0
    %2400 = vdwg.mxu0
    %v2401 = vlaneseq
    %v2402 = vshrl.u32 %v2401, 7
    %v2403 = vsub.s32 0, %v2402
    %v2404 = vrot.slane %v2398, %v2403
    %v2405 = vsub.f32 %v2311, %v2404
    %v2406 = vmul.f32 %v2405, %v2405
    %v2407 = vsel %vm1386, %v2406, 0.0
    %v2408 = vrot.slane %v2407, 4
    %v2409 = vadd.f32 %v2407, %v2408
    %v2410 = vrot.slane %v2409, 2
    %v2411 = vadd.f32 %v2409, %v2410
    %v2412 = vrot.slane %v2411, 1
    %v2413 = vadd.f32 %v2411, %v2412
    %v2414 = vmul.f32 %v2413, 0.125
    %v2415 = vld [vmem:[%s33] sm:$0x1]
    %v2417 = vlaneseq
    %v2418 = vshrl.u32 %v2417, 7
    %v2419 = vsub.s32 0, %v2418
    %v2420 = vrot.slane %v2415, %v2419
    %v2422 = vmul.f32 %v2420, %v2405
    %v2424 = vsel %vm1386, %v2414, 0
    %2426 = vmatprep.subr.mxu0 0.0
    %2427 = vmatpush1.msra.mxu0 0.0
    %2428 = vmatprep.subr.mxu0 0.0
    %2429 = vmatpush1.msra.mxu0 0.0
    %2430 = vmatprep.subr.mxu0 0.0
    %2431 = vmatpush1.msra.mxu0 0.0
    %2432 = vmatprep.subr.mxu0 0.0
    %2433 = vmatpush1.msra.mxu0 0.0
    %2434 = vmatprep.subr.mxu0 0.0
    %2435 = vmatpush1.msra.mxu0 0.0
    %2436 = vmatprep.subr.mxu0 0.0
    %2437 = vmatpush1.msra.mxu0 0.0
    %2438 = vmatprep.subr.mxu0 0.0
    %2439 = vmatpush1.msra.mxu0 0.0
    %2440 = vmatprep.subr.mxu0 0.0
    %2441 = vmatpush1.msra.mxu0 0.0
    %2442 = vmatprep.subr.mxu0 0.0
    %2443 = vmatpush1.msra.mxu0 %v2327
    %2444 = vmatprep.subr.mxu0 0.0
    %2445 = vmatpush1.msra.mxu0 %v2326
    %2446 = vmatprep.subr.mxu0 0.0
    %2447 = vmatpush1.msra.mxu0 %v2325
    %2448 = vmatprep.subr.mxu0 0.0
    %2449 = vmatpush1.msra.mxu0 %v2324
    %2450 = vmatprep.subr.mxu0 0.0
    %2451 = vmatpush1.msra.mxu0 %v2323
    %2452 = vmatprep.subr.mxu0 0.0
    %2453 = vmatpush1.msra.mxu0 %v2322
    %2454 = vmatprep.subr.mxu0 0.0
    %2455 = vmatpush1.msra.mxu0 %v2321
    %2456 = vmatprep.subr.mxu0 0.0
    %2457 = vmatpush1.msra.mxu0 %v2320
    %2458 = vmatprep.subr.mxu0 0.0
    %2459 = vmatpush2.msra.mxu0 0.0
    %2460 = vmatprep.subr.mxu0 0.0
    %2461 = vmatpush2.msra.mxu0 0.0
    %2462 = vmatprep.subr.mxu0 0.0
    %2463 = vmatpush2.msra.mxu0 0.0
    %2464 = vmatprep.subr.mxu0 0.0
    %2465 = vmatpush2.msra.mxu0 0.0
    %2466 = vmatprep.subr.mxu0 0.0
    %2467 = vmatpush2.msra.mxu0 0.0
    %2468 = vmatprep.subr.mxu0 0.0
    %2469 = vmatpush2.msra.mxu0 0.0
    %2470 = vmatprep.subr.mxu0 0.0
    %2471 = vmatpush2.msra.mxu0 0.0
    %2472 = vmatprep.subr.mxu0 0.0
    %2473 = vmatpush2.msra.mxu0 0.0
    %2474 = vmatprep.subr.mxu0 0.0
    %2475 = vmatpush2.msra.mxu0 0.0
    %2476 = vmatprep.subr.mxu0 0.0
    %2477 = vmatpush2.msra.mxu0 0.0
    %2478 = vmatprep.subr.mxu0 0.0
    %2479 = vmatpush2.msra.mxu0 0.0
    %2480 = vmatprep.subr.mxu0 0.0
    %2481 = vmatpush2.msra.mxu0 0.0
    %2482 = vmatprep.subr.mxu0 0.0
    %2483 = vmatpush2.msra.mxu0 0.0
    %2484 = vmatprep.subr.mxu0 0.0
    %2485 = vmatpush2.msra.mxu0 0.0
    %2486 = vmatprep.subr.mxu0 0.0
    %2487 = vmatpush2.msra.mxu0 0.0
    %2488 = vmatprep.subr.mxu0 0.0
    %2489 = vmatpush2.msra.mxu0 0.0
    %2490 = vmatprep.mubr.f32.mxu0 0.0
    %2491 = vmatmul.mubr.f32.gmra.mxu0 %v2424
    %v2492 = vpop.f32.mrf.mxu0
    %v2493 = vadd.f32 1e-05, %v2492
    %v2494 = vpop.f32.mrf.mxu0
    %2495 = vdwg.mxu0
    %v2496 = vrsqrt.pop %v2493
    %v2497 = vlaneseq
    %v2498 = vshrl.u32 %v2497, 7
    %v2499 = vsub.s32 0, %v2498
    %v2500 = vrot.slane %v2496, %v2499
    %v2501 = vmul.f32 %v2422, %v2500
    %v2502 = vld [vmem:[%s35] sm:$0x1]
    %v2504 = vlaneseq
    %v2505 = vshrl.u32 %v2504, 7
    %v2506 = vsub.s32 0, %v2505
    %v2507 = vrot.slane %v2502, %v2506
    %v2509 = vadd.f32 %v2501, %v2507
    %vm2510 = vcmp.gt.f32.partialorder %v2509, 0.0
    %v2511 = vmul.f32 %v2509, 0.01
    %v2512 = vsel %vm2510, %v2509, %v2511
    %v2513 = vpack.c.bf16 %v2512, %v2512
    %v2514 = vld [vmem:[%s39] sm:$0xf]
    %vm2515 = vcmask 64512
    %v2517 = vsel %vm2515, %v2514, 0
    %vm2519 = vcmask 1043456
    %v2521 = vsel %vm2519, %v2513, 0
    %2523 = vmatprep.subr.bf16.mxu0 0
    %2524 = vmatpush1.bf16.msra.mxu0 0
    %2525 = vmatprep.subr.bf16.mxu0 0
    %2526 = vmatpush1.bf16.msra.mxu0 0
    %2527 = vmatprep.subr.bf16.mxu0 0
    %2528 = vmatpush1.bf16.msra.mxu0 0
    %2529 = vmatprep.subr.bf16.mxu0 0
    %2530 = vmatpush1.bf16.msra.mxu0 0
    %2531 = vmatprep.subr.bf16.mxu0 0
    %2532 = vmatpush1.bf16.msra.mxu0 0
    %2533 = vmatprep.subr.bf16.mxu0 0
    %2534 = vmatpush1.bf16.msra.mxu0 0
    %2535 = vmatprep.subr.bf16.mxu0 0
    %2536 = vmatpush1.bf16.msra.mxu0 0
    %2537 = vmatprep.subr.bf16.mxu0 0
    %2538 = vmatpush1.bf16.msra.mxu0 %v2521
    %2539 = vmatprep.subr.bf16.mxu0 0
    %2540 = vmatpush2.bf16.msra.mxu0 0
    %2541 = vmatprep.subr.bf16.mxu0 0
    %2542 = vmatpush2.bf16.msra.mxu0 0
    %2543 = vmatprep.subr.bf16.mxu0 0
    %2544 = vmatpush2.bf16.msra.mxu0 0
    %2545 = vmatprep.subr.bf16.mxu0 0
    %2546 = vmatpush2.bf16.msra.mxu0 0
    %2547 = vmatprep.subr.bf16.mxu0 0
    %2548 = vmatpush2.bf16.msra.mxu0 0
    %2549 = vmatprep.subr.bf16.mxu0 0
    %2550 = vmatpush2.bf16.msra.mxu0 0
    %2551 = vmatprep.subr.bf16.mxu0 0
    %2552 = vmatpush2.bf16.msra.mxu0 0
    %2553 = vmatprep.subr.bf16.mxu0 0
    %2554 = vmatpush2.bf16.msra.mxu0 0
    %2555 = vmatprep.mubr.bf16.mxu0 0
    %2556 = vmatmul.mubr.bf16.gmra.mxu0 %v2517
    %v2557 = vpop.f32.mrf.mxu0
    %v2558 = vadd.f32 0.0, %v2557
    %v2559 = vpop.f32.mrf.mxu0
    %v2560 = vpop.f32.mrf.mxu0
    %v2561 = vpop.f32.mrf.mxu0
    %2562 = vdwg.mxu0
    %v2563 = vpack.c.bf16 %v2558, %v2558
    %v2564 = vld [vmem:[%s41] sm:$0xf]
    %v2565 = vld [vmem:[%s41 + $0x4] sm:$0xf]
    %v2566 = vld [vmem:[%s41 + $0x8] sm:$0xf]
    %v2567 = vld [vmem:[%s41 + $0xc] sm:$0xf]
    %v2568 = vld [vmem:[%s41 + $0x10] sm:$0xf]
    %v2569 = vld [vmem:[%s41 + $0x14] sm:$0xf]
    %v2570 = vld [vmem:[%s41 + $0x18] sm:$0xf]
    %v2571 = vld [vmem:[%s41 + $0x1c] sm:$0xf]
    %s2572 = scalar_lea.vmem %s39, 4
    %v2573 = vld [vmem:[%s2572] sm:$0xf]
    %v2575 = vsel %vm2515, %v2573, 0
    %2577 = vmatprep.subr.bf16.mxu0 0
    %2578 = vmatpush1.bf16.msra.mxu0 0
    %2579 = vmatprep.subr.bf16.mxu0 0
    %2580 = vmatpush1.bf16.msra.mxu0 0
    %2581 = vmatprep.subr.bf16.mxu0 0
    %2582 = vmatpush1.bf16.msra.mxu0 0
    %2583 = vmatprep.subr.bf16.mxu0 0
    %2584 = vmatpush1.bf16.msra.mxu0 0
    %2585 = vmatprep.subr.bf16.mxu0 0
    %2586 = vmatpush1.bf16.msra.mxu0 0
    %2587 = vmatprep.subr.bf16.mxu0 0
    %2588 = vmatpush1.bf16.msra.mxu0 0
    %2589 = vmatprep.subr.bf16.mxu0 0
    %2590 = vmatpush1.bf16.msra.mxu0 0
    %2591 = vmatprep.subr.bf16.mxu0 0
    %2592 = vmatpush1.bf16.msra.mxu0 %v2521
    %2593 = vmatprep.subr.bf16.mxu0 0
    %2594 = vmatpush2.bf16.msra.mxu0 0
    %2595 = vmatprep.subr.bf16.mxu0 0
    %2596 = vmatpush2.bf16.msra.mxu0 0
    %2597 = vmatprep.subr.bf16.mxu0 0
    %2598 = vmatpush2.bf16.msra.mxu0 0
    %2599 = vmatprep.subr.bf16.mxu0 0
    %2600 = vmatpush2.bf16.msra.mxu0 0
    %2601 = vmatprep.subr.bf16.mxu0 0
    %2602 = vmatpush2.bf16.msra.mxu0 0
    %2603 = vmatprep.subr.bf16.mxu0 0
    %2604 = vmatpush2.bf16.msra.mxu0 0
    %2605 = vmatprep.subr.bf16.mxu0 0
    %2606 = vmatpush2.bf16.msra.mxu0 0
    %2607 = vmatprep.subr.bf16.mxu0 0
    %2608 = vmatpush2.bf16.msra.mxu0 0
    %2609 = vmatprep.mubr.bf16.mxu0 0
    %2610 = vmatmul.mubr.bf16.gmra.mxu0 %v2575
    %v2611 = vpop.f32.mrf.mxu0
    %v2612 = vadd.f32 0.0, %v2611
    %v2613 = vpop.f32.mrf.mxu0
    %v2614 = vpop.f32.mrf.mxu0
    %v2615 = vpop.f32.mrf.mxu0
    %2616 = vdwg.mxu0
    %v2617 = vpack.c.bf16 %v2612, %v2612
    %s2618 = scalar_lea.vmem %s41, 32
    %v2619 = vld [vmem:[%s2618] sm:$0xf]
    %v2620 = vld [vmem:[%s2618 + $0x4] sm:$0xf]
    %v2621 = vld [vmem:[%s2618 + $0x8] sm:$0xf]
    %v2622 = vld [vmem:[%s2618 + $0xc] sm:$0xf]
    %v2623 = vld [vmem:[%s2618 + $0x10] sm:$0xf]
    %v2624 = vld [vmem:[%s2618 + $0x14] sm:$0xf]
    %v2625 = vld [vmem:[%s2618 + $0x18] sm:$0xf]
    %v2626 = vld [vmem:[%s2618 + $0x1c] sm:$0xf]
    %v2635 = vunpack.c.l.b16 %v2619
    %v2636 = vunpack.c.l.b16 %v2620
    %v2637 = vunpack.c.l.b16 %v2621
    %v2638 = vunpack.c.l.b16 %v2622
    %v2639 = vunpack.c.l.b16 %v2623
    %v2640 = vunpack.c.l.b16 %v2624
    %v2641 = vunpack.c.l.b16 %v2625
    %v2642 = vunpack.c.l.b16 %v2626
    %v2643 = vpack.c.b16 %v2636, %v2635
    %v2644 = vpack.c.b16 %v2638, %v2637
    %v2645 = vpack.c.b16 %v2640, %v2639
    %v2646 = vpack.c.b16 %v2642, %v2641
    %v2652 = vsel %vm1386, %v2617, 0
    %2654 = vmatprep.subr.bf16.mxu0 0
    %2655 = vmatpush1.bf16.msra.mxu0 0
    %2656 = vmatprep.subr.bf16.mxu0 0
    %2657 = vmatpush1.bf16.msra.mxu0 0
    %2658 = vmatprep.subr.bf16.mxu0 0
    %2659 = vmatpush1.bf16.msra.mxu0 0
    %2660 = vmatprep.subr.bf16.mxu0 0
    %2661 = vmatpush1.bf16.msra.mxu0 0
    %2662 = vmatprep.subr.bf16.mxu0 0
    %2663 = vmatpush1.bf16.msra.mxu0 %v2646
    %2664 = vmatprep.subr.bf16.mxu0 0
    %2665 = vmatpush1.bf16.msra.mxu0 %v2645
    %2666 = vmatprep.subr.bf16.mxu0 0
    %2667 = vmatpush1.bf16.msra.mxu0 %v2644
    %2668 = vmatprep.subr.bf16.mxu0 0
    %2669 = vmatpush1.bf16.msra.mxu0 %v2643
    %2670 = vmatprep.subr.bf16.mxu0 0
    %2671 = vmatpush2.bf16.msra.mxu0 0
    %2672 = vmatprep.subr.bf16.mxu0 0
    %2673 = vmatpush2.bf16.msra.mxu0 0
    %2674 = vmatprep.subr.bf16.mxu0 0
    %2675 = vmatpush2.bf16.msra.mxu0 0
    %2676 = vmatprep.subr.bf16.mxu0 0
    %2677 = vmatpush2.bf16.msra.mxu0 0
    %2678 = vmatprep.subr.bf16.mxu0 0
    %2679 = vmatpush2.bf16.msra.mxu0 0
    %2680 = vmatprep.subr.bf16.mxu0 0
    %2681 = vmatpush2.bf16.msra.mxu0 0
    %2682 = vmatprep.subr.bf16.mxu0 0
    %2683 = vmatpush2.bf16.msra.mxu0 0
    %2684 = vmatprep.subr.bf16.mxu0 0
    %2685 = vmatpush2.bf16.msra.mxu0 0
    %2686 = vmatprep.mubr.bf16.mxu0 0
    %2687 = vmatmul.mubr.bf16.gmra.mxu0 %v2652
    %v2688 = vpop.f32.mrf.mxu0
    %v2689 = vadd.f32 0.0, %v2688
    %v2690 = vpop.f32.mrf.mxu0
    %v2691 = vpop.f32.mrf.mxu0
    %v2692 = vpop.f32.mrf.mxu0
    %2693 = vdwg.mxu0
    %v2702 = vunpack.c.l.b16 %v2564
    %v2703 = vunpack.c.l.b16 %v2565
    %v2704 = vunpack.c.l.b16 %v2566
    %v2705 = vunpack.c.l.b16 %v2567
    %v2706 = vunpack.c.l.b16 %v2568
    %v2707 = vunpack.c.l.b16 %v2569
    %v2708 = vunpack.c.l.b16 %v2570
    %v2709 = vunpack.c.l.b16 %v2571
    %v2710 = vpack.c.b16 %v2703, %v2702
    %v2711 = vpack.c.b16 %v2705, %v2704
    %v2712 = vpack.c.b16 %v2707, %v2706
    %v2713 = vpack.c.b16 %v2709, %v2708
    %v2719 = vsel %vm1386, %v2563, 0
    %2721 = vmatprep.subr.bf16.mxu0 0
    %2722 = vmatpush1.bf16.msra.mxu0 0
    %2723 = vmatprep.subr.bf16.mxu0 0
    %2724 = vmatpush1.bf16.msra.mxu0 0
    %2725 = vmatprep.subr.bf16.mxu0 0
    %2726 = vmatpush1.bf16.msra.mxu0 0
    %2727 = vmatprep.subr.bf16.mxu0 0
    %2728 = vmatpush1.bf16.msra.mxu0 0
    %2729 = vmatprep.subr.bf16.mxu0 0
    %2730 = vmatpush1.bf16.msra.mxu0 %v2713
    %2731 = vmatprep.subr.bf16.mxu0 0
    %2732 = vmatpush1.bf16.msra.mxu0 %v2712
    %2733 = vmatprep.subr.bf16.mxu0 0
    %2734 = vmatpush1.bf16.msra.mxu0 %v2711
    %2735 = vmatprep.subr.bf16.mxu0 0
    %2736 = vmatpush1.bf16.msra.mxu0 %v2710
    %2737 = vmatprep.subr.bf16.mxu0 0
    %2738 = vmatpush2.bf16.msra.mxu0 0
    %2739 = vmatprep.subr.bf16.mxu0 0
    %2740 = vmatpush2.bf16.msra.mxu0 0
    %2741 = vmatprep.subr.bf16.mxu0 0
    %2742 = vmatpush2.bf16.msra.mxu0 0
    %2743 = vmatprep.subr.bf16.mxu0 0
    %2744 = vmatpush2.bf16.msra.mxu0 0
    %2745 = vmatprep.subr.bf16.mxu0 0
    %2746 = vmatpush2.bf16.msra.mxu0 0
    %2747 = vmatprep.subr.bf16.mxu0 0
    %2748 = vmatpush2.bf16.msra.mxu0 0
    %2749 = vmatprep.subr.bf16.mxu0 0
    %2750 = vmatpush2.bf16.msra.mxu0 0
    %2751 = vmatprep.subr.bf16.mxu0 0
    %2752 = vmatpush2.bf16.msra.mxu0 0
    %2753 = vmatprep.mubr.bf16.mxu0 0
    %2754 = vmatmul.mubr.bf16.gmra.mxu0 %v2719
    %v2755 = vpop.f32.mrf.mxu0
    %v2756 = vadd.f32 %v2689, %v2755
    %v2757 = vpop.f32.mrf.mxu0
    %v2758 = vpop.f32.mrf.mxu0
    %v2759 = vpop.f32.mrf.mxu0
    %2760 = vdwg.mxu0
    %s2761 = scalar_lea.vmem %s39, 8
    %v2762 = vld [vmem:[%s2761] sm:$0xf]
    %v2764 = vsel %vm2515, %v2762, 0
    %2766 = vmatprep.subr.bf16.mxu0 0
    %2767 = vmatpush1.bf16.msra.mxu0 0
    %2768 = vmatprep.subr.bf16.mxu0 0
    %2769 = vmatpush1.bf16.msra.mxu0 0
    %2770 = vmatprep.subr.bf16.mxu0 0
    %2771 = vmatpush1.bf16.msra.mxu0 0
    %2772 = vmatprep.subr.bf16.mxu0 0
    %2773 = vmatpush1.bf16.msra.mxu0 0
    %2774 = vmatprep.subr.bf16.mxu0 0
    %2775 = vmatpush1.bf16.msra.mxu0 0
    %2776 = vmatprep.subr.bf16.mxu0 0
    %2777 = vmatpush1.bf16.msra.mxu0 0
    %2778 = vmatprep.subr.bf16.mxu0 0
    %2779 = vmatpush1.bf16.msra.mxu0 0
    %2780 = vmatprep.subr.bf16.mxu0 0
    %2781 = vmatpush1.bf16.msra.mxu0 %v2521
    %2782 = vmatprep.subr.bf16.mxu0 0
    %2783 = vmatpush2.bf16.msra.mxu0 0
    %2784 = vmatprep.subr.bf16.mxu0 0
    %2785 = vmatpush2.bf16.msra.mxu0 0
    %2786 = vmatprep.subr.bf16.mxu0 0
    %2787 = vmatpush2.bf16.msra.mxu0 0
    %2788 = vmatprep.subr.bf16.mxu0 0
    %2789 = vmatpush2.bf16.msra.mxu0 0
    %2790 = vmatprep.subr.bf16.mxu0 0
    %2791 = vmatpush2.bf16.msra.mxu0 0
    %2792 = vmatprep.subr.bf16.mxu0 0
    %2793 = vmatpush2.bf16.msra.mxu0 0
    %2794 = vmatprep.subr.bf16.mxu0 0
    %2795 = vmatpush2.bf16.msra.mxu0 0
    %2796 = vmatprep.subr.bf16.mxu0 0
    %2797 = vmatpush2.bf16.msra.mxu0 0
    %2798 = vmatprep.mubr.bf16.mxu0 0
    %2799 = vmatmul.mubr.bf16.gmra.mxu0 %v2764
    %v2800 = vpop.f32.mrf.mxu0
    %v2801 = vadd.f32 0.0, %v2800
    %v2802 = vpop.f32.mrf.mxu0
    %v2803 = vpop.f32.mrf.mxu0
    %v2804 = vpop.f32.mrf.mxu0
    %2805 = vdwg.mxu0
    %v2806 = vpack.c.bf16 %v2801, %v2801
    %s2807 = scalar_lea.vmem %s41, 64
    %v2808 = vld [vmem:[%s2807] sm:$0xf]
    %v2809 = vld [vmem:[%s2807 + $0x4] sm:$0xf]
    %v2810 = vld [vmem:[%s2807 + $0x8] sm:$0xf]
    %v2811 = vld [vmem:[%s2807 + $0xc] sm:$0xf]
    %v2812 = vld [vmem:[%s2807 + $0x10] sm:$0xf]
    %v2813 = vld [vmem:[%s2807 + $0x14] sm:$0xf]
    %v2814 = vld [vmem:[%s2807 + $0x18] sm:$0xf]
    %v2815 = vld [vmem:[%s2807 + $0x1c] sm:$0xf]
    %v2824 = vunpack.c.l.b16 %v2808
    %v2825 = vunpack.c.l.b16 %v2809
    %v2826 = vunpack.c.l.b16 %v2810
    %v2827 = vunpack.c.l.b16 %v2811
    %v2828 = vunpack.c.l.b16 %v2812
    %v2829 = vunpack.c.l.b16 %v2813
    %v2830 = vunpack.c.l.b16 %v2814
    %v2831 = vunpack.c.l.b16 %v2815
    %v2832 = vpack.c.b16 %v2825, %v2824
    %v2833 = vpack.c.b16 %v2827, %v2826
    %v2834 = vpack.c.b16 %v2829, %v2828
    %v2835 = vpack.c.b16 %v2831, %v2830
    %v2841 = vsel %vm1386, %v2806, 0
    %2843 = vmatprep.subr.bf16.mxu0 0
    %2844 = vmatpush1.bf16.msra.mxu0 0
    %2845 = vmatprep.subr.bf16.mxu0 0
    %2846 = vmatpush1.bf16.msra.mxu0 0
    %2847 = vmatprep.subr.bf16.mxu0 0
    %2848 = vmatpush1.bf16.msra.mxu0 0
    %2849 = vmatprep.subr.bf16.mxu0 0
    %2850 = vmatpush1.bf16.msra.mxu0 0
    %2851 = vmatprep.subr.bf16.mxu0 0
    %2852 = vmatpush1.bf16.msra.mxu0 %v2835
    %2853 = vmatprep.subr.bf16.mxu0 0
    %2854 = vmatpush1.bf16.msra.mxu0 %v2834
    %2855 = vmatprep.subr.bf16.mxu0 0
    %2856 = vmatpush1.bf16.msra.mxu0 %v2833
    %2857 = vmatprep.subr.bf16.mxu0 0
    %2858 = vmatpush1.bf16.msra.mxu0 %v2832
    %2859 = vmatprep.subr.bf16.mxu0 0
    %2860 = vmatpush2.bf16.msra.mxu0 0
    %2861 = vmatprep.subr.bf16.mxu0 0
    %2862 = vmatpush2.bf16.msra.mxu0 0
    %2863 = vmatprep.subr.bf16.mxu0 0
    %2864 = vmatpush2.bf16.msra.mxu0 0
    %2865 = vmatprep.subr.bf16.mxu0 0
    %2866 = vmatpush2.bf16.msra.mxu0 0
    %2867 = vmatprep.subr.bf16.mxu0 0
    %2868 = vmatpush2.bf16.msra.mxu0 0
    %2869 = vmatprep.subr.bf16.mxu0 0
    %2870 = vmatpush2.bf16.msra.mxu0 0
    %2871 = vmatprep.subr.bf16.mxu0 0
    %2872 = vmatpush2.bf16.msra.mxu0 0
    %2873 = vmatprep.subr.bf16.mxu0 0
    %2874 = vmatpush2.bf16.msra.mxu0 0
    %2875 = vmatprep.mubr.bf16.mxu0 0
    %2876 = vmatmul.mubr.bf16.gmra.mxu0 %v2841
    %v2877 = vpop.f32.mrf.mxu0
    %v2878 = vadd.f32 0.0, %v2877
    %v2879 = vpop.f32.mrf.mxu0
    %v2880 = vpop.f32.mrf.mxu0
    %v2881 = vpop.f32.mrf.mxu0
    %2882 = vdwg.mxu0
    %v2883 = vadd.f32 %v2756, %v2878
    %v2884 = vld [vmem:[%s43] sm:$0x1]
    %v2886 = vlaneseq
    %v2887 = vshrl.u32 %v2886, 7
    %v2888 = vsub.s32 0, %v2887
    %v2889 = vrot.slane %v2884, %v2888
    %v2891 = vadd.f32 %v2883, %v2889
    %v2892 = vrot.slane %v2891, 4
    %v2893 = vadd.f32 %v2891, %v2892
    %v2894 = vrot.slane %v2893, 2
    %v2895 = vadd.f32 %v2893, %v2894
    %v2896 = vrot.slane %v2895, 1
    %v2897 = vadd.f32 %v2895, %v2896
    %v2898 = vmul.f32 %v2897, 0.125
    %v2899 = vld [vmem:[%s49] sm:$0xff]
    %v2900 = vld [vmem:[%s49 + $0x8] sm:$0xff]
    %v2901 = vld [vmem:[%s49 + $0x10] sm:$0xff]
    %v2902 = vld [vmem:[%s49 + $0x18] sm:$0xff]
    %v2903 = vld [vmem:[%s49 + $0x20] sm:$0xff]
    %v2904 = vld [vmem:[%s49 + $0x28] sm:$0xff]
    %v2905 = vld [vmem:[%s49 + $0x30] sm:$0xff]
    %v2906 = vld [vmem:[%s49 + $0x38] sm:$0xff]
    %v2907 = vld [vmem:[%s49 + $0x40] sm:$0xff]
    %v2908 = vld [vmem:[%s49 + $0x48] sm:$0xff]
    %v2909 = vld [vmem:[%s49 + $0x50] sm:$0xff]
    %v2910 = vld [vmem:[%s49 + $0x58] sm:$0xff]
    %v2911 = vld [vmem:[%s49 + $0x60] sm:$0xff]
    %v2912 = vld [vmem:[%s49 + $0x68] sm:$0xff]
    %v2913 = vld [vmem:[%s49 + $0x70] sm:$0xff]
    %v2914 = vld [vmem:[%s49 + $0x78] sm:$0xff]
    %2915 = vmatprep.subr.mxu0 0.0
    %2916 = vmatpush1.msra.mxu0 %v2914
    %2917 = vmatprep.subr.mxu0 0.0
    %2918 = vmatpush1.msra.mxu0 %v2913
    %2919 = vmatprep.subr.mxu0 0.0
    %2920 = vmatpush1.msra.mxu0 %v2912
    %2921 = vmatprep.subr.mxu0 0.0
    %2922 = vmatpush1.msra.mxu0 %v2911
    %2923 = vmatprep.subr.mxu0 0.0
    %2924 = vmatpush1.msra.mxu0 %v2910
    %2925 = vmatprep.subr.mxu0 0.0
    %2926 = vmatpush1.msra.mxu0 %v2909
    %2927 = vmatprep.subr.mxu0 0.0
    %2928 = vmatpush1.msra.mxu0 %v2908
    %2929 = vmatprep.subr.mxu0 0.0
    %2930 = vmatpush1.msra.mxu0 %v2907
    %2931 = vmatprep.subr.mxu0 0.0
    %2932 = vmatpush1.msra.mxu0 %v2906
    %2933 = vmatprep.subr.mxu0 0.0
    %2934 = vmatpush1.msra.mxu0 %v2905
    %2935 = vmatprep.subr.mxu0 0.0
    %2936 = vmatpush1.msra.mxu0 %v2904
    %2937 = vmatprep.subr.mxu0 0.0
    %2938 = vmatpush1.msra.mxu0 %v2903
    %2939 = vmatprep.subr.mxu0 0.0
    %2940 = vmatpush1.msra.mxu0 %v2902
    %2941 = vmatprep.subr.mxu0 0.0
    %2942 = vmatpush1.msra.mxu0 %v2901
    %2943 = vmatprep.subr.mxu0 0.0
    %2944 = vmatpush1.msra.mxu0 %v2900
    %2945 = vmatprep.subr.mxu0 0.0
    %2946 = vmatpush1.msra.mxu0 %v2899
    %2947 = vmatprep.subr.mxu0 0.0
    %2948 = vmatpush2.msra.mxu0 0.0
    %2949 = vmatprep.subr.mxu0 0.0
    %2950 = vmatpush2.msra.mxu0 0.0
    %2951 = vmatprep.subr.mxu0 0.0
    %2952 = vmatpush2.msra.mxu0 0.0
    %2953 = vmatprep.subr.mxu0 0.0
    %2954 = vmatpush2.msra.mxu0 0.0
    %2955 = vmatprep.subr.mxu0 0.0
    %2956 = vmatpush2.msra.mxu0 0.0
    %2957 = vmatprep.subr.mxu0 0.0
    %2958 = vmatpush2.msra.mxu0 0.0
    %2959 = vmatprep.subr.mxu0 0.0
    %2960 = vmatpush2.msra.mxu0 0.0
    %2961 = vmatprep.subr.mxu0 0.0
    %2962 = vmatpush2.msra.mxu0 0.0
    %2963 = vmatprep.subr.mxu0 0.0
    %2964 = vmatpush2.msra.mxu0 0.0
    %2965 = vmatprep.subr.mxu0 0.0
    %2966 = vmatpush2.msra.mxu0 0.0
    %2967 = vmatprep.subr.mxu0 0.0
    %2968 = vmatpush2.msra.mxu0 0.0
    %2969 = vmatprep.subr.mxu0 0.0
    %2970 = vmatpush2.msra.mxu0 0.0
    %2971 = vmatprep.subr.mxu0 0.0
    %2972 = vmatpush2.msra.mxu0 0.0
    %2973 = vmatprep.subr.mxu0 0.0
    %2974 = vmatpush2.msra.mxu0 0.0
    %2975 = vmatprep.subr.mxu0 0.0
    %2976 = vmatpush2.msra.mxu0 0.0
    %2977 = vmatprep.subr.mxu0 0.0
    %2978 = vmatpush2.msra.mxu0 0.0
    %2979 = vmatprep.mubr.f32.mxu0 0.0
    %2980 = vmatmul.mubr.f32.gmra.mxu0 %v2898
    %v2981 = vpop.f32.mrf.mxu0
    %v2982 = vadd.f32 0.0, %v2981
    %v2983 = vpop.f32.mrf.mxu0
    %2984 = vdwg.mxu0
    %v2985 = vlaneseq
    %v2986 = vshrl.u32 %v2985, 7
    %v2987 = vsub.s32 0, %v2986
    %v2988 = vrot.slane %v2982, %v2987
    %v2989 = vsub.f32 %v2891, %v2988
    %v2990 = vmul.f32 %v2989, %v2989
    %v2991 = vrot.slane %v2990, 4
    %v2992 = vadd.f32 %v2990, %v2991
    %v2993 = vrot.slane %v2992, 2
    %v2994 = vadd.f32 %v2992, %v2993
    %v2995 = vrot.slane %v2994, 1
    %v2996 = vadd.f32 %v2994, %v2995
    %v2997 = vmul.f32 %v2996, 0.125
    %v2998 = vld [vmem:[%s45] sm:$0x1]
    %v3000 = vlaneseq
    %v3001 = vshrl.u32 %v3000, 7
    %v3002 = vsub.s32 0, %v3001
    %v3003 = vrot.slane %v2998, %v3002
    %v3005 = vmul.f32 %v3003, %v2989
    %3006 = vmatprep.subr.mxu0 0.0
    %3007 = vmatpush1.msra.mxu0 %v2914
    %3008 = vmatprep.subr.mxu0 0.0
    %3009 = vmatpush1.msra.mxu0 %v2913
    %3010 = vmatprep.subr.mxu0 0.0
    %3011 = vmatpush1.msra.mxu0 %v2912
    %3012 = vmatprep.subr.mxu0 0.0
    %3013 = vmatpush1.msra.mxu0 %v2911
    %3014 = vmatprep.subr.mxu0 0.0
    %3015 = vmatpush1.msra.mxu0 %v2910
    %3016 = vmatprep.subr.mxu0 0.0
    %3017 = vmatpush1.msra.mxu0 %v2909
    %3018 = vmatprep.subr.mxu0 0.0
    %3019 = vmatpush1.msra.mxu0 %v2908
    %3020 = vmatprep.subr.mxu0 0.0
    %3021 = vmatpush1.msra.mxu0 %v2907
    %3022 = vmatprep.subr.mxu0 0.0
    %3023 = vmatpush1.msra.mxu0 %v2906
    %3024 = vmatprep.subr.mxu0 0.0
    %3025 = vmatpush1.msra.mxu0 %v2905
    %3026 = vmatprep.subr.mxu0 0.0
    %3027 = vmatpush1.msra.mxu0 %v2904
    %3028 = vmatprep.subr.mxu0 0.0
    %3029 = vmatpush1.msra.mxu0 %v2903
    %3030 = vmatprep.subr.mxu0 0.0
    %3031 = vmatpush1.msra.mxu0 %v2902
    %3032 = vmatprep.subr.mxu0 0.0
    %3033 = vmatpush1.msra.mxu0 %v2901
    %3034 = vmatprep.subr.mxu0 0.0
    %3035 = vmatpush1.msra.mxu0 %v2900
    %3036 = vmatprep.subr.mxu0 0.0
    %3037 = vmatpush1.msra.mxu0 %v2899
    %3038 = vmatprep.subr.mxu0 0.0
    %3039 = vmatpush2.msra.mxu0 0.0
    %3040 = vmatprep.subr.mxu0 0.0
    %3041 = vmatpush2.msra.mxu0 0.0
    %3042 = vmatprep.subr.mxu0 0.0
    %3043 = vmatpush2.msra.mxu0 0.0
    %3044 = vmatprep.subr.mxu0 0.0
    %3045 = vmatpush2.msra.mxu0 0.0
    %3046 = vmatprep.subr.mxu0 0.0
    %3047 = vmatpush2.msra.mxu0 0.0
    %3048 = vmatprep.subr.mxu0 0.0
    %3049 = vmatpush2.msra.mxu0 0.0
    %3050 = vmatprep.subr.mxu0 0.0
    %3051 = vmatpush2.msra.mxu0 0.0
    %3052 = vmatprep.subr.mxu0 0.0
    %3053 = vmatpush2.msra.mxu0 0.0
    %3054 = vmatprep.subr.mxu0 0.0
    %3055 = vmatpush2.msra.mxu0 0.0
    %3056 = vmatprep.subr.mxu0 0.0
    %3057 = vmatpush2.msra.mxu0 0.0
    %3058 = vmatprep.subr.mxu0 0.0
    %3059 = vmatpush2.msra.mxu0 0.0
    %3060 = vmatprep.subr.mxu0 0.0
    %3061 = vmatpush2.msra.mxu0 0.0
    %3062 = vmatprep.subr.mxu0 0.0
    %3063 = vmatpush2.msra.mxu0 0.0
    %3064 = vmatprep.subr.mxu0 0.0
    %3065 = vmatpush2.msra.mxu0 0.0
    %3066 = vmatprep.subr.mxu0 0.0
    %3067 = vmatpush2.msra.mxu0 0.0
    %3068 = vmatprep.subr.mxu0 0.0
    %3069 = vmatpush2.msra.mxu0 0.0
    %3070 = vmatprep.mubr.f32.mxu0 0.0
    %3071 = vmatmul.mubr.f32.gmra.mxu0 %v2997
    %v3072 = vpop.f32.mrf.mxu0
    %v3073 = vadd.f32 1e-05, %v3072
    %v3074 = vpop.f32.mrf.mxu0
    %3075 = vdwg.mxu0
    %v3076 = vrsqrt.pop %v3073
    %v3077 = vlaneseq
    %v3078 = vshrl.u32 %v3077, 7
    %v3079 = vsub.s32 0, %v3078
    %v3080 = vrot.slane %v3076, %v3079
    %v3081 = vmul.f32 %v3005, %v3080
    %v3082 = vld [vmem:[%s47] sm:$0x1]
    %v3084 = vlaneseq
    %v3085 = vshrl.u32 %v3084, 7
    %v3086 = vsub.s32 0, %v3085
    %v3087 = vrot.slane %v3082, %v3086
    %v3089 = vadd.f32 %v3081, %v3087
    %vm3090 = vcmp.gt.f32.partialorder %v3089, 0.0
    %v3091 = vmul.f32 %v3089, 0.01
    %v3092 = vsel %vm3090, %v3089, %v3091
    %v3093 = vpack.c.bf16 %v3092, %v3092
    %v3094 = vld [vmem:[%s51] sm:$0x3]
    %v3096 = vsel %vm2515, %v3094, 0
    %v3099 = vsel %vm2519, %v3093, 0
    %3101 = vmatprep.subr.bf16.mxu0 0
    %3102 = vmatpush1.bf16.msra.mxu0 0
    %3103 = vmatprep.subr.bf16.mxu0 0
    %3104 = vmatpush1.bf16.msra.mxu0 0
    %3105 = vmatprep.subr.bf16.mxu0 0
    %3106 = vmatpush1.bf16.msra.mxu0 0
    %3107 = vmatprep.subr.bf16.mxu0 0
    %3108 = vmatpush1.bf16.msra.mxu0 0
    %3109 = vmatprep.subr.bf16.mxu0 0
    %3110 = vmatpush1.bf16.msra.mxu0 0
    %3111 = vmatprep.subr.bf16.mxu0 0
    %3112 = vmatpush1.bf16.msra.mxu0 0
    %3113 = vmatprep.subr.bf16.mxu0 0
    %3114 = vmatpush1.bf16.msra.mxu0 0
    %3115 = vmatprep.subr.bf16.mxu0 0
    %3116 = vmatpush1.bf16.msra.mxu0 %v3099
    %3117 = vmatprep.subr.bf16.mxu0 0
    %3118 = vmatpush2.bf16.msra.mxu0 0
    %3119 = vmatprep.subr.bf16.mxu0 0
    %3120 = vmatpush2.bf16.msra.mxu0 0
    %3121 = vmatprep.subr.bf16.mxu0 0
    %3122 = vmatpush2.bf16.msra.mxu0 0
    %3123 = vmatprep.subr.bf16.mxu0 0
    %3124 = vmatpush2.bf16.msra.mxu0 0
    %3125 = vmatprep.subr.bf16.mxu0 0
    %3126 = vmatpush2.bf16.msra.mxu0 0
    %3127 = vmatprep.subr.bf16.mxu0 0
    %3128 = vmatpush2.bf16.msra.mxu0 0
    %3129 = vmatprep.subr.bf16.mxu0 0
    %3130 = vmatpush2.bf16.msra.mxu0 0
    %3131 = vmatprep.subr.bf16.mxu0 0
    %3132 = vmatpush2.bf16.msra.mxu0 0
    %3133 = vmatprep.mubr.bf16.mxu0 0
    %3134 = vmatmul.mubr.bf16.gmra.mxu0 %v3096
    %v3135 = vpop.f32.mrf.mxu0
    %v3136 = vadd.f32 0.0, %v3135
    %v3137 = vpop.f32.mrf.mxu0
    %v3138 = vpop.f32.mrf.mxu0
    %v3139 = vpop.f32.mrf.mxu0
    %3140 = vdwg.mxu0
    %v3141 = vpack.c.bf16 %v3136, %v3136
    %v3142 = vld [vmem:[%s53] sm:$0xf]
    %v3143 = vld [vmem:[%s53 + $0x4] sm:$0xf]
    %v3144 = vld [vmem:[%s53 + $0x8] sm:$0xf]
    %v3145 = vld [vmem:[%s53 + $0xc] sm:$0xf]
    %v3146 = vld [vmem:[%s53 + $0x10] sm:$0xf]
    %v3147 = vld [vmem:[%s53 + $0x14] sm:$0xf]
    %v3148 = vld [vmem:[%s53 + $0x18] sm:$0xf]
    %v3149 = vld [vmem:[%s53 + $0x1c] sm:$0xf]
    %v3150 = vld [vmem:[%s53 + $0x20] sm:$0xf]
    %v3151 = vld [vmem:[%s53 + $0x24] sm:$0xf]
    %v3152 = vld [vmem:[%s53 + $0x28] sm:$0xf]
    %v3153 = vld [vmem:[%s53 + $0x2c] sm:$0xf]
    %v3154 = vld [vmem:[%s53 + $0x30] sm:$0xf]
    %v3155 = vld [vmem:[%s53 + $0x34] sm:$0xf]
    %v3156 = vld [vmem:[%s53 + $0x38] sm:$0xf]
    %v3157 = vld [vmem:[%s53 + $0x3c] sm:$0xf]
    %s3158 = scalar_lea.vmem %s51, 2
    %v3159 = vld [vmem:[%s3158] sm:$0x3]
    %v3161 = vsel %vm2515, %v3159, 0
    %3163 = vmatprep.subr.bf16.mxu0 0
    %3164 = vmatpush1.bf16.msra.mxu0 0
    %3165 = vmatprep.subr.bf16.mxu0 0
    %3166 = vmatpush1.bf16.msra.mxu0 0
    %3167 = vmatprep.subr.bf16.mxu0 0
    %3168 = vmatpush1.bf16.msra.mxu0 0
    %3169 = vmatprep.subr.bf16.mxu0 0
    %3170 = vmatpush1.bf16.msra.mxu0 0
    %3171 = vmatprep.subr.bf16.mxu0 0
    %3172 = vmatpush1.bf16.msra.mxu0 0
    %3173 = vmatprep.subr.bf16.mxu0 0
    %3174 = vmatpush1.bf16.msra.mxu0 0
    %3175 = vmatprep.subr.bf16.mxu0 0
    %3176 = vmatpush1.bf16.msra.mxu0 0
    %3177 = vmatprep.subr.bf16.mxu0 0
    %3178 = vmatpush1.bf16.msra.mxu0 %v3099
    %3179 = vmatprep.subr.bf16.mxu0 0
    %3180 = vmatpush2.bf16.msra.mxu0 0
    %3181 = vmatprep.subr.bf16.mxu0 0
    %3182 = vmatpush2.bf16.msra.mxu0 0
    %3183 = vmatprep.subr.bf16.mxu0 0
    %3184 = vmatpush2.bf16.msra.mxu0 0
    %3185 = vmatprep.subr.bf16.mxu0 0
    %3186 = vmatpush2.bf16.msra.mxu0 0
    %3187 = vmatprep.subr.bf16.mxu0 0
    %3188 = vmatpush2.bf16.msra.mxu0 0
    %3189 = vmatprep.subr.bf16.mxu0 0
    %3190 = vmatpush2.bf16.msra.mxu0 0
    %3191 = vmatprep.subr.bf16.mxu0 0
    %3192 = vmatpush2.bf16.msra.mxu0 0
    %3193 = vmatprep.subr.bf16.mxu0 0
    %3194 = vmatpush2.bf16.msra.mxu0 0
    %3195 = vmatprep.mubr.bf16.mxu0 0
    %3196 = vmatmul.mubr.bf16.gmra.mxu0 %v3161
    %v3197 = vpop.f32.mrf.mxu0
    %v3198 = vadd.f32 0.0, %v3197
    %v3199 = vpop.f32.mrf.mxu0
    %v3200 = vpop.f32.mrf.mxu0
    %v3201 = vpop.f32.mrf.mxu0
    %3202 = vdwg.mxu0
    %v3203 = vpack.c.bf16 %v3198, %v3198
    %s3204 = scalar_lea.vmem %s53, 64
    %v3205 = vld [vmem:[%s3204] sm:$0xf]
    %v3206 = vld [vmem:[%s3204 + $0x4] sm:$0xf]
    %v3207 = vld [vmem:[%s3204 + $0x8] sm:$0xf]
    %v3208 = vld [vmem:[%s3204 + $0xc] sm:$0xf]
    %v3209 = vld [vmem:[%s3204 + $0x10] sm:$0xf]
    %v3210 = vld [vmem:[%s3204 + $0x14] sm:$0xf]
    %v3211 = vld [vmem:[%s3204 + $0x18] sm:$0xf]
    %v3212 = vld [vmem:[%s3204 + $0x1c] sm:$0xf]
    %v3213 = vld [vmem:[%s3204 + $0x20] sm:$0xf]
    %v3214 = vld [vmem:[%s3204 + $0x24] sm:$0xf]
    %v3215 = vld [vmem:[%s3204 + $0x28] sm:$0xf]
    %v3216 = vld [vmem:[%s3204 + $0x2c] sm:$0xf]
    %v3217 = vld [vmem:[%s3204 + $0x30] sm:$0xf]
    %v3218 = vld [vmem:[%s3204 + $0x34] sm:$0xf]
    %v3219 = vld [vmem:[%s3204 + $0x38] sm:$0xf]
    %v3220 = vld [vmem:[%s3204 + $0x3c] sm:$0xf]
    %v3237 = vunpack.c.l.b16 %v3205
    %v3238 = vunpack.c.l.b16 %v3206
    %v3239 = vunpack.c.l.b16 %v3207
    %v3240 = vunpack.c.l.b16 %v3208
    %v3241 = vunpack.c.l.b16 %v3209
    %v3242 = vunpack.c.l.b16 %v3210
    %v3243 = vunpack.c.l.b16 %v3211
    %v3244 = vunpack.c.l.b16 %v3212
    %v3245 = vunpack.c.l.b16 %v3213
    %v3246 = vunpack.c.l.b16 %v3214
    %v3247 = vunpack.c.l.b16 %v3215
    %v3248 = vunpack.c.l.b16 %v3216
    %v3249 = vunpack.c.l.b16 %v3217
    %v3250 = vunpack.c.l.b16 %v3218
    %v3251 = vunpack.c.l.b16 %v3219
    %v3252 = vunpack.c.l.b16 %v3220
    %v3253 = vpack.c.b16 %v3238, %v3237
    %v3254 = vpack.c.b16 %v3240, %v3239
    %v3255 = vpack.c.b16 %v3242, %v3241
    %v3256 = vpack.c.b16 %v3244, %v3243
    %v3257 = vpack.c.b16 %v3246, %v3245
    %v3258 = vpack.c.b16 %v3248, %v3247
    %v3259 = vpack.c.b16 %v3250, %v3249
    %v3260 = vpack.c.b16 %v3252, %v3251
    %3269 = vmatprep.subr.bf16.mxu0 0
    %3270 = vmatpush1.bf16.msra.mxu0 %v3260
    %3271 = vmatprep.subr.bf16.mxu0 0
    %3272 = vmatpush1.bf16.msra.mxu0 %v3259
    %3273 = vmatprep.subr.bf16.mxu0 0
    %3274 = vmatpush1.bf16.msra.mxu0 %v3258
    %3275 = vmatprep.subr.bf16.mxu0 0
    %3276 = vmatpush1.bf16.msra.mxu0 %v3257
    %3277 = vmatprep.subr.bf16.mxu0 0
    %3278 = vmatpush1.bf16.msra.mxu0 %v3256
    %3279 = vmatprep.subr.bf16.mxu0 0
    %3280 = vmatpush1.bf16.msra.mxu0 %v3255
    %3281 = vmatprep.subr.bf16.mxu0 0
    %3282 = vmatpush1.bf16.msra.mxu0 %v3254
    %3283 = vmatprep.subr.bf16.mxu0 0
    %3284 = vmatpush1.bf16.msra.mxu0 %v3253
    %3285 = vmatprep.subr.bf16.mxu0 0
    %3286 = vmatpush2.bf16.msra.mxu0 0
    %3287 = vmatprep.subr.bf16.mxu0 0
    %3288 = vmatpush2.bf16.msra.mxu0 0
    %3289 = vmatprep.subr.bf16.mxu0 0
    %3290 = vmatpush2.bf16.msra.mxu0 0
    %3291 = vmatprep.subr.bf16.mxu0 0
    %3292 = vmatpush2.bf16.msra.mxu0 0
    %3293 = vmatprep.subr.bf16.mxu0 0
    %3294 = vmatpush2.bf16.msra.mxu0 0
    %3295 = vmatprep.subr.bf16.mxu0 0
    %3296 = vmatpush2.bf16.msra.mxu0 0
    %3297 = vmatprep.subr.bf16.mxu0 0
    %3298 = vmatpush2.bf16.msra.mxu0 0
    %3299 = vmatprep.subr.bf16.mxu0 0
    %3300 = vmatpush2.bf16.msra.mxu0 0
    %3301 = vmatprep.mubr.bf16.mxu0 0
    %3302 = vmatmul.mubr.bf16.gmra.mxu0 %v3203
    %v3303 = vpop.f32.mrf.mxu0
    %v3304 = vadd.f32 0.0, %v3303
    %v3305 = vpop.f32.mrf.mxu0
    %v3306 = vpop.f32.mrf.mxu0
    %v3307 = vpop.f32.mrf.mxu0
    %3308 = vdwg.mxu0
    %v3325 = vunpack.c.l.b16 %v3142
    %v3326 = vunpack.c.l.b16 %v3143
    %v3327 = vunpack.c.l.b16 %v3144
    %v3328 = vunpack.c.l.b16 %v3145
    %v3329 = vunpack.c.l.b16 %v3146
    %v3330 = vunpack.c.l.b16 %v3147
    %v3331 = vunpack.c.l.b16 %v3148
    %v3332 = vunpack.c.l.b16 %v3149
    %v3333 = vunpack.c.l.b16 %v3150
    %v3334 = vunpack.c.l.b16 %v3151
    %v3335 = vunpack.c.l.b16 %v3152
    %v3336 = vunpack.c.l.b16 %v3153
    %v3337 = vunpack.c.l.b16 %v3154
    %v3338 = vunpack.c.l.b16 %v3155
    %v3339 = vunpack.c.l.b16 %v3156
    %v3340 = vunpack.c.l.b16 %v3157
    %v3341 = vpack.c.b16 %v3326, %v3325
    %v3342 = vpack.c.b16 %v3328, %v3327
    %v3343 = vpack.c.b16 %v3330, %v3329
    %v3344 = vpack.c.b16 %v3332, %v3331
    %v3345 = vpack.c.b16 %v3334, %v3333
    %v3346 = vpack.c.b16 %v3336, %v3335
    %v3347 = vpack.c.b16 %v3338, %v3337
    %v3348 = vpack.c.b16 %v3340, %v3339
    %3357 = vmatprep.subr.bf16.mxu0 0
    %3358 = vmatpush1.bf16.msra.mxu0 %v3348
    %3359 = vmatprep.subr.bf16.mxu0 0
    %3360 = vmatpush1.bf16.msra.mxu0 %v3347
    %3361 = vmatprep.subr.bf16.mxu0 0
    %3362 = vmatpush1.bf16.msra.mxu0 %v3346
    %3363 = vmatprep.subr.bf16.mxu0 0
    %3364 = vmatpush1.bf16.msra.mxu0 %v3345
    %3365 = vmatprep.subr.bf16.mxu0 0
    %3366 = vmatpush1.bf16.msra.mxu0 %v3344
    %3367 = vmatprep.subr.bf16.mxu0 0
    %3368 = vmatpush1.bf16.msra.mxu0 %v3343
    %3369 = vmatprep.subr.bf16.mxu0 0
    %3370 = vmatpush1.bf16.msra.mxu0 %v3342
    %3371 = vmatprep.subr.bf16.mxu0 0
    %3372 = vmatpush1.bf16.msra.mxu0 %v3341
    %3373 = vmatprep.subr.bf16.mxu0 0
    %3374 = vmatpush2.bf16.msra.mxu0 0
    %3375 = vmatprep.subr.bf16.mxu0 0
    %3376 = vmatpush2.bf16.msra.mxu0 0
    %3377 = vmatprep.subr.bf16.mxu0 0
    %3378 = vmatpush2.bf16.msra.mxu0 0
    %3379 = vmatprep.subr.bf16.mxu0 0
    %3380 = vmatpush2.bf16.msra.mxu0 0
    %3381 = vmatprep.subr.bf16.mxu0 0
    %3382 = vmatpush2.bf16.msra.mxu0 0
    %3383 = vmatprep.subr.bf16.mxu0 0
    %3384 = vmatpush2.bf16.msra.mxu0 0
    %3385 = vmatprep.subr.bf16.mxu0 0
    %3386 = vmatpush2.bf16.msra.mxu0 0
    %3387 = vmatprep.subr.bf16.mxu0 0
    %3388 = vmatpush2.bf16.msra.mxu0 0
    %3389 = vmatprep.mubr.bf16.mxu0 0
    %3390 = vmatmul.mubr.bf16.gmra.mxu0 %v3141
    %v3391 = vpop.f32.mrf.mxu0
    %v3392 = vadd.f32 %v3304, %v3391
    %v3393 = vpop.f32.mrf.mxu0
    %v3394 = vpop.f32.mrf.mxu0
    %v3395 = vpop.f32.mrf.mxu0
    %3396 = vdwg.mxu0
    %s3397 = scalar_lea.vmem %s51, 4
    %v3398 = vld [vmem:[%s3397] sm:$0x3]
    %v3400 = vsel %vm2515, %v3398, 0
    %3402 = vmatprep.subr.bf16.mxu0 0
    %3403 = vmatpush1.bf16.msra.mxu0 0
    %3404 = vmatprep.subr.bf16.mxu0 0
    %3405 = vmatpush1.bf16.msra.mxu0 0
    %3406 = vmatprep.subr.bf16.mxu0 0
    %3407 = vmatpush1.bf16.msra.mxu0 0
    %3408 = vmatprep.subr.bf16.mxu0 0
    %3409 = vmatpush1.bf16.msra.mxu0 0
    %3410 = vmatprep.subr.bf16.mxu0 0
    %3411 = vmatpush1.bf16.msra.mxu0 0
    %3412 = vmatprep.subr.bf16.mxu0 0
    %3413 = vmatpush1.bf16.msra.mxu0 0
    %3414 = vmatprep.subr.bf16.mxu0 0
    %3415 = vmatpush1.bf16.msra.mxu0 0
    %3416 = vmatprep.subr.bf16.mxu0 0
    %3417 = vmatpush1.bf16.msra.mxu0 %v3099
    %3418 = vmatprep.subr.bf16.mxu0 0
    %3419 = vmatpush2.bf16.msra.mxu0 0
    %3420 = vmatprep.subr.bf16.mxu0 0
    %3421 = vmatpush2.bf16.msra.mxu0 0
    %3422 = vmatprep.subr.bf16.mxu0 0
    %3423 = vmatpush2.bf16.msra.mxu0 0
    %3424 = vmatprep.subr.bf16.mxu0 0
    %3425 = vmatpush2.bf16.msra.mxu0 0
    %3426 = vmatprep.subr.bf16.mxu0 0
    %3427 = vmatpush2.bf16.msra.mxu0 0
    %3428 = vmatprep.subr.bf16.mxu0 0
    %3429 = vmatpush2.bf16.msra.mxu0 0
    %3430 = vmatprep.subr.bf16.mxu0 0
    %3431 = vmatpush2.bf16.msra.mxu0 0
    %3432 = vmatprep.subr.bf16.mxu0 0
    %3433 = vmatpush2.bf16.msra.mxu0 0
    %3434 = vmatprep.mubr.bf16.mxu0 0
    %3435 = vmatmul.mubr.bf16.gmra.mxu0 %v3400
    %v3436 = vpop.f32.mrf.mxu0
    %v3437 = vadd.f32 0.0, %v3436
    %v3438 = vpop.f32.mrf.mxu0
    %v3439 = vpop.f32.mrf.mxu0
    %v3440 = vpop.f32.mrf.mxu0
    %3441 = vdwg.mxu0
    %v3442 = vpack.c.bf16 %v3437, %v3437
    %s3443 = scalar_lea.vmem %s53, 128
    %v3444 = vld [vmem:[%s3443] sm:$0xf]
    %v3445 = vld [vmem:[%s3443 + $0x4] sm:$0xf]
    %v3446 = vld [vmem:[%s3443 + $0x8] sm:$0xf]
    %v3447 = vld [vmem:[%s3443 + $0xc] sm:$0xf]
    %v3448 = vld [vmem:[%s3443 + $0x10] sm:$0xf]
    %v3449 = vld [vmem:[%s3443 + $0x14] sm:$0xf]
    %v3450 = vld [vmem:[%s3443 + $0x18] sm:$0xf]
    %v3451 = vld [vmem:[%s3443 + $0x1c] sm:$0xf]
    %v3452 = vld [vmem:[%s3443 + $0x20] sm:$0xf]
    %v3453 = vld [vmem:[%s3443 + $0x24] sm:$0xf]
    %v3454 = vld [vmem:[%s3443 + $0x28] sm:$0xf]
    %v3455 = vld [vmem:[%s3443 + $0x2c] sm:$0xf]
    %v3456 = vld [vmem:[%s3443 + $0x30] sm:$0xf]
    %v3457 = vld [vmem:[%s3443 + $0x34] sm:$0xf]
    %v3458 = vld [vmem:[%s3443 + $0x38] sm:$0xf]
    %v3459 = vld [vmem:[%s3443 + $0x3c] sm:$0xf]
    %v3476 = vunpack.c.l.b16 %v3444
    %v3477 = vunpack.c.l.b16 %v3445
    %v3478 = vunpack.c.l.b16 %v3446
    %v3479 = vunpack.c.l.b16 %v3447
    %v3480 = vunpack.c.l.b16 %v3448
    %v3481 = vunpack.c.l.b16 %v3449
    %v3482 = vunpack.c.l.b16 %v3450
    %v3483 = vunpack.c.l.b16 %v3451
    %v3484 = vunpack.c.l.b16 %v3452
    %v3485 = vunpack.c.l.b16 %v3453
    %v3486 = vunpack.c.l.b16 %v3454
    %v3487 = vunpack.c.l.b16 %v3455
    %v3488 = vunpack.c.l.b16 %v3456
    %v3489 = vunpack.c.l.b16 %v3457
    %v3490 = vunpack.c.l.b16 %v3458
    %v3491 = vunpack.c.l.b16 %v3459
    %v3492 = vpack.c.b16 %v3477, %v3476
    %v3493 = vpack.c.b16 %v3479, %v3478
    %v3494 = vpack.c.b16 %v3481, %v3480
    %v3495 = vpack.c.b16 %v3483, %v3482
    %v3496 = vpack.c.b16 %v3485, %v3484
    %v3497 = vpack.c.b16 %v3487, %v3486
    %v3498 = vpack.c.b16 %v3489, %v3488
    %v3499 = vpack.c.b16 %v3491, %v3490
    %3508 = vmatprep.subr.bf16.mxu0 0
    %3509 = vmatpush1.bf16.msra.mxu0 %v3499
    %3510 = vmatprep.subr.bf16.mxu0 0
    %3511 = vmatpush1.bf16.msra.mxu0 %v3498
    %3512 = vmatprep.subr.bf16.mxu0 0
    %3513 = vmatpush1.bf16.msra.mxu0 %v3497
    %3514 = vmatprep.subr.bf16.mxu0 0
    %3515 = vmatpush1.bf16.msra.mxu0 %v3496
    %3516 = vmatprep.subr.bf16.mxu0 0
    %3517 = vmatpush1.bf16.msra.mxu0 %v3495
    %3518 = vmatprep.subr.bf16.mxu0 0
    %3519 = vmatpush1.bf16.msra.mxu0 %v3494
    %3520 = vmatprep.subr.bf16.mxu0 0
    %3521 = vmatpush1.bf16.msra.mxu0 %v3493
    %3522 = vmatprep.subr.bf16.mxu0 0
    %3523 = vmatpush1.bf16.msra.mxu0 %v3492
    %3524 = vmatprep.subr.bf16.mxu0 0
    %3525 = vmatpush2.bf16.msra.mxu0 0
    %3526 = vmatprep.subr.bf16.mxu0 0
    %3527 = vmatpush2.bf16.msra.mxu0 0
    %3528 = vmatprep.subr.bf16.mxu0 0
    %3529 = vmatpush2.bf16.msra.mxu0 0
    %3530 = vmatprep.subr.bf16.mxu0 0
    %3531 = vmatpush2.bf16.msra.mxu0 0
    %3532 = vmatprep.subr.bf16.mxu0 0
    %3533 = vmatpush2.bf16.msra.mxu0 0
    %3534 = vmatprep.subr.bf16.mxu0 0
    %3535 = vmatpush2.bf16.msra.mxu0 0
    %3536 = vmatprep.subr.bf16.mxu0 0
    %3537 = vmatpush2.bf16.msra.mxu0 0
    %3538 = vmatprep.subr.bf16.mxu0 0
    %3539 = vmatpush2.bf16.msra.mxu0 0
    %3540 = vmatprep.mubr.bf16.mxu0 0
    %3541 = vmatmul.mubr.bf16.gmra.mxu0 %v3442
    %v3542 = vpop.f32.mrf.mxu0
    %v3543 = vadd.f32 0.0, %v3542
    %v3544 = vpop.f32.mrf.mxu0
    %v3545 = vpop.f32.mrf.mxu0
    %v3546 = vpop.f32.mrf.mxu0
    %3547 = vdwg.mxu0
    %v3548 = vadd.f32 %v3392, %v3543
    %v3549 = vld [vmem:[%s55] sm:$0x1]
    %v3551 = vlaneseq
    %v3552 = vshrl.u32 %v3551, 7
    %v3553 = vsub.s32 0, %v3552
    %v3554 = vrot.slane %v3549, %v3553
    %v3556 = vadd.f32 %v3548, %v3554
    %vm3557 = vcmask 519168
    %v3558 = vsel %vm3557, %v3556, 0.0
    %v3559 = vrot.slane %v3558, 4
    %v3560 = vadd.f32 %v3558, %v3559
    %v3561 = vrot.slane %v3560, 2
    %v3562 = vadd.f32 %v3560, %v3561
    %v3563 = vrot.slane %v3562, 1
    %v3564 = vadd.f32 %v3562, %v3563
    %v3565 = vmul.f32 %v3564, 0.25
    %v3566 = vld [vmem:[%s61] sm:$0xff]
    %v3567 = vld [vmem:[%s61 + $0x8] sm:$0xff]
    %v3568 = vld [vmem:[%s61 + $0x10] sm:$0xff]
    %v3569 = vld [vmem:[%s61 + $0x18] sm:$0xff]
    %v3570 = vld [vmem:[%s61 + $0x20] sm:$0xff]
    %v3571 = vld [vmem:[%s61 + $0x28] sm:$0xff]
    %v3572 = vld [vmem:[%s61 + $0x30] sm:$0xff]
    %v3573 = vld [vmem:[%s61 + $0x38] sm:$0xff]
    %v3575 = vsel %vm1386, %v3565, 0
    %3577 = vmatprep.subr.mxu0 0.0
    %3578 = vmatpush1.msra.mxu0 0.0
    %3579 = vmatprep.subr.mxu0 0.0
    %3580 = vmatpush1.msra.mxu0 0.0
    %3581 = vmatprep.subr.mxu0 0.0
    %3582 = vmatpush1.msra.mxu0 0.0
    %3583 = vmatprep.subr.mxu0 0.0
    %3584 = vmatpush1.msra.mxu0 0.0
    %3585 = vmatprep.subr.mxu0 0.0
    %3586 = vmatpush1.msra.mxu0 0.0
    %3587 = vmatprep.subr.mxu0 0.0
    %3588 = vmatpush1.msra.mxu0 0.0
    %3589 = vmatprep.subr.mxu0 0.0
    %3590 = vmatpush1.msra.mxu0 0.0
    %3591 = vmatprep.subr.mxu0 0.0
    %3592 = vmatpush1.msra.mxu0 0.0
    %3593 = vmatprep.subr.mxu0 0.0
    %3594 = vmatpush1.msra.mxu0 %v3573
    %3595 = vmatprep.subr.mxu0 0.0
    %3596 = vmatpush1.msra.mxu0 %v3572
    %3597 = vmatprep.subr.mxu0 0.0
    %3598 = vmatpush1.msra.mxu0 %v3571
    %3599 = vmatprep.subr.mxu0 0.0
    %3600 = vmatpush1.msra.mxu0 %v3570
    %3601 = vmatprep.subr.mxu0 0.0
    %3602 = vmatpush1.msra.mxu0 %v3569
    %3603 = vmatprep.subr.mxu0 0.0
    %3604 = vmatpush1.msra.mxu0 %v3568
    %3605 = vmatprep.subr.mxu0 0.0
    %3606 = vmatpush1.msra.mxu0 %v3567
    %3607 = vmatprep.subr.mxu0 0.0
    %3608 = vmatpush1.msra.mxu0 %v3566
    %3609 = vmatprep.subr.mxu0 0.0
    %3610 = vmatpush2.msra.mxu0 0.0
    %3611 = vmatprep.subr.mxu0 0.0
    %3612 = vmatpush2.msra.mxu0 0.0
    %3613 = vmatprep.subr.mxu0 0.0
    %3614 = vmatpush2.msra.mxu0 0.0
    %3615 = vmatprep.subr.mxu0 0.0
    %3616 = vmatpush2.msra.mxu0 0.0
    %3617 = vmatprep.subr.mxu0 0.0
    %3618 = vmatpush2.msra.mxu0 0.0
    %3619 = vmatprep.subr.mxu0 0.0
    %3620 = vmatpush2.msra.mxu0 0.0
    %3621 = vmatprep.subr.mxu0 0.0
    %3622 = vmatpush2.msra.mxu0 0.0
    %3623 = vmatprep.subr.mxu0 0.0
    %3624 = vmatpush2.msra.mxu0 0.0
    %3625 = vmatprep.subr.mxu0 0.0
    %3626 = vmatpush2.msra.mxu0 0.0
    %3627 = vmatprep.subr.mxu0 0.0
    %3628 = vmatpush2.msra.mxu0 0.0
    %3629 = vmatprep.subr.mxu0 0.0
    %3630 = vmatpush2.msra.mxu0 0.0
    %3631 = vmatprep.subr.mxu0 0.0
    %3632 = vmatpush2.msra.mxu0 0.0
    %3633 = vmatprep.subr.mxu0 0.0
    %3634 = vmatpush2.msra.mxu0 0.0
    %3635 = vmatprep.subr.mxu0 0.0
    %3636 = vmatpush2.msra.mxu0 0.0
    %3637 = vmatprep.subr.mxu0 0.0
    %3638 = vmatpush2.msra.mxu0 0.0
    %3639 = vmatprep.subr.mxu0 0.0
    %3640 = vmatpush2.msra.mxu0 0.0
    %3641 = vmatprep.mubr.f32.mxu0 0.0
    %3642 = vmatmul.mubr.f32.gmra.mxu0 %v3575
    %v3643 = vpop.f32.mrf.mxu0
    %v3644 = vadd.f32 0.0, %v3643
    %v3645 = vpop.f32.mrf.mxu0
    %3646 = vdwg.mxu0
    %v3647 = vlaneseq
    %v3648 = vshrl.u32 %v3647, 7
    %v3649 = vsub.s32 0, %v3648
    %v3650 = vrot.slane %v3644, %v3649
    %v3651 = vsub.f32 %v3556, %v3650
    %v3652 = vmul.f32 %v3651, %v3651
    %v3653 = vsel %vm3557, %v3652, 0.0
    %v3654 = vrot.slane %v3653, 4
    %v3655 = vadd.f32 %v3653, %v3654
    %v3656 = vrot.slane %v3655, 2
    %v3657 = vadd.f32 %v3655, %v3656
    %v3658 = vrot.slane %v3657, 1
    %v3659 = vadd.f32 %v3657, %v3658
    %v3660 = vmul.f32 %v3659, 0.25
    %v3661 = vld [vmem:[%s57] sm:$0x1]
    %v3663 = vlaneseq
    %v3664 = vshrl.u32 %v3663, 7
    %v3665 = vsub.s32 0, %v3664
    %v3666 = vrot.slane %v3661, %v3665
    %v3668 = vmul.f32 %v3666, %v3651
    %v3670 = vsel %vm1386, %v3660, 0
    %3672 = vmatprep.subr.mxu0 0.0
    %3673 = vmatpush1.msra.mxu0 0.0
    %3674 = vmatprep.subr.mxu0 0.0
    %3675 = vmatpush1.msra.mxu0 0.0
    %3676 = vmatprep.subr.mxu0 0.0
    %3677 = vmatpush1.msra.mxu0 0.0
    %3678 = vmatprep.subr.mxu0 0.0
    %3679 = vmatpush1.msra.mxu0 0.0
    %3680 = vmatprep.subr.mxu0 0.0
    %3681 = vmatpush1.msra.mxu0 0.0
    %3682 = vmatprep.subr.mxu0 0.0
    %3683 = vmatpush1.msra.mxu0 0.0
    %3684 = vmatprep.subr.mxu0 0.0
    %3685 = vmatpush1.msra.mxu0 0.0
    %3686 = vmatprep.subr.mxu0 0.0
    %3687 = vmatpush1.msra.mxu0 0.0
    %3688 = vmatprep.subr.mxu0 0.0
    %3689 = vmatpush1.msra.mxu0 %v3573
    %3690 = vmatprep.subr.mxu0 0.0
    %3691 = vmatpush1.msra.mxu0 %v3572
    %3692 = vmatprep.subr.mxu0 0.0
    %3693 = vmatpush1.msra.mxu0 %v3571
    %3694 = vmatprep.subr.mxu0 0.0
    %3695 = vmatpush1.msra.mxu0 %v3570
    %3696 = vmatprep.subr.mxu0 0.0
    %3697 = vmatpush1.msra.mxu0 %v3569
    %3698 = vmatprep.subr.mxu0 0.0
    %3699 = vmatpush1.msra.mxu0 %v3568
    %3700 = vmatprep.subr.mxu0 0.0
    %3701 = vmatpush1.msra.mxu0 %v3567
    %3702 = vmatprep.subr.mxu0 0.0
    %3703 = vmatpush1.msra.mxu0 %v3566
    %3704 = vmatprep.subr.mxu0 0.0
    %3705 = vmatpush2.msra.mxu0 0.0
    %3706 = vmatprep.subr.mxu0 0.0
    %3707 = vmatpush2.msra.mxu0 0.0
    %3708 = vmatprep.subr.mxu0 0.0
    %3709 = vmatpush2.msra.mxu0 0.0
    %3710 = vmatprep.subr.mxu0 0.0
    %3711 = vmatpush2.msra.mxu0 0.0
    %3712 = vmatprep.subr.mxu0 0.0
    %3713 = vmatpush2.msra.mxu0 0.0
    %3714 = vmatprep.subr.mxu0 0.0
    %3715 = vmatpush2.msra.mxu0 0.0
    %3716 = vmatprep.subr.mxu0 0.0
    %3717 = vmatpush2.msra.mxu0 0.0
    %3718 = vmatprep.subr.mxu0 0.0
    %3719 = vmatpush2.msra.mxu0 0.0
    %3720 = vmatprep.subr.mxu0 0.0
    %3721 = vmatpush2.msra.mxu0 0.0
    %3722 = vmatprep.subr.mxu0 0.0
    %3723 = vmatpush2.msra.mxu0 0.0
    %3724 = vmatprep.subr.mxu0 0.0
    %3725 = vmatpush2.msra.mxu0 0.0
    %3726 = vmatprep.subr.mxu0 0.0
    %3727 = vmatpush2.msra.mxu0 0.0
    %3728 = vmatprep.subr.mxu0 0.0
    %3729 = vmatpush2.msra.mxu0 0.0
    %3730 = vmatprep.subr.mxu0 0.0
    %3731 = vmatpush2.msra.mxu0 0.0
    %3732 = vmatprep.subr.mxu0 0.0
    %3733 = vmatpush2.msra.mxu0 0.0
    %3734 = vmatprep.subr.mxu0 0.0
    %3735 = vmatpush2.msra.mxu0 0.0
    %3736 = vmatprep.mubr.f32.mxu0 0.0
    %3737 = vmatmul.mubr.f32.gmra.mxu0 %v3670
    %v3738 = vpop.f32.mrf.mxu0
    %v3739 = vadd.f32 1e-05, %v3738
    %v3740 = vpop.f32.mrf.mxu0
    %3741 = vdwg.mxu0
    %v3742 = vrsqrt.pop %v3739
    %v3743 = vlaneseq
    %v3744 = vshrl.u32 %v3743, 7
    %v3745 = vsub.s32 0, %v3744
    %v3746 = vrot.slane %v3742, %v3745
    %v3747 = vmul.f32 %v3668, %v3746
    %v3748 = vld [vmem:[%s59] sm:$0x1]
    %v3750 = vlaneseq
    %v3751 = vshrl.u32 %v3750, 7
    %v3752 = vsub.s32 0, %v3751
    %v3753 = vrot.slane %v3748, %v3752
    %v3755 = vadd.f32 %v3747, %v3753
    %vm3756 = vcmp.gt.f32.partialorder %v3755, 0.0
    %v3757 = vmul.f32 %v3755, 0.01
    %v3758 = vsel %vm3756, %v3755, %v3757
    %v3759 = vpack.c.bf16 %v3758, %v3758
    %v3760 = vld [vmem:[%s63] sm:$0x3]
    %vm3761 = vcmask 31744
    %v3763 = vsel %vm3761, %v3760, 0
    %vm3765 = vcmask 1041408
    %v3767 = vsel %vm3765, %v3759, 0
    %3769 = vmatprep.subr.bf16.mxu0 0
    %3770 = vmatpush1.bf16.msra.mxu0 0
    %3771 = vmatprep.subr.bf16.mxu0 0
    %3772 = vmatpush1.bf16.msra.mxu0 0
    %3773 = vmatprep.subr.bf16.mxu0 0
    %3774 = vmatpush1.bf16.msra.mxu0 0
    %3775 = vmatprep.subr.bf16.mxu0 0
    %3776 = vmatpush1.bf16.msra.mxu0 0
    %3777 = vmatprep.subr.bf16.mxu0 0
    %3778 = vmatpush1.bf16.msra.mxu0 0
    %3779 = vmatprep.subr.bf16.mxu0 0
    %3780 = vmatpush1.bf16.msra.mxu0 0
    %3781 = vmatprep.subr.bf16.mxu0 0
    %3782 = vmatpush1.bf16.msra.mxu0 0
    %3783 = vmatprep.subr.bf16.mxu0 0
    %3784 = vmatpush1.bf16.msra.mxu0 %v3767
    %3785 = vmatprep.subr.bf16.mxu0 0
    %3786 = vmatpush2.bf16.msra.mxu0 0
    %3787 = vmatprep.subr.bf16.mxu0 0
    %3788 = vmatpush2.bf16.msra.mxu0 0
    %3789 = vmatprep.subr.bf16.mxu0 0
    %3790 = vmatpush2.bf16.msra.mxu0 0
    %3791 = vmatprep.subr.bf16.mxu0 0
    %3792 = vmatpush2.bf16.msra.mxu0 0
    %3793 = vmatprep.subr.bf16.mxu0 0
    %3794 = vmatpush2.bf16.msra.mxu0 0
    %3795 = vmatprep.subr.bf16.mxu0 0
    %3796 = vmatpush2.bf16.msra.mxu0 0
    %3797 = vmatprep.subr.bf16.mxu0 0
    %3798 = vmatpush2.bf16.msra.mxu0 0
    %3799 = vmatprep.subr.bf16.mxu0 0
    %3800 = vmatpush2.bf16.msra.mxu0 0
    %3801 = vmatprep.mubr.bf16.mxu0 0
    %3802 = vmatmul.mubr.bf16.gmra.mxu0 %v3763
    %v3803 = vpop.f32.mrf.mxu0
    %v3804 = vadd.f32 0.0, %v3803
    %v3805 = vpop.f32.mrf.mxu0
    %v3806 = vpop.f32.mrf.mxu0
    %v3807 = vpop.f32.mrf.mxu0
    %3808 = vdwg.mxu0
    %v3809 = vpack.c.bf16 %v3804, %v3804
    %v3810 = vld [vmem:[%s65] sm:$0xf]
    %v3811 = vld [vmem:[%s65 + $0x4] sm:$0xf]
    %v3812 = vld [vmem:[%s65 + $0x8] sm:$0xf]
    %v3813 = vld [vmem:[%s65 + $0xc] sm:$0xf]
    %v3814 = vld [vmem:[%s65 + $0x10] sm:$0xf]
    %v3815 = vld [vmem:[%s65 + $0x14] sm:$0xf]
    %v3816 = vld [vmem:[%s65 + $0x18] sm:$0xf]
    %v3817 = vld [vmem:[%s65 + $0x1c] sm:$0xf]
    %s3818 = scalar_lea.vmem %s63, 2
    %v3819 = vld [vmem:[%s3818] sm:$0x3]
    %v3821 = vsel %vm3761, %v3819, 0
    %3823 = vmatprep.subr.bf16.mxu0 0
    %3824 = vmatpush1.bf16.msra.mxu0 0
    %3825 = vmatprep.subr.bf16.mxu0 0
    %3826 = vmatpush1.bf16.msra.mxu0 0
    %3827 = vmatprep.subr.bf16.mxu0 0
    %3828 = vmatpush1.bf16.msra.mxu0 0
    %3829 = vmatprep.subr.bf16.mxu0 0
    %3830 = vmatpush1.bf16.msra.mxu0 0
    %3831 = vmatprep.subr.bf16.mxu0 0
    %3832 = vmatpush1.bf16.msra.mxu0 0
    %3833 = vmatprep.subr.bf16.mxu0 0
    %3834 = vmatpush1.bf16.msra.mxu0 0
    %3835 = vmatprep.subr.bf16.mxu0 0
    %3836 = vmatpush1.bf16.msra.mxu0 0
    %3837 = vmatprep.subr.bf16.mxu0 0
    %3838 = vmatpush1.bf16.msra.mxu0 %v3767
    %3839 = vmatprep.subr.bf16.mxu0 0
    %3840 = vmatpush2.bf16.msra.mxu0 0
    %3841 = vmatprep.subr.bf16.mxu0 0
    %3842 = vmatpush2.bf16.msra.mxu0 0
    %3843 = vmatprep.subr.bf16.mxu0 0
    %3844 = vmatpush2.bf16.msra.mxu0 0
    %3845 = vmatprep.subr.bf16.mxu0 0
    %3846 = vmatpush2.bf16.msra.mxu0 0
    %3847 = vmatprep.subr.bf16.mxu0 0
    %3848 = vmatpush2.bf16.msra.mxu0 0
    %3849 = vmatprep.subr.bf16.mxu0 0
    %3850 = vmatpush2.bf16.msra.mxu0 0
    %3851 = vmatprep.subr.bf16.mxu0 0
    %3852 = vmatpush2.bf16.msra.mxu0 0
    %3853 = vmatprep.subr.bf16.mxu0 0
    %3854 = vmatpush2.bf16.msra.mxu0 0
    %3855 = vmatprep.mubr.bf16.mxu0 0
    %3856 = vmatmul.mubr.bf16.gmra.mxu0 %v3821
    %v3857 = vpop.f32.mrf.mxu0
    %v3858 = vadd.f32 0.0, %v3857
    %v3859 = vpop.f32.mrf.mxu0
    %v3860 = vpop.f32.mrf.mxu0
    %v3861 = vpop.f32.mrf.mxu0
    %3862 = vdwg.mxu0
    %v3863 = vpack.c.bf16 %v3858, %v3858
    %s3864 = scalar_lea.vmem %s65, 32
    %v3865 = vld [vmem:[%s3864] sm:$0xf]
    %v3866 = vld [vmem:[%s3864 + $0x4] sm:$0xf]
    %v3867 = vld [vmem:[%s3864 + $0x8] sm:$0xf]
    %v3868 = vld [vmem:[%s3864 + $0xc] sm:$0xf]
    %v3869 = vld [vmem:[%s3864 + $0x10] sm:$0xf]
    %v3870 = vld [vmem:[%s3864 + $0x14] sm:$0xf]
    %v3871 = vld [vmem:[%s3864 + $0x18] sm:$0xf]
    %v3872 = vld [vmem:[%s3864 + $0x1c] sm:$0xf]
    %v3881 = vunpack.c.l.b16 %v3865
    %v3882 = vunpack.c.l.b16 %v3866
    %v3883 = vunpack.c.l.b16 %v3867
    %v3884 = vunpack.c.l.b16 %v3868
    %v3885 = vunpack.c.l.b16 %v3869
    %v3886 = vunpack.c.l.b16 %v3870
    %v3887 = vunpack.c.l.b16 %v3871
    %v3888 = vunpack.c.l.b16 %v3872
    %v3889 = vpack.c.b16 %v3882, %v3881
    %v3890 = vpack.c.b16 %v3884, %v3883
    %v3891 = vpack.c.b16 %v3886, %v3885
    %v3892 = vpack.c.b16 %v3888, %v3887
    %v3898 = vsel %vm1386, %v3863, 0
    %3900 = vmatprep.subr.bf16.mxu0 0
    %3901 = vmatpush1.bf16.msra.mxu0 0
    %3902 = vmatprep.subr.bf16.mxu0 0
    %3903 = vmatpush1.bf16.msra.mxu0 0
    %3904 = vmatprep.subr.bf16.mxu0 0
    %3905 = vmatpush1.bf16.msra.mxu0 0
    %3906 = vmatprep.subr.bf16.mxu0 0
    %3907 = vmatpush1.bf16.msra.mxu0 0
    %3908 = vmatprep.subr.bf16.mxu0 0
    %3909 = vmatpush1.bf16.msra.mxu0 %v3892
    %3910 = vmatprep.subr.bf16.mxu0 0
    %3911 = vmatpush1.bf16.msra.mxu0 %v3891
    %3912 = vmatprep.subr.bf16.mxu0 0
    %3913 = vmatpush1.bf16.msra.mxu0 %v3890
    %3914 = vmatprep.subr.bf16.mxu0 0
    %3915 = vmatpush1.bf16.msra.mxu0 %v3889
    %3916 = vmatprep.subr.bf16.mxu0 0
    %3917 = vmatpush2.bf16.msra.mxu0 0
    %3918 = vmatprep.subr.bf16.mxu0 0
    %3919 = vmatpush2.bf16.msra.mxu0 0
    %3920 = vmatprep.subr.bf16.mxu0 0
    %3921 = vmatpush2.bf16.msra.mxu0 0
    %3922 = vmatprep.subr.bf16.mxu0 0
    %3923 = vmatpush2.bf16.msra.mxu0 0
    %3924 = vmatprep.subr.bf16.mxu0 0
    %3925 = vmatpush2.bf16.msra.mxu0 0
    %3926 = vmatprep.subr.bf16.mxu0 0
    %3927 = vmatpush2.bf16.msra.mxu0 0
    %3928 = vmatprep.subr.bf16.mxu0 0
    %3929 = vmatpush2.bf16.msra.mxu0 0
    %3930 = vmatprep.subr.bf16.mxu0 0
    %3931 = vmatpush2.bf16.msra.mxu0 0
    %3932 = vmatprep.mubr.bf16.mxu0 0
    %3933 = vmatmul.mubr.bf16.gmra.mxu0 %v3898
    %v3934 = vpop.f32.mrf.mxu0
    %v3935 = vadd.f32 0.0, %v3934
    %v3936 = vpop.f32.mrf.mxu0
    %v3937 = vpop.f32.mrf.mxu0
    %v3938 = vpop.f32.mrf.mxu0
    %3939 = vdwg.mxu0
    %v3948 = vunpack.c.l.b16 %v3810
    %v3949 = vunpack.c.l.b16 %v3811
    %v3950 = vunpack.c.l.b16 %v3812
    %v3951 = vunpack.c.l.b16 %v3813
    %v3952 = vunpack.c.l.b16 %v3814
    %v3953 = vunpack.c.l.b16 %v3815
    %v3954 = vunpack.c.l.b16 %v3816
    %v3955 = vunpack.c.l.b16 %v3817
    %v3956 = vpack.c.b16 %v3949, %v3948
    %v3957 = vpack.c.b16 %v3951, %v3950
    %v3958 = vpack.c.b16 %v3953, %v3952
    %v3959 = vpack.c.b16 %v3955, %v3954
    %v3965 = vsel %vm1386, %v3809, 0
    %3967 = vmatprep.subr.bf16.mxu0 0
    %3968 = vmatpush1.bf16.msra.mxu0 0
    %3969 = vmatprep.subr.bf16.mxu0 0
    %3970 = vmatpush1.bf16.msra.mxu0 0
    %3971 = vmatprep.subr.bf16.mxu0 0
    %3972 = vmatpush1.bf16.msra.mxu0 0
    %3973 = vmatprep.subr.bf16.mxu0 0
    %3974 = vmatpush1.bf16.msra.mxu0 0
    %3975 = vmatprep.subr.bf16.mxu0 0
    %3976 = vmatpush1.bf16.msra.mxu0 %v3959
    %3977 = vmatprep.subr.bf16.mxu0 0
    %3978 = vmatpush1.bf16.msra.mxu0 %v3958
    %3979 = vmatprep.subr.bf16.mxu0 0
    %3980 = vmatpush1.bf16.msra.mxu0 %v3957
    %3981 = vmatprep.subr.bf16.mxu0 0
    %3982 = vmatpush1.bf16.msra.mxu0 %v3956
    %3983 = vmatprep.subr.bf16.mxu0 0
    %3984 = vmatpush2.bf16.msra.mxu0 0
    %3985 = vmatprep.subr.bf16.mxu0 0
    %3986 = vmatpush2.bf16.msra.mxu0 0
    %3987 = vmatprep.subr.bf16.mxu0 0
    %3988 = vmatpush2.bf16.msra.mxu0 0
    %3989 = vmatprep.subr.bf16.mxu0 0
    %3990 = vmatpush2.bf16.msra.mxu0 0
    %3991 = vmatprep.subr.bf16.mxu0 0
    %3992 = vmatpush2.bf16.msra.mxu0 0
    %3993 = vmatprep.subr.bf16.mxu0 0
    %3994 = vmatpush2.bf16.msra.mxu0 0
    %3995 = vmatprep.subr.bf16.mxu0 0
    %3996 = vmatpush2.bf16.msra.mxu0 0
    %3997 = vmatprep.subr.bf16.mxu0 0
    %3998 = vmatpush2.bf16.msra.mxu0 0
    %3999 = vmatprep.mubr.bf16.mxu0 0
    %4000 = vmatmul.mubr.bf16.gmra.mxu0 %v3965
    %v4001 = vpop.f32.mrf.mxu0
    %v4002 = vadd.f32 %v3935, %v4001
    %v4003 = vpop.f32.mrf.mxu0
    %v4004 = vpop.f32.mrf.mxu0
    %v4005 = vpop.f32.mrf.mxu0
    %4006 = vdwg.mxu0
    %s4007 = scalar_lea.vmem %s63, 4
    %v4008 = vld [vmem:[%s4007] sm:$0x3]
    %v4010 = vsel %vm3761, %v4008, 0
    %4012 = vmatprep.subr.bf16.mxu0 0
    %4013 = vmatpush1.bf16.msra.mxu0 0
    %4014 = vmatprep.subr.bf16.mxu0 0
    %4015 = vmatpush1.bf16.msra.mxu0 0
    %4016 = vmatprep.subr.bf16.mxu0 0
    %4017 = vmatpush1.bf16.msra.mxu0 0
    %4018 = vmatprep.subr.bf16.mxu0 0
    %4019 = vmatpush1.bf16.msra.mxu0 0
    %4020 = vmatprep.subr.bf16.mxu0 0
    %4021 = vmatpush1.bf16.msra.mxu0 0
    %4022 = vmatprep.subr.bf16.mxu0 0
    %4023 = vmatpush1.bf16.msra.mxu0 0
    %4024 = vmatprep.subr.bf16.mxu0 0
    %4025 = vmatpush1.bf16.msra.mxu0 0
    %4026 = vmatprep.subr.bf16.mxu0 0
    %4027 = vmatpush1.bf16.msra.mxu0 %v3767
    %4028 = vmatprep.subr.bf16.mxu0 0
    %4029 = vmatpush2.bf16.msra.mxu0 0
    %4030 = vmatprep.subr.bf16.mxu0 0
    %4031 = vmatpush2.bf16.msra.mxu0 0
    %4032 = vmatprep.subr.bf16.mxu0 0
    %4033 = vmatpush2.bf16.msra.mxu0 0
    %4034 = vmatprep.subr.bf16.mxu0 0
    %4035 = vmatpush2.bf16.msra.mxu0 0
    %4036 = vmatprep.subr.bf16.mxu0 0
    %4037 = vmatpush2.bf16.msra.mxu0 0
    %4038 = vmatprep.subr.bf16.mxu0 0
    %4039 = vmatpush2.bf16.msra.mxu0 0
    %4040 = vmatprep.subr.bf16.mxu0 0
    %4041 = vmatpush2.bf16.msra.mxu0 0
    %4042 = vmatprep.subr.bf16.mxu0 0
    %4043 = vmatpush2.bf16.msra.mxu0 0
    %4044 = vmatprep.mubr.bf16.mxu0 0
    %4045 = vmatmul.mubr.bf16.gmra.mxu0 %v4010
    %v4046 = vpop.f32.mrf.mxu0
    %v4047 = vadd.f32 0.0, %v4046
    %v4048 = vpop.f32.mrf.mxu0
    %v4049 = vpop.f32.mrf.mxu0
    %v4050 = vpop.f32.mrf.mxu0
    %4051 = vdwg.mxu0
    %v4052 = vpack.c.bf16 %v4047, %v4047
    %s4053 = scalar_lea.vmem %s65, 64
    %v4054 = vld [vmem:[%s4053] sm:$0xf]
    %v4055 = vld [vmem:[%s4053 + $0x4] sm:$0xf]
    %v4056 = vld [vmem:[%s4053 + $0x8] sm:$0xf]
    %v4057 = vld [vmem:[%s4053 + $0xc] sm:$0xf]
    %v4058 = vld [vmem:[%s4053 + $0x10] sm:$0xf]
    %v4059 = vld [vmem:[%s4053 + $0x14] sm:$0xf]
    %v4060 = vld [vmem:[%s4053 + $0x18] sm:$0xf]
    %v4061 = vld [vmem:[%s4053 + $0x1c] sm:$0xf]
    %v4070 = vunpack.c.l.b16 %v4054
    %v4071 = vunpack.c.l.b16 %v4055
    %v4072 = vunpack.c.l.b16 %v4056
    %v4073 = vunpack.c.l.b16 %v4057
    %v4074 = vunpack.c.l.b16 %v4058
    %v4075 = vunpack.c.l.b16 %v4059
    %v4076 = vunpack.c.l.b16 %v4060
    %v4077 = vunpack.c.l.b16 %v4061
    %v4078 = vpack.c.b16 %v4071, %v4070
    %v4079 = vpack.c.b16 %v4073, %v4072
    %v4080 = vpack.c.b16 %v4075, %v4074
    %v4081 = vpack.c.b16 %v4077, %v4076
    %v4087 = vsel %vm1386, %v4052, 0
    %4089 = vmatprep.subr.bf16.mxu0 0
    %4090 = vmatpush1.bf16.msra.mxu0 0
    %4091 = vmatprep.subr.bf16.mxu0 0
    %4092 = vmatpush1.bf16.msra.mxu0 0
    %4093 = vmatprep.subr.bf16.mxu0 0
    %4094 = vmatpush1.bf16.msra.mxu0 0
    %4095 = vmatprep.subr.bf16.mxu0 0
    %4096 = vmatpush1.bf16.msra.mxu0 0
    %4097 = vmatprep.subr.bf16.mxu0 0
    %4098 = vmatpush1.bf16.msra.mxu0 %v4081
    %4099 = vmatprep.subr.bf16.mxu0 0
    %4100 = vmatpush1.bf16.msra.mxu0 %v4080
    %4101 = vmatprep.subr.bf16.mxu0 0
    %4102 = vmatpush1.bf16.msra.mxu0 %v4079
    %4103 = vmatprep.subr.bf16.mxu0 0
    %4104 = vmatpush1.bf16.msra.mxu0 %v4078
    %4105 = vmatprep.subr.bf16.mxu0 0
    %4106 = vmatpush2.bf16.msra.mxu0 0
    %4107 = vmatprep.subr.bf16.mxu0 0
    %4108 = vmatpush2.bf16.msra.mxu0 0
    %4109 = vmatprep.subr.bf16.mxu0 0
    %4110 = vmatpush2.bf16.msra.mxu0 0
    %4111 = vmatprep.subr.bf16.mxu0 0
    %4112 = vmatpush2.bf16.msra.mxu0 0
    %4113 = vmatprep.subr.bf16.mxu0 0
    %4114 = vmatpush2.bf16.msra.mxu0 0
    %4115 = vmatprep.subr.bf16.mxu0 0
    %4116 = vmatpush2.bf16.msra.mxu0 0
    %4117 = vmatprep.subr.bf16.mxu0 0
    %4118 = vmatpush2.bf16.msra.mxu0 0
    %4119 = vmatprep.subr.bf16.mxu0 0
    %4120 = vmatpush2.bf16.msra.mxu0 0
    %4121 = vmatprep.mubr.bf16.mxu0 0
    %4122 = vmatmul.mubr.bf16.gmra.mxu0 %v4087
    %v4123 = vpop.f32.mrf.mxu0
    %v4124 = vadd.f32 0.0, %v4123
    %v4125 = vpop.f32.mrf.mxu0
    %v4126 = vpop.f32.mrf.mxu0
    %v4127 = vpop.f32.mrf.mxu0
    %4128 = vdwg.mxu0
    %v4129 = vadd.f32 %v4002, %v4124
    %v4130 = vld [vmem:[%s67] sm:$0x1]
    %v4132 = vlaneseq
    %v4133 = vshrl.u32 %v4132, 7
    %v4134 = vsub.s32 0, %v4133
    %v4135 = vrot.slane %v4130, %v4134
    %v4137 = vadd.f32 %v4129, %v4135
    %v4138 = vsel %vm2519, %v4137, 0.0
    %v4139 = vrot.slane %v4138, 4
    %v4140 = vadd.f32 %v4138, %v4139
    %v4141 = vrot.slane %v4140, 2
    %v4142 = vadd.f32 %v4140, %v4141
    %v4143 = vrot.slane %v4142, 1
    %v4144 = vadd.f32 %v4142, %v4143
    %v4145 = vmul.f32 %v4144, 0.25
    %v4146 = vld [vmem:[%s73] sm:$0xff]
    %v4147 = vld [vmem:[%s73 + $0x8] sm:$0xff]
    %v4148 = vld [vmem:[%s73 + $0x10] sm:$0xff]
    %v4149 = vld [vmem:[%s73 + $0x18] sm:$0xff]
    %v4150 = vld [vmem:[%s73 + $0x20] sm:$0xff]
    %v4151 = vld [vmem:[%s73 + $0x28] sm:$0xff]
    %v4152 = vld [vmem:[%s73 + $0x30] sm:$0xff]
    %v4153 = vld [vmem:[%s73 + $0x38] sm:$0xff]
    %v4154 = vld [vmem:[%s73 + $0x40] sm:$0xff]
    %v4155 = vld [vmem:[%s73 + $0x48] sm:$0xff]
    %v4156 = vld [vmem:[%s73 + $0x50] sm:$0xff]
    %v4157 = vld [vmem:[%s73 + $0x58] sm:$0xff]
    %v4158 = vld [vmem:[%s73 + $0x60] sm:$0xff]
    %v4159 = vld [vmem:[%s73 + $0x68] sm:$0xff]
    %v4160 = vld [vmem:[%s73 + $0x70] sm:$0xff]
    %v4161 = vld [vmem:[%s73 + $0x78] sm:$0xff]
    %4162 = vmatprep.subr.mxu0 0.0
    %4163 = vmatpush1.msra.mxu0 %v4161
    %4164 = vmatprep.subr.mxu0 0.0
    %4165 = vmatpush1.msra.mxu0 %v4160
    %4166 = vmatprep.subr.mxu0 0.0
    %4167 = vmatpush1.msra.mxu0 %v4159
    %4168 = vmatprep.subr.mxu0 0.0
    %4169 = vmatpush1.msra.mxu0 %v4158
    %4170 = vmatprep.subr.mxu0 0.0
    %4171 = vmatpush1.msra.mxu0 %v4157
    %4172 = vmatprep.subr.mxu0 0.0
    %4173 = vmatpush1.msra.mxu0 %v4156
    %4174 = vmatprep.subr.mxu0 0.0
    %4175 = vmatpush1.msra.mxu0 %v4155
    %4176 = vmatprep.subr.mxu0 0.0
    %4177 = vmatpush1.msra.mxu0 %v4154
    %4178 = vmatprep.subr.mxu0 0.0
    %4179 = vmatpush1.msra.mxu0 %v4153
    %4180 = vmatprep.subr.mxu0 0.0
    %4181 = vmatpush1.msra.mxu0 %v4152
    %4182 = vmatprep.subr.mxu0 0.0
    %4183 = vmatpush1.msra.mxu0 %v4151
    %4184 = vmatprep.subr.mxu0 0.0
    %4185 = vmatpush1.msra.mxu0 %v4150
    %4186 = vmatprep.subr.mxu0 0.0
    %4187 = vmatpush1.msra.mxu0 %v4149
    %4188 = vmatprep.subr.mxu0 0.0
    %4189 = vmatpush1.msra.mxu0 %v4148
    %4190 = vmatprep.subr.mxu0 0.0
    %4191 = vmatpush1.msra.mxu0 %v4147
    %4192 = vmatprep.subr.mxu0 0.0
    %4193 = vmatpush1.msra.mxu0 %v4146
    %4194 = vmatprep.subr.mxu0 0.0
    %4195 = vmatpush2.msra.mxu0 0.0
    %4196 = vmatprep.subr.mxu0 0.0
    %4197 = vmatpush2.msra.mxu0 0.0
    %4198 = vmatprep.subr.mxu0 0.0
    %4199 = vmatpush2.msra.mxu0 0.0
    %4200 = vmatprep.subr.mxu0 0.0
    %4201 = vmatpush2.msra.mxu0 0.0
    %4202 = vmatprep.subr.mxu0 0.0
    %4203 = vmatpush2.msra.mxu0 0.0
    %4204 = vmatprep.subr.mxu0 0.0
    %4205 = vmatpush2.msra.mxu0 0.0
    %4206 = vmatprep.subr.mxu0 0.0
    %4207 = vmatpush2.msra.mxu0 0.0
    %4208 = vmatprep.subr.mxu0 0.0
    %4209 = vmatpush2.msra.mxu0 0.0
    %4210 = vmatprep.subr.mxu0 0.0
    %4211 = vmatpush2.msra.mxu0 0.0
    %4212 = vmatprep.subr.mxu0 0.0
    %4213 = vmatpush2.msra.mxu0 0.0
    %4214 = vmatprep.subr.mxu0 0.0
    %4215 = vmatpush2.msra.mxu0 0.0
    %4216 = vmatprep.subr.mxu0 0.0
    %4217 = vmatpush2.msra.mxu0 0.0
    %4218 = vmatprep.subr.mxu0 0.0
    %4219 = vmatpush2.msra.mxu0 0.0
    %4220 = vmatprep.subr.mxu0 0.0
    %4221 = vmatpush2.msra.mxu0 0.0
    %4222 = vmatprep.subr.mxu0 0.0
    %4223 = vmatpush2.msra.mxu0 0.0
    %4224 = vmatprep.subr.mxu0 0.0
    %4225 = vmatpush2.msra.mxu0 0.0
    %4226 = vmatprep.mubr.f32.mxu0 0.0
    %4227 = vmatmul.mubr.f32.gmra.mxu0 %v4145
    %v4228 = vpop.f32.mrf.mxu0
    %v4229 = vadd.f32 0.0, %v4228
    %v4230 = vpop.f32.mrf.mxu0
    %4231 = vdwg.mxu0
    %v4232 = vlaneseq
    %v4233 = vshrl.u32 %v4232, 7
    %v4234 = vsub.s32 0, %v4233
    %v4235 = vrot.slane %v4229, %v4234
    %v4236 = vsub.f32 %v4137, %v4235
    %v4237 = vmul.f32 %v4236, %v4236
    %v4238 = vsel %vm2519, %v4237, 0.0
    %v4239 = vrot.slane %v4238, 4
    %v4240 = vadd.f32 %v4238, %v4239
    %v4241 = vrot.slane %v4240, 2
    %v4242 = vadd.f32 %v4240, %v4241
    %v4243 = vrot.slane %v4242, 1
    %v4244 = vadd.f32 %v4242, %v4243
    %v4245 = vmul.f32 %v4244, 0.25
    %v4246 = vld [vmem:[#allocation3] sm:$0x1]
    %v4248 = vlaneseq
    %v4249 = vshrl.u32 %v4248, 7
    %v4250 = vsub.s32 0, %v4249
    %v4251 = vrot.slane %v4246, %v4250
    %v4253 = vmul.f32 %v4251, %v4236
    %4254 = vmatprep.subr.mxu0 0.0
    %4255 = vmatpush1.msra.mxu0 %v4161
    %4256 = vmatprep.subr.mxu0 0.0
    %4257 = vmatpush1.msra.mxu0 %v4160
    %4258 = vmatprep.subr.mxu0 0.0
    %4259 = vmatpush1.msra.mxu0 %v4159
    %4260 = vmatprep.subr.mxu0 0.0
    %4261 = vmatpush1.msra.mxu0 %v4158
    %4262 = vmatprep.subr.mxu0 0.0
    %4263 = vmatpush1.msra.mxu0 %v4157
    %4264 = vmatprep.subr.mxu0 0.0
    %4265 = vmatpush1.msra.mxu0 %v4156
    %4266 = vmatprep.subr.mxu0 0.0
    %4267 = vmatpush1.msra.mxu0 %v4155
    %4268 = vmatprep.subr.mxu0 0.0
    %4269 = vmatpush1.msra.mxu0 %v4154
    %4270 = vmatprep.subr.mxu0 0.0
    %4271 = vmatpush1.msra.mxu0 %v4153
    %4272 = vmatprep.subr.mxu0 0.0
    %4273 = vmatpush1.msra.mxu0 %v4152
    %4274 = vmatprep.subr.mxu0 0.0
    %4275 = vmatpush1.msra.mxu0 %v4151
    %4276 = vmatprep.subr.mxu0 0.0
    %4277 = vmatpush1.msra.mxu0 %v4150
    %4278 = vmatprep.subr.mxu0 0.0
    %4279 = vmatpush1.msra.mxu0 %v4149
    %4280 = vmatprep.subr.mxu0 0.0
    %4281 = vmatpush1.msra.mxu0 %v4148
    %4282 = vmatprep.subr.mxu0 0.0
    %4283 = vmatpush1.msra.mxu0 %v4147
    %4284 = vmatprep.subr.mxu0 0.0
    %4285 = vmatpush1.msra.mxu0 %v4146
    %4286 = vmatprep.subr.mxu0 0.0
    %4287 = vmatpush2.msra.mxu0 0.0
    %4288 = vmatprep.subr.mxu0 0.0
    %4289 = vmatpush2.msra.mxu0 0.0
    %4290 = vmatprep.subr.mxu0 0.0
    %4291 = vmatpush2.msra.mxu0 0.0
    %4292 = vmatprep.subr.mxu0 0.0
    %4293 = vmatpush2.msra.mxu0 0.0
    %4294 = vmatprep.subr.mxu0 0.0
    %4295 = vmatpush2.msra.mxu0 0.0
    %4296 = vmatprep.subr.mxu0 0.0
    %4297 = vmatpush2.msra.mxu0 0.0
    %4298 = vmatprep.subr.mxu0 0.0
    %4299 = vmatpush2.msra.mxu0 0.0
    %4300 = vmatprep.subr.mxu0 0.0
    %4301 = vmatpush2.msra.mxu0 0.0
    %4302 = vmatprep.subr.mxu0 0.0
    %4303 = vmatpush2.msra.mxu0 0.0
    %4304 = vmatprep.subr.mxu0 0.0
    %4305 = vmatpush2.msra.mxu0 0.0
    %4306 = vmatprep.subr.mxu0 0.0
    %4307 = vmatpush2.msra.mxu0 0.0
    %4308 = vmatprep.subr.mxu0 0.0
    %4309 = vmatpush2.msra.mxu0 0.0
    %4310 = vmatprep.subr.mxu0 0.0
    %4311 = vmatpush2.msra.mxu0 0.0
    %4312 = vmatprep.subr.mxu0 0.0
    %4313 = vmatpush2.msra.mxu0 0.0
    %4314 = vmatprep.subr.mxu0 0.0
    %4315 = vmatpush2.msra.mxu0 0.0
    %4316 = vmatprep.subr.mxu0 0.0
    %4317 = vmatpush2.msra.mxu0 0.0
    %4318 = vmatprep.mubr.f32.mxu0 0.0
    %4319 = vmatmul.mubr.f32.gmra.mxu0 %v4245
    %v4320 = vpop.f32.mrf.mxu0
    %v4321 = vadd.f32 1e-05, %v4320
    %v4322 = vpop.f32.mrf.mxu0
    %4323 = vdwg.mxu0
    %v4324 = vrsqrt.pop %v4321
    %v4325 = vlaneseq
    %v4326 = vshrl.u32 %v4325, 7
    %v4327 = vsub.s32 0, %v4326
    %v4328 = vrot.slane %v4324, %v4327
    %v4329 = vmul.f32 %v4253, %v4328
    %v4330 = vld [vmem:[#allocation5] sm:$0x1]
    %v4332 = vlaneseq
    %v4333 = vshrl.u32 %v4332, 7
    %v4334 = vsub.s32 0, %v4333
    %v4335 = vrot.slane %v4330, %v4334
    %v4337 = vadd.f32 %v4329, %v4335
    %vm4338 = vcmp.gt.f32.partialorder %v4337, 0.0
    %v4339 = vmul.f32 %v4337, 0.01
    %v4340 = vsel %vm4338, %v4337, %v4339
    %v4341 = vpack.c.bf16 %v4340, %v4340
    %v4342 = vld [vmem:[%s75] sm:$0x1]
    %v4344 = vsel %vm3761, %v4342, 0
    %v4347 = vsel %vm3765, %v4341, 0
    %4349 = vmatprep.subr.bf16.mxu0 0
    %4350 = vmatpush1.bf16.msra.mxu0 0
    %4351 = vmatprep.subr.bf16.mxu0 0
    %4352 = vmatpush1.bf16.msra.mxu0 0
    %4353 = vmatprep.subr.bf16.mxu0 0
    %4354 = vmatpush1.bf16.msra.mxu0 0
    %4355 = vmatprep.subr.bf16.mxu0 0
    %4356 = vmatpush1.bf16.msra.mxu0 0
    %4357 = vmatprep.subr.bf16.mxu0 0
    %4358 = vmatpush1.bf16.msra.mxu0 0
    %4359 = vmatprep.subr.bf16.mxu0 0
    %4360 = vmatpush1.bf16.msra.mxu0 0
    %4361 = vmatprep.subr.bf16.mxu0 0
    %4362 = vmatpush1.bf16.msra.mxu0 0
    %4363 = vmatprep.subr.bf16.mxu0 0
    %4364 = vmatpush1.bf16.msra.mxu0 %v4347
    %4365 = vmatprep.subr.bf16.mxu0 0
    %4366 = vmatpush2.bf16.msra.mxu0 0
    %4367 = vmatprep.subr.bf16.mxu0 0
    %4368 = vmatpush2.bf16.msra.mxu0 0
    %4369 = vmatprep.subr.bf16.mxu0 0
    %4370 = vmatpush2.bf16.msra.mxu0 0
    %4371 = vmatprep.subr.bf16.mxu0 0
    %4372 = vmatpush2.bf16.msra.mxu0 0
    %4373 = vmatprep.subr.bf16.mxu0 0
    %4374 = vmatpush2.bf16.msra.mxu0 0
    %4375 = vmatprep.subr.bf16.mxu0 0
    %4376 = vmatpush2.bf16.msra.mxu0 0
    %4377 = vmatprep.subr.bf16.mxu0 0
    %4378 = vmatpush2.bf16.msra.mxu0 0
    %4379 = vmatprep.subr.bf16.mxu0 0
    %4380 = vmatpush2.bf16.msra.mxu0 0
    %4381 = vmatprep.mubr.bf16.mxu0 0
    %4382 = vmatmul.mubr.bf16.gmra.mxu0 %v4344
    %v4383 = vpop.f32.mrf.mxu0
    %v4384 = vadd.f32 0.0, %v4383
    %v4385 = vpop.f32.mrf.mxu0
    %v4386 = vpop.f32.mrf.mxu0
    %v4387 = vpop.f32.mrf.mxu0
    %4388 = vdwg.mxu0
    %v4389 = vpack.c.bf16 %v4384, %v4384
    %v4390 = vld [vmem:[%s77] sm:$0xf]
    %v4391 = vld [vmem:[%s77 + $0x4] sm:$0xf]
    %v4392 = vld [vmem:[%s77 + $0x8] sm:$0xf]
    %v4393 = vld [vmem:[%s77 + $0xc] sm:$0xf]
    %v4394 = vld [vmem:[%s77 + $0x10] sm:$0xf]
    %v4395 = vld [vmem:[%s77 + $0x14] sm:$0xf]
    %v4396 = vld [vmem:[%s77 + $0x18] sm:$0xf]
    %v4397 = vld [vmem:[%s77 + $0x1c] sm:$0xf]
    %v4398 = vld [vmem:[%s77 + $0x20] sm:$0xf]
    %v4399 = vld [vmem:[%s77 + $0x24] sm:$0xf]
    %v4400 = vld [vmem:[%s77 + $0x28] sm:$0xf]
    %v4401 = vld [vmem:[%s77 + $0x2c] sm:$0xf]
    %v4402 = vld [vmem:[%s77 + $0x30] sm:$0xf]
    %v4403 = vld [vmem:[%s77 + $0x34] sm:$0xf]
    %v4404 = vld [vmem:[%s77 + $0x38] sm:$0xf]
    %v4405 = vld [vmem:[%s77 + $0x3c] sm:$0xf]
    %s4406 = scalar_lea.vmem %s75, 1
    %v4407 = vld [vmem:[%s4406] sm:$0x1]
    %v4409 = vsel %vm3761, %v4407, 0
    %4411 = vmatprep.subr.bf16.mxu0 0
    %4412 = vmatpush1.bf16.msra.mxu0 0
    %4413 = vmatprep.subr.bf16.mxu0 0
    %4414 = vmatpush1.bf16.msra.mxu0 0
    %4415 = vmatprep.subr.bf16.mxu0 0
    %4416 = vmatpush1.bf16.msra.mxu0 0
    %4417 = vmatprep.subr.bf16.mxu0 0
    %4418 = vmatpush1.bf16.msra.mxu0 0
    %4419 = vmatprep.subr.bf16.mxu0 0
    %4420 = vmatpush1.bf16.msra.mxu0 0
    %4421 = vmatprep.subr.bf16.mxu0 0
    %4422 = vmatpush1.bf16.msra.mxu0 0
    %4423 = vmatprep.subr.bf16.mxu0 0
    %4424 = vmatpush1.bf16.msra.mxu0 0
    %4425 = vmatprep.subr.bf16.mxu0 0
    %4426 = vmatpush1.bf16.msra.mxu0 %v4347
    %4427 = vmatprep.subr.bf16.mxu0 0
    %4428 = vmatpush2.bf16.msra.mxu0 0
    %4429 = vmatprep.subr.bf16.mxu0 0
    %4430 = vmatpush2.bf16.msra.mxu0 0
    %4431 = vmatprep.subr.bf16.mxu0 0
    %4432 = vmatpush2.bf16.msra.mxu0 0
    %4433 = vmatprep.subr.bf16.mxu0 0
    %4434 = vmatpush2.bf16.msra.mxu0 0
    %4435 = vmatprep.subr.bf16.mxu0 0
    %4436 = vmatpush2.bf16.msra.mxu0 0
    %4437 = vmatprep.subr.bf16.mxu0 0
    %4438 = vmatpush2.bf16.msra.mxu0 0
    %4439 = vmatprep.subr.bf16.mxu0 0
    %4440 = vmatpush2.bf16.msra.mxu0 0
    %4441 = vmatprep.subr.bf16.mxu0 0
    %4442 = vmatpush2.bf16.msra.mxu0 0
    %4443 = vmatprep.mubr.bf16.mxu0 0
    %4444 = vmatmul.mubr.bf16.gmra.mxu0 %v4409
    %v4445 = vpop.f32.mrf.mxu0
    %v4446 = vadd.f32 0.0, %v4445
    %v4447 = vpop.f32.mrf.mxu0
    %v4448 = vpop.f32.mrf.mxu0
    %v4449 = vpop.f32.mrf.mxu0
    %4450 = vdwg.mxu0
    %v4451 = vpack.c.bf16 %v4446, %v4446
    %s4452 = scalar_lea.vmem %s77, 64
    %v4453 = vld [vmem:[%s4452] sm:$0xf]
    %v4454 = vld [vmem:[%s4452 + $0x4] sm:$0xf]
    %v4455 = vld [vmem:[%s4452 + $0x8] sm:$0xf]
    %v4456 = vld [vmem:[%s4452 + $0xc] sm:$0xf]
    %v4457 = vld [vmem:[%s4452 + $0x10] sm:$0xf]
    %v4458 = vld [vmem:[%s4452 + $0x14] sm:$0xf]
    %v4459 = vld [vmem:[%s4452 + $0x18] sm:$0xf]
    %v4460 = vld [vmem:[%s4452 + $0x1c] sm:$0xf]
    %v4461 = vld [vmem:[%s4452 + $0x20] sm:$0xf]
    %v4462 = vld [vmem:[%s4452 + $0x24] sm:$0xf]
    %v4463 = vld [vmem:[%s4452 + $0x28] sm:$0xf]
    %v4464 = vld [vmem:[%s4452 + $0x2c] sm:$0xf]
    %v4465 = vld [vmem:[%s4452 + $0x30] sm:$0xf]
    %v4466 = vld [vmem:[%s4452 + $0x34] sm:$0xf]
    %v4467 = vld [vmem:[%s4452 + $0x38] sm:$0xf]
    %v4468 = vld [vmem:[%s4452 + $0x3c] sm:$0xf]
    %v4485 = vunpack.c.l.b16 %v4453
    %v4486 = vunpack.c.l.b16 %v4454
    %v4487 = vunpack.c.l.b16 %v4455
    %v4488 = vunpack.c.l.b16 %v4456
    %v4489 = vunpack.c.l.b16 %v4457
    %v4490 = vunpack.c.l.b16 %v4458
    %v4491 = vunpack.c.l.b16 %v4459
    %v4492 = vunpack.c.l.b16 %v4460
    %v4493 = vunpack.c.l.b16 %v4461
    %v4494 = vunpack.c.l.b16 %v4462
    %v4495 = vunpack.c.l.b16 %v4463
    %v4496 = vunpack.c.l.b16 %v4464
    %v4497 = vunpack.c.l.b16 %v4465
    %v4498 = vunpack.c.l.b16 %v4466
    %v4499 = vunpack.c.l.b16 %v4467
    %v4500 = vunpack.c.l.b16 %v4468
    %v4501 = vpack.c.b16 %v4486, %v4485
    %v4502 = vpack.c.b16 %v4488, %v4487
    %v4503 = vpack.c.b16 %v4490, %v4489
    %v4504 = vpack.c.b16 %v4492, %v4491
    %v4505 = vpack.c.b16 %v4494, %v4493
    %v4506 = vpack.c.b16 %v4496, %v4495
    %v4507 = vpack.c.b16 %v4498, %v4497
    %v4508 = vpack.c.b16 %v4500, %v4499
    %4517 = vmatprep.subr.bf16.mxu0 0
    %4518 = vmatpush1.bf16.msra.mxu0 %v4508
    %4519 = vmatprep.subr.bf16.mxu0 0
    %4520 = vmatpush1.bf16.msra.mxu0 %v4507
    %4521 = vmatprep.subr.bf16.mxu0 0
    %4522 = vmatpush1.bf16.msra.mxu0 %v4506
    %4523 = vmatprep.subr.bf16.mxu0 0
    %4524 = vmatpush1.bf16.msra.mxu0 %v4505
    %4525 = vmatprep.subr.bf16.mxu0 0
    %4526 = vmatpush1.bf16.msra.mxu0 %v4504
    %4527 = vmatprep.subr.bf16.mxu0 0
    %4528 = vmatpush1.bf16.msra.mxu0 %v4503
    %4529 = vmatprep.subr.bf16.mxu0 0
    %4530 = vmatpush1.bf16.msra.mxu0 %v4502
    %4531 = vmatprep.subr.bf16.mxu0 0
    %4532 = vmatpush1.bf16.msra.mxu0 %v4501
    %4533 = vmatprep.subr.bf16.mxu0 0
    %4534 = vmatpush2.bf16.msra.mxu0 0
    %4535 = vmatprep.subr.bf16.mxu0 0
    %4536 = vmatpush2.bf16.msra.mxu0 0
    %4537 = vmatprep.subr.bf16.mxu0 0
    %4538 = vmatpush2.bf16.msra.mxu0 0
    %4539 = vmatprep.subr.bf16.mxu0 0
    %4540 = vmatpush2.bf16.msra.mxu0 0
    %4541 = vmatprep.subr.bf16.mxu0 0
    %4542 = vmatpush2.bf16.msra.mxu0 0
    %4543 = vmatprep.subr.bf16.mxu0 0
    %4544 = vmatpush2.bf16.msra.mxu0 0
    %4545 = vmatprep.subr.bf16.mxu0 0
    %4546 = vmatpush2.bf16.msra.mxu0 0
    %4547 = vmatprep.subr.bf16.mxu0 0
    %4548 = vmatpush2.bf16.msra.mxu0 0
    %4549 = vmatprep.mubr.bf16.mxu0 0
    %4550 = vmatmul.mubr.bf16.gmra.mxu0 %v4451
    %v4551 = vpop.f32.mrf.mxu0
    %v4552 = vadd.f32 0.0, %v4551
    %v4553 = vpop.f32.mrf.mxu0
    %v4554 = vpop.f32.mrf.mxu0
    %v4555 = vpop.f32.mrf.mxu0
    %4556 = vdwg.mxu0
    %v4573 = vunpack.c.l.b16 %v4390
    %v4574 = vunpack.c.l.b16 %v4391
    %v4575 = vunpack.c.l.b16 %v4392
    %v4576 = vunpack.c.l.b16 %v4393
    %v4577 = vunpack.c.l.b16 %v4394
    %v4578 = vunpack.c.l.b16 %v4395
    %v4579 = vunpack.c.l.b16 %v4396
    %v4580 = vunpack.c.l.b16 %v4397
    %v4581 = vunpack.c.l.b16 %v4398
    %v4582 = vunpack.c.l.b16 %v4399
    %v4583 = vunpack.c.l.b16 %v4400
    %v4584 = vunpack.c.l.b16 %v4401
    %v4585 = vunpack.c.l.b16 %v4402
    %v4586 = vunpack.c.l.b16 %v4403
    %v4587 = vunpack.c.l.b16 %v4404
    %v4588 = vunpack.c.l.b16 %v4405
    %v4589 = vpack.c.b16 %v4574, %v4573
    %v4590 = vpack.c.b16 %v4576, %v4575
    %v4591 = vpack.c.b16 %v4578, %v4577
    %v4592 = vpack.c.b16 %v4580, %v4579
    %v4593 = vpack.c.b16 %v4582, %v4581
    %v4594 = vpack.c.b16 %v4584, %v4583
    %v4595 = vpack.c.b16 %v4586, %v4585
    %v4596 = vpack.c.b16 %v4588, %v4587
    %4605 = vmatprep.subr.bf16.mxu0 0
    %4606 = vmatpush1.bf16.msra.mxu0 %v4596
    %4607 = vmatprep.subr.bf16.mxu0 0
    %4608 = vmatpush1.bf16.msra.mxu0 %v4595
    %4609 = vmatprep.subr.bf16.mxu0 0
    %4610 = vmatpush1.bf16.msra.mxu0 %v4594
    %4611 = vmatprep.subr.bf16.mxu0 0
    %4612 = vmatpush1.bf16.msra.mxu0 %v4593
    %4613 = vmatprep.subr.bf16.mxu0 0
    %4614 = vmatpush1.bf16.msra.mxu0 %v4592
    %4615 = vmatprep.subr.bf16.mxu0 0
    %4616 = vmatpush1.bf16.msra.mxu0 %v4591
    %4617 = vmatprep.subr.bf16.mxu0 0
    %4618 = vmatpush1.bf16.msra.mxu0 %v4590
    %4619 = vmatprep.subr.bf16.mxu0 0
    %4620 = vmatpush1.bf16.msra.mxu0 %v4589
    %4621 = vmatprep.subr.bf16.mxu0 0
    %4622 = vmatpush2.bf16.msra.mxu0 0
    %4623 = vmatprep.subr.bf16.mxu0 0
    %4624 = vmatpush2.bf16.msra.mxu0 0
    %4625 = vmatprep.subr.bf16.mxu0 0
    %4626 = vmatpush2.bf16.msra.mxu0 0
    %4627 = vmatprep.subr.bf16.mxu0 0
    %4628 = vmatpush2.bf16.msra.mxu0 0
    %4629 = vmatprep.subr.bf16.mxu0 0
    %4630 = vmatpush2.bf16.msra.mxu0 0
    %4631 = vmatprep.subr.bf16.mxu0 0
    %4632 = vmatpush2.bf16.msra.mxu0 0
    %4633 = vmatprep.subr.bf16.mxu0 0
    %4634 = vmatpush2.bf16.msra.mxu0 0
    %4635 = vmatprep.subr.bf16.mxu0 0
    %4636 = vmatpush2.bf16.msra.mxu0 0
    %4637 = vmatprep.mubr.bf16.mxu0 0
    %4638 = vmatmul.mubr.bf16.gmra.mxu0 %v4389
    %v4639 = vpop.f32.mrf.mxu0
    %v4640 = vadd.f32 %v4552, %v4639
    %v4641 = vpop.f32.mrf.mxu0
    %v4642 = vpop.f32.mrf.mxu0
    %v4643 = vpop.f32.mrf.mxu0
    %4644 = vdwg.mxu0
    %s4645 = scalar_lea.vmem %s75, 2
    %v4646 = vld [vmem:[%s4645] sm:$0x1]
    %v4648 = vsel %vm3761, %v4646, 0
    %4650 = vmatprep.subr.bf16.mxu0 0
    %4651 = vmatpush1.bf16.msra.mxu0 0
    %4652 = vmatprep.subr.bf16.mxu0 0
    %4653 = vmatpush1.bf16.msra.mxu0 0
    %4654 = vmatprep.subr.bf16.mxu0 0
    %4655 = vmatpush1.bf16.msra.mxu0 0
    %4656 = vmatprep.subr.bf16.mxu0 0
    %4657 = vmatpush1.bf16.msra.mxu0 0
    %4658 = vmatprep.subr.bf16.mxu0 0
    %4659 = vmatpush1.bf16.msra.mxu0 0
    %4660 = vmatprep.subr.bf16.mxu0 0
    %4661 = vmatpush1.bf16.msra.mxu0 0
    %4662 = vmatprep.subr.bf16.mxu0 0
    %4663 = vmatpush1.bf16.msra.mxu0 0
    %4664 = vmatprep.subr.bf16.mxu0 0
    %4665 = vmatpush1.bf16.msra.mxu0 %v4347
    %4666 = vmatprep.subr.bf16.mxu0 0
    %4667 = vmatpush2.bf16.msra.mxu0 0
    %4668 = vmatprep.subr.bf16.mxu0 0
    %4669 = vmatpush2.bf16.msra.mxu0 0
    %4670 = vmatprep.subr.bf16.mxu0 0
    %4671 = vmatpush2.bf16.msra.mxu0 0
    %4672 = vmatprep.subr.bf16.mxu0 0
    %4673 = vmatpush2.bf16.msra.mxu0 0
    %4674 = vmatprep.subr.bf16.mxu0 0
    %4675 = vmatpush2.bf16.msra.mxu0 0
    %4676 = vmatprep.subr.bf16.mxu0 0
    %4677 = vmatpush2.bf16.msra.mxu0 0
    %4678 = vmatprep.subr.bf16.mxu0 0
    %4679 = vmatpush2.bf16.msra.mxu0 0
    %4680 = vmatprep.subr.bf16.mxu0 0
    %4681 = vmatpush2.bf16.msra.mxu0 0
    %4682 = vmatprep.mubr.bf16.mxu0 0
    %4683 = vmatmul.mubr.bf16.gmra.mxu0 %v4648
    %v4684 = vpop.f32.mrf.mxu0
    %v4685 = vadd.f32 0.0, %v4684
    %v4686 = vpop.f32.mrf.mxu0
    %v4687 = vpop.f32.mrf.mxu0
    %v4688 = vpop.f32.mrf.mxu0
    %4689 = vdwg.mxu0
    %v4690 = vpack.c.bf16 %v4685, %v4685
    %s4691 = scalar_lea.vmem %s77, 128
    %v4692 = vld [vmem:[%s4691] sm:$0xf]
    %v4693 = vld [vmem:[%s4691 + $0x4] sm:$0xf]
    %v4694 = vld [vmem:[%s4691 + $0x8] sm:$0xf]
    %v4695 = vld [vmem:[%s4691 + $0xc] sm:$0xf]
    %v4696 = vld [vmem:[%s4691 + $0x10] sm:$0xf]
    %v4697 = vld [vmem:[%s4691 + $0x14] sm:$0xf]
    %v4698 = vld [vmem:[%s4691 + $0x18] sm:$0xf]
    %v4699 = vld [vmem:[%s4691 + $0x1c] sm:$0xf]
    %v4700 = vld [vmem:[%s4691 + $0x20] sm:$0xf]
    %v4701 = vld [vmem:[%s4691 + $0x24] sm:$0xf]
    %v4702 = vld [vmem:[%s4691 + $0x28] sm:$0xf]
    %v4703 = vld [vmem:[%s4691 + $0x2c] sm:$0xf]
    %v4704 = vld [vmem:[%s4691 + $0x30] sm:$0xf]
    %v4705 = vld [vmem:[%s4691 + $0x34] sm:$0xf]
    %v4706 = vld [vmem:[%s4691 + $0x38] sm:$0xf]
    %v4707 = vld [vmem:[%s4691 + $0x3c] sm:$0xf]
    %v4724 = vunpack.c.l.b16 %v4692
    %v4725 = vunpack.c.l.b16 %v4693
    %v4726 = vunpack.c.l.b16 %v4694
    %v4727 = vunpack.c.l.b16 %v4695
    %v4728 = vunpack.c.l.b16 %v4696
    %v4729 = vunpack.c.l.b16 %v4697
    %v4730 = vunpack.c.l.b16 %v4698
    %v4731 = vunpack.c.l.b16 %v4699
    %v4732 = vunpack.c.l.b16 %v4700
    %v4733 = vunpack.c.l.b16 %v4701
    %v4734 = vunpack.c.l.b16 %v4702
    %v4735 = vunpack.c.l.b16 %v4703
    %v4736 = vunpack.c.l.b16 %v4704
    %v4737 = vunpack.c.l.b16 %v4705
    %v4738 = vunpack.c.l.b16 %v4706
    %v4739 = vunpack.c.l.b16 %v4707
    %v4740 = vpack.c.b16 %v4725, %v4724
    %v4741 = vpack.c.b16 %v4727, %v4726
    %v4742 = vpack.c.b16 %v4729, %v4728
    %v4743 = vpack.c.b16 %v4731, %v4730
    %v4744 = vpack.c.b16 %v4733, %v4732
    %v4745 = vpack.c.b16 %v4735, %v4734
    %v4746 = vpack.c.b16 %v4737, %v4736
    %v4747 = vpack.c.b16 %v4739, %v4738
    %4756 = vmatprep.subr.bf16.mxu0 0
    %4757 = vmatpush1.bf16.msra.mxu0 %v4747
    %4758 = vmatprep.subr.bf16.mxu0 0
    %4759 = vmatpush1.bf16.msra.mxu0 %v4746
    %4760 = vmatprep.subr.bf16.mxu0 0
    %4761 = vmatpush1.bf16.msra.mxu0 %v4745
    %4762 = vmatprep.subr.bf16.mxu0 0
    %4763 = vmatpush1.bf16.msra.mxu0 %v4744
    %4764 = vmatprep.subr.bf16.mxu0 0
    %4765 = vmatpush1.bf16.msra.mxu0 %v4743
    %4766 = vmatprep.subr.bf16.mxu0 0
    %4767 = vmatpush1.bf16.msra.mxu0 %v4742
    %4768 = vmatprep.subr.bf16.mxu0 0
    %4769 = vmatpush1.bf16.msra.mxu0 %v4741
    %4770 = vmatprep.subr.bf16.mxu0 0
    %4771 = vmatpush1.bf16.msra.mxu0 %v4740
    %4772 = vmatprep.subr.bf16.mxu0 0
    %4773 = vmatpush2.bf16.msra.mxu0 0
    %4774 = vmatprep.subr.bf16.mxu0 0
    %4775 = vmatpush2.bf16.msra.mxu0 0
    %4776 = vmatprep.subr.bf16.mxu0 0
    %4777 = vmatpush2.bf16.msra.mxu0 0
    %4778 = vmatprep.subr.bf16.mxu0 0
    %4779 = vmatpush2.bf16.msra.mxu0 0
    %4780 = vmatprep.subr.bf16.mxu0 0
    %4781 = vmatpush2.bf16.msra.mxu0 0
    %4782 = vmatprep.subr.bf16.mxu0 0
    %4783 = vmatpush2.bf16.msra.mxu0 0
    %4784 = vmatprep.subr.bf16.mxu0 0
    %4785 = vmatpush2.bf16.msra.mxu0 0
    %4786 = vmatprep.subr.bf16.mxu0 0
    %4787 = vmatpush2.bf16.msra.mxu0 0
    %4788 = vmatprep.mubr.bf16.mxu0 0
    %4789 = vmatmul.mubr.bf16.gmra.mxu0 %v4690
    %v4790 = vpop.f32.mrf.mxu0
    %v4791 = vadd.f32 0.0, %v4790
    %v4792 = vpop.f32.mrf.mxu0
    %v4793 = vpop.f32.mrf.mxu0
    %v4794 = vpop.f32.mrf.mxu0
    %4795 = vdwg.mxu0
    %v4796 = vadd.f32 %v4640, %v4791
    %v4797 = vld [vmem:[#allocation7] sm:$0x1]
    %v4799 = vlaneseq
    %v4800 = vshrl.u32 %v4799, 7
    %v4801 = vsub.s32 0, %v4800
    %v4802 = vrot.slane %v4797, %v4801
    %v4804 = vadd.f32 %v4796, %v4802
    %vm4805 = vcmask 517120
    %v4806 = vsel %vm4805, %v4804, 0.0
    %v4807 = vrot.slane %v4806, 4
    %v4808 = vadd.f32 %v4806, %v4807
    %v4809 = vrot.slane %v4808, 2
    %v4810 = vadd.f32 %v4808, %v4809
    %v4811 = vrot.slane %v4810, 1
    %v4812 = vadd.f32 %v4810, %v4811
    %v4813 = vmul.f32 %v4812, 0.5
    %v4814 = vld [vmem:[%s85] sm:$0xff]
    %v4815 = vld [vmem:[%s85 + $0x8] sm:$0xff]
    %v4816 = vld [vmem:[%s85 + $0x10] sm:$0xff]
    %v4817 = vld [vmem:[%s85 + $0x18] sm:$0xff]
    %v4818 = vld [vmem:[%s85 + $0x20] sm:$0xff]
    %v4819 = vld [vmem:[%s85 + $0x28] sm:$0xff]
    %v4820 = vld [vmem:[%s85 + $0x30] sm:$0xff]
    %v4821 = vld [vmem:[%s85 + $0x38] sm:$0xff]
    %v4823 = vsel %vm1386, %v4813, 0
    %4825 = vmatprep.subr.mxu0 0.0
    %4826 = vmatpush1.msra.mxu0 0.0
    %4827 = vmatprep.subr.mxu0 0.0
    %4828 = vmatpush1.msra.mxu0 0.0
    %4829 = vmatprep.subr.mxu0 0.0
    %4830 = vmatpush1.msra.mxu0 0.0
    %4831 = vmatprep.subr.mxu0 0.0
    %4832 = vmatpush1.msra.mxu0 0.0
    %4833 = vmatprep.subr.mxu0 0.0
    %4834 = vmatpush1.msra.mxu0 0.0
    %4835 = vmatprep.subr.mxu0 0.0
    %4836 = vmatpush1.msra.mxu0 0.0
    %4837 = vmatprep.subr.mxu0 0.0
    %4838 = vmatpush1.msra.mxu0 0.0
    %4839 = vmatprep.subr.mxu0 0.0
    %4840 = vmatpush1.msra.mxu0 0.0
    %4841 = vmatprep.subr.mxu0 0.0
    %4842 = vmatpush1.msra.mxu0 %v4821
    %4843 = vmatprep.subr.mxu0 0.0
    %4844 = vmatpush1.msra.mxu0 %v4820
    %4845 = vmatprep.subr.mxu0 0.0
    %4846 = vmatpush1.msra.mxu0 %v4819
    %4847 = vmatprep.subr.mxu0 0.0
    %4848 = vmatpush1.msra.mxu0 %v4818
    %4849 = vmatprep.subr.mxu0 0.0
    %4850 = vmatpush1.msra.mxu0 %v4817
    %4851 = vmatprep.subr.mxu0 0.0
    %4852 = vmatpush1.msra.mxu0 %v4816
    %4853 = vmatprep.subr.mxu0 0.0
    %4854 = vmatpush1.msra.mxu0 %v4815
    %4855 = vmatprep.subr.mxu0 0.0
    %4856 = vmatpush1.msra.mxu0 %v4814
    %4857 = vmatprep.subr.mxu0 0.0
    %4858 = vmatpush2.msra.mxu0 0.0
    %4859 = vmatprep.subr.mxu0 0.0
    %4860 = vmatpush2.msra.mxu0 0.0
    %4861 = vmatprep.subr.mxu0 0.0
    %4862 = vmatpush2.msra.mxu0 0.0
    %4863 = vmatprep.subr.mxu0 0.0
    %4864 = vmatpush2.msra.mxu0 0.0
    %4865 = vmatprep.subr.mxu0 0.0
    %4866 = vmatpush2.msra.mxu0 0.0
    %4867 = vmatprep.subr.mxu0 0.0
    %4868 = vmatpush2.msra.mxu0 0.0
    %4869 = vmatprep.subr.mxu0 0.0
    %4870 = vmatpush2.msra.mxu0 0.0
    %4871 = vmatprep.subr.mxu0 0.0
    %4872 = vmatpush2.msra.mxu0 0.0
    %4873 = vmatprep.subr.mxu0 0.0
    %4874 = vmatpush2.msra.mxu0 0.0
    %4875 = vmatprep.subr.mxu0 0.0
    %4876 = vmatpush2.msra.mxu0 0.0
    %4877 = vmatprep.subr.mxu0 0.0
    %4878 = vmatpush2.msra.mxu0 0.0
    %4879 = vmatprep.subr.mxu0 0.0
    %4880 = vmatpush2.msra.mxu0 0.0
    %4881 = vmatprep.subr.mxu0 0.0
    %4882 = vmatpush2.msra.mxu0 0.0
    %4883 = vmatprep.subr.mxu0 0.0
    %4884 = vmatpush2.msra.mxu0 0.0
    %4885 = vmatprep.subr.mxu0 0.0
    %4886 = vmatpush2.msra.mxu0 0.0
    %4887 = vmatprep.subr.mxu0 0.0
    %4888 = vmatpush2.msra.mxu0 0.0
    %4889 = vmatprep.mubr.f32.mxu0 0.0
    %4890 = vmatmul.mubr.f32.gmra.mxu0 %v4823
    %v4891 = vpop.f32.mrf.mxu0
    %v4892 = vadd.f32 0.0, %v4891
    %v4893 = vpop.f32.mrf.mxu0
    %4894 = vdwg.mxu0
    %v4895 = vlaneseq
    %v4896 = vshrl.u32 %v4895, 7
    %v4897 = vsub.s32 0, %v4896
    %v4898 = vrot.slane %v4892, %v4897
    %v4899 = vsub.f32 %v4804, %v4898
    %v4900 = vmul.f32 %v4899, %v4899
    %v4901 = vsel %vm4805, %v4900, 0.0
    %v4902 = vrot.slane %v4901, 4
    %v4903 = vadd.f32 %v4901, %v4902
    %v4904 = vrot.slane %v4903, 2
    %v4905 = vadd.f32 %v4903, %v4904
    %v4906 = vrot.slane %v4905, 1
    %v4907 = vadd.f32 %v4905, %v4906
    %v4908 = vmul.f32 %v4907, 0.5
    %v4909 = vld [vmem:[#allocation8] sm:$0x1]
    %v4911 = vlaneseq
    %v4912 = vshrl.u32 %v4911, 7
    %v4913 = vsub.s32 0, %v4912
    %v4914 = vrot.slane %v4909, %v4913
    %v4916 = vmul.f32 %v4914, %v4899
    %v4918 = vsel %vm1386, %v4908, 0
    %4920 = vmatprep.subr.mxu0 0.0
    %4921 = vmatpush1.msra.mxu0 0.0
    %4922 = vmatprep.subr.mxu0 0.0
    %4923 = vmatpush1.msra.mxu0 0.0
    %4924 = vmatprep.subr.mxu0 0.0
    %4925 = vmatpush1.msra.mxu0 0.0
    %4926 = vmatprep.subr.mxu0 0.0
    %4927 = vmatpush1.msra.mxu0 0.0
    %4928 = vmatprep.subr.mxu0 0.0
    %4929 = vmatpush1.msra.mxu0 0.0
    %4930 = vmatprep.subr.mxu0 0.0
    %4931 = vmatpush1.msra.mxu0 0.0
    %4932 = vmatprep.subr.mxu0 0.0
    %4933 = vmatpush1.msra.mxu0 0.0
    %4934 = vmatprep.subr.mxu0 0.0
    %4935 = vmatpush1.msra.mxu0 0.0
    %4936 = vmatprep.subr.mxu0 0.0
    %4937 = vmatpush1.msra.mxu0 %v4821
    %4938 = vmatprep.subr.mxu0 0.0
    %4939 = vmatpush1.msra.mxu0 %v4820
    %4940 = vmatprep.subr.mxu0 0.0
    %4941 = vmatpush1.msra.mxu0 %v4819
    %4942 = vmatprep.subr.mxu0 0.0
    %4943 = vmatpush1.msra.mxu0 %v4818
    %4944 = vmatprep.subr.mxu0 0.0
    %4945 = vmatpush1.msra.mxu0 %v4817
    %4946 = vmatprep.subr.mxu0 0.0
    %4947 = vmatpush1.msra.mxu0 %v4816
    %4948 = vmatprep.subr.mxu0 0.0
    %4949 = vmatpush1.msra.mxu0 %v4815
    %4950 = vmatprep.subr.mxu0 0.0
    %4951 = vmatpush1.msra.mxu0 %v4814
    %4952 = vmatprep.subr.mxu0 0.0
    %4953 = vmatpush2.msra.mxu0 0.0
    %4954 = vmatprep.subr.mxu0 0.0
    %4955 = vmatpush2.msra.mxu0 0.0
    %4956 = vmatprep.subr.mxu0 0.0
    %4957 = vmatpush2.msra.mxu0 0.0
    %4958 = vmatprep.subr.mxu0 0.0
    %4959 = vmatpush2.msra.mxu0 0.0
    %4960 = vmatprep.subr.mxu0 0.0
    %4961 = vmatpush2.msra.mxu0 0.0
    %4962 = vmatprep.subr.mxu0 0.0
    %4963 = vmatpush2.msra.mxu0 0.0
    %4964 = vmatprep.subr.mxu0 0.0
    %4965 = vmatpush2.msra.mxu0 0.0
    %4966 = vmatprep.subr.mxu0 0.0
    %4967 = vmatpush2.msra.mxu0 0.0
    %4968 = vmatprep.subr.mxu0 0.0
    %4969 = vmatpush2.msra.mxu0 0.0
    %4970 = vmatprep.subr.mxu0 0.0
    %4971 = vmatpush2.msra.mxu0 0.0
    %4972 = vmatprep.subr.mxu0 0.0
    %4973 = vmatpush2.msra.mxu0 0.0
    %4974 = vmatprep.subr.mxu0 0.0
    %4975 = vmatpush2.msra.mxu0 0.0
    %4976 = vmatprep.subr.mxu0 0.0
    %4977 = vmatpush2.msra.mxu0 0.0
    %4978 = vmatprep.subr.mxu0 0.0
    %4979 = vmatpush2.msra.mxu0 0.0
    %4980 = vmatprep.subr.mxu0 0.0
    %4981 = vmatpush2.msra.mxu0 0.0
    %4982 = vmatprep.subr.mxu0 0.0
    %4983 = vmatpush2.msra.mxu0 0.0
    %4984 = vmatprep.mubr.f32.mxu0 0.0
    %4985 = vmatmul.mubr.f32.gmra.mxu0 %v4918
    %v4986 = vpop.f32.mrf.mxu0
    %v4987 = vadd.f32 1e-05, %v4986
    %v4988 = vpop.f32.mrf.mxu0
    %4989 = vdwg.mxu0
    %v4990 = vrsqrt.pop %v4987
    %v4991 = vlaneseq
    %v4992 = vshrl.u32 %v4991, 7
    %v4993 = vsub.s32 0, %v4992
    %v4994 = vrot.slane %v4990, %v4993
    %v4995 = vmul.f32 %v4916, %v4994
    %v4996 = vld [vmem:[#allocation10] sm:$0x1]
    %v4998 = vlaneseq
    %v4999 = vshrl.u32 %v4998, 7
    %v5000 = vsub.s32 0, %v4999
    %v5001 = vrot.slane %v4996, %v5000
    %v5003 = vadd.f32 %v4995, %v5001
    %vm5004 = vcmp.gt.f32.partialorder %v5003, 0.0
    %v5005 = vmul.f32 %v5003, 0.01
    %v5006 = vsel %vm5004, %v5003, %v5005
    %v5007 = vpack.c.bf16 %v5006, %v5006
    %v5008 = vld [vmem:[%s87] sm:$0xff]
    %v5009 = vld [vmem:[%s87 + $0x8] sm:$0xff]
    %v5010 = vld [vmem:[%s87 + $0x10] sm:$0xff]
    %v5011 = vld [vmem:[%s87 + $0x18] sm:$0xff]
    %v5012 = vld [vmem:[%s87 + $0x20] sm:$0xff]
    %v5013 = vld [vmem:[%s87 + $0x28] sm:$0xff]
    %v5014 = vld [vmem:[%s87 + $0x30] sm:$0xff]
    %v5015 = vld [vmem:[%s87 + $0x38] sm:$0xff]
    %v5016 = vld [vmem:[%s87 + $0x40] sm:$0xff]
    %v5017 = vld [vmem:[%s87 + $0x48] sm:$0xff]
    %v5018 = vld [vmem:[%s87 + $0x50] sm:$0xff]
    %v5019 = vld [vmem:[%s87 + $0x58] sm:$0xff]
    %v5020 = vld [vmem:[%s87 + $0x60] sm:$0xff]
    %v5021 = vld [vmem:[%s87 + $0x68] sm:$0xff]
    %v5022 = vld [vmem:[%s87 + $0x70] sm:$0xff]
    %v5023 = vld [vmem:[%s87 + $0x78] sm:$0xff]
    %v5024 = vld [vmem:[%s87 + $0x80] sm:$0xff]
    %v5025 = vld [vmem:[%s87 + $0x88] sm:$0xff]
    %v5026 = vld [vmem:[%s87 + $0x90] sm:$0xff]
    %v5027 = vld [vmem:[%s87 + $0x98] sm:$0xff]
    %v5028 = vld [vmem:[%s87 + $0xa0] sm:$0xff]
    %v5029 = vld [vmem:[%s87 + $0xa8] sm:$0xff]
    %v5030 = vld [vmem:[%s87 + $0xb0] sm:$0xff]
    %v5031 = vld [vmem:[%s87 + $0xb8] sm:$0xff]
    %v5032 = vld [vmem:[%s87 + $0xc0] sm:$0xff]
    %v5033 = vld [vmem:[%s87 + $0xc8] sm:$0xff]
    %v5034 = vld [vmem:[%s87 + $0xd0] sm:$0xff]
    %v5035 = vld [vmem:[%s87 + $0xd8] sm:$0xff]
    %v5036 = vld [vmem:[%s87 + $0xe0] sm:$0xff]
    %v5037 = vld [vmem:[%s87 + $0xe8] sm:$0xff]
    %v5038 = vld [vmem:[%s87 + $0xf0] sm:$0xff]
    %v5039 = vld [vmem:[%s87 + $0xf8] sm:$0xff]
    %v5040 = vld [vmem:[%s89] sm:$0xff]
    %v5042 = vlaneseq
    %v5043 = vshrl.u32 %v5042, 7
    %v5044 = vsub.s32 0, %v5043
    %v5045 = vrot.slane %v5040, %v5044
    %v5046 = vlaneseq
    %v5047 = vshrl.u32 %v5046, 7
    %v5048 = vsub.s32 1, %v5047
    %v5049 = vrot.slane %v5040, %v5048
    %v5050 = vlaneseq
    %v5051 = vshrl.u32 %v5050, 7
    %v5052 = vsub.s32 2, %v5051
    %v5053 = vrot.slane %v5040, %v5052
    %v5054 = vlaneseq
    %v5055 = vshrl.u32 %v5054, 7
    %v5056 = vsub.s32 3, %v5055
    %v5057 = vrot.slane %v5040, %v5056
    %v5058 = vlaneseq
    %v5059 = vshrl.u32 %v5058, 7
    %v5060 = vsub.s32 4, %v5059
    %v5061 = vrot.slane %v5040, %v5060
    %v5062 = vlaneseq
    %v5063 = vshrl.u32 %v5062, 7
    %v5064 = vsub.s32 5, %v5063
    %v5065 = vrot.slane %v5040, %v5064
    %v5066 = vlaneseq
    %v5067 = vshrl.u32 %v5066, 7
    %v5068 = vsub.s32 6, %v5067
    %v5069 = vrot.slane %v5040, %v5068
    %v5070 = vlaneseq
    %v5071 = vshrl.u32 %v5070, 7
    %v5072 = vsub.s32 7, %v5071
    %v5073 = vrot.slane %v5040, %v5072
    %v5114 = vunpack.c.l.b16 %v5008
    %v5115 = vunpack.c.h.b16 %v5008
    %v5116 = vunpack.c.l.b16 %v5009
    %v5117 = vunpack.c.h.b16 %v5009
    %v5118 = vunpack.c.l.b16 %v5010
    %v5119 = vunpack.c.h.b16 %v5010
    %v5120 = vunpack.c.l.b16 %v5011
    %v5121 = vunpack.c.h.b16 %v5011
    %v5122 = vunpack.c.l.b16 %v5012
    %v5123 = vunpack.c.h.b16 %v5012
    %v5124 = vunpack.c.l.b16 %v5013
    %v5125 = vunpack.c.h.b16 %v5013
    %v5126 = vunpack.c.l.b16 %v5014
    %v5127 = vunpack.c.h.b16 %v5014
    %v5128 = vunpack.c.l.b16 %v5015
    %v5129 = vunpack.c.h.b16 %v5015
    %v5130 = vunpack.c.l.b16 %v5016
    %v5131 = vunpack.c.h.b16 %v5016
    %v5132 = vunpack.c.l.b16 %v5017
    %v5133 = vunpack.c.h.b16 %v5017
    %v5134 = vunpack.c.l.b16 %v5018
    %v5135 = vunpack.c.h.b16 %v5018
    %v5136 = vunpack.c.l.b16 %v5019
    %v5137 = vunpack.c.h.b16 %v5019
    %v5138 = vunpack.c.l.b16 %v5020
    %v5139 = vunpack.c.h.b16 %v5020
    %v5140 = vunpack.c.l.b16 %v5021
    %v5141 = vunpack.c.h.b16 %v5021
    %v5142 = vunpack.c.l.b16 %v5022
    %v5143 = vunpack.c.h.b16 %v5022
    %v5144 = vunpack.c.l.b16 %v5023
    %v5145 = vunpack.c.h.b16 %v5023
    %v5146 = vunpack.c.l.b16 %v5024
    %v5147 = vunpack.c.h.b16 %v5024
    %v5148 = vunpack.c.l.b16 %v5025
    %v5149 = vunpack.c.h.b16 %v5025
    %v5150 = vunpack.c.l.b16 %v5026
    %v5151 = vunpack.c.h.b16 %v5026
    %v5152 = vunpack.c.l.b16 %v5027
    %v5153 = vunpack.c.h.b16 %v5027
    %v5154 = vunpack.c.l.b16 %v5028
    %v5155 = vunpack.c.h.b16 %v5028
    %v5156 = vunpack.c.l.b16 %v5029
    %v5157 = vunpack.c.h.b16 %v5029
    %v5158 = vunpack.c.l.b16 %v5030
    %v5159 = vunpack.c.h.b16 %v5030
    %v5160 = vunpack.c.l.b16 %v5031
    %v5161 = vunpack.c.h.b16 %v5031
    %v5162 = vunpack.c.l.b16 %v5032
    %v5163 = vunpack.c.h.b16 %v5032
    %v5164 = vunpack.c.l.b16 %v5033
    %v5165 = vunpack.c.h.b16 %v5033
    %v5166 = vunpack.c.l.b16 %v5034
    %v5167 = vunpack.c.h.b16 %v5034
    %v5168 = vunpack.c.l.b16 %v5035
    %v5169 = vunpack.c.h.b16 %v5035
    %v5170 = vunpack.c.l.b16 %v5036
    %v5171 = vunpack.c.h.b16 %v5036
    %v5172 = vunpack.c.l.b16 %v5037
    %v5173 = vunpack.c.h.b16 %v5037
    %v5174 = vunpack.c.l.b16 %v5038
    %v5175 = vunpack.c.h.b16 %v5038
    %v5176 = vunpack.c.l.b16 %v5039
    %v5177 = vunpack.c.h.b16 %v5039
    %v5178 = vpack.c.b16 %v5122, %v5114
    %v5179 = vpack.c.b16 %v5123, %v5115
    %v5180 = vpack.c.b16 %v5124, %v5116
    %v5181 = vpack.c.b16 %v5125, %v5117
    %v5182 = vpack.c.b16 %v5126, %v5118
    %v5183 = vpack.c.b16 %v5127, %v5119
    %v5184 = vpack.c.b16 %v5128, %v5120
    %v5185 = vpack.c.b16 %v5129, %v5121
    %v5186 = vpack.c.b16 %v5138, %v5130
    %v5187 = vpack.c.b16 %v5139, %v5131
    %v5188 = vpack.c.b16 %v5140, %v5132
    %v5189 = vpack.c.b16 %v5141, %v5133
    %v5190 = vpack.c.b16 %v5142, %v5134
    %v5191 = vpack.c.b16 %v5143, %v5135
    %v5192 = vpack.c.b16 %v5144, %v5136
    %v5193 = vpack.c.b16 %v5145, %v5137
    %v5194 = vpack.c.b16 %v5154, %v5146
    %v5195 = vpack.c.b16 %v5155, %v5147
    %v5196 = vpack.c.b16 %v5156, %v5148
    %v5197 = vpack.c.b16 %v5157, %v5149
    %v5198 = vpack.c.b16 %v5158, %v5150
    %v5199 = vpack.c.b16 %v5159, %v5151
    %v5200 = vpack.c.b16 %v5160, %v5152
    %v5201 = vpack.c.b16 %v5161, %v5153
    %v5202 = vpack.c.b16 %v5170, %v5162
    %v5203 = vpack.c.b16 %v5171, %v5163
    %v5204 = vpack.c.b16 %v5172, %v5164
    %v5205 = vpack.c.b16 %v5173, %v5165
    %v5206 = vpack.c.b16 %v5174, %v5166
    %v5207 = vpack.c.b16 %v5175, %v5167
    %v5208 = vpack.c.b16 %v5176, %v5168
    %v5209 = vpack.c.b16 %v5177, %v5169
    %v5243 = vsel %vm1386, %v5007, 0
    %5245 = vmatprep.subr.bf16.mxu0 0
    %5246 = vmatpush1.bf16.msra.mxu0 0
    %5247 = vmatprep.subr.bf16.mxu0 0
    %5248 = vmatpush1.bf16.msra.mxu0 0
    %5249 = vmatprep.subr.bf16.mxu0 0
    %5250 = vmatpush1.bf16.msra.mxu0 0
    %5251 = vmatprep.subr.bf16.mxu0 0
    %5252 = vmatpush1.bf16.msra.mxu0 0
    %5253 = vmatprep.subr.bf16.mxu0 %v5203
    %5254 = vmatpush1.bf16.msra.mxu0 %v5202
    %5255 = vmatprep.subr.bf16.mxu0 %v5195
    %5256 = vmatpush1.bf16.msra.mxu0 %v5194
    %5257 = vmatprep.subr.bf16.mxu0 %v5187
    %5258 = vmatpush1.bf16.msra.mxu0 %v5186
    %5259 = vmatprep.subr.bf16.mxu0 %v5179
    %5260 = vmatpush1.bf16.msra.mxu0 %v5178
    %5261 = vmatprep.subr.bf16.mxu0 0
    %5262 = vmatpush2.bf16.msra.mxu0 0
    %5263 = vmatprep.subr.bf16.mxu0 0
    %5264 = vmatpush2.bf16.msra.mxu0 0
    %5265 = vmatprep.subr.bf16.mxu0 0
    %5266 = vmatpush2.bf16.msra.mxu0 0
    %5267 = vmatprep.subr.bf16.mxu0 0
    %5268 = vmatpush2.bf16.msra.mxu0 0
    %5269 = vmatprep.subr.bf16.mxu0 0
    %5270 = vmatpush2.bf16.msra.mxu0 0
    %5271 = vmatprep.subr.bf16.mxu0 0
    %5272 = vmatpush2.bf16.msra.mxu0 0
    %5273 = vmatprep.subr.bf16.mxu0 0
    %5274 = vmatpush2.bf16.msra.mxu0 0
    %5275 = vmatprep.subr.bf16.mxu0 0
    %5276 = vmatpush2.bf16.msra.mxu0 0
    %5277 = vmatprep.mubr.bf16.mxu0 0
    %5278 = vmatmul.mubr.bf16.gmra.mxu0 %v5243
    %v5279 = vpop.f32.mrf.mxu0
    %v5280 = vadd.f32 %v5045, %v5279
    %v5281 = vpop.f32.mrf.mxu0
    %v5282 = vadd.f32 %v5049, %v5281
    %v5283 = vpop.f32.mrf.mxu0
    %v5284 = vpop.f32.mrf.mxu0
    %5285 = vdwg.mxu0
    %5286 = vmatprep.subr.bf16.mxu0 0
    %5287 = vmatpush1.bf16.msra.mxu0 0
    %5288 = vmatprep.subr.bf16.mxu0 0
    %5289 = vmatpush1.bf16.msra.mxu0 0
    %5290 = vmatprep.subr.bf16.mxu0 0
    %5291 = vmatpush1.bf16.msra.mxu0 0
    %5292 = vmatprep.subr.bf16.mxu0 0
    %5293 = vmatpush1.bf16.msra.mxu0 0
    %5294 = vmatprep.subr.bf16.mxu0 %v5205
    %5295 = vmatpush1.bf16.msra.mxu0 %v5204
    %5296 = vmatprep.subr.bf16.mxu0 %v5197
    %5297 = vmatpush1.bf16.msra.mxu0 %v5196
    %5298 = vmatprep.subr.bf16.mxu0 %v5189
    %5299 = vmatpush1.bf16.msra.mxu0 %v5188
    %5300 = vmatprep.subr.bf16.mxu0 %v5181
    %5301 = vmatpush1.bf16.msra.mxu0 %v5180
    %5302 = vmatprep.subr.bf16.mxu0 0
    %5303 = vmatpush2.bf16.msra.mxu0 0
    %5304 = vmatprep.subr.bf16.mxu0 0
    %5305 = vmatpush2.bf16.msra.mxu0 0
    %5306 = vmatprep.subr.bf16.mxu0 0
    %5307 = vmatpush2.bf16.msra.mxu0 0
    %5308 = vmatprep.subr.bf16.mxu0 0
    %5309 = vmatpush2.bf16.msra.mxu0 0
    %5310 = vmatprep.subr.bf16.mxu0 0
    %5311 = vmatpush2.bf16.msra.mxu0 0
    %5312 = vmatprep.subr.bf16.mxu0 0
    %5313 = vmatpush2.bf16.msra.mxu0 0
    %5314 = vmatprep.subr.bf16.mxu0 0
    %5315 = vmatpush2.bf16.msra.mxu0 0
    %5316 = vmatprep.subr.bf16.mxu0 0
    %5317 = vmatpush2.bf16.msra.mxu0 0
    %5318 = vmatprep.mubr.bf16.mxu0 0
    %5319 = vmatmul.mubr.bf16.gmra.mxu0 %v5243
    %v5320 = vpop.f32.mrf.mxu0
    %v5321 = vadd.f32 %v5053, %v5320
    %v5322 = vpop.f32.mrf.mxu0
    %v5323 = vadd.f32 %v5057, %v5322
    %v5324 = vpop.f32.mrf.mxu0
    %v5325 = vpop.f32.mrf.mxu0
    %5326 = vdwg.mxu0
    %5327 = vmatprep.subr.bf16.mxu0 0
    %5328 = vmatpush1.bf16.msra.mxu0 0
    %5329 = vmatprep.subr.bf16.mxu0 0
    %5330 = vmatpush1.bf16.msra.mxu0 0
    %5331 = vmatprep.subr.bf16.mxu0 0
    %5332 = vmatpush1.bf16.msra.mxu0 0
    %5333 = vmatprep.subr.bf16.mxu0 0
    %5334 = vmatpush1.bf16.msra.mxu0 0
    %5335 = vmatprep.subr.bf16.mxu0 %v5207
    %5336 = vmatpush1.bf16.msra.mxu0 %v5206
    %5337 = vmatprep.subr.bf16.mxu0 %v5199
    %5338 = vmatpush1.bf16.msra.mxu0 %v5198
    %5339 = vmatprep.subr.bf16.mxu0 %v5191
    %5340 = vmatpush1.bf16.msra.mxu0 %v5190
    %5341 = vmatprep.subr.bf16.mxu0 %v5183
    %5342 = vmatpush1.bf16.msra.mxu0 %v5182
    %5343 = vmatprep.subr.bf16.mxu0 0
    %5344 = vmatpush2.bf16.msra.mxu0 0
    %5345 = vmatprep.subr.bf16.mxu0 0
    %5346 = vmatpush2.bf16.msra.mxu0 0
    %5347 = vmatprep.subr.bf16.mxu0 0
    %5348 = vmatpush2.bf16.msra.mxu0 0
    %5349 = vmatprep.subr.bf16.mxu0 0
    %5350 = vmatpush2.bf16.msra.mxu0 0
    %5351 = vmatprep.subr.bf16.mxu0 0
    %5352 = vmatpush2.bf16.msra.mxu0 0
    %5353 = vmatprep.subr.bf16.mxu0 0
    %5354 = vmatpush2.bf16.msra.mxu0 0
    %5355 = vmatprep.subr.bf16.mxu0 0
    %5356 = vmatpush2.bf16.msra.mxu0 0
    %5357 = vmatprep.subr.bf16.mxu0 0
    %5358 = vmatpush2.bf16.msra.mxu0 0
    %5359 = vmatprep.mubr.bf16.mxu0 0
    %5360 = vmatmul.mubr.bf16.gmra.mxu0 %v5243
    %v5361 = vpop.f32.mrf.mxu0
    %v5362 = vadd.f32 %v5061, %v5361
    %v5363 = vpop.f32.mrf.mxu0
    %v5364 = vadd.f32 %v5065, %v5363
    %v5365 = vpop.f32.mrf.mxu0
    %v5366 = vpop.f32.mrf.mxu0
    %5367 = vdwg.mxu0
    %5368 = vmatprep.subr.bf16.mxu0 0
    %5369 = vmatpush1.bf16.msra.mxu0 0
    %5370 = vmatprep.subr.bf16.mxu0 0
    %5371 = vmatpush1.bf16.msra.mxu0 0
    %5372 = vmatprep.subr.bf16.mxu0 0
    %5373 = vmatpush1.bf16.msra.mxu0 0
    %5374 = vmatprep.subr.bf16.mxu0 0
    %5375 = vmatpush1.bf16.msra.mxu0 0
    %5376 = vmatprep.subr.bf16.mxu0 %v5209
    %5377 = vmatpush1.bf16.msra.mxu0 %v5208
    %5378 = vmatprep.subr.bf16.mxu0 %v5201
    %5379 = vmatpush1.bf16.msra.mxu0 %v5200
    %5380 = vmatprep.subr.bf16.mxu0 %v5193
    %5381 = vmatpush1.bf16.msra.mxu0 %v5192
    %5382 = vmatprep.subr.bf16.mxu0 %v5185
    %5383 = vmatpush1.bf16.msra.mxu0 %v5184
    %5384 = vmatprep.subr.bf16.mxu0 0
    %5385 = vmatpush2.bf16.msra.mxu0 0
    %5386 = vmatprep.subr.bf16.mxu0 0
    %5387 = vmatpush2.bf16.msra.mxu0 0
    %5388 = vmatprep.subr.bf16.mxu0 0
    %5389 = vmatpush2.bf16.msra.mxu0 0
    %5390 = vmatprep.subr.bf16.mxu0 0
    %5391 = vmatpush2.bf16.msra.mxu0 0
    %5392 = vmatprep.subr.bf16.mxu0 0
    %5393 = vmatpush2.bf16.msra.mxu0 0
    %5394 = vmatprep.subr.bf16.mxu0 0
    %5395 = vmatpush2.bf16.msra.mxu0 0
    %5396 = vmatprep.subr.bf16.mxu0 0
    %5397 = vmatpush2.bf16.msra.mxu0 0
    %5398 = vmatprep.subr.bf16.mxu0 0
    %5399 = vmatpush2.bf16.msra.mxu0 0
    %5400 = vmatprep.mubr.bf16.mxu0 0
    %5401 = vmatmul.mubr.bf16.gmra.mxu0 %v5243
    %v5402 = vpop.f32.mrf.mxu0
    %v5403 = vadd.f32 %v5069, %v5402
    %v5404 = vpop.f32.mrf.mxu0
    %v5405 = vadd.f32 %v5073, %v5404
    %v5406 = vpop.f32.mrf.mxu0
    %v5407 = vpop.f32.mrf.mxu0
    %5408 = vdwg.mxu0
    %vm5409 = vcmp.gt.f32.partialorder %v5280, 0.0
    %vm5410 = vcmp.gt.f32.partialorder %v5282, 0.0
    %vm5411 = vcmp.gt.f32.partialorder %v5321, 0.0
    %vm5412 = vcmp.gt.f32.partialorder %v5323, 0.0
    %vm5413 = vcmp.gt.f32.partialorder %v5362, 0.0
    %vm5414 = vcmp.gt.f32.partialorder %v5364, 0.0
    %vm5415 = vcmp.gt.f32.partialorder %v5403, 0.0
    %vm5416 = vcmp.gt.f32.partialorder %v5405, 0.0
    %v5417 = vmul.f32 %v5280, 0.01
    %v5418 = vmul.f32 %v5282, 0.01
    %v5419 = vmul.f32 %v5321, 0.01
    %v5420 = vmul.f32 %v5323, 0.01
    %v5421 = vmul.f32 %v5362, 0.01
    %v5422 = vmul.f32 %v5364, 0.01
    %v5423 = vmul.f32 %v5403, 0.01
    %v5424 = vmul.f32 %v5405, 0.01
    %v5425 = vsel %vm5409, %v5280, %v5417
    %v5426 = vsel %vm5410, %v5282, %v5418
    %v5427 = vsel %vm5411, %v5321, %v5419
    %v5428 = vsel %vm5412, %v5323, %v5420
    %v5429 = vsel %vm5413, %v5362, %v5421
    %v5430 = vsel %vm5414, %v5364, %v5422
    %v5431 = vsel %vm5415, %v5403, %v5423
    %v5432 = vsel %vm5416, %v5405, %v5424
    %v5433 = vpack.c.bf16 %v5425, %v5425
    %v5434 = vpack.c.bf16 %v5426, %v5426
    %v5435 = vpack.c.bf16 %v5427, %v5427
    %v5436 = vpack.c.bf16 %v5428, %v5428
    %v5437 = vpack.c.bf16 %v5429, %v5429
    %v5438 = vpack.c.bf16 %v5430, %v5430
    %v5439 = vpack.c.bf16 %v5431, %v5431
    %v5440 = vpack.c.bf16 %v5432, %v5432
    %v5441 = vld [vmem:[%s91] sm:$0xf]
    %v5442 = vld [vmem:[%s91 + $0x4] sm:$0xf]
    %v5443 = vld [vmem:[%s91 + $0x8] sm:$0xf]
    %v5444 = vld [vmem:[%s91 + $0xc] sm:$0xf]
    %v5445 = vld [vmem:[%s91 + $0x10] sm:$0xf]
    %v5446 = vld [vmem:[%s91 + $0x14] sm:$0xf]
    %v5447 = vld [vmem:[%s91 + $0x18] sm:$0xf]
    %v5448 = vld [vmem:[%s91 + $0x1c] sm:$0xf]
    %v5449 = vld [vmem:[%s91 + $0x20] sm:$0xf]
    %v5450 = vld [vmem:[%s91 + $0x24] sm:$0xf]
    %v5451 = vld [vmem:[%s91 + $0x28] sm:$0xf]
    %v5452 = vld [vmem:[%s91 + $0x2c] sm:$0xf]
    %v5453 = vld [vmem:[%s91 + $0x30] sm:$0xf]
    %v5454 = vld [vmem:[%s91 + $0x34] sm:$0xf]
    %v5455 = vld [vmem:[%s91 + $0x38] sm:$0xf]
    %v5456 = vld [vmem:[%s91 + $0x3c] sm:$0xf]
    %v5457 = vld [vmem:[%s91 + $0x40] sm:$0xf]
    %v5458 = vld [vmem:[%s91 + $0x44] sm:$0xf]
    %v5459 = vld [vmem:[%s91 + $0x48] sm:$0xf]
    %v5460 = vld [vmem:[%s91 + $0x4c] sm:$0xf]
    %v5461 = vld [vmem:[%s91 + $0x50] sm:$0xf]
    %v5462 = vld [vmem:[%s91 + $0x54] sm:$0xf]
    %v5463 = vld [vmem:[%s91 + $0x58] sm:$0xf]
    %v5464 = vld [vmem:[%s91 + $0x5c] sm:$0xf]
    %v5465 = vld [vmem:[%s91 + $0x60] sm:$0xf]
    %v5466 = vld [vmem:[%s91 + $0x64] sm:$0xf]
    %v5467 = vld [vmem:[%s91 + $0x68] sm:$0xf]
    %v5468 = vld [vmem:[%s91 + $0x6c] sm:$0xf]
    %v5469 = vld [vmem:[%s91 + $0x70] sm:$0xf]
    %v5470 = vld [vmem:[%s91 + $0x74] sm:$0xf]
    %v5471 = vld [vmem:[%s91 + $0x78] sm:$0xf]
    %v5472 = vld [vmem:[%s91 + $0x7c] sm:$0xf]
    %v5473 = vld [vmem:[%s91 + $0x80] sm:$0xf]
    %v5474 = vld [vmem:[%s91 + $0x84] sm:$0xf]
    %v5475 = vld [vmem:[%s91 + $0x88] sm:$0xf]
    %v5476 = vld [vmem:[%s91 + $0x8c] sm:$0xf]
    %v5477 = vld [vmem:[%s91 + $0x90] sm:$0xf]
    %v5478 = vld [vmem:[%s91 + $0x94] sm:$0xf]
    %v5479 = vld [vmem:[%s91 + $0x98] sm:$0xf]
    %v5480 = vld [vmem:[%s91 + $0x9c] sm:$0xf]
    %v5481 = vld [vmem:[%s91 + $0xa0] sm:$0xf]
    %v5482 = vld [vmem:[%s91 + $0xa4] sm:$0xf]
    %v5483 = vld [vmem:[%s91 + $0xa8] sm:$0xf]
    %v5484 = vld [vmem:[%s91 + $0xac] sm:$0xf]
    %v5485 = vld [vmem:[%s91 + $0xb0] sm:$0xf]
    %v5486 = vld [vmem:[%s91 + $0xb4] sm:$0xf]
    %v5487 = vld [vmem:[%s91 + $0xb8] sm:$0xf]
    %v5488 = vld [vmem:[%s91 + $0xbc] sm:$0xf]
    %v5489 = vld [vmem:[%s91 + $0xc0] sm:$0xf]
    %v5490 = vld [vmem:[%s91 + $0xc4] sm:$0xf]
    %v5491 = vld [vmem:[%s91 + $0xc8] sm:$0xf]
    %v5492 = vld [vmem:[%s91 + $0xcc] sm:$0xf]
    %v5493 = vld [vmem:[%s91 + $0xd0] sm:$0xf]
    %v5494 = vld [vmem:[%s91 + $0xd4] sm:$0xf]
    %v5495 = vld [vmem:[%s91 + $0xd8] sm:$0xf]
    %v5496 = vld [vmem:[%s91 + $0xdc] sm:$0xf]
    %v5497 = vld [vmem:[%s91 + $0xe0] sm:$0xf]
    %v5498 = vld [vmem:[%s91 + $0xe4] sm:$0xf]
    %v5499 = vld [vmem:[%s91 + $0xe8] sm:$0xf]
    %v5500 = vld [vmem:[%s91 + $0xec] sm:$0xf]
    %v5501 = vld [vmem:[%s91 + $0xf0] sm:$0xf]
    %v5502 = vld [vmem:[%s91 + $0xf4] sm:$0xf]
    %v5503 = vld [vmem:[%s91 + $0xf8] sm:$0xf]
    %v5504 = vld [vmem:[%s91 + $0xfc] sm:$0xf]
    %v5505 = vld [vmem:[%s91 + $0x100] sm:$0xf]
    %v5506 = vld [vmem:[%s91 + $0x104] sm:$0xf]
    %v5507 = vld [vmem:[%s91 + $0x108] sm:$0xf]
    %v5508 = vld [vmem:[%s91 + $0x10c] sm:$0xf]
    %v5509 = vld [vmem:[%s91 + $0x110] sm:$0xf]
    %v5510 = vld [vmem:[%s91 + $0x114] sm:$0xf]
    %v5511 = vld [vmem:[%s91 + $0x118] sm:$0xf]
    %v5512 = vld [vmem:[%s91 + $0x11c] sm:$0xf]
    %v5513 = vld [vmem:[%s91 + $0x120] sm:$0xf]
    %v5514 = vld [vmem:[%s91 + $0x124] sm:$0xf]
    %v5515 = vld [vmem:[%s91 + $0x128] sm:$0xf]
    %v5516 = vld [vmem:[%s91 + $0x12c] sm:$0xf]
    %v5517 = vld [vmem:[%s91 + $0x130] sm:$0xf]
    %v5518 = vld [vmem:[%s91 + $0x134] sm:$0xf]
    %v5519 = vld [vmem:[%s91 + $0x138] sm:$0xf]
    %v5520 = vld [vmem:[%s91 + $0x13c] sm:$0xf]
    %v5521 = vld [vmem:[%s91 + $0x140] sm:$0xf]
    %v5522 = vld [vmem:[%s91 + $0x144] sm:$0xf]
    %v5523 = vld [vmem:[%s91 + $0x148] sm:$0xf]
    %v5524 = vld [vmem:[%s91 + $0x14c] sm:$0xf]
    %v5525 = vld [vmem:[%s91 + $0x150] sm:$0xf]
    %v5526 = vld [vmem:[%s91 + $0x154] sm:$0xf]
    %v5527 = vld [vmem:[%s91 + $0x158] sm:$0xf]
    %v5528 = vld [vmem:[%s91 + $0x15c] sm:$0xf]
    %v5529 = vld [vmem:[%s91 + $0x160] sm:$0xf]
    %v5530 = vld [vmem:[%s91 + $0x164] sm:$0xf]
    %v5531 = vld [vmem:[%s91 + $0x168] sm:$0xf]
    %v5532 = vld [vmem:[%s91 + $0x16c] sm:$0xf]
    %v5533 = vld [vmem:[%s91 + $0x170] sm:$0xf]
    %v5534 = vld [vmem:[%s91 + $0x174] sm:$0xf]
    %v5535 = vld [vmem:[%s91 + $0x178] sm:$0xf]
    %v5536 = vld [vmem:[%s91 + $0x17c] sm:$0xf]
    %v5537 = vld [vmem:[%s91 + $0x180] sm:$0xf]
    %v5538 = vld [vmem:[%s91 + $0x184] sm:$0xf]
    %v5539 = vld [vmem:[%s91 + $0x188] sm:$0xf]
    %v5540 = vld [vmem:[%s91 + $0x18c] sm:$0xf]
    %v5541 = vld [vmem:[%s91 + $0x190] sm:$0xf]
    %v5542 = vld [vmem:[%s91 + $0x194] sm:$0xf]
    %v5543 = vld [vmem:[%s91 + $0x198] sm:$0xf]
    %v5544 = vld [vmem:[%s91 + $0x19c] sm:$0xf]
    %v5545 = vld [vmem:[%s91 + $0x1a0] sm:$0xf]
    %v5546 = vld [vmem:[%s91 + $0x1a4] sm:$0xf]
    %v5547 = vld [vmem:[%s91 + $0x1a8] sm:$0xf]
    %v5548 = vld [vmem:[%s91 + $0x1ac] sm:$0xf]
    %v5549 = vld [vmem:[%s91 + $0x1b0] sm:$0xf]
    %v5550 = vld [vmem:[%s91 + $0x1b4] sm:$0xf]
    %v5551 = vld [vmem:[%s91 + $0x1b8] sm:$0xf]
    %v5552 = vld [vmem:[%s91 + $0x1bc] sm:$0xf]
    %v5553 = vld [vmem:[%s91 + $0x1c0] sm:$0xf]
    %v5554 = vld [vmem:[%s91 + $0x1c4] sm:$0xf]
    %v5555 = vld [vmem:[%s91 + $0x1c8] sm:$0xf]
    %v5556 = vld [vmem:[%s91 + $0x1cc] sm:$0xf]
    %v5557 = vld [vmem:[%s91 + $0x1d0] sm:$0xf]
    %v5558 = vld [vmem:[%s91 + $0x1d4] sm:$0xf]
    %v5559 = vld [vmem:[%s91 + $0x1d8] sm:$0xf]
    %v5560 = vld [vmem:[%s91 + $0x1dc] sm:$0xf]
    %v5561 = vld [vmem:[%s91 + $0x1e0] sm:$0xf]
    %v5562 = vld [vmem:[%s91 + $0x1e4] sm:$0xf]
    %v5563 = vld [vmem:[%s91 + $0x1e8] sm:$0xf]
    %v5564 = vld [vmem:[%s91 + $0x1ec] sm:$0xf]
    %v5565 = vld [vmem:[%s91 + $0x1f0] sm:$0xf]
    %v5566 = vld [vmem:[%s91 + $0x1f4] sm:$0xf]
    %v5567 = vld [vmem:[%s91 + $0x1f8] sm:$0xf]
    %v5568 = vld [vmem:[%s91 + $0x1fc] sm:$0xf]
    %v5569 = vld [vmem:[#allocation2] sm:$0x1]
    %v5571 = vlaneseq
    %v5572 = vshrl.u32 %v5571, 7
    %v5573 = vsub.s32 0, %v5572
    %v5574 = vrot.slane %v5569, %v5573
    %v5704 = vunpack.c.l.b16 %v5441
    %v5705 = vunpack.c.l.b16 %v5442
    %v5706 = vunpack.c.l.b16 %v5443
    %v5707 = vunpack.c.l.b16 %v5444
    %v5708 = vunpack.c.l.b16 %v5445
    %v5709 = vunpack.c.l.b16 %v5446
    %v5710 = vunpack.c.l.b16 %v5447
    %v5711 = vunpack.c.l.b16 %v5448
    %v5712 = vunpack.c.l.b16 %v5449
    %v5713 = vunpack.c.l.b16 %v5450
    %v5714 = vunpack.c.l.b16 %v5451
    %v5715 = vunpack.c.l.b16 %v5452
    %v5716 = vunpack.c.l.b16 %v5453
    %v5717 = vunpack.c.l.b16 %v5454
    %v5718 = vunpack.c.l.b16 %v5455
    %v5719 = vunpack.c.l.b16 %v5456
    %v5720 = vunpack.c.l.b16 %v5457
    %v5721 = vunpack.c.l.b16 %v5458
    %v5722 = vunpack.c.l.b16 %v5459
    %v5723 = vunpack.c.l.b16 %v5460
    %v5724 = vunpack.c.l.b16 %v5461
    %v5725 = vunpack.c.l.b16 %v5462
    %v5726 = vunpack.c.l.b16 %v5463
    %v5727 = vunpack.c.l.b16 %v5464
    %v5728 = vunpack.c.l.b16 %v5465
    %v5729 = vunpack.c.l.b16 %v5466
    %v5730 = vunpack.c.l.b16 %v5467
    %v5731 = vunpack.c.l.b16 %v5468
    %v5732 = vunpack.c.l.b16 %v5469
    %v5733 = vunpack.c.l.b16 %v5470
    %v5734 = vunpack.c.l.b16 %v5471
    %v5735 = vunpack.c.l.b16 %v5472
    %v5736 = vunpack.c.l.b16 %v5473
    %v5737 = vunpack.c.l.b16 %v5474
    %v5738 = vunpack.c.l.b16 %v5475
    %v5739 = vunpack.c.l.b16 %v5476
    %v5740 = vunpack.c.l.b16 %v5477
    %v5741 = vunpack.c.l.b16 %v5478
    %v5742 = vunpack.c.l.b16 %v5479
    %v5743 = vunpack.c.l.b16 %v5480
    %v5744 = vunpack.c.l.b16 %v5481
    %v5745 = vunpack.c.l.b16 %v5482
    %v5746 = vunpack.c.l.b16 %v5483
    %v5747 = vunpack.c.l.b16 %v5484
    %v5748 = vunpack.c.l.b16 %v5485
    %v5749 = vunpack.c.l.b16 %v5486
    %v5750 = vunpack.c.l.b16 %v5487
    %v5751 = vunpack.c.l.b16 %v5488
    %v5752 = vunpack.c.l.b16 %v5489
    %v5753 = vunpack.c.l.b16 %v5490
    %v5754 = vunpack.c.l.b16 %v5491
    %v5755 = vunpack.c.l.b16 %v5492
    %v5756 = vunpack.c.l.b16 %v5493
    %v5757 = vunpack.c.l.b16 %v5494
    %v5758 = vunpack.c.l.b16 %v5495
    %v5759 = vunpack.c.l.b16 %v5496
    %v5760 = vunpack.c.l.b16 %v5497
    %v5761 = vunpack.c.l.b16 %v5498
    %v5762 = vunpack.c.l.b16 %v5499
    %v5763 = vunpack.c.l.b16 %v5500
    %v5764 = vunpack.c.l.b16 %v5501
    %v5765 = vunpack.c.l.b16 %v5502
    %v5766 = vunpack.c.l.b16 %v5503
    %v5767 = vunpack.c.l.b16 %v5504
    %v5768 = vunpack.c.l.b16 %v5505
    %v5769 = vunpack.c.l.b16 %v5506
    %v5770 = vunpack.c.l.b16 %v5507
    %v5771 = vunpack.c.l.b16 %v5508
    %v5772 = vunpack.c.l.b16 %v5509
    %v5773 = vunpack.c.l.b16 %v5510
    %v5774 = vunpack.c.l.b16 %v5511
    %v5775 = vunpack.c.l.b16 %v5512
    %v5776 = vunpack.c.l.b16 %v5513
    %v5777 = vunpack.c.l.b16 %v5514
    %v5778 = vunpack.c.l.b16 %v5515
    %v5779 = vunpack.c.l.b16 %v5516
    %v5780 = vunpack.c.l.b16 %v5517
    %v5781 = vunpack.c.l.b16 %v5518
    %v5782 = vunpack.c.l.b16 %v5519
    %v5783 = vunpack.c.l.b16 %v5520
    %v5784 = vunpack.c.l.b16 %v5521
    %v5785 = vunpack.c.l.b16 %v5522
    %v5786 = vunpack.c.l.b16 %v5523
    %v5787 = vunpack.c.l.b16 %v5524
    %v5788 = vunpack.c.l.b16 %v5525
    %v5789 = vunpack.c.l.b16 %v5526
    %v5790 = vunpack.c.l.b16 %v5527
    %v5791 = vunpack.c.l.b16 %v5528
    %v5792 = vunpack.c.l.b16 %v5529
    %v5793 = vunpack.c.l.b16 %v5530
    %v5794 = vunpack.c.l.b16 %v5531
    %v5795 = vunpack.c.l.b16 %v5532
    %v5796 = vunpack.c.l.b16 %v5533
    %v5797 = vunpack.c.l.b16 %v5534
    %v5798 = vunpack.c.l.b16 %v5535
    %v5799 = vunpack.c.l.b16 %v5536
    %v5800 = vunpack.c.l.b16 %v5537
    %v5801 = vunpack.c.l.b16 %v5538
    %v5802 = vunpack.c.l.b16 %v5539
    %v5803 = vunpack.c.l.b16 %v5540
    %v5804 = vunpack.c.l.b16 %v5541
    %v5805 = vunpack.c.l.b16 %v5542
    %v5806 = vunpack.c.l.b16 %v5543
    %v5807 = vunpack.c.l.b16 %v5544
    %v5808 = vunpack.c.l.b16 %v5545
    %v5809 = vunpack.c.l.b16 %v5546
    %v5810 = vunpack.c.l.b16 %v5547
    %v5811 = vunpack.c.l.b16 %v5548
    %v5812 = vunpack.c.l.b16 %v5549
    %v5813 = vunpack.c.l.b16 %v5550
    %v5814 = vunpack.c.l.b16 %v5551
    %v5815 = vunpack.c.l.b16 %v5552
    %v5816 = vunpack.c.l.b16 %v5553
    %v5817 = vunpack.c.l.b16 %v5554
    %v5818 = vunpack.c.l.b16 %v5555
    %v5819 = vunpack.c.l.b16 %v5556
    %v5820 = vunpack.c.l.b16 %v5557
    %v5821 = vunpack.c.l.b16 %v5558
    %v5822 = vunpack.c.l.b16 %v5559
    %v5823 = vunpack.c.l.b16 %v5560
    %v5824 = vunpack.c.l.b16 %v5561
    %v5825 = vunpack.c.l.b16 %v5562
    %v5826 = vunpack.c.l.b16 %v5563
    %v5827 = vunpack.c.l.b16 %v5564
    %v5828 = vunpack.c.l.b16 %v5565
    %v5829 = vunpack.c.l.b16 %v5566
    %v5830 = vunpack.c.l.b16 %v5567
    %v5831 = vunpack.c.l.b16 %v5568
    %v5832 = vpack.c.b16 %v5705, %v5704
    %v5833 = vpack.c.b16 %v5707, %v5706
    %v5834 = vpack.c.b16 %v5709, %v5708
    %v5835 = vpack.c.b16 %v5711, %v5710
    %v5836 = vpack.c.b16 %v5713, %v5712
    %v5837 = vpack.c.b16 %v5715, %v5714
    %v5838 = vpack.c.b16 %v5717, %v5716
    %v5839 = vpack.c.b16 %v5719, %v5718
    %v5840 = vpack.c.b16 %v5721, %v5720
    %v5841 = vpack.c.b16 %v5723, %v5722
    %v5842 = vpack.c.b16 %v5725, %v5724
    %v5843 = vpack.c.b16 %v5727, %v5726
    %v5844 = vpack.c.b16 %v5729, %v5728
    %v5845 = vpack.c.b16 %v5731, %v5730
    %v5846 = vpack.c.b16 %v5733, %v5732
    %v5847 = vpack.c.b16 %v5735, %v5734
    %v5848 = vpack.c.b16 %v5737, %v5736
    %v5849 = vpack.c.b16 %v5739, %v5738
    %v5850 = vpack.c.b16 %v5741, %v5740
    %v5851 = vpack.c.b16 %v5743, %v5742
    %v5852 = vpack.c.b16 %v5745, %v5744
    %v5853 = vpack.c.b16 %v5747, %v5746
    %v5854 = vpack.c.b16 %v5749, %v5748
    %v5855 = vpack.c.b16 %v5751, %v5750
    %v5856 = vpack.c.b16 %v5753, %v5752
    %v5857 = vpack.c.b16 %v5755, %v5754
    %v5858 = vpack.c.b16 %v5757, %v5756
    %v5859 = vpack.c.b16 %v5759, %v5758
    %v5860 = vpack.c.b16 %v5761, %v5760
    %v5861 = vpack.c.b16 %v5763, %v5762
    %v5862 = vpack.c.b16 %v5765, %v5764
    %v5863 = vpack.c.b16 %v5767, %v5766
    %v5864 = vpack.c.b16 %v5769, %v5768
    %v5865 = vpack.c.b16 %v5771, %v5770
    %v5866 = vpack.c.b16 %v5773, %v5772
    %v5867 = vpack.c.b16 %v5775, %v5774
    %v5868 = vpack.c.b16 %v5777, %v5776
    %v5869 = vpack.c.b16 %v5779, %v5778
    %v5870 = vpack.c.b16 %v5781, %v5780
    %v5871 = vpack.c.b16 %v5783, %v5782
    %v5872 = vpack.c.b16 %v5785, %v5784
    %v5873 = vpack.c.b16 %v5787, %v5786
    %v5874 = vpack.c.b16 %v5789, %v5788
    %v5875 = vpack.c.b16 %v5791, %v5790
    %v5876 = vpack.c.b16 %v5793, %v5792
    %v5877 = vpack.c.b16 %v5795, %v5794
    %v5878 = vpack.c.b16 %v5797, %v5796
    %v5879 = vpack.c.b16 %v5799, %v5798
    %v5880 = vpack.c.b16 %v5801, %v5800
    %v5881 = vpack.c.b16 %v5803, %v5802
    %v5882 = vpack.c.b16 %v5805, %v5804
    %v5883 = vpack.c.b16 %v5807, %v5806
    %v5884 = vpack.c.b16 %v5809, %v5808
    %v5885 = vpack.c.b16 %v5811, %v5810
    %v5886 = vpack.c.b16 %v5813, %v5812
    %v5887 = vpack.c.b16 %v5815, %v5814
    %v5888 = vpack.c.b16 %v5817, %v5816
    %v5889 = vpack.c.b16 %v5819, %v5818
    %v5890 = vpack.c.b16 %v5821, %v5820
    %v5891 = vpack.c.b16 %v5823, %v5822
    %v5892 = vpack.c.b16 %v5825, %v5824
    %v5893 = vpack.c.b16 %v5827, %v5826
    %v5894 = vpack.c.b16 %v5829, %v5828
    %v5895 = vpack.c.b16 %v5831, %v5830
    %5960 = vmatprep.subr.bf16.mxu0 0
    %5961 = vmatpush1.bf16.msra.mxu0 %v5839
    %5962 = vmatprep.subr.bf16.mxu0 0
    %5963 = vmatpush1.bf16.msra.mxu0 %v5838
    %5964 = vmatprep.subr.bf16.mxu0 0
    %5965 = vmatpush1.bf16.msra.mxu0 %v5837
    %5966 = vmatprep.subr.bf16.mxu0 0
    %5967 = vmatpush1.bf16.msra.mxu0 %v5836
    %5968 = vmatprep.subr.bf16.mxu0 0
    %5969 = vmatpush1.bf16.msra.mxu0 %v5835
    %5970 = vmatprep.subr.bf16.mxu0 0
    %5971 = vmatpush1.bf16.msra.mxu0 %v5834
    %5972 = vmatprep.subr.bf16.mxu0 0
    %5973 = vmatpush1.bf16.msra.mxu0 %v5833
    %5974 = vmatprep.subr.bf16.mxu0 0
    %5975 = vmatpush1.bf16.msra.mxu0 %v5832
    %5976 = vmatprep.subr.bf16.mxu0 0
    %5977 = vmatpush2.bf16.msra.mxu0 %v5847
    %5978 = vmatprep.subr.bf16.mxu0 0
    %5979 = vmatpush2.bf16.msra.mxu0 %v5846
    %5980 = vmatprep.subr.bf16.mxu0 0
    %5981 = vmatpush2.bf16.msra.mxu0 %v5845
    %5982 = vmatprep.subr.bf16.mxu0 0
    %5983 = vmatpush2.bf16.msra.mxu0 %v5844
    %5984 = vmatprep.subr.bf16.mxu0 0
    %5985 = vmatpush2.bf16.msra.mxu0 %v5843
    %5986 = vmatprep.subr.bf16.mxu0 0
    %5987 = vmatpush2.bf16.msra.mxu0 %v5842
    %5988 = vmatprep.subr.bf16.mxu0 0
    %5989 = vmatpush2.bf16.msra.mxu0 %v5841
    %5990 = vmatprep.subr.bf16.mxu0 0
    %5991 = vmatpush2.bf16.msra.mxu0 %v5840
    %5992 = vmatprep.mubr.bf16.mxu0 %v5434
    %5993 = vmatmul.mubr.bf16.gmra.mxu0 %v5433
    %v5994 = vpop.f32.mrf.mxu0
    %v5995 = vadd.f32 %v5574, %v5994
    %v5996 = vpop.f32.mrf.mxu0
    %v5997 = vpop.f32.mrf.mxu0
    %v5998 = vpop.f32.mrf.mxu0
    %5999 = vdwg.mxu0
    %6000 = vmatprep.subr.bf16.mxu0 0
    %6001 = vmatpush1.bf16.msra.mxu0 %v5855
    %6002 = vmatprep.subr.bf16.mxu0 0
    %6003 = vmatpush1.bf16.msra.mxu0 %v5854
    %6004 = vmatprep.subr.bf16.mxu0 0
    %6005 = vmatpush1.bf16.msra.mxu0 %v5853
    %6006 = vmatprep.subr.bf16.mxu0 0
    %6007 = vmatpush1.bf16.msra.mxu0 %v5852
    %6008 = vmatprep.subr.bf16.mxu0 0
    %6009 = vmatpush1.bf16.msra.mxu0 %v5851
    %6010 = vmatprep.subr.bf16.mxu0 0
    %6011 = vmatpush1.bf16.msra.mxu0 %v5850
    %6012 = vmatprep.subr.bf16.mxu0 0
    %6013 = vmatpush1.bf16.msra.mxu0 %v5849
    %6014 = vmatprep.subr.bf16.mxu0 0
    %6015 = vmatpush1.bf16.msra.mxu0 %v5848
    %6016 = vmatprep.subr.bf16.mxu0 0
    %6017 = vmatpush2.bf16.msra.mxu0 %v5863
    %6018 = vmatprep.subr.bf16.mxu0 0
    %6019 = vmatpush2.bf16.msra.mxu0 %v5862
    %6020 = vmatprep.subr.bf16.mxu0 0
    %6021 = vmatpush2.bf16.msra.mxu0 %v5861
    %6022 = vmatprep.subr.bf16.mxu0 0
    %6023 = vmatpush2.bf16.msra.mxu0 %v5860
    %6024 = vmatprep.subr.bf16.mxu0 0
    %6025 = vmatpush2.bf16.msra.mxu0 %v5859
    %6026 = vmatprep.subr.bf16.mxu0 0
    %6027 = vmatpush2.bf16.msra.mxu0 %v5858
    %6028 = vmatprep.subr.bf16.mxu0 0
    %6029 = vmatpush2.bf16.msra.mxu0 %v5857
    %6030 = vmatprep.subr.bf16.mxu0 0
    %6031 = vmatpush2.bf16.msra.mxu0 %v5856
    %6032 = vmatprep.mubr.bf16.mxu0 %v5436
    %6033 = vmatmul.mubr.bf16.gmra.mxu0 %v5435
    %v6034 = vpop.f32.mrf.mxu0
    %v6035 = vadd.f32 %v5995, %v6034
    %v6036 = vpop.f32.mrf.mxu0
    %v6037 = vpop.f32.mrf.mxu0
    %v6038 = vpop.f32.mrf.mxu0
    %6039 = vdwg.mxu0
    %6040 = vmatprep.subr.bf16.mxu0 0
    %6041 = vmatpush1.bf16.msra.mxu0 %v5871
    %6042 = vmatprep.subr.bf16.mxu0 0
    %6043 = vmatpush1.bf16.msra.mxu0 %v5870
    %6044 = vmatprep.subr.bf16.mxu0 0
    %6045 = vmatpush1.bf16.msra.mxu0 %v5869
    %6046 = vmatprep.subr.bf16.mxu0 0
    %6047 = vmatpush1.bf16.msra.mxu0 %v5868
    %6048 = vmatprep.subr.bf16.mxu0 0
    %6049 = vmatpush1.bf16.msra.mxu0 %v5867
    %6050 = vmatprep.subr.bf16.mxu0 0
    %6051 = vmatpush1.bf16.msra.mxu0 %v5866
    %6052 = vmatprep.subr.bf16.mxu0 0
    %6053 = vmatpush1.bf16.msra.mxu0 %v5865
    %6054 = vmatprep.subr.bf16.mxu0 0
    %6055 = vmatpush1.bf16.msra.mxu0 %v5864
    %6056 = vmatprep.subr.bf16.mxu0 0
    %6057 = vmatpush2.bf16.msra.mxu0 %v5879
    %6058 = vmatprep.subr.bf16.mxu0 0
    %6059 = vmatpush2.bf16.msra.mxu0 %v5878
    %6060 = vmatprep.subr.bf16.mxu0 0
    %6061 = vmatpush2.bf16.msra.mxu0 %v5877
    %6062 = vmatprep.subr.bf16.mxu0 0
    %6063 = vmatpush2.bf16.msra.mxu0 %v5876
    %6064 = vmatprep.subr.bf16.mxu0 0
    %6065 = vmatpush2.bf16.msra.mxu0 %v5875
    %6066 = vmatprep.subr.bf16.mxu0 0
    %6067 = vmatpush2.bf16.msra.mxu0 %v5874
    %6068 = vmatprep.subr.bf16.mxu0 0
    %6069 = vmatpush2.bf16.msra.mxu0 %v5873
    %6070 = vmatprep.subr.bf16.mxu0 0
    %6071 = vmatpush2.bf16.msra.mxu0 %v5872
    %6072 = vmatprep.mubr.bf16.mxu0 %v5438
    %6073 = vmatmul.mubr.bf16.gmra.mxu0 %v5437
    %v6074 = vpop.f32.mrf.mxu0
    %v6075 = vadd.f32 %v6035, %v6074
    %v6076 = vpop.f32.mrf.mxu0
    %v6077 = vpop.f32.mrf.mxu0
    %v6078 = vpop.f32.mrf.mxu0
    %6079 = vdwg.mxu0
    %6080 = vmatprep.subr.bf16.mxu0 0
    %6081 = vmatpush1.bf16.msra.mxu0 %v5887
    %6082 = vmatprep.subr.bf16.mxu0 0
    %6083 = vmatpush1.bf16.msra.mxu0 %v5886
    %6084 = vmatprep.subr.bf16.mxu0 0
    %6085 = vmatpush1.bf16.msra.mxu0 %v5885
    %6086 = vmatprep.subr.bf16.mxu0 0
    %6087 = vmatpush1.bf16.msra.mxu0 %v5884
    %6088 = vmatprep.subr.bf16.mxu0 0
    %6089 = vmatpush1.bf16.msra.mxu0 %v5883
    %6090 = vmatprep.subr.bf16.mxu0 0
    %6091 = vmatpush1.bf16.msra.mxu0 %v5882
    %6092 = vmatprep.subr.bf16.mxu0 0
    %6093 = vmatpush1.bf16.msra.mxu0 %v5881
    %6094 = vmatprep.subr.bf16.mxu0 0
    %6095 = vmatpush1.bf16.msra.mxu0 %v5880
    %6096 = vmatprep.subr.bf16.mxu0 0
    %6097 = vmatpush2.bf16.msra.mxu0 %v5895
    %6098 = vmatprep.subr.bf16.mxu0 0
    %6099 = vmatpush2.bf16.msra.mxu0 %v5894
    %6100 = vmatprep.subr.bf16.mxu0 0
    %6101 = vmatpush2.bf16.msra.mxu0 %v5893
    %6102 = vmatprep.subr.bf16.mxu0 0
    %6103 = vmatpush2.bf16.msra.mxu0 %v5892
    %6104 = vmatprep.subr.bf16.mxu0 0
    %6105 = vmatpush2.bf16.msra.mxu0 %v5891
    %6106 = vmatprep.subr.bf16.mxu0 0
    %6107 = vmatpush2.bf16.msra.mxu0 %v5890
    %6108 = vmatprep.subr.bf16.mxu0 0
    %6109 = vmatpush2.bf16.msra.mxu0 %v5889
    %6110 = vmatprep.subr.bf16.mxu0 0
    %6111 = vmatpush2.bf16.msra.mxu0 %v5888
    %6112 = vmatprep.mubr.bf16.mxu0 %v5440
    %6113 = vmatmul.mubr.bf16.gmra.mxu0 %v5439
    %v6114 = vpop.f32.mrf.mxu0
    %v6115 = vadd.f32 %v6075, %v6114
    %v6116 = vpop.f32.mrf.mxu0
    %v6117 = vpop.f32.mrf.mxu0
    %v6118 = vpop.f32.mrf.mxu0
    %6119 = vdwg.mxu0
    %v6120 = vsub.f32 0.0, %v6115
    %v6121 = vmul.f32 %v6120, 1.442695
    %v6122 = vpow.pop %v6121
    %v6123 = vadd.f32 %v6122, 1.0
    %v6124 = vrcp.pop %v6123
    %vm6125 = vcmask 1024
    %6126 = vst.msk [vmem:[%s95] sm:$0x3] %vm6125, %v6124
    // Predicated region
    $region210: #{tpu_custom_call.1} parent=1 // pred_check
      _
    $region211: #{tpu_custom_call.1} parent=1 // pred_check_branch
      %6128 = sbr.rel (0) target = $region213
    $region212: #{tpu_custom_call.1} parent=1 // pred_region
      _
    $region213: #{tpu_custom_call.1} parent=1 // pred_fallthru
      _
    // Predicated region
    $region214: #{tpu_custom_call.1} parent=1 // pred_check
      _
    $region215: #{tpu_custom_call.1} parent=1 // pred_check_branch
      %6130 = sbr.rel (0) target = $region217
    $region216: #{tpu_custom_call.1} parent=1 // pred_region
      _
    $region217: #{tpu_custom_call.1} parent=1 // pred_fallthru
      _
    %6131 = vsyncpa [#allocation4], 1
    %6132 = vsyncpa [#allocation6], 1
    %6133 = vsyncpa [#allocation9], 1

</llo_original>
